<compile_context>
chip_gen: v7x
topology: tpu7x:2x2x1
jax: 0.10.0
libtpu: 0.0.40
codegen_flags: <defaults>
</compile_context>

<pallas_src>
import math
import numpy as np

import jax
import jax.numpy as jnp
from jax import lax
from jax.experimental import pallas as pl
from jax.experimental.pallas import tpu as pltpu


# ----------------------------- fused Pallas kernel -------------------------- #

def up_fused_kernel(x1_ref, x2_ref, ufull_ref,
                    w1_ref, w2_ref,
                    g1_ref, b1_ref, g2_ref, b2_ref,
                    wfc1_ref, wfc2_ref, wsa_ref,
                    o_ref,
                    xp1_ref, xp2_ref, sap_ref):
    f32 = jnp.float32
    bf16 = jnp.bfloat16
    N, H, W, C2 = x2_ref.shape
    Ccat = xp1_ref.shape[-1]                       # C2 + C1 (concat channels)
    C1 = Ccat - C2
    Cmid = xp2_ref.shape[-1]
    Cout = w2_ref.shape[1]
    Wp = W + 6
    HW = H * W
    M = N * HW
    eps = 1e-5

    # ---- 1/2. bilinear upsample (+F.pad) of x1; concat(x2, x1u) materialized
    # only as the channel layout of one zero-padded VMEM scratch.
    xp1_ref[...] = jnp.zeros(xp1_ref.shape, f32)
    xp1_ref[:, 1:1 + H, 1:1 + W, :C2] = x2_ref[...]
    # one matmul for the whole batch: (H*W, Hin*Win) @ (Hin*Win, N*C1)
    x1u = jnp.dot(ufull_ref[...], x1_ref[...], preferred_element_type=f32)
    for n in range(N):                                         # N tiny -> unrolled
        xp1_ref[n, 1:1 + H, 1:1 + W, C2:] = (
            x1u[:, n * C1:(n + 1) * C1].reshape(H, W, C1))

    # ---- 3. conv1 via full-batch im2col -> one MXU matmul (bf16, f32 acc).
    def im2col(xp_ref, c):
        cols = [xp_ref[:, dy:dy + H, dx:dx + W, :].reshape(M, c).astype(bf16)
                for dy in range(3) for dx in range(3)]
        return jnp.concatenate(cols, axis=-1)                  # (M, 9*c)

    y1 = jnp.dot(im2col(xp1_ref, Ccat), w1_ref[...],
                 preferred_element_type=f32)                   # (M, Cmid)

    # ---- 4. BN1 (training-mode batch stats, biased var) + ReLU (f32).
    mean1 = jnp.mean(y1, axis=0, keepdims=True)
    var1 = jnp.mean(jnp.square(y1 - mean1), axis=0, keepdims=True)
    scale1 = g1_ref[...] * lax.rsqrt(var1 + eps)
    shift1 = b1_ref[...] - mean1 * scale1
    z1 = jnp.maximum(y1 * scale1 + shift1, 0.0)

    # ---- 5. conv2 via im2col.
    xp2_ref[...] = jnp.zeros(xp2_ref.shape, f32)
    xp2_ref[:, 1:1 + H, 1:1 + W, :] = z1.reshape(N, H, W, Cmid)
    y2 = jnp.dot(im2col(xp2_ref, Cmid), w2_ref[...],
                 preferred_element_type=f32)                   # (M, Cout)

    # ---- 6. BN2 + ReLU.
    mean2 = jnp.mean(y2, axis=0, keepdims=True)
    var2 = jnp.mean(jnp.square(y2 - mean2), axis=0, keepdims=True)
    scale2 = g2_ref[...] * lax.rsqrt(var2 + eps)
    shift2 = b2_ref[...] - mean2 * scale2
    z2 = jnp.maximum(y2 * scale2 + shift2, 0.0)                # (M, Cout)

    # ---- 7. Channel attention (avg & max pooled rows share one MLP pass).
    z2n = z2.reshape(N, HW, Cout)
    pooled = jnp.concatenate([jnp.mean(z2n, axis=1),
                              jnp.max(z2n, axis=1)], axis=0)   # (2N, Cout)
    hfc = jnp.maximum(jnp.dot(pooled, wfc1_ref[...],
                              preferred_element_type=f32), 0.0)
    mlp = jnp.dot(hfc, wfc2_ref[...], preferred_element_type=f32)  # (2N, Cout)
    ca = jax.nn.sigmoid(mlp[:N] + mlp[N:])                         # (N, Cout)
    z2c = z2n.reshape(N, H, W, Cout) * ca.reshape(N, 1, 1, Cout)

    # ---- 8. Spatial attention: 7x7 conv as 7 banded matmuls over the two
    # pooled maps laid side by side on the lane axis of one padded scratch.
    sap_ref[...] = jnp.zeros(sap_ref.shape, f32)
    sap_ref[:, 3:3 + H, 3:3 + W] = jnp.mean(z2c, axis=-1)            # avg map
    sap_ref[:, 3:3 + H, Wp + 3:Wp + 3 + W] = jnp.max(z2c, axis=-1)   # max map
    sa_acc = jnp.zeros((N * H, W), f32)
    for dy in range(7):
        rows = sap_ref[:, dy:dy + H, :].reshape(N * H, 2 * Wp)
        sa_acc = sa_acc + jnp.dot(rows, wsa_ref[dy],
                                  preferred_element_type=f32)
    sa = jax.nn.sigmoid(sa_acc).reshape(N, H, W, 1)

    # ---- 9. final scale & store.
    o_ref[...] = (z2c * sa).reshape(M, Cout)


# ----------------------------- wrapper --------------------------------------- #

def bilinear_matrix(n_in, n_out):
    """1-D bilinear-resize matrix, align_corners=True."""
    m = np.zeros((n_out, n_in), np.float32)
    if n_out == 1 or n_in == 1:
        m[:, 0] = 1.0
        return m
    scale = (n_in - 1) / (n_out - 1)
    for i in range(n_out):
        s = i * scale
        i0 = int(math.floor(s))
        i1 = min(i0 + 1, n_in - 1)
        f = s - i0
        m[i, i0] += 1.0 - f
        m[i, i1] += f
    return m


def upsample_pad_matrix(n_in, n_up, n_final, pad_before):
    """Bilinear-upsample matrix with torch-F.pad zero rows folded in."""
    base = bilinear_matrix(n_in, n_up)
    m = np.zeros((n_final, n_in), np.float32)
    for r in range(n_final):
        s = r - pad_before
        if 0 <= s < n_up:
            m[r] = base[s]
    return m


def up_forward(p, x1, x2):
    """Equivalent of Up.forward(x1, x2).  x1, x2, output: NCHW float32."""
    N, C1, Hin, Win = x1.shape
    _, C2, H, W = x2.shape
    Ccat = C2 + C1
    Cmid = p["w_conv1"].shape[0]
    Cout = p["w_conv2"].shape[0]
    Cr = p["w_fc1"].shape[0]
    Wp = W + 6

    # Combined bilinear-upsample (align_corners=True) + F.pad matrix (static).
    Hup, Wup = 2 * Hin, 2 * Win
    uh = upsample_pad_matrix(Hin, Hup, H, (H - Hup) // 2)
    uw = upsample_pad_matrix(Win, Wup, W, (W - Wup) // 2)
    ufull = jnp.asarray(np.kron(uh, uw))                     # (H*W, Hin*Win)

    # x1 as (Hin*Win, N*C1): one upsample matmul for the whole batch.
    x1s = jnp.transpose(x1, (2, 3, 0, 1)).reshape(Hin * Win, N * C1)
    # x2 in NHWC (channels on the lane axis).
    x2s = jnp.transpose(x2, (0, 2, 3, 1))

    # Conv weights in im2col layout (9*Cin, Cout), K order = (dy, dx, cin),
    # cin order = [x2 channels, x1 channels] matching torch.cat([x2, x1]).
    def im2col_w(w):
        cout, cin = w.shape[0], w.shape[1]
        return jnp.transpose(w, (2, 3, 1, 0)).reshape(9 * cin, cout)

    w1c = im2col_w(p["w_conv1"]).astype(jnp.bfloat16)        # (9*Ccat, Cmid)
    w2c = im2col_w(p["w_conv2"]).astype(jnp.bfloat16)        # (9*Cmid, Cout)

    g1 = p["gamma1"].reshape(1, Cmid)
    b1 = p["beta1"].reshape(1, Cmid)
    g2 = p["gamma2"].reshape(1, Cout)
    b2 = p["beta2"].reshape(1, Cout)
    wfc1 = jnp.transpose(p["w_fc1"][:, :, 0, 0])             # (Cout, Cr)
    wfc2 = jnp.transpose(p["w_fc2"][:, :, 0, 0])             # (Cr, Cout)

    # Banded 7x7 spatial-attention weights, both input maps merged on the
    # contracting axis: wsa[dy, m*Wp + p, w] = sum_dx k[m,dy,dx]*[p == w+dx].
    shift_eye = np.zeros((7, Wp, W), np.float32)
    for dx in range(7):
        shift_eye[dx, dx:dx + W, :] = np.eye(W, dtype=np.float32)
    wsa = jnp.einsum("myx,xpw->ympw", p["w_sa"][0],
                     jnp.asarray(shift_eye)).reshape(7, 2 * Wp, W)

    out = pl.pallas_call(
        up_fused_kernel,
        out_shape=jax.ShapeDtypeStruct((N * H * W, Cout), jnp.float32),
        grid=(1,),
        in_specs=[
            pl.BlockSpec((Hin * Win, N * C1), lambda i: (0, 0)),
            pl.BlockSpec((N, H, W, C2), lambda i: (0, 0, 0, 0)),
            pl.BlockSpec((H * W, Hin * Win), lambda i: (0, 0)),
            pl.BlockSpec((9 * Ccat, Cmid), lambda i: (0, 0)),
            pl.BlockSpec((9 * Cmid, Cout), lambda i: (0, 0)),
            pl.BlockSpec((1, Cmid), lambda i: (0, 0)),
            pl.BlockSpec((1, Cmid), lambda i: (0, 0)),
            pl.BlockSpec((1, Cout), lambda i: (0, 0)),
            pl.BlockSpec((1, Cout), lambda i: (0, 0)),
            pl.BlockSpec((Cout, Cr), lambda i: (0, 0)),
            pl.BlockSpec((Cr, Cout), lambda i: (0, 0)),
            pl.BlockSpec((7, 2 * Wp, W), lambda i: (0, 0, 0)),
        ],
        out_specs=pl.BlockSpec((N * H * W, Cout), lambda i: (0, 0)),
        scratch_shapes=[
            pltpu.VMEM((N, H + 2, W + 2, Ccat), jnp.float32),  # padded concat input
            pltpu.VMEM((N, H + 2, W + 2, Cmid), jnp.float32),  # padded conv2 input
            pltpu.VMEM((N, H + 6, 2 * Wp), jnp.float32),       # padded SA maps (avg|max)
        ],
        compiler_params=pltpu.CompilerParams(
            dimension_semantics=("arbitrary",)),
    )(x1s, x2s, ufull, w1c, w2c, g1, b1, g2, b2, wfc1, wfc2, wsa)

    return jnp.transpose(out.reshape(N, H, W, Cout), (0, 3, 1, 2))   # NCHW


def init_params(key, in_channels, out_channels, ratio=16):
    mid = out_channels
    cr = out_channels // ratio
    ks = jax.random.split(key, 9)
    p = {}
    p["w_conv1"] = 0.05 * jax.random.normal(ks[0], (mid, in_channels, 3, 3), jnp.float32)
    p["gamma1"] = 1.0 + 0.01 * jax.random.normal(ks[1], (mid,), jnp.float32)
    p["beta1"] = 0.01 * jax.random.normal(ks[2], (mid,), jnp.float32)
    p["w_conv2"] = 0.05 * jax.random.normal(ks[3], (out_channels, mid, 3, 3), jnp.float32)
    p["gamma2"] = 1.0 + 0.01 * jax.random.normal(ks[4], (out_channels,), jnp.float32)
    p["beta2"] = 0.01 * jax.random.normal(ks[5], (out_channels,), jnp.float32)
    p["w_fc1"] = 0.1 * jax.random.normal(ks[6], (cr, out_channels, 1, 1), jnp.float32)
    p["w_fc2"] = 0.1 * jax.random.normal(ks[7], (out_channels, cr, 1, 1), jnp.float32)
    p["w_sa"] = 0.1 * jax.random.normal(ks[8], (1, 2, 7, 7), jnp.float32)
    return p


# ----------------------------- main ------------------------------------------ #

if __name__ == "__main__":
    key = jax.random.PRNGKey(0)
    k1, k2, kp = jax.random.split(key, 3)

    N = 2
    C1, C2 = 32, 32                 # x1 (decoder) / x2 (skip) channels
    Hin, Win = 8, 8                 # x1 spatial (upsampled 2x -> 16x16)
    H, W = 16, 16                   # x2 spatial
    in_channels = C1 + C2           # Up(in_channels=64, out_channels=32)
    out_channels = 32

    x1 = jax.random.normal(k1, (N, C1, Hin, Win), jnp.float32)
    x2 = jax.random.normal(k2, (N, C2, H, W), jnp.float32)
    params = init_params(kp, in_channels, out_channels)

    y = jax.jit(up_forward)(params, x1, x2)
    jax.block_until_ready(y)
    assert y.shape == (N, out_channels, H, W), y.shape
    assert bool(jnp.all(jnp.isfinite(y)))
    print("KERNEL_OK")
</pallas_src>

<mosaic_0001>
module attributes {stable_mosaic.version = 11 : i64} {
  func.func @up_fused_kernel(%arg0: i32, %arg1: memref<64x64xf32, #tpu.memory_space<vmem>>, %arg2: memref<2x16x16x32xf32, #tpu.memory_space<vmem>>, %arg3: memref<256x64xf32, #tpu.memory_space<vmem>>, %arg4: memref<576x32xbf16, #tpu.memory_space<vmem>>, %arg5: memref<288x32xbf16, #tpu.memory_space<vmem>>, %arg6: memref<1x32xf32, #tpu.memory_space<vmem>>, %arg7: memref<1x32xf32, #tpu.memory_space<vmem>>, %arg8: memref<1x32xf32, #tpu.memory_space<vmem>>, %arg9: memref<1x32xf32, #tpu.memory_space<vmem>>, %arg10: memref<32x2xf32, #tpu.memory_space<vmem>>, %arg11: memref<2x32xf32, #tpu.memory_space<vmem>>, %arg12: memref<7x44x16xf32, #tpu.memory_space<vmem>>, %arg13: memref<512x32xf32, #tpu.memory_space<vmem>>, %arg14: memref<2x18x18x64xf32, #tpu.memory_space<vmem>>, %arg15: memref<2x18x18x32xf32, #tpu.memory_space<vmem>>, %arg16: memref<2x22x44xf32, #tpu.memory_space<vmem>>) attributes {dimension_semantics = [#tpu.dimension_semantics<arbitrary>], iteration_bounds = array<i64: 1>, scalar_prefetch = 0 : i64, scratch_operands = 3 : i64, tpu.core_type = #tpu.core_type<tc>, window_params = [{pipeline_mode = #tpu.pipeline_mode<synchronous>, transform_indices = @transform_0, window_bounds = array<i64: 64, 64>}, {pipeline_mode = #tpu.pipeline_mode<synchronous>, transform_indices = @transform_1, window_bounds = array<i64: 2, 16, 16, 32>}, {pipeline_mode = #tpu.pipeline_mode<synchronous>, transform_indices = @transform_2, window_bounds = array<i64: 256, 64>}, {pipeline_mode = #tpu.pipeline_mode<synchronous>, transform_indices = @transform_3, window_bounds = array<i64: 576, 32>}, {pipeline_mode = #tpu.pipeline_mode<synchronous>, transform_indices = @transform_4, window_bounds = array<i64: 288, 32>}, {pipeline_mode = #tpu.pipeline_mode<synchronous>, transform_indices = @transform_5, window_bounds = array<i64: 1, 32>}, {pipeline_mode = #tpu.pipeline_mode<synchronous>, transform_indices = @transform_6, window_bounds = array<i64: 1, 32>}, {pipeline_mode = #tpu.pipeline_mode<synchronous>, transform_indices = @transform_7, window_bounds = array<i64: 1, 32>}, {pipeline_mode = #tpu.pipeline_mode<synchronous>, transform_indices = @transform_8, window_bounds = array<i64: 1, 32>}, {pipeline_mode = #tpu.pipeline_mode<synchronous>, transform_indices = @transform_9, window_bounds = array<i64: 32, 2>}, {pipeline_mode = #tpu.pipeline_mode<synchronous>, transform_indices = @transform_10, window_bounds = array<i64: 2, 32>}, {pipeline_mode = #tpu.pipeline_mode<synchronous>, transform_indices = @transform_11, window_bounds = array<i64: 7, 44, 16>}, {pipeline_mode = #tpu.pipeline_mode<synchronous>, transform_indices = @transform_12, window_bounds = array<i64: 512, 32>}]} {
    %cst = arith.constant 0.000000e+00 : f32
    %0 = vector.broadcast %cst : f32 to vector<2x18x18x64xf32>
    %c0 = arith.constant 0 : index
    %c0_0 = arith.constant 0 : index
    %c0_1 = arith.constant 0 : index
    %c0_2 = arith.constant 0 : index
    %1 = vector.load %arg14[%c0, %c0_0, %c0_1, %c0_2] : memref<2x18x18x64xf32, #tpu.memory_space<vmem>>, vector<2x18x18x64xf32>
    tpu.vector_store %arg14[%c0, %c0_0, %c0_1, %c0_2], %0 {strides = array<i32>} : memref<2x18x18x64xf32, #tpu.memory_space<vmem>>, vector<2x18x18x64xf32>,
    %c0_3 = arith.constant 0 : index
    %c0_4 = arith.constant 0 : index
    %c0_5 = arith.constant 0 : index
    %c0_6 = arith.constant 0 : index
    %2 = vector.load %arg2[%c0_3, %c0_4, %c0_5, %c0_6] : memref<2x16x16x32xf32, #tpu.memory_space<vmem>>, vector<2x16x16x32xf32>
    %c0_7 = arith.constant 0 : index
    %c1 = arith.constant 1 : index
    %c1_8 = arith.constant 1 : index
    %c0_9 = arith.constant 0 : index
    %3 = vector.load %arg14[%c0_7, %c1, %c1_8, %c0_9] : memref<2x18x18x64xf32, #tpu.memory_space<vmem>>, vector<2x16x16x32xf32>
    tpu.vector_store %arg14[%c0_7, %c1, %c1_8, %c0_9], %2 {strides = array<i32>} : memref<2x18x18x64xf32, #tpu.memory_space<vmem>>, vector<2x16x16x32xf32>,
    %c0_10 = arith.constant 0 : index
    %c0_11 = arith.constant 0 : index
    %4 = vector.load %arg3[%c0_10, %c0_11] : memref<256x64xf32, #tpu.memory_space<vmem>>, vector<256x64xf32>
    %c0_12 = arith.constant 0 : index
    %c0_13 = arith.constant 0 : index
    %5 = vector.load %arg1[%c0_12, %c0_13] : memref<64x64xf32, #tpu.memory_space<vmem>>, vector<64x64xf32>
    %cst_14 = arith.constant dense<0.000000e+00> : vector<256x64xf32>
    %6 = tpu.matmul %4, %5, %cst_14 {dimension_numbers = #tpu.dot_dimension_numbers<[1], [0], [0], [1], [0, 0, 1, 1], [], []>} : vector<256x64xf32>, vector<64x64xf32>, vector<256x64xf32> -> vector<256x64xf32>
    %7 = vector.extract_strided_slice %6 {offsets = [0, 0], sizes = [256, 32], strides = [1, 1]} : vector<256x64xf32> to vector<256x32xf32>
    %8 = vector.shape_cast %7 : vector<256x32xf32> to vector<16x16x32xf32>
    %c0_15 = arith.constant 0 : index
    %c1_16 = arith.constant 1 : index
    %c1_17 = arith.constant 1 : index
    %c32 = arith.constant 32 : index
    %9 = vector.load %arg14[%c0_15, %c1_16, %c1_17, %c32] : memref<2x18x18x64xf32, #tpu.memory_space<vmem>>, vector<1x16x16x32xf32>
    %10 = vector.shape_cast %9 : vector<1x16x16x32xf32> to vector<16x16x32xf32>
    %11 = vector.shape_cast %8 : vector<16x16x32xf32> to vector<1x16x16x32xf32>
    tpu.vector_store %arg14[%c0_15, %c1_16, %c1_17, %c32], %11 {strides = array<i32>} : memref<2x18x18x64xf32, #tpu.memory_space<vmem>>, vector<1x16x16x32xf32>,
    %12 = vector.extract_strided_slice %6 {offsets = [0, 32], sizes = [256, 32], strides = [1, 1]} : vector<256x64xf32> to vector<256x32xf32>
    %13 = vector.shape_cast %12 : vector<256x32xf32> to vector<16x16x32xf32>
    %c1_18 = arith.constant 1 : index
    %c1_19 = arith.constant 1 : index
    %c1_20 = arith.constant 1 : index
    %c32_21 = arith.constant 32 : index
    %14 = vector.load %arg14[%c1_18, %c1_19, %c1_20, %c32_21] : memref<2x18x18x64xf32, #tpu.memory_space<vmem>>, vector<1x16x16x32xf32>
    %15 = vector.shape_cast %14 : vector<1x16x16x32xf32> to vector<16x16x32xf32>
    %16 = vector.shape_cast %13 : vector<16x16x32xf32> to vector<1x16x16x32xf32>
    tpu.vector_store %arg14[%c1_18, %c1_19, %c1_20, %c32_21], %16 {strides = array<i32>} : memref<2x18x18x64xf32, #tpu.memory_space<vmem>>, vector<1x16x16x32xf32>,
    %c0_22 = arith.constant 0 : index
    %c0_23 = arith.constant 0 : index
    %c0_24 = arith.constant 0 : index
    %c0_25 = arith.constant 0 : index
    %17 = vector.load %arg14[%c0_22, %c0_23, %c0_24, %c0_25] : memref<2x18x18x64xf32, #tpu.memory_space<vmem>>, vector<2x16x16x64xf32>
    %18 = vector.shape_cast %17 : vector<2x16x16x64xf32> to vector<512x64xf32>
    %19 = arith.truncf %18 : vector<512x64xf32> to vector<512x64xbf16>
    %c0_26 = arith.constant 0 : index
    %c0_27 = arith.constant 0 : index
    %c1_28 = arith.constant 1 : index
    %c0_29 = arith.constant 0 : index
    %20 = vector.load %arg14[%c0_26, %c0_27, %c1_28, %c0_29] : memref<2x18x18x64xf32, #tpu.memory_space<vmem>>, vector<2x16x16x64xf32>
    %21 = vector.shape_cast %20 : vector<2x16x16x64xf32> to vector<512x64xf32>
    %22 = arith.truncf %21 : vector<512x64xf32> to vector<512x64xbf16>
    %c0_30 = arith.constant 0 : index
    %c0_31 = arith.constant 0 : index
    %c2 = arith.constant 2 : index
    %c0_32 = arith.constant 0 : index
    %23 = vector.load %arg14[%c0_30, %c0_31, %c2, %c0_32] : memref<2x18x18x64xf32, #tpu.memory_space<vmem>>, vector<2x16x16x64xf32>
    %24 = vector.shape_cast %23 : vector<2x16x16x64xf32> to vector<512x64xf32>
    %25 = arith.truncf %24 : vector<512x64xf32> to vector<512x64xbf16>
    %c0_33 = arith.constant 0 : index
    %c1_34 = arith.constant 1 : index
    %c0_35 = arith.constant 0 : index
    %c0_36 = arith.constant 0 : index
    %26 = vector.load %arg14[%c0_33, %c1_34, %c0_35, %c0_36] : memref<2x18x18x64xf32, #tpu.memory_space<vmem>>, vector<2x16x16x64xf32>
    %27 = vector.shape_cast %26 : vector<2x16x16x64xf32> to vector<512x64xf32>
    %28 = arith.truncf %27 : vector<512x64xf32> to vector<512x64xbf16>
    %c0_37 = arith.constant 0 : index
    %c1_38 = arith.constant 1 : index
    %c1_39 = arith.constant 1 : index
    %c0_40 = arith.constant 0 : index
    %29 = vector.load %arg14[%c0_37, %c1_38, %c1_39, %c0_40] : memref<2x18x18x64xf32, #tpu.memory_space<vmem>>, vector<2x16x16x64xf32>
    %30 = vector.shape_cast %29 : vector<2x16x16x64xf32> to vector<512x64xf32>
    %31 = arith.truncf %30 : vector<512x64xf32> to vector<512x64xbf16>
    %c0_41 = arith.constant 0 : index
    %c1_42 = arith.constant 1 : index
    %c2_43 = arith.constant 2 : index
    %c0_44 = arith.constant 0 : index
    %32 = vector.load %arg14[%c0_41, %c1_42, %c2_43, %c0_44] : memref<2x18x18x64xf32, #tpu.memory_space<vmem>>, vector<2x16x16x64xf32>
    %33 = vector.shape_cast %32 : vector<2x16x16x64xf32> to vector<512x64xf32>
    %34 = arith.truncf %33 : vector<512x64xf32> to vector<512x64xbf16>
    %c0_45 = arith.constant 0 : index
    %c2_46 = arith.constant 2 : index
    %c0_47 = arith.constant 0 : index
    %c0_48 = arith.constant 0 : index
    %35 = vector.load %arg14[%c0_45, %c2_46, %c0_47, %c0_48] : memref<2x18x18x64xf32, #tpu.memory_space<vmem>>, vector<2x16x16x64xf32>
    %36 = vector.shape_cast %35 : vector<2x16x16x64xf32> to vector<512x64xf32>
    %37 = arith.truncf %36 : vector<512x64xf32> to vector<512x64xbf16>
    %c0_49 = arith.constant 0 : index
    %c2_50 = arith.constant 2 : index
    %c1_51 = arith.constant 1 : index
    %c0_52 = arith.constant 0 : index
    %38 = vector.load %arg14[%c0_49, %c2_50, %c1_51, %c0_52] : memref<2x18x18x64xf32, #tpu.memory_space<vmem>>, vector<2x16x16x64xf32>
    %39 = vector.shape_cast %38 : vector<2x16x16x64xf32> to vector<512x64xf32>
    %40 = arith.truncf %39 : vector<512x64xf32> to vector<512x64xbf16>
    %c0_53 = arith.constant 0 : index
    %c2_54 = arith.constant 2 : index
    %c2_55 = arith.constant 2 : index
    %c0_56 = arith.constant 0 : index
    %41 = vector.load %arg14[%c0_53, %c2_54, %c2_55, %c0_56] : memref<2x18x18x64xf32, #tpu.memory_space<vmem>>, vector<2x16x16x64xf32>
    %42 = vector.shape_cast %41 : vector<2x16x16x64xf32> to vector<512x64xf32>
    %43 = arith.truncf %42 : vector<512x64xf32> to vector<512x64xbf16>
    %44 = tpu.concatenate %19, %22, %25, %28, %31, %34, %37, %40, %43 in 1 : vector<512x64xbf16>, vector<512x64xbf16>, vector<512x64xbf16>, vector<512x64xbf16>, vector<512x64xbf16>, vector<512x64xbf16>, vector<512x64xbf16>, vector<512x64xbf16>, vector<512x64xbf16> -> vector<512x576xbf16>
    %c0_57 = arith.constant 0 : index
    %c0_58 = arith.constant 0 : index
    %45 = vector.load %arg4[%c0_57, %c0_58] : memref<576x32xbf16, #tpu.memory_space<vmem>>, vector<576x32xbf16>
    %cst_59 = arith.constant dense<0.000000e+00> : vector<512x32xf32>
    %46 = tpu.matmul %44, %45, %cst_59 {dimension_numbers = #tpu.dot_dimension_numbers<[1], [0], [0], [1], [0, 0, 1, 1], [], []>} : vector<512x576xbf16>, vector<576x32xbf16>, vector<512x32xf32> -> vector<512x32xf32>
    %cst_60 = arith.constant dense<0.000000e+00> : vector<32xf32>
    %47 = vector.multi_reduction <add>, %46, %cst_60 [0] : vector<512x32xf32> to vector<32xf32>
    %48 = vector.shape_cast %47 : vector<32xf32> to vector<1x32xf32>
    %cst_61 = arith.constant 5.120000e+02 : f32
    %49 = vector.broadcast %cst_61 : f32 to vector<1x32xf32>
    %50 = arith.divf %48, %49 : vector<1x32xf32>
    %51 = vector.broadcast %50 : vector<1x32xf32> to vector<512x32xf32>
    %52 = arith.subf %46, %51 : vector<512x32xf32>
    %53 = arith.mulf %52, %52 : vector<512x32xf32>
    %cst_62 = arith.constant dense<0.000000e+00> : vector<32xf32>
    %54 = vector.multi_reduction <add>, %53, %cst_62 [0] : vector<512x32xf32> to vector<32xf32>
    %55 = vector.shape_cast %54 : vector<32xf32> to vector<1x32xf32>
    %cst_63 = arith.constant 5.120000e+02 : f32
    %56 = vector.broadcast %cst_63 : f32 to vector<1x32xf32>
    %57 = arith.divf %55, %56 : vector<1x32xf32>
    %c0_64 = arith.constant 0 : index
    %c0_65 = arith.constant 0 : index
    %58 = vector.load %arg6[%c0_64, %c0_65] : memref<1x32xf32, #tpu.memory_space<vmem>>, vector<1x32xf32>
    %cst_66 = arith.constant 9.99999974E-6 : f32
    %59 = vector.broadcast %cst_66 : f32 to vector<1x32xf32>
    %60 = arith.addf %57, %59 : vector<1x32xf32>
    %61 = math.rsqrt %60 : vector<1x32xf32>
    %62 = arith.mulf %58, %61 : vector<1x32xf32>
    %c0_67 = arith.constant 0 : index
    %c0_68 = arith.constant 0 : index
    %63 = vector.load %arg7[%c0_67, %c0_68] : memref<1x32xf32, #tpu.memory_space<vmem>>, vector<1x32xf32>
    %64 = arith.mulf %50, %62 : vector<1x32xf32>
    %65 = arith.subf %63, %64 : vector<1x32xf32>
    %66 = vector.broadcast %62 : vector<1x32xf32> to vector<512x32xf32>
    %67 = arith.mulf %46, %66 : vector<512x32xf32>
    %68 = vector.broadcast %65 : vector<1x32xf32> to vector<512x32xf32>
    %69 = arith.addf %67, %68 : vector<512x32xf32>
    %cst_69 = arith.constant 0.000000e+00 : f32
    %70 = vector.broadcast %cst_69 : f32 to vector<512x32xf32>
    %71 = arith.maximumf %69, %70 : vector<512x32xf32>
    %cst_70 = arith.constant 0.000000e+00 : f32
    %72 = vector.broadcast %cst_70 : f32 to vector<2x18x18x32xf32>
    %c0_71 = arith.constant 0 : index
    %c0_72 = arith.constant 0 : index
    %c0_73 = arith.constant 0 : index
    %c0_74 = arith.constant 0 : index
    %73 = vector.load %arg15[%c0_71, %c0_72, %c0_73, %c0_74] : memref<2x18x18x32xf32, #tpu.memory_space<vmem>>, vector<2x18x18x32xf32>
    tpu.vector_store %arg15[%c0_71, %c0_72, %c0_73, %c0_74], %72 {strides = array<i32>} : memref<2x18x18x32xf32, #tpu.memory_space<vmem>>, vector<2x18x18x32xf32>,
    %74 = vector.shape_cast %71 : vector<512x32xf32> to vector<2x16x16x32xf32>
    %c0_75 = arith.constant 0 : index
    %c1_76 = arith.constant 1 : index
    %c1_77 = arith.constant 1 : index
    %c0_78 = arith.constant 0 : index
    %75 = vector.load %arg15[%c0_75, %c1_76, %c1_77, %c0_78] : memref<2x18x18x32xf32, #tpu.memory_space<vmem>>, vector<2x16x16x32xf32>
    tpu.vector_store %arg15[%c0_75, %c1_76, %c1_77, %c0_78], %74 {strides = array<i32>} : memref<2x18x18x32xf32, #tpu.memory_space<vmem>>, vector<2x16x16x32xf32>,
    %c0_79 = arith.constant 0 : index
    %c0_80 = arith.constant 0 : index
    %c0_81 = arith.constant 0 : index
    %c0_82 = arith.constant 0 : index
    %76 = vector.load %arg15[%c0_79, %c0_80, %c0_81, %c0_82] : memref<2x18x18x32xf32, #tpu.memory_space<vmem>>, vector<2x16x16x32xf32>
    %77 = vector.shape_cast %76 : vector<2x16x16x32xf32> to vector<512x32xf32>
    %78 = arith.truncf %77 : vector<512x32xf32> to vector<512x32xbf16>
    %c0_83 = arith.constant 0 : index
    %c0_84 = arith.constant 0 : index
    %c1_85 = arith.constant 1 : index
    %c0_86 = arith.constant 0 : index
    %79 = vector.load %arg15[%c0_83, %c0_84, %c1_85, %c0_86] : memref<2x18x18x32xf32, #tpu.memory_space<vmem>>, vector<2x16x16x32xf32>
    %80 = vector.shape_cast %79 : vector<2x16x16x32xf32> to vector<512x32xf32>
    %81 = arith.truncf %80 : vector<512x32xf32> to vector<512x32xbf16>
    %c0_87 = arith.constant 0 : index
    %c0_88 = arith.constant 0 : index
    %c2_89 = arith.constant 2 : index
    %c0_90 = arith.constant 0 : index
    %82 = vector.load %arg15[%c0_87, %c0_88, %c2_89, %c0_90] : memref<2x18x18x32xf32, #tpu.memory_space<vmem>>, vector<2x16x16x32xf32>
    %83 = vector.shape_cast %82 : vector<2x16x16x32xf32> to vector<512x32xf32>
    %84 = arith.truncf %83 : vector<512x32xf32> to vector<512x32xbf16>
    %c0_91 = arith.constant 0 : index
    %c1_92 = arith.constant 1 : index
    %c0_93 = arith.constant 0 : index
    %c0_94 = arith.constant 0 : index
    %85 = vector.load %arg15[%c0_91, %c1_92, %c0_93, %c0_94] : memref<2x18x18x32xf32, #tpu.memory_space<vmem>>, vector<2x16x16x32xf32>
    %86 = vector.shape_cast %85 : vector<2x16x16x32xf32> to vector<512x32xf32>
    %87 = arith.truncf %86 : vector<512x32xf32> to vector<512x32xbf16>
    %c0_95 = arith.constant 0 : index
    %c1_96 = arith.constant 1 : index
    %c1_97 = arith.constant 1 : index
    %c0_98 = arith.constant 0 : index
    %88 = vector.load %arg15[%c0_95, %c1_96, %c1_97, %c0_98] : memref<2x18x18x32xf32, #tpu.memory_space<vmem>>, vector<2x16x16x32xf32>
    %89 = vector.shape_cast %88 : vector<2x16x16x32xf32> to vector<512x32xf32>
    %90 = arith.truncf %89 : vector<512x32xf32> to vector<512x32xbf16>
    %c0_99 = arith.constant 0 : index
    %c1_100 = arith.constant 1 : index
    %c2_101 = arith.constant 2 : index
    %c0_102 = arith.constant 0 : index
    %91 = vector.load %arg15[%c0_99, %c1_100, %c2_101, %c0_102] : memref<2x18x18x32xf32, #tpu.memory_space<vmem>>, vector<2x16x16x32xf32>
    %92 = vector.shape_cast %91 : vector<2x16x16x32xf32> to vector<512x32xf32>
    %93 = arith.truncf %92 : vector<512x32xf32> to vector<512x32xbf16>
    %c0_103 = arith.constant 0 : index
    %c2_104 = arith.constant 2 : index
    %c0_105 = arith.constant 0 : index
    %c0_106 = arith.constant 0 : index
    %94 = vector.load %arg15[%c0_103, %c2_104, %c0_105, %c0_106] : memref<2x18x18x32xf32, #tpu.memory_space<vmem>>, vector<2x16x16x32xf32>
    %95 = vector.shape_cast %94 : vector<2x16x16x32xf32> to vector<512x32xf32>
    %96 = arith.truncf %95 : vector<512x32xf32> to vector<512x32xbf16>
    %c0_107 = arith.constant 0 : index
    %c2_108 = arith.constant 2 : index
    %c1_109 = arith.constant 1 : index
    %c0_110 = arith.constant 0 : index
    %97 = vector.load %arg15[%c0_107, %c2_108, %c1_109, %c0_110] : memref<2x18x18x32xf32, #tpu.memory_space<vmem>>, vector<2x16x16x32xf32>
    %98 = vector.shape_cast %97 : vector<2x16x16x32xf32> to vector<512x32xf32>
    %99 = arith.truncf %98 : vector<512x32xf32> to vector<512x32xbf16>
    %c0_111 = arith.constant 0 : index
    %c2_112 = arith.constant 2 : index
    %c2_113 = arith.constant 2 : index
    %c0_114 = arith.constant 0 : index
    %100 = vector.load %arg15[%c0_111, %c2_112, %c2_113, %c0_114] : memref<2x18x18x32xf32, #tpu.memory_space<vmem>>, vector<2x16x16x32xf32>
    %101 = vector.shape_cast %100 : vector<2x16x16x32xf32> to vector<512x32xf32>
    %102 = arith.truncf %101 : vector<512x32xf32> to vector<512x32xbf16>
    %103 = tpu.concatenate %78, %81, %84, %87, %90, %93, %96, %99, %102 in 1 : vector<512x32xbf16>, vector<512x32xbf16>, vector<512x32xbf16>, vector<512x32xbf16>, vector<512x32xbf16>, vector<512x32xbf16>, vector<512x32xbf16>, vector<512x32xbf16>, vector<512x32xbf16> -> vector<512x288xbf16>
    %c0_115 = arith.constant 0 : index
    %c0_116 = arith.constant 0 : index
    %104 = vector.load %arg5[%c0_115, %c0_116] : memref<288x32xbf16, #tpu.memory_space<vmem>>, vector<288x32xbf16>
    %cst_117 = arith.constant dense<0.000000e+00> : vector<512x32xf32>
    %105 = tpu.matmul %103, %104, %cst_117 {dimension_numbers = #tpu.dot_dimension_numbers<[1], [0], [0], [1], [0, 0, 1, 1], [], []>} : vector<512x288xbf16>, vector<288x32xbf16>, vector<512x32xf32> -> vector<512x32xf32>
    %cst_118 = arith.constant dense<0.000000e+00> : vector<32xf32>
    %106 = vector.multi_reduction <add>, %105, %cst_118 [0] : vector<512x32xf32> to vector<32xf32>
    %107 = vector.shape_cast %106 : vector<32xf32> to vector<1x32xf32>
    %cst_119 = arith.constant 5.120000e+02 : f32
    %108 = vector.broadcast %cst_119 : f32 to vector<1x32xf32>
    %109 = arith.divf %107, %108 : vector<1x32xf32>
    %110 = vector.broadcast %109 : vector<1x32xf32> to vector<512x32xf32>
    %111 = arith.subf %105, %110 : vector<512x32xf32>
    %112 = arith.mulf %111, %111 : vector<512x32xf32>
    %cst_120 = arith.constant dense<0.000000e+00> : vector<32xf32>
    %113 = vector.multi_reduction <add>, %112, %cst_120 [0] : vector<512x32xf32> to vector<32xf32>
    %114 = vector.shape_cast %113 : vector<32xf32> to vector<1x32xf32>
    %cst_121 = arith.constant 5.120000e+02 : f32
    %115 = vector.broadcast %cst_121 : f32 to vector<1x32xf32>
    %116 = arith.divf %114, %115 : vector<1x32xf32>
    %c0_122 = arith.constant 0 : index
    %c0_123 = arith.constant 0 : index
    %117 = vector.load %arg8[%c0_122, %c0_123] : memref<1x32xf32, #tpu.memory_space<vmem>>, vector<1x32xf32>
    %cst_124 = arith.constant 9.99999974E-6 : f32
    %118 = vector.broadcast %cst_124 : f32 to vector<1x32xf32>
    %119 = arith.addf %116, %118 : vector<1x32xf32>
    %120 = math.rsqrt %119 : vector<1x32xf32>
    %121 = arith.mulf %117, %120 : vector<1x32xf32>
    %c0_125 = arith.constant 0 : index
    %c0_126 = arith.constant 0 : index
    %122 = vector.load %arg9[%c0_125, %c0_126] : memref<1x32xf32, #tpu.memory_space<vmem>>, vector<1x32xf32>
    %123 = arith.mulf %109, %121 : vector<1x32xf32>
    %124 = arith.subf %122, %123 : vector<1x32xf32>
    %125 = vector.broadcast %121 : vector<1x32xf32> to vector<512x32xf32>
    %126 = arith.mulf %105, %125 : vector<512x32xf32>
    %127 = vector.broadcast %124 : vector<1x32xf32> to vector<512x32xf32>
    %128 = arith.addf %126, %127 : vector<512x32xf32>
    %cst_127 = arith.constant 0.000000e+00 : f32
    %129 = vector.broadcast %cst_127 : f32 to vector<512x32xf32>
    %130 = arith.maximumf %128, %129 : vector<512x32xf32>
    %131 = vector.shape_cast %130 : vector<512x32xf32> to vector<2x256x32xf32>
    %cst_128 = arith.constant dense<0.000000e+00> : vector<2x32xf32>
    %132 = vector.multi_reduction <add>, %131, %cst_128 [1] : vector<2x256x32xf32> to vector<2x32xf32>
    %cst_129 = arith.constant 2.560000e+02 : f32
    %133 = vector.broadcast %cst_129 : f32 to vector<2x32xf32>
    %134 = arith.divf %132, %133 : vector<2x32xf32>
    %cst_130 = arith.constant dense<0xFF800000> : vector<2x32xf32>
    %135 = vector.multi_reduction <maximumf>, %131, %cst_130 [1] : vector<2x256x32xf32> to vector<2x32xf32>
    %136 = tpu.concatenate %134, %135 in 0 : vector<2x32xf32>, vector<2x32xf32> -> vector<4x32xf32>
    %c0_131 = arith.constant 0 : index
    %c0_132 = arith.constant 0 : index
    %137 = vector.load %arg10[%c0_131, %c0_132] : memref<32x2xf32, #tpu.memory_space<vmem>>, vector<32x2xf32>
    %cst_133 = arith.constant dense<0.000000e+00> : vector<4x2xf32>
    %138 = tpu.matmul %136, %137, %cst_133 {dimension_numbers = #tpu.dot_dimension_numbers<[1], [0], [0], [1], [0, 0, 1, 1], [], []>} : vector<4x32xf32>, vector<32x2xf32>, vector<4x2xf32> -> vector<4x2xf32>
    %cst_134 = arith.constant 0.000000e+00 : f32
    %139 = vector.broadcast %cst_134 : f32 to vector<4x2xf32>
    %140 = arith.maximumf %138, %139 : vector<4x2xf32>
    %c0_135 = arith.constant 0 : index
    %c0_136 = arith.constant 0 : index
    %141 = vector.load %arg11[%c0_135, %c0_136] : memref<2x32xf32, #tpu.memory_space<vmem>>, vector<2x32xf32>
    %cst_137 = arith.constant dense<0.000000e+00> : vector<4x32xf32>
    %142 = tpu.matmul %140, %141, %cst_137 {dimension_numbers = #tpu.dot_dimension_numbers<[1], [0], [0], [1], [0, 0, 1, 1], [], []>} : vector<4x2xf32>, vector<2x32xf32>, vector<4x32xf32> -> vector<4x32xf32>
    %143 = vector.extract_strided_slice %142 {offsets = [0, 0], sizes = [2, 32], strides = [1, 1]} : vector<4x32xf32> to vector<2x32xf32>
    %144 = vector.extract_strided_slice %142 {offsets = [2, 0], sizes = [2, 32], strides = [1, 1]} : vector<4x32xf32> to vector<2x32xf32>
    %145 = arith.addf %143, %144 : vector<2x32xf32>
    %146 = arith.negf %145 : vector<2x32xf32>
    %147 = math.exp %146 : vector<2x32xf32>
    %cst_138 = arith.constant 1.000000e+00 : f32
    %148 = vector.broadcast %cst_138 : f32 to vector<2x32xf32>
    %149 = arith.addf %148, %147 : vector<2x32xf32>
    %150 = arith.divf %148, %149 : vector<2x32xf32>
    %151 = vector.shape_cast %131 : vector<2x256x32xf32> to vector<2x16x16x32xf32>
    %152 = vector.shape_cast %150 : vector<2x32xf32> to vector<2x1x1x32xf32>
    %153 = vector.broadcast %152 : vector<2x1x1x32xf32> to vector<2x16x16x32xf32>
    %154 = arith.mulf %151, %153 : vector<2x16x16x32xf32>
    %cst_139 = arith.constant 0.000000e+00 : f32
    %155 = vector.broadcast %cst_139 : f32 to vector<2x22x44xf32>
    %c0_140 = arith.constant 0 : index
    %c0_141 = arith.constant 0 : index
    %c0_142 = arith.constant 0 : index
    %156 = vector.load %arg16[%c0_140, %c0_141, %c0_142] : memref<2x22x44xf32, #tpu.memory_space<vmem>>, vector<2x22x44xf32>
    tpu.vector_store %arg16[%c0_140, %c0_141, %c0_142], %155 {strides = array<i32>} : memref<2x22x44xf32, #tpu.memory_space<vmem>>, vector<2x22x44xf32>,
    %cst_143 = arith.constant dense<0.000000e+00> : vector<2x16x16xf32>
    %157 = vector.multi_reduction <add>, %154, %cst_143 [3] : vector<2x16x16x32xf32> to vector<2x16x16xf32>
    %cst_144 = arith.constant 3.200000e+01 : f32
    %158 = vector.broadcast %cst_144 : f32 to vector<2x16x16xf32>
    %159 = arith.divf %157, %158 : vector<2x16x16xf32>
    %c0_145 = arith.constant 0 : index
    %c3 = arith.constant 3 : index
    %c3_146 = arith.constant 3 : index
    %160 = vector.load %arg16[%c0_145, %c3, %c3_146] : memref<2x22x44xf32, #tpu.memory_space<vmem>>, vector<2x16x16xf32>
    tpu.vector_store %arg16[%c0_145, %c3, %c3_146], %159 {strides = array<i32>} : memref<2x22x44xf32, #tpu.memory_space<vmem>>, vector<2x16x16xf32>,
    %cst_147 = arith.constant dense<0xFF800000> : vector<2x16x16xf32>
    %161 = vector.multi_reduction <maximumf>, %154, %cst_147 [3] : vector<2x16x16x32xf32> to vector<2x16x16xf32>
    %c0_148 = arith.constant 0 : index
    %c3_149 = arith.constant 3 : index
    %c25 = arith.constant 25 : index
    %162 = vector.load %arg16[%c0_148, %c3_149, %c25] : memref<2x22x44xf32, #tpu.memory_space<vmem>>, vector<2x16x16xf32>
    tpu.vector_store %arg16[%c0_148, %c3_149, %c25], %161 {strides = array<i32>} : memref<2x22x44xf32, #tpu.memory_space<vmem>>, vector<2x16x16xf32>,
    %cst_150 = arith.constant 0.000000e+00 : f32
    %163 = vector.broadcast %cst_150 : f32 to vector<32x16xf32>
    %c0_151 = arith.constant 0 : index
    %c0_152 = arith.constant 0 : index
    %c0_153 = arith.constant 0 : index
    %164 = vector.load %arg16[%c0_151, %c0_152, %c0_153] : memref<2x22x44xf32, #tpu.memory_space<vmem>>, vector<2x16x44xf32>
    %165 = vector.shape_cast %164 : vector<2x16x44xf32> to vector<32x44xf32>
    %c0_154 = arith.constant 0 : index
    %c0_155 = arith.constant 0 : index
    %c0_156 = arith.constant 0 : index
    %166 = vector.load %arg12[%c0_154, %c0_155, %c0_156] : memref<7x44x16xf32, #tpu.memory_space<vmem>>, vector<1x44x16xf32>
    %167 = vector.shape_cast %166 : vector<1x44x16xf32> to vector<44x16xf32>
    %cst_157 = arith.constant dense<0.000000e+00> : vector<32x16xf32>
    %168 = tpu.matmul %165, %167, %cst_157 {dimension_numbers = #tpu.dot_dimension_numbers<[1], [0], [0], [1], [0, 0, 1, 1], [], []>} : vector<32x44xf32>, vector<44x16xf32>, vector<32x16xf32> -> vector<32x16xf32>
    %169 = arith.addf %163, %168 : vector<32x16xf32>
    %c0_158 = arith.constant 0 : index
    %c1_159 = arith.constant 1 : index
    %c0_160 = arith.constant 0 : index
    %170 = vector.load %arg16[%c0_158, %c1_159, %c0_160] : memref<2x22x44xf32, #tpu.memory_space<vmem>>, vector<2x16x44xf32>
    %171 = vector.shape_cast %170 : vector<2x16x44xf32> to vector<32x44xf32>
    %c1_161 = arith.constant 1 : index
    %c0_162 = arith.constant 0 : index
    %c0_163 = arith.constant 0 : index
    %172 = vector.load %arg12[%c1_161, %c0_162, %c0_163] : memref<7x44x16xf32, #tpu.memory_space<vmem>>, vector<1x44x16xf32>
    %173 = vector.shape_cast %172 : vector<1x44x16xf32> to vector<44x16xf32>
    %cst_164 = arith.constant dense<0.000000e+00> : vector<32x16xf32>
    %174 = tpu.matmul %171, %173, %cst_164 {dimension_numbers = #tpu.dot_dimension_numbers<[1], [0], [0], [1], [0, 0, 1, 1], [], []>} : vector<32x44xf32>, vector<44x16xf32>, vector<32x16xf32> -> vector<32x16xf32>
    %175 = arith.addf %169, %174 : vector<32x16xf32>
    %c0_165 = arith.constant 0 : index
    %c2_166 = arith.constant 2 : index
    %c0_167 = arith.constant 0 : index
    %176 = vector.load %arg16[%c0_165, %c2_166, %c0_167] : memref<2x22x44xf32, #tpu.memory_space<vmem>>, vector<2x16x44xf32>
    %177 = vector.shape_cast %176 : vector<2x16x44xf32> to vector<32x44xf32>
    %c2_168 = arith.constant 2 : index
    %c0_169 = arith.constant 0 : index
    %c0_170 = arith.constant 0 : index
    %178 = vector.load %arg12[%c2_168, %c0_169, %c0_170] : memref<7x44x16xf32, #tpu.memory_space<vmem>>, vector<1x44x16xf32>
    %179 = vector.shape_cast %178 : vector<1x44x16xf32> to vector<44x16xf32>
    %cst_171 = arith.constant dense<0.000000e+00> : vector<32x16xf32>
    %180 = tpu.matmul %177, %179, %cst_171 {dimension_numbers = #tpu.dot_dimension_numbers<[1], [0], [0], [1], [0, 0, 1, 1], [], []>} : vector<32x44xf32>, vector<44x16xf32>, vector<32x16xf32> -> vector<32x16xf32>
    %181 = arith.addf %175, %180 : vector<32x16xf32>
    %c0_172 = arith.constant 0 : index
    %c3_173 = arith.constant 3 : index
    %c0_174 = arith.constant 0 : index
    %182 = vector.load %arg16[%c0_172, %c3_173, %c0_174] : memref<2x22x44xf32, #tpu.memory_space<vmem>>, vector<2x16x44xf32>
    %183 = vector.shape_cast %182 : vector<2x16x44xf32> to vector<32x44xf32>
    %c3_175 = arith.constant 3 : index
    %c0_176 = arith.constant 0 : index
    %c0_177 = arith.constant 0 : index
    %184 = vector.load %arg12[%c3_175, %c0_176, %c0_177] : memref<7x44x16xf32, #tpu.memory_space<vmem>>, vector<1x44x16xf32>
    %185 = vector.shape_cast %184 : vector<1x44x16xf32> to vector<44x16xf32>
    %cst_178 = arith.constant dense<0.000000e+00> : vector<32x16xf32>
    %186 = tpu.matmul %183, %185, %cst_178 {dimension_numbers = #tpu.dot_dimension_numbers<[1], [0], [0], [1], [0, 0, 1, 1], [], []>} : vector<32x44xf32>, vector<44x16xf32>, vector<32x16xf32> -> vector<32x16xf32>
    %187 = arith.addf %181, %186 : vector<32x16xf32>
    %c0_179 = arith.constant 0 : index
    %c4 = arith.constant 4 : index
    %c0_180 = arith.constant 0 : index
    %188 = vector.load %arg16[%c0_179, %c4, %c0_180] : memref<2x22x44xf32, #tpu.memory_space<vmem>>, vector<2x16x44xf32>
    %189 = vector.shape_cast %188 : vector<2x16x44xf32> to vector<32x44xf32>
    %c4_181 = arith.constant 4 : index
    %c0_182 = arith.constant 0 : index
    %c0_183 = arith.constant 0 : index
    %190 = vector.load %arg12[%c4_181, %c0_182, %c0_183] : memref<7x44x16xf32, #tpu.memory_space<vmem>>, vector<1x44x16xf32>
    %191 = vector.shape_cast %190 : vector<1x44x16xf32> to vector<44x16xf32>
    %cst_184 = arith.constant dense<0.000000e+00> : vector<32x16xf32>
    %192 = tpu.matmul %189, %191, %cst_184 {dimension_numbers = #tpu.dot_dimension_numbers<[1], [0], [0], [1], [0, 0, 1, 1], [], []>} : vector<32x44xf32>, vector<44x16xf32>, vector<32x16xf32> -> vector<32x16xf32>
    %193 = arith.addf %187, %192 : vector<32x16xf32>
    %c0_185 = arith.constant 0 : index
    %c5 = arith.constant 5 : index
    %c0_186 = arith.constant 0 : index
    %194 = vector.load %arg16[%c0_185, %c5, %c0_186] : memref<2x22x44xf32, #tpu.memory_space<vmem>>, vector<2x16x44xf32>
    %195 = vector.shape_cast %194 : vector<2x16x44xf32> to vector<32x44xf32>
    %c5_187 = arith.constant 5 : index
    %c0_188 = arith.constant 0 : index
    %c0_189 = arith.constant 0 : index
    %196 = vector.load %arg12[%c5_187, %c0_188, %c0_189] : memref<7x44x16xf32, #tpu.memory_space<vmem>>, vector<1x44x16xf32>
    %197 = vector.shape_cast %196 : vector<1x44x16xf32> to vector<44x16xf32>
    %cst_190 = arith.constant dense<0.000000e+00> : vector<32x16xf32>
    %198 = tpu.matmul %195, %197, %cst_190 {dimension_numbers = #tpu.dot_dimension_numbers<[1], [0], [0], [1], [0, 0, 1, 1], [], []>} : vector<32x44xf32>, vector<44x16xf32>, vector<32x16xf32> -> vector<32x16xf32>
    %199 = arith.addf %193, %198 : vector<32x16xf32>
    %c0_191 = arith.constant 0 : index
    %c6 = arith.constant 6 : index
    %c0_192 = arith.constant 0 : index
    %200 = vector.load %arg16[%c0_191, %c6, %c0_192] : memref<2x22x44xf32, #tpu.memory_space<vmem>>, vector<2x16x44xf32>
    %201 = vector.shape_cast %200 : vector<2x16x44xf32> to vector<32x44xf32>
    %c6_193 = arith.constant 6 : index
    %c0_194 = arith.constant 0 : index
    %c0_195 = arith.constant 0 : index
    %202 = vector.load %arg12[%c6_193, %c0_194, %c0_195] : memref<7x44x16xf32, #tpu.memory_space<vmem>>, vector<1x44x16xf32>
    %203 = vector.shape_cast %202 : vector<1x44x16xf32> to vector<44x16xf32>
    %cst_196 = arith.constant dense<0.000000e+00> : vector<32x16xf32>
    %204 = tpu.matmul %201, %203, %cst_196 {dimension_numbers = #tpu.dot_dimension_numbers<[1], [0], [0], [1], [0, 0, 1, 1], [], []>} : vector<32x44xf32>, vector<44x16xf32>, vector<32x16xf32> -> vector<32x16xf32>
    %205 = arith.addf %199, %204 : vector<32x16xf32>
    %206 = arith.negf %205 : vector<32x16xf32>
    %207 = math.exp %206 : vector<32x16xf32>
    %cst_197 = arith.constant 1.000000e+00 : f32
    %208 = vector.broadcast %cst_197 : f32 to vector<32x16xf32>
    %209 = arith.addf %208, %207 : vector<32x16xf32>
    %210 = arith.divf %208, %209 : vector<32x16xf32>
    %211 = vector.shape_cast %210 : vector<32x16xf32> to vector<2x16x16x1xf32>
    %212 = vector.broadcast %211 : vector<2x16x16x1xf32> to vector<2x16x16x32xf32>
    %213 = arith.mulf %154, %212 : vector<2x16x16x32xf32>
    %214 = vector.shape_cast %213 : vector<2x16x16x32xf32> to vector<512x32xf32>
    %c0_198 = arith.constant 0 : index
    %c0_199 = arith.constant 0 : index
    %215 = vector.load %arg13[%c0_198, %c0_199] : memref<512x32xf32, #tpu.memory_space<vmem>>, vector<512x32xf32>
    tpu.vector_store %arg13[%c0_198, %c0_199], %214 {strides = array<i32>} : memref<512x32xf32, #tpu.memory_space<vmem>>, vector<512x32xf32>,
    return
  }
  func.func @transform_0(%arg0: i32) -> (i32, i32) {
    %c0_i32 = arith.constant 0 : i32
    %c0_i32_0 = arith.constant 0 : i32
    %c0_i32_1 = arith.constant 0 : i32
    return %c0_i32, %c0_i32_0 : i32, i32
  }
  func.func @transform_1(%arg0: i32) -> (i32, i32, i32, i32) {
    %c0_i32 = arith.constant 0 : i32
    %c0_i32_0 = arith.constant 0 : i32
    %c0_i32_1 = arith.constant 0 : i32
    %c0_i32_2 = arith.constant 0 : i32
    %c0_i32_3 = arith.constant 0 : i32
    return %c0_i32, %c0_i32_0, %c0_i32_1, %c0_i32_2 : i32, i32, i32, i32
  }
  func.func @transform_2(%arg0: i32) -> (i32, i32) {
    %c0_i32 = arith.constant 0 : i32
    %c0_i32_0 = arith.constant 0 : i32
    %c0_i32_1 = arith.constant 0 : i32
    return %c0_i32, %c0_i32_0 : i32, i32
  }
  func.func @transform_3(%arg0: i32) -> (i32, i32) {
    %c0_i32 = arith.constant 0 : i32
    %c0_i32_0 = arith.constant 0 : i32
    %c0_i32_1 = arith.constant 0 : i32
    return %c0_i32, %c0_i32_0 : i32, i32
  }
  func.func @transform_4(%arg0: i32) -> (i32, i32) {
    %c0_i32 = arith.constant 0 : i32
    %c0_i32_0 = arith.constant 0 : i32
    %c0_i32_1 = arith.constant 0 : i32
    return %c0_i32, %c0_i32_0 : i32, i32
  }
  func.func @transform_5(%arg0: i32) -> (i32, i32) {
    %c0_i32 = arith.constant 0 : i32
    %c0_i32_0 = arith.constant 0 : i32
    %c0_i32_1 = arith.constant 0 : i32
    return %c0_i32, %c0_i32_0 : i32, i32
  }
  func.func @transform_6(%arg0: i32) -> (i32, i32) {
    %c0_i32 = arith.constant 0 : i32
    %c0_i32_0 = arith.constant 0 : i32
    %c0_i32_1 = arith.constant 0 : i32
    return %c0_i32, %c0_i32_0 : i32, i32
  }
  func.func @transform_7(%arg0: i32) -> (i32, i32) {
    %c0_i32 = arith.constant 0 : i32
    %c0_i32_0 = arith.constant 0 : i32
    %c0_i32_1 = arith.constant 0 : i32
    return %c0_i32, %c0_i32_0 : i32, i32
  }
  func.func @transform_8(%arg0: i32) -> (i32, i32) {
    %c0_i32 = arith.constant 0 : i32
    %c0_i32_0 = arith.constant 0 : i32
    %c0_i32_1 = arith.constant 0 : i32
    return %c0_i32, %c0_i32_0 : i32, i32
  }
  func.func @transform_9(%arg0: i32) -> (i32, i32) {
    %c0_i32 = arith.constant 0 : i32
    %c0_i32_0 = arith.constant 0 : i32
    %c0_i32_1 = arith.constant 0 : i32
    return %c0_i32, %c0_i32_0 : i32, i32
  }
  func.func @transform_10(%arg0: i32) -> (i32, i32) {
    %c0_i32 = arith.constant 0 : i32
    %c0_i32_0 = arith.constant 0 : i32
    %c0_i32_1 = arith.constant 0 : i32
    return %c0_i32, %c0_i32_0 : i32, i32
  }
  func.func @transform_11(%arg0: i32) -> (i32, i32, i32) {
    %c0_i32 = arith.constant 0 : i32
    %c0_i32_0 = arith.constant 0 : i32
    %c0_i32_1 = arith.constant 0 : i32
    %c0_i32_2 = arith.constant 0 : i32
    return %c0_i32, %c0_i32_0, %c0_i32_1 : i32, i32, i32
  }
  func.func @transform_12(%arg0: i32) -> (i32, i32) {
    %c0_i32 = arith.constant 0 : i32
    %c0_i32_0 = arith.constant 0 : i32
    %c0_i32_1 = arith.constant 0 : i32
    return %c0_i32, %c0_i32_0 : i32, i32
  }
}

</mosaic_0001>

<llo_original>
// kernel: up_forward.1
$region0: #{up_forward.1}
  #allocation0 [shape = 'u32[]', space=smem, size = 0x4, offset = 0x4, fixed_abs, tag = 'smem constant byte address 0x4 - core index']
  #allocation1 [shape = 'u32[144,128]{1,0:T(1,128)}', space=vmem, size = 0x12000, scoped, tag = 'internal scratch']
  #allocation2 [shape = 'f32[2,18,18,64]{3,2,1,0:T(8,128)}', space=vmem, size = 0x6c000, scoped, tag = 'scratch operand']
  #allocation3 [shape = 'f32[2,18,18,32]{3,2,1,0:T(8,128)}', space=vmem, size = 0x6c000, scoped, tag = 'scratch operand']
  #allocation4 [shape = 'f32[2,22,44]{2,1,0:T(8,128)}', space=vmem, size = 0x6000, scoped, tag = 'scratch operand']
  %s0 = inlined_call_operand.vmem [shape: f32[64,64], index: 0, kind: input, shape index: {}]
  %s1 = inlined_call_operand.vmem [shape: f32[2,16,16,32], index: 1, kind: input, shape index: {}]
  %s2 = inlined_call_operand.vmem [shape: f32[256,64], index: 2, kind: input, shape index: {}]
  %s3 = inlined_call_operand.vmem [shape: bf16[576,32], index: 3, kind: input, shape index: {}]
  %s4 = inlined_call_operand.vmem [shape: bf16[288,32], index: 4, kind: input, shape index: {}]
  %s5 = inlined_call_operand.vmem [shape: f32[1,32], index: 5, kind: input, shape index: {}]
  %s6 = inlined_call_operand.vmem [shape: f32[1,32], index: 6, kind: input, shape index: {}]
  %s7 = inlined_call_operand.vmem [shape: f32[1,32], index: 7, kind: input, shape index: {}]
  %s8 = inlined_call_operand.vmem [shape: f32[1,32], index: 8, kind: input, shape index: {}]
  %s9 = inlined_call_operand.vmem [shape: f32[32,2], index: 9, kind: input, shape index: {}]
  %s10 = inlined_call_operand.vmem [shape: f32[2,32], index: 10, kind: input, shape index: {}]
  %s11 = inlined_call_operand.vmem [shape: f32[7,44,16], index: 11, kind: input, shape index: {}]
  %s12 = inlined_call_operand.hbm [shape: f32[512,32], index: 12, kind: output, shape index: {}]
  %s13 = sld [smem:[#allocation0]]
  $region58: #{up_forward.1} parent=0
    _
  %s15 = ssub.s32 1, %s13
  %s16 = scalar_select 0, %s15, %s13
  $region1: #{up_forward.1} parent=0
    #allocation5 [shape = 'u8[262144]{0}', space=vmem, size = 0x40000, scoped, tag = 'output window, operand 0, single buffered']
    #allocation6 [shape = 's32[1]{0}', space=sflag, size = 0x4, scoped, tag = 'scoped memory for up_forward.1']
    %17 = vsyncpa [#allocation6], 0
    // Predicated region
    $region2: #{up_forward.1} parent=1 // pred_check
      _
    $region3: #{up_forward.1} parent=1 // pred_check_branch
      %19 = sbr.rel (0) target = $region5
    $region4: #{up_forward.1} parent=1 // pred_region
      _
    $region5: #{up_forward.1} parent=1 // pred_fallthru
      _
    // Predicated region
    $region6: #{up_forward.1} parent=1 // pred_check
      _
    $region7: #{up_forward.1} parent=1 // pred_check_branch
      %21 = sbr.rel (0) target = $region9
    $region8: #{up_forward.1} parent=1 // pred_region
      _
    $region9: #{up_forward.1} parent=1 // pred_fallthru
      _
    // Predicated region
    $region10: #{up_forward.1} parent=1 // pred_check
      _
    $region11: #{up_forward.1} parent=1 // pred_check_branch
      %23 = sbr.rel (0) target = $region13
    $region12: #{up_forward.1} parent=1 // pred_region
      _
    $region13: #{up_forward.1} parent=1 // pred_fallthru
      _
    // Predicated region
    $region14: #{up_forward.1} parent=1 // pred_check
      _
    $region15: #{up_forward.1} parent=1 // pred_check_branch
      %25 = sbr.rel (0) target = $region17
    $region16: #{up_forward.1} parent=1 // pred_region
      _
    $region17: #{up_forward.1} parent=1 // pred_fallthru
      _
    // Predicated region
    $region18: #{up_forward.1} parent=1 // pred_check
      _
    $region19: #{up_forward.1} parent=1 // pred_check_branch
      %27 = sbr.rel (0) target = $region21
    $region20: #{up_forward.1} parent=1 // pred_region
      _
    $region21: #{up_forward.1} parent=1 // pred_fallthru
      _
    // Predicated region
    $region22: #{up_forward.1} parent=1 // pred_check
      _
    $region23: #{up_forward.1} parent=1 // pred_check_branch
      %29 = sbr.rel (0) target = $region25
    $region24: #{up_forward.1} parent=1 // pred_region
      _
    $region25: #{up_forward.1} parent=1 // pred_fallthru
      _
    // Predicated region
    $region26: #{up_forward.1} parent=1 // pred_check
      _
    $region27: #{up_forward.1} parent=1 // pred_check_branch
      %31 = sbr.rel (0) target = $region29
    $region28: #{up_forward.1} parent=1 // pred_region
      _
    $region29: #{up_forward.1} parent=1 // pred_fallthru
      _
    // Predicated region
    $region30: #{up_forward.1} parent=1 // pred_check
      _
    $region31: #{up_forward.1} parent=1 // pred_check_branch
      %33 = sbr.rel (0) target = $region33
    $region32: #{up_forward.1} parent=1 // pred_region
      _
    $region33: #{up_forward.1} parent=1 // pred_fallthru
      _
    // Predicated region
    $region34: #{up_forward.1} parent=1 // pred_check
      _
    $region35: #{up_forward.1} parent=1 // pred_check_branch
      %35 = sbr.rel (0) target = $region37
    $region36: #{up_forward.1} parent=1 // pred_region
      _
    $region37: #{up_forward.1} parent=1 // pred_fallthru
      _
    // Predicated region
    $region38: #{up_forward.1} parent=1 // pred_check
      _
    $region39: #{up_forward.1} parent=1 // pred_check_branch
      %37 = sbr.rel (0) target = $region41
    $region40: #{up_forward.1} parent=1 // pred_region
      _
    $region41: #{up_forward.1} parent=1 // pred_fallthru
      _
    // Predicated region
    $region42: #{up_forward.1} parent=1 // pred_check
      _
    $region43: #{up_forward.1} parent=1 // pred_check_branch
      %39 = sbr.rel (0) target = $region45
    $region44: #{up_forward.1} parent=1 // pred_region
      _
    $region45: #{up_forward.1} parent=1 // pred_fallthru
      _
    // Predicated region
    $region46: #{up_forward.1} parent=1 // pred_check
      _
    $region47: #{up_forward.1} parent=1 // pred_check_branch
      %41 = sbr.rel (0) target = $region49
    $region48: #{up_forward.1} parent=1 // pred_region
      _
    $region49: #{up_forward.1} parent=1 // pred_fallthru
      _
    %vm43 = vcmask 523264
    %44 = vst.msk [vmem:[#allocation2] sm:$0xff] %vm43, 0.0
    %45 = vst.msk [vmem:[#allocation2 + $0x8] sm:$0xff] %vm43, 0.0
    %vm46 = vcmask 517120
    %47 = vst.msk [vmem:[#allocation2 + $0x10] sm:$0x3] %vm46, 0.0
    %48 = vst.msk [vmem:[#allocation2 + $0x18] sm:$0xff] %vm43, 0.0
    %49 = vst.msk [vmem:[#allocation2 + $0x20] sm:$0xff] %vm43, 0.0
    %50 = vst.msk [vmem:[#allocation2 + $0x28] sm:$0x3] %vm46, 0.0
    %51 = vst.msk [vmem:[#allocation2 + $0x30] sm:$0xff] %vm43, 0.0
    %52 = vst.msk [vmem:[#allocation2 + $0x38] sm:$0xff] %vm43, 0.0
    %53 = vst.msk [vmem:[#allocation2 + $0x40] sm:$0x3] %vm46, 0.0
    %54 = vst.msk [vmem:[#allocation2 + $0x48] sm:$0xff] %vm43, 0.0
    %55 = vst.msk [vmem:[#allocation2 + $0x50] sm:$0xff] %vm43, 0.0
    %56 = vst.msk [vmem:[#allocation2 + $0x58] sm:$0x3] %vm46, 0.0
    %57 = vst.msk [vmem:[#allocation2 + $0x60] sm:$0xff] %vm43, 0.0
    %58 = vst.msk [vmem:[#allocation2 + $0x68] sm:$0xff] %vm43, 0.0
    %59 = vst.msk [vmem:[#allocation2 + $0x70] sm:$0x3] %vm46, 0.0
    %60 = vst.msk [vmem:[#allocation2 + $0x78] sm:$0xff] %vm43, 0.0
    %61 = vst.msk [vmem:[#allocation2 + $0x80] sm:$0xff] %vm43, 0.0
    %62 = vst.msk [vmem:[#allocation2 + $0x88] sm:$0x3] %vm46, 0.0
    %63 = vst.msk [vmem:[#allocation2 + $0x90] sm:$0xff] %vm43, 0.0
    %64 = vst.msk [vmem:[#allocation2 + $0x98] sm:$0xff] %vm43, 0.0
    %65 = vst.msk [vmem:[#allocation2 + $0xa0] sm:$0x3] %vm46, 0.0
    %66 = vst.msk [vmem:[#allocation2 + $0xa8] sm:$0xff] %vm43, 0.0
    %67 = vst.msk [vmem:[#allocation2 + $0xb0] sm:$0xff] %vm43, 0.0
    %68 = vst.msk [vmem:[#allocation2 + $0xb8] sm:$0x3] %vm46, 0.0
    %69 = vst.msk [vmem:[#allocation2 + $0xc0] sm:$0xff] %vm43, 0.0
    %70 = vst.msk [vmem:[#allocation2 + $0xc8] sm:$0xff] %vm43, 0.0
    %71 = vst.msk [vmem:[#allocation2 + $0xd0] sm:$0x3] %vm46, 0.0
    %72 = vst.msk [vmem:[#allocation2 + $0xd8] sm:$0xff] %vm43, 0.0
    %73 = vst.msk [vmem:[#allocation2 + $0xe0] sm:$0xff] %vm43, 0.0
    %74 = vst.msk [vmem:[#allocation2 + $0xe8] sm:$0x3] %vm46, 0.0
    %75 = vst.msk [vmem:[#allocation2 + $0xf0] sm:$0xff] %vm43, 0.0
    %76 = vst.msk [vmem:[#allocation2 + $0xf8] sm:$0xff] %vm43, 0.0
    %77 = vst.msk [vmem:[#allocation2 + $0x100] sm:$0x3] %vm46, 0.0
    %78 = vst.msk [vmem:[#allocation2 + $0x108] sm:$0xff] %vm43, 0.0
    %79 = vst.msk [vmem:[#allocation2 + $0x110] sm:$0xff] %vm43, 0.0
    %80 = vst.msk [vmem:[#allocation2 + $0x118] sm:$0x3] %vm46, 0.0
    %81 = vst.msk [vmem:[#allocation2 + $0x120] sm:$0xff] %vm43, 0.0
    %82 = vst.msk [vmem:[#allocation2 + $0x128] sm:$0xff] %vm43, 0.0
    %83 = vst.msk [vmem:[#allocation2 + $0x130] sm:$0x3] %vm46, 0.0
    %84 = vst.msk [vmem:[#allocation2 + $0x138] sm:$0xff] %vm43, 0.0
    %85 = vst.msk [vmem:[#allocation2 + $0x140] sm:$0xff] %vm43, 0.0
    %86 = vst.msk [vmem:[#allocation2 + $0x148] sm:$0x3] %vm46, 0.0
    %87 = vst.msk [vmem:[#allocation2 + $0x150] sm:$0xff] %vm43, 0.0
    %88 = vst.msk [vmem:[#allocation2 + $0x158] sm:$0xff] %vm43, 0.0
    %89 = vst.msk [vmem:[#allocation2 + $0x160] sm:$0x3] %vm46, 0.0
    %90 = vst.msk [vmem:[#allocation2 + $0x168] sm:$0xff] %vm43, 0.0
    %91 = vst.msk [vmem:[#allocation2 + $0x170] sm:$0xff] %vm43, 0.0
    %92 = vst.msk [vmem:[#allocation2 + $0x178] sm:$0x3] %vm46, 0.0
    %93 = vst.msk [vmem:[#allocation2 + $0x180] sm:$0xff] %vm43, 0.0
    %94 = vst.msk [vmem:[#allocation2 + $0x188] sm:$0xff] %vm43, 0.0
    %95 = vst.msk [vmem:[#allocation2 + $0x190] sm:$0x3] %vm46, 0.0
    %96 = vst.msk [vmem:[#allocation2 + $0x198] sm:$0xff] %vm43, 0.0
    %97 = vst.msk [vmem:[#allocation2 + $0x1a0] sm:$0xff] %vm43, 0.0
    %98 = vst.msk [vmem:[#allocation2 + $0x1a8] sm:$0x3] %vm46, 0.0
    %99 = vst.msk [vmem:[#allocation2 + $0x1b0] sm:$0xff] %vm43, 0.0
    %100 = vst.msk [vmem:[#allocation2 + $0x1b8] sm:$0xff] %vm43, 0.0
    %101 = vst.msk [vmem:[#allocation2 + $0x1c0] sm:$0x3] %vm46, 0.0
    %102 = vst.msk [vmem:[#allocation2 + $0x1c8] sm:$0xff] %vm43, 0.0
    %103 = vst.msk [vmem:[#allocation2 + $0x1d0] sm:$0xff] %vm43, 0.0
    %104 = vst.msk [vmem:[#allocation2 + $0x1d8] sm:$0x3] %vm46, 0.0
    %105 = vst.msk [vmem:[#allocation2 + $0x1e0] sm:$0xff] %vm43, 0.0
    %106 = vst.msk [vmem:[#allocation2 + $0x1e8] sm:$0xff] %vm43, 0.0
    %107 = vst.msk [vmem:[#allocation2 + $0x1f0] sm:$0x3] %vm46, 0.0
    %108 = vst.msk [vmem:[#allocation2 + $0x1f8] sm:$0xff] %vm43, 0.0
    %109 = vst.msk [vmem:[#allocation2 + $0x200] sm:$0xff] %vm43, 0.0
    %110 = vst.msk [vmem:[#allocation2 + $0x208] sm:$0x3] %vm46, 0.0
    %111 = vst.msk [vmem:[#allocation2 + $0x210] sm:$0xff] %vm43, 0.0
    %112 = vst.msk [vmem:[#allocation2 + $0x218] sm:$0xff] %vm43, 0.0
    %113 = vst.msk [vmem:[#allocation2 + $0x220] sm:$0x3] %vm46, 0.0
    %114 = vst.msk [vmem:[#allocation2 + $0x228] sm:$0xff] %vm43, 0.0
    %115 = vst.msk [vmem:[#allocation2 + $0x230] sm:$0xff] %vm43, 0.0
    %116 = vst.msk [vmem:[#allocation2 + $0x238] sm:$0x3] %vm46, 0.0
    %117 = vst.msk [vmem:[#allocation2 + $0x240] sm:$0xff] %vm43, 0.0
    %118 = vst.msk [vmem:[#allocation2 + $0x248] sm:$0xff] %vm43, 0.0
    %119 = vst.msk [vmem:[#allocation2 + $0x250] sm:$0x3] %vm46, 0.0
    %120 = vst.msk [vmem:[#allocation2 + $0x258] sm:$0xff] %vm43, 0.0
    %121 = vst.msk [vmem:[#allocation2 + $0x260] sm:$0xff] %vm43, 0.0
    %122 = vst.msk [vmem:[#allocation2 + $0x268] sm:$0x3] %vm46, 0.0
    %123 = vst.msk [vmem:[#allocation2 + $0x270] sm:$0xff] %vm43, 0.0
    %124 = vst.msk [vmem:[#allocation2 + $0x278] sm:$0xff] %vm43, 0.0
    %125 = vst.msk [vmem:[#allocation2 + $0x280] sm:$0x3] %vm46, 0.0
    %126 = vst.msk [vmem:[#allocation2 + $0x288] sm:$0xff] %vm43, 0.0
    %127 = vst.msk [vmem:[#allocation2 + $0x290] sm:$0xff] %vm43, 0.0
    %128 = vst.msk [vmem:[#allocation2 + $0x298] sm:$0x3] %vm46, 0.0
    %129 = vst.msk [vmem:[#allocation2 + $0x2a0] sm:$0xff] %vm43, 0.0
    %130 = vst.msk [vmem:[#allocation2 + $0x2a8] sm:$0xff] %vm43, 0.0
    %131 = vst.msk [vmem:[#allocation2 + $0x2b0] sm:$0x3] %vm46, 0.0
    %132 = vst.msk [vmem:[#allocation2 + $0x2b8] sm:$0xff] %vm43, 0.0
    %133 = vst.msk [vmem:[#allocation2 + $0x2c0] sm:$0xff] %vm43, 0.0
    %134 = vst.msk [vmem:[#allocation2 + $0x2c8] sm:$0x3] %vm46, 0.0
    %135 = vst.msk [vmem:[#allocation2 + $0x2d0] sm:$0xff] %vm43, 0.0
    %136 = vst.msk [vmem:[#allocation2 + $0x2d8] sm:$0xff] %vm43, 0.0
    %137 = vst.msk [vmem:[#allocation2 + $0x2e0] sm:$0x3] %vm46, 0.0
    %138 = vst.msk [vmem:[#allocation2 + $0x2e8] sm:$0xff] %vm43, 0.0
    %139 = vst.msk [vmem:[#allocation2 + $0x2f0] sm:$0xff] %vm43, 0.0
    %140 = vst.msk [vmem:[#allocation2 + $0x2f8] sm:$0x3] %vm46, 0.0
    %141 = vst.msk [vmem:[#allocation2 + $0x300] sm:$0xff] %vm43, 0.0
    %142 = vst.msk [vmem:[#allocation2 + $0x308] sm:$0xff] %vm43, 0.0
    %143 = vst.msk [vmem:[#allocation2 + $0x310] sm:$0x3] %vm46, 0.0
    %144 = vst.msk [vmem:[#allocation2 + $0x318] sm:$0xff] %vm43, 0.0
    %145 = vst.msk [vmem:[#allocation2 + $0x320] sm:$0xff] %vm43, 0.0
    %146 = vst.msk [vmem:[#allocation2 + $0x328] sm:$0x3] %vm46, 0.0
    %147 = vst.msk [vmem:[#allocation2 + $0x330] sm:$0xff] %vm43, 0.0
    %148 = vst.msk [vmem:[#allocation2 + $0x338] sm:$0xff] %vm43, 0.0
    %149 = vst.msk [vmem:[#allocation2 + $0x340] sm:$0x3] %vm46, 0.0
    %150 = vst.msk [vmem:[#allocation2 + $0x348] sm:$0xff] %vm43, 0.0
    %151 = vst.msk [vmem:[#allocation2 + $0x350] sm:$0xff] %vm43, 0.0
    %152 = vst.msk [vmem:[#allocation2 + $0x358] sm:$0x3] %vm46, 0.0
    %v153 = vld [vmem:[%s1] sm:$0xff]
    %v154 = vld [vmem:[%s1 + $0x8] sm:$0xff]
    %v155 = vld [vmem:[%s1 + $0x10] sm:$0xff]
    %v156 = vld [vmem:[%s1 + $0x18] sm:$0xff]
    %v157 = vld [vmem:[%s1 + $0x20] sm:$0xff]
    %v158 = vld [vmem:[%s1 + $0x28] sm:$0xff]
    %v159 = vld [vmem:[%s1 + $0x30] sm:$0xff]
    %v160 = vld [vmem:[%s1 + $0x38] sm:$0xff]
    %v161 = vld [vmem:[%s1 + $0x40] sm:$0xff]
    %v162 = vld [vmem:[%s1 + $0x48] sm:$0xff]
    %v163 = vld [vmem:[%s1 + $0x50] sm:$0xff]
    %v164 = vld [vmem:[%s1 + $0x58] sm:$0xff]
    %v165 = vld [vmem:[%s1 + $0x60] sm:$0xff]
    %v166 = vld [vmem:[%s1 + $0x68] sm:$0xff]
    %v167 = vld [vmem:[%s1 + $0x70] sm:$0xff]
    %v168 = vld [vmem:[%s1 + $0x78] sm:$0xff]
    %v169 = vld [vmem:[%s1 + $0x80] sm:$0xff]
    %v170 = vld [vmem:[%s1 + $0x88] sm:$0xff]
    %v171 = vld [vmem:[%s1 + $0x90] sm:$0xff]
    %v172 = vld [vmem:[%s1 + $0x98] sm:$0xff]
    %v173 = vld [vmem:[%s1 + $0xa0] sm:$0xff]
    %v174 = vld [vmem:[%s1 + $0xa8] sm:$0xff]
    %v175 = vld [vmem:[%s1 + $0xb0] sm:$0xff]
    %v176 = vld [vmem:[%s1 + $0xb8] sm:$0xff]
    %v177 = vld [vmem:[%s1 + $0xc0] sm:$0xff]
    %v178 = vld [vmem:[%s1 + $0xc8] sm:$0xff]
    %v179 = vld [vmem:[%s1 + $0xd0] sm:$0xff]
    %v180 = vld [vmem:[%s1 + $0xd8] sm:$0xff]
    %v181 = vld [vmem:[%s1 + $0xe0] sm:$0xff]
    %v182 = vld [vmem:[%s1 + $0xe8] sm:$0xff]
    %v183 = vld [vmem:[%s1 + $0xf0] sm:$0xff]
    %v184 = vld [vmem:[%s1 + $0xf8] sm:$0xff]
    %v185 = vld [vmem:[%s1 + $0x100] sm:$0xff]
    %v186 = vld [vmem:[%s1 + $0x108] sm:$0xff]
    %v187 = vld [vmem:[%s1 + $0x110] sm:$0xff]
    %v188 = vld [vmem:[%s1 + $0x118] sm:$0xff]
    %v189 = vld [vmem:[%s1 + $0x120] sm:$0xff]
    %v190 = vld [vmem:[%s1 + $0x128] sm:$0xff]
    %v191 = vld [vmem:[%s1 + $0x130] sm:$0xff]
    %v192 = vld [vmem:[%s1 + $0x138] sm:$0xff]
    %v193 = vld [vmem:[%s1 + $0x140] sm:$0xff]
    %v194 = vld [vmem:[%s1 + $0x148] sm:$0xff]
    %v195 = vld [vmem:[%s1 + $0x150] sm:$0xff]
    %v196 = vld [vmem:[%s1 + $0x158] sm:$0xff]
    %v197 = vld [vmem:[%s1 + $0x160] sm:$0xff]
    %v198 = vld [vmem:[%s1 + $0x168] sm:$0xff]
    %v199 = vld [vmem:[%s1 + $0x170] sm:$0xff]
    %v200 = vld [vmem:[%s1 + $0x178] sm:$0xff]
    %v201 = vld [vmem:[%s1 + $0x180] sm:$0xff]
    %v202 = vld [vmem:[%s1 + $0x188] sm:$0xff]
    %v203 = vld [vmem:[%s1 + $0x190] sm:$0xff]
    %v204 = vld [vmem:[%s1 + $0x198] sm:$0xff]
    %v205 = vld [vmem:[%s1 + $0x1a0] sm:$0xff]
    %v206 = vld [vmem:[%s1 + $0x1a8] sm:$0xff]
    %v207 = vld [vmem:[%s1 + $0x1b0] sm:$0xff]
    %v208 = vld [vmem:[%s1 + $0x1b8] sm:$0xff]
    %v209 = vld [vmem:[%s1 + $0x1c0] sm:$0xff]
    %v210 = vld [vmem:[%s1 + $0x1c8] sm:$0xff]
    %v211 = vld [vmem:[%s1 + $0x1d0] sm:$0xff]
    %v212 = vld [vmem:[%s1 + $0x1d8] sm:$0xff]
    %v213 = vld [vmem:[%s1 + $0x1e0] sm:$0xff]
    %v214 = vld [vmem:[%s1 + $0x1e8] sm:$0xff]
    %v215 = vld [vmem:[%s1 + $0x1f0] sm:$0xff]
    %v216 = vld [vmem:[%s1 + $0x1f8] sm:$0xff]
    %s217 = scalar_lea.vmem [#allocation2], 24
    %vm218 = vcmask 261120
    %219 = vst.msk [vmem:[%s217 + $0x1] sm:$0xff] %vm218, %v153
    %220 = vst.msk [vmem:[%s217 + $0x9] sm:$0xff] %vm218, %v154
    %221 = vst.msk [vmem:[%s217 + $0x19] sm:$0xff] %vm218, %v155
    %222 = vst.msk [vmem:[%s217 + $0x21] sm:$0xff] %vm218, %v156
    %223 = vst.msk [vmem:[%s217 + $0x31] sm:$0xff] %vm218, %v157
    %224 = vst.msk [vmem:[%s217 + $0x39] sm:$0xff] %vm218, %v158
    %225 = vst.msk [vmem:[%s217 + $0x49] sm:$0xff] %vm218, %v159
    %226 = vst.msk [vmem:[%s217 + $0x51] sm:$0xff] %vm218, %v160
    %227 = vst.msk [vmem:[%s217 + $0x61] sm:$0xff] %vm218, %v161
    %228 = vst.msk [vmem:[%s217 + $0x69] sm:$0xff] %vm218, %v162
    %229 = vst.msk [vmem:[%s217 + $0x79] sm:$0xff] %vm218, %v163
    %230 = vst.msk [vmem:[%s217 + $0x81] sm:$0xff] %vm218, %v164
    %231 = vst.msk [vmem:[%s217 + $0x91] sm:$0xff] %vm218, %v165
    %232 = vst.msk [vmem:[%s217 + $0x99] sm:$0xff] %vm218, %v166
    %233 = vst.msk [vmem:[%s217 + $0xa9] sm:$0xff] %vm218, %v167
    %234 = vst.msk [vmem:[%s217 + $0xb1] sm:$0xff] %vm218, %v168
    %235 = vst.msk [vmem:[%s217 + $0xc1] sm:$0xff] %vm218, %v169
    %236 = vst.msk [vmem:[%s217 + $0xc9] sm:$0xff] %vm218, %v170
    %237 = vst.msk [vmem:[%s217 + $0xd9] sm:$0xff] %vm218, %v171
    %238 = vst.msk [vmem:[%s217 + $0xe1] sm:$0xff] %vm218, %v172
    %239 = vst.msk [vmem:[%s217 + $0xf1] sm:$0xff] %vm218, %v173
    %240 = vst.msk [vmem:[%s217 + $0xf9] sm:$0xff] %vm218, %v174
    %241 = vst.msk [vmem:[%s217 + $0x109] sm:$0xff] %vm218, %v175
    %242 = vst.msk [vmem:[%s217 + $0x111] sm:$0xff] %vm218, %v176
    %243 = vst.msk [vmem:[%s217 + $0x121] sm:$0xff] %vm218, %v177
    %244 = vst.msk [vmem:[%s217 + $0x129] sm:$0xff] %vm218, %v178
    %245 = vst.msk [vmem:[%s217 + $0x139] sm:$0xff] %vm218, %v179
    %246 = vst.msk [vmem:[%s217 + $0x141] sm:$0xff] %vm218, %v180
    %247 = vst.msk [vmem:[%s217 + $0x151] sm:$0xff] %vm218, %v181
    %248 = vst.msk [vmem:[%s217 + $0x159] sm:$0xff] %vm218, %v182
    %249 = vst.msk [vmem:[%s217 + $0x169] sm:$0xff] %vm218, %v183
    %250 = vst.msk [vmem:[%s217 + $0x171] sm:$0xff] %vm218, %v184
    %251 = vst.msk [vmem:[%s217 + $0x1b1] sm:$0xff] %vm218, %v185
    %252 = vst.msk [vmem:[%s217 + $0x1b9] sm:$0xff] %vm218, %v186
    %253 = vst.msk [vmem:[%s217 + $0x1c9] sm:$0xff] %vm218, %v187
    %254 = vst.msk [vmem:[%s217 + $0x1d1] sm:$0xff] %vm218, %v188
    %255 = vst.msk [vmem:[%s217 + $0x1e1] sm:$0xff] %vm218, %v189
    %256 = vst.msk [vmem:[%s217 + $0x1e9] sm:$0xff] %vm218, %v190
    %257 = vst.msk [vmem:[%s217 + $0x1f9] sm:$0xff] %vm218, %v191
    %258 = vst.msk [vmem:[%s217 + $0x201] sm:$0xff] %vm218, %v192
    %259 = vst.msk [vmem:[%s217 + $0x211] sm:$0xff] %vm218, %v193
    %260 = vst.msk [vmem:[%s217 + $0x219] sm:$0xff] %vm218, %v194
    %261 = vst.msk [vmem:[%s217 + $0x229] sm:$0xff] %vm218, %v195
    %262 = vst.msk [vmem:[%s217 + $0x231] sm:$0xff] %vm218, %v196
    %263 = vst.msk [vmem:[%s217 + $0x241] sm:$0xff] %vm218, %v197
    %264 = vst.msk [vmem:[%s217 + $0x249] sm:$0xff] %vm218, %v198
    %265 = vst.msk [vmem:[%s217 + $0x259] sm:$0xff] %vm218, %v199
    %266 = vst.msk [vmem:[%s217 + $0x261] sm:$0xff] %vm218, %v200
    %267 = vst.msk [vmem:[%s217 + $0x271] sm:$0xff] %vm218, %v201
    %268 = vst.msk [vmem:[%s217 + $0x279] sm:$0xff] %vm218, %v202
    %269 = vst.msk [vmem:[%s217 + $0x289] sm:$0xff] %vm218, %v203
    %270 = vst.msk [vmem:[%s217 + $0x291] sm:$0xff] %vm218, %v204
    %271 = vst.msk [vmem:[%s217 + $0x2a1] sm:$0xff] %vm218, %v205
    %272 = vst.msk [vmem:[%s217 + $0x2a9] sm:$0xff] %vm218, %v206
    %273 = vst.msk [vmem:[%s217 + $0x2b9] sm:$0xff] %vm218, %v207
    %274 = vst.msk [vmem:[%s217 + $0x2c1] sm:$0xff] %vm218, %v208
    %275 = vst.msk [vmem:[%s217 + $0x2d1] sm:$0xff] %vm218, %v209
    %276 = vst.msk [vmem:[%s217 + $0x2d9] sm:$0xff] %vm218, %v210
    %277 = vst.msk [vmem:[%s217 + $0x2e9] sm:$0xff] %vm218, %v211
    %278 = vst.msk [vmem:[%s217 + $0x2f1] sm:$0xff] %vm218, %v212
    %279 = vst.msk [vmem:[%s217 + $0x301] sm:$0xff] %vm218, %v213
    %280 = vst.msk [vmem:[%s217 + $0x309] sm:$0xff] %vm218, %v214
    %281 = vst.msk [vmem:[%s217 + $0x319] sm:$0xff] %vm218, %v215
    %282 = vst.msk [vmem:[%s217 + $0x321] sm:$0xff] %vm218, %v216
    %v283 = vld [vmem:[%s2] sm:$0xff]
    %v284 = vld [vmem:[%s2 + $0x8] sm:$0xff]
    %v285 = vld [vmem:[%s2 + $0x10] sm:$0xff]
    %v286 = vld [vmem:[%s2 + $0x18] sm:$0xff]
    %v287 = vld [vmem:[%s2 + $0x20] sm:$0xff]
    %v288 = vld [vmem:[%s2 + $0x28] sm:$0xff]
    %v289 = vld [vmem:[%s2 + $0x30] sm:$0xff]
    %v290 = vld [vmem:[%s2 + $0x38] sm:$0xff]
    %v291 = vld [vmem:[%s2 + $0x40] sm:$0xff]
    %v292 = vld [vmem:[%s2 + $0x48] sm:$0xff]
    %v293 = vld [vmem:[%s2 + $0x50] sm:$0xff]
    %v294 = vld [vmem:[%s2 + $0x58] sm:$0xff]
    %v295 = vld [vmem:[%s2 + $0x60] sm:$0xff]
    %v296 = vld [vmem:[%s2 + $0x68] sm:$0xff]
    %v297 = vld [vmem:[%s2 + $0x70] sm:$0xff]
    %v298 = vld [vmem:[%s2 + $0x78] sm:$0xff]
    %v299 = vld [vmem:[%s2 + $0x80] sm:$0xff]
    %v300 = vld [vmem:[%s2 + $0x88] sm:$0xff]
    %v301 = vld [vmem:[%s2 + $0x90] sm:$0xff]
    %v302 = vld [vmem:[%s2 + $0x98] sm:$0xff]
    %v303 = vld [vmem:[%s2 + $0xa0] sm:$0xff]
    %v304 = vld [vmem:[%s2 + $0xa8] sm:$0xff]
    %v305 = vld [vmem:[%s2 + $0xb0] sm:$0xff]
    %v306 = vld [vmem:[%s2 + $0xb8] sm:$0xff]
    %v307 = vld [vmem:[%s2 + $0xc0] sm:$0xff]
    %v308 = vld [vmem:[%s2 + $0xc8] sm:$0xff]
    %v309 = vld [vmem:[%s2 + $0xd0] sm:$0xff]
    %v310 = vld [vmem:[%s2 + $0xd8] sm:$0xff]
    %v311 = vld [vmem:[%s2 + $0xe0] sm:$0xff]
    %v312 = vld [vmem:[%s2 + $0xe8] sm:$0xff]
    %v313 = vld [vmem:[%s2 + $0xf0] sm:$0xff]
    %v314 = vld [vmem:[%s2 + $0xf8] sm:$0xff]
    %v315 = vld [vmem:[%s0] sm:$0xff]
    %v316 = vld [vmem:[%s0 + $0x8] sm:$0xff]
    %v317 = vld [vmem:[%s0 + $0x10] sm:$0xff]
    %v318 = vld [vmem:[%s0 + $0x18] sm:$0xff]
    %v319 = vld [vmem:[%s0 + $0x20] sm:$0xff]
    %v320 = vld [vmem:[%s0 + $0x28] sm:$0xff]
    %v321 = vld [vmem:[%s0 + $0x30] sm:$0xff]
    %v322 = vld [vmem:[%s0 + $0x38] sm:$0xff]
    %v324 = vsel %vm43, %v283, 0
    %v327 = vsel %vm43, %v284, 0
    %v330 = vsel %vm43, %v285, 0
    %v333 = vsel %vm43, %v286, 0
    %v336 = vsel %vm43, %v287, 0
    %v339 = vsel %vm43, %v288, 0
    %v342 = vsel %vm43, %v289, 0
    %v345 = vsel %vm43, %v290, 0
    %v348 = vsel %vm43, %v291, 0
    %v351 = vsel %vm43, %v292, 0
    %v354 = vsel %vm43, %v293, 0
    %v357 = vsel %vm43, %v294, 0
    %v360 = vsel %vm43, %v295, 0
    %v363 = vsel %vm43, %v296, 0
    %v366 = vsel %vm43, %v297, 0
    %v369 = vsel %vm43, %v298, 0
    %v372 = vsel %vm43, %v299, 0
    %v375 = vsel %vm43, %v300, 0
    %v378 = vsel %vm43, %v301, 0
    %v381 = vsel %vm43, %v302, 0
    %v384 = vsel %vm43, %v303, 0
    %v387 = vsel %vm43, %v304, 0
    %v390 = vsel %vm43, %v305, 0
    %v393 = vsel %vm43, %v306, 0
    %v396 = vsel %vm43, %v307, 0
    %v399 = vsel %vm43, %v308, 0
    %v402 = vsel %vm43, %v309, 0
    %v405 = vsel %vm43, %v310, 0
    %v408 = vsel %vm43, %v311, 0
    %v411 = vsel %vm43, %v312, 0
    %v414 = vsel %vm43, %v313, 0
    %v417 = vsel %vm43, %v314, 0
    %419 = vmatprep.subr.mxu0 0.0
    %420 = vmatpush1.msra.mxu0 %v315
    %421 = vmatprep.subr.mxu0 0.0
    %422 = vmatpush1.msra.mxu0 %v316
    %423 = vmatprep.subr.mxu0 0.0
    %424 = vmatpush1.msra.mxu0 %v317
    %425 = vmatprep.subr.mxu0 0.0
    %426 = vmatpush1.msra.mxu0 %v318
    %427 = vmatprep.subr.mxu0 0.0
    %428 = vmatpush1.msra.mxu0 %v319
    %429 = vmatprep.subr.mxu0 0.0
    %430 = vmatpush1.msra.mxu0 %v320
    %431 = vmatprep.subr.mxu0 0.0
    %432 = vmatpush1.msra.mxu0 %v321
    %433 = vmatprep.subr.mxu0 0.0
    %434 = vmatpush1.msra.mxu0 %v322
    %435 = vmatprep.subr.mxu0 0.0
    %436 = vmatpush1.msra.mxu0 0.0
    %437 = vmatprep.subr.mxu0 0.0
    %438 = vmatpush1.msra.mxu0 0.0
    %439 = vmatprep.subr.mxu0 0.0
    %440 = vmatpush1.msra.mxu0 0.0
    %441 = vmatprep.subr.mxu0 0.0
    %442 = vmatpush1.msra.mxu0 0.0
    %443 = vmatprep.subr.mxu0 0.0
    %444 = vmatpush1.msra.mxu0 0.0
    %445 = vmatprep.subr.mxu0 0.0
    %446 = vmatpush1.msra.mxu0 0.0
    %447 = vmatprep.subr.mxu0 0.0
    %448 = vmatpush1.msra.mxu0 0.0
    %449 = vmatprep.subr.mxu0 0.0
    %450 = vmatpush1.msra.mxu0 0.0
    %451 = vmatprep.subr.mxu0 0.0
    %452 = vmatpush1.msra.mxu0 0.0
    %453 = vmatprep.subr.mxu0 0.0
    %454 = vmatpush1.msra.mxu0 0.0
    %455 = vmatprep.subr.mxu0 0.0
    %456 = vmatpush1.msra.mxu0 0.0
    %457 = vmatprep.subr.mxu0 0.0
    %458 = vmatpush1.msra.mxu0 0.0
    %459 = vmatprep.subr.mxu0 0.0
    %460 = vmatpush1.msra.mxu0 0.0
    %461 = vmatprep.subr.mxu0 0.0
    %462 = vmatpush1.msra.mxu0 0.0
    %463 = vmatprep.subr.mxu0 0.0
    %464 = vmatpush1.msra.mxu0 0.0
    %465 = vmatprep.subr.mxu0 0.0
    %466 = vmatpush1.msra.mxu0 0.0
    %467 = vmatprep.subr.mxu0 0.0
    %468 = vmatpush1.msra.mxu0 0.0
    %469 = vmatprep.subr.mxu0 0.0
    %470 = vmatpush1.msra.mxu0 0.0
    %471 = vmatprep.subr.mxu0 0.0
    %472 = vmatpush1.msra.mxu0 0.0
    %473 = vmatprep.subr.mxu0 0.0
    %474 = vmatpush1.msra.mxu0 0.0
    %475 = vmatprep.subr.mxu0 0.0
    %476 = vmatpush1.msra.mxu0 0.0
    %477 = vmatprep.subr.mxu0 0.0
    %478 = vmatpush1.msra.mxu0 0.0
    %479 = vmatprep.subr.mxu0 0.0
    %480 = vmatpush1.msra.mxu0 0.0
    %481 = vmatprep.subr.mxu0 0.0
    %482 = vmatpush1.msra.mxu0 0.0
    %483 = vmatprep.mubr.f32.mxu0 0.0
    %484 = vmatmul.mubr.f32.gmra.mrb[0].mxu0 %v324
    %v485 = vpop.f32.mrb[0].mxu0
    %v486 = vadd.f32 0.0, %v485
    %v487 = vpop.f32.mrb[0].mxu0
    %488 = vmatprep.mubr.f32.mxu0 0.0
    %489 = vmatmul.mubr.f32.gmra.mrb[0].mxu0 %v327
    %v490 = vpop.f32.mrb[0].mxu0
    %v491 = vadd.f32 0.0, %v490
    %v492 = vpop.f32.mrb[0].mxu0
    %493 = vmatprep.mubr.f32.mxu0 0.0
    %494 = vmatmul.mubr.f32.gmra.mrb[0].mxu0 %v330
    %v495 = vpop.f32.mrb[0].mxu0
    %v496 = vadd.f32 0.0, %v495
    %v497 = vpop.f32.mrb[0].mxu0
    %498 = vmatprep.mubr.f32.mxu0 0.0
    %499 = vmatmul.mubr.f32.gmra.mrb[0].mxu0 %v333
    %v500 = vpop.f32.mrb[0].mxu0
    %v501 = vadd.f32 0.0, %v500
    %v502 = vpop.f32.mrb[0].mxu0
    %503 = vmatprep.mubr.f32.mxu0 0.0
    %504 = vmatmul.mubr.f32.gmra.mrb[0].mxu0 %v336
    %v505 = vpop.f32.mrb[0].mxu0
    %v506 = vadd.f32 0.0, %v505
    %v507 = vpop.f32.mrb[0].mxu0
    %508 = vmatprep.mubr.f32.mxu0 0.0
    %509 = vmatmul.mubr.f32.gmra.mrb[0].mxu0 %v339
    %v510 = vpop.f32.mrb[0].mxu0
    %v511 = vadd.f32 0.0, %v510
    %v512 = vpop.f32.mrb[0].mxu0
    %513 = vmatprep.mubr.f32.mxu0 0.0
    %514 = vmatmul.mubr.f32.gmra.mrb[0].mxu0 %v342
    %v515 = vpop.f32.mrb[0].mxu0
    %v516 = vadd.f32 0.0, %v515
    %v517 = vpop.f32.mrb[0].mxu0
    %518 = vmatprep.mubr.f32.mxu0 0.0
    %519 = vmatmul.mubr.f32.gmra.mrb[0].mxu0 %v345
    %v520 = vpop.f32.mrb[0].mxu0
    %v521 = vadd.f32 0.0, %v520
    %v522 = vpop.f32.mrb[0].mxu0
    %523 = vmatprep.mubr.f32.mxu0 0.0
    %524 = vmatmul.mubr.f32.gmra.mrb[0].mxu0 %v348
    %v525 = vpop.f32.mrb[0].mxu0
    %v526 = vadd.f32 0.0, %v525
    %v527 = vpop.f32.mrb[0].mxu0
    %528 = vmatprep.mubr.f32.mxu0 0.0
    %529 = vmatmul.mubr.f32.gmra.mrb[0].mxu0 %v351
    %v530 = vpop.f32.mrb[0].mxu0
    %v531 = vadd.f32 0.0, %v530
    %v532 = vpop.f32.mrb[0].mxu0
    %533 = vmatprep.mubr.f32.mxu0 0.0
    %534 = vmatmul.mubr.f32.gmra.mrb[0].mxu0 %v354
    %v535 = vpop.f32.mrb[0].mxu0
    %v536 = vadd.f32 0.0, %v535
    %v537 = vpop.f32.mrb[0].mxu0
    %538 = vmatprep.mubr.f32.mxu0 0.0
    %539 = vmatmul.mubr.f32.gmra.mrb[0].mxu0 %v357
    %v540 = vpop.f32.mrb[0].mxu0
    %v541 = vadd.f32 0.0, %v540
    %v542 = vpop.f32.mrb[0].mxu0
    %543 = vmatprep.mubr.f32.mxu0 0.0
    %544 = vmatmul.mubr.f32.gmra.mrb[0].mxu0 %v360
    %v545 = vpop.f32.mrb[0].mxu0
    %v546 = vadd.f32 0.0, %v545
    %v547 = vpop.f32.mrb[0].mxu0
    %548 = vmatprep.mubr.f32.mxu0 0.0
    %549 = vmatmul.mubr.f32.gmra.mrb[0].mxu0 %v363
    %v550 = vpop.f32.mrb[0].mxu0
    %v551 = vadd.f32 0.0, %v550
    %v552 = vpop.f32.mrb[0].mxu0
    %553 = vmatprep.mubr.f32.mxu0 0.0
    %554 = vmatmul.mubr.f32.gmra.mrb[0].mxu0 %v366
    %v555 = vpop.f32.mrb[0].mxu0
    %v556 = vadd.f32 0.0, %v555
    %v557 = vpop.f32.mrb[0].mxu0
    %558 = vmatprep.mubr.f32.mxu0 0.0
    %559 = vmatmul.mubr.f32.gmra.mrb[0].mxu0 %v369
    %v560 = vpop.f32.mrb[0].mxu0
    %v561 = vadd.f32 0.0, %v560
    %v562 = vpop.f32.mrb[0].mxu0
    %563 = vmatprep.mubr.f32.mxu0 0.0
    %564 = vmatmul.mubr.f32.gmra.mrb[0].mxu0 %v372
    %v565 = vpop.f32.mrb[0].mxu0
    %v566 = vadd.f32 0.0, %v565
    %v567 = vpop.f32.mrb[0].mxu0
    %568 = vmatprep.mubr.f32.mxu0 0.0
    %569 = vmatmul.mubr.f32.gmra.mrb[0].mxu0 %v375
    %v570 = vpop.f32.mrb[0].mxu0
    %v571 = vadd.f32 0.0, %v570
    %v572 = vpop.f32.mrb[0].mxu0
    %573 = vmatprep.mubr.f32.mxu0 0.0
    %574 = vmatmul.mubr.f32.gmra.mrb[0].mxu0 %v378
    %v575 = vpop.f32.mrb[0].mxu0
    %v576 = vadd.f32 0.0, %v575
    %v577 = vpop.f32.mrb[0].mxu0
    %578 = vmatprep.mubr.f32.mxu0 0.0
    %579 = vmatmul.mubr.f32.gmra.mrb[0].mxu0 %v381
    %v580 = vpop.f32.mrb[0].mxu0
    %v581 = vadd.f32 0.0, %v580
    %v582 = vpop.f32.mrb[0].mxu0
    %583 = vmatprep.mubr.f32.mxu0 0.0
    %584 = vmatmul.mubr.f32.gmra.mrb[0].mxu0 %v384
    %v585 = vpop.f32.mrb[0].mxu0
    %v586 = vadd.f32 0.0, %v585
    %v587 = vpop.f32.mrb[0].mxu0
    %588 = vmatprep.mubr.f32.mxu0 0.0
    %589 = vmatmul.mubr.f32.gmra.mrb[0].mxu0 %v387
    %v590 = vpop.f32.mrb[0].mxu0
    %v591 = vadd.f32 0.0, %v590
    %v592 = vpop.f32.mrb[0].mxu0
    %593 = vmatprep.mubr.f32.mxu0 0.0
    %594 = vmatmul.mubr.f32.gmra.mrb[0].mxu0 %v390
    %v595 = vpop.f32.mrb[0].mxu0
    %v596 = vadd.f32 0.0, %v595
    %v597 = vpop.f32.mrb[0].mxu0
    %598 = vmatprep.mubr.f32.mxu0 0.0
    %599 = vmatmul.mubr.f32.gmra.mrb[0].mxu0 %v393
    %v600 = vpop.f32.mrb[0].mxu0
    %v601 = vadd.f32 0.0, %v600
    %v602 = vpop.f32.mrb[0].mxu0
    %603 = vmatprep.mubr.f32.mxu0 0.0
    %604 = vmatmul.mubr.f32.gmra.mrb[0].mxu0 %v396
    %v605 = vpop.f32.mrb[0].mxu0
    %v606 = vadd.f32 0.0, %v605
    %v607 = vpop.f32.mrb[0].mxu0
    %608 = vmatprep.mubr.f32.mxu0 0.0
    %609 = vmatmul.mubr.f32.gmra.mrb[0].mxu0 %v399
    %v610 = vpop.f32.mrb[0].mxu0
    %v611 = vadd.f32 0.0, %v610
    %v612 = vpop.f32.mrb[0].mxu0
    %613 = vmatprep.mubr.f32.mxu0 0.0
    %614 = vmatmul.mubr.f32.gmra.mrb[0].mxu0 %v402
    %v615 = vpop.f32.mrb[0].mxu0
    %v616 = vadd.f32 0.0, %v615
    %v617 = vpop.f32.mrb[0].mxu0
    %618 = vmatprep.mubr.f32.mxu0 0.0
    %619 = vmatmul.mubr.f32.gmra.mrb[0].mxu0 %v405
    %v620 = vpop.f32.mrb[0].mxu0
    %v621 = vadd.f32 0.0, %v620
    %v622 = vpop.f32.mrb[0].mxu0
    %623 = vmatprep.mubr.f32.mxu0 0.0
    %624 = vmatmul.mubr.f32.gmra.mrb[0].mxu0 %v408
    %v625 = vpop.f32.mrb[0].mxu0
    %v626 = vadd.f32 0.0, %v625
    %v627 = vpop.f32.mrb[0].mxu0
    %628 = vmatprep.mubr.f32.mxu0 0.0
    %629 = vmatmul.mubr.f32.gmra.mrb[0].mxu0 %v411
    %v630 = vpop.f32.mrb[0].mxu0
    %v631 = vadd.f32 0.0, %v630
    %v632 = vpop.f32.mrb[0].mxu0
    %633 = vmatprep.mubr.f32.mxu0 0.0
    %634 = vmatmul.mubr.f32.gmra.mrb[0].mxu0 %v414
    %v635 = vpop.f32.mrb[0].mxu0
    %v636 = vadd.f32 0.0, %v635
    %v637 = vpop.f32.mrb[0].mxu0
    %638 = vmatprep.mubr.f32.mxu0 0.0
    %639 = vmatmul.mubr.f32.gmra.mrb[0].mxu0 %v417
    %v640 = vpop.f32.mrb[0].mxu0
    %v641 = vadd.f32 0.0, %v640
    %v642 = vpop.f32.mrb[0].mxu0
    %643 = vdwg.mxu0
    %676 = vrot.lane.b32.xlu0 %v486, 32
    %v677 = vpop.permute.xlu0 %676
    %678 = vrot.lane.b32.xlu0 %v491, 32
    %v679 = vpop.permute.xlu0 %678
    %680 = vrot.lane.b32.xlu0 %v496, 32
    %v681 = vpop.permute.xlu0 %680
    %682 = vrot.lane.b32.xlu0 %v501, 32
    %v683 = vpop.permute.xlu0 %682
    %684 = vrot.lane.b32.xlu0 %v506, 32
    %v685 = vpop.permute.xlu0 %684
    %686 = vrot.lane.b32.xlu0 %v511, 32
    %v687 = vpop.permute.xlu0 %686
    %688 = vrot.lane.b32.xlu0 %v516, 32
    %v689 = vpop.permute.xlu0 %688
    %690 = vrot.lane.b32.xlu0 %v521, 32
    %v691 = vpop.permute.xlu0 %690
    %692 = vrot.lane.b32.xlu0 %v526, 32
    %v693 = vpop.permute.xlu0 %692
    %694 = vrot.lane.b32.xlu0 %v531, 32
    %v695 = vpop.permute.xlu0 %694
    %696 = vrot.lane.b32.xlu0 %v536, 32
    %v697 = vpop.permute.xlu0 %696
    %698 = vrot.lane.b32.xlu0 %v541, 32
    %v699 = vpop.permute.xlu0 %698
    %700 = vrot.lane.b32.xlu0 %v546, 32
    %v701 = vpop.permute.xlu0 %700
    %702 = vrot.lane.b32.xlu0 %v551, 32
    %v703 = vpop.permute.xlu0 %702
    %704 = vrot.lane.b32.xlu0 %v556, 32
    %v705 = vpop.permute.xlu0 %704
    %706 = vrot.lane.b32.xlu0 %v561, 32
    %v707 = vpop.permute.xlu0 %706
    %708 = vrot.lane.b32.xlu0 %v566, 32
    %v709 = vpop.permute.xlu0 %708
    %710 = vrot.lane.b32.xlu0 %v571, 32
    %v711 = vpop.permute.xlu0 %710
    %712 = vrot.lane.b32.xlu0 %v576, 32
    %v713 = vpop.permute.xlu0 %712
    %714 = vrot.lane.b32.xlu0 %v581, 32
    %v715 = vpop.permute.xlu0 %714
    %716 = vrot.lane.b32.xlu0 %v586, 32
    %v717 = vpop.permute.xlu0 %716
    %718 = vrot.lane.b32.xlu0 %v591, 32
    %v719 = vpop.permute.xlu0 %718
    %720 = vrot.lane.b32.xlu0 %v596, 32
    %v721 = vpop.permute.xlu0 %720
    %722 = vrot.lane.b32.xlu0 %v601, 32
    %v723 = vpop.permute.xlu0 %722
    %724 = vrot.lane.b32.xlu0 %v606, 32
    %v725 = vpop.permute.xlu0 %724
    %726 = vrot.lane.b32.xlu0 %v611, 32
    %v727 = vpop.permute.xlu0 %726
    %728 = vrot.lane.b32.xlu0 %v616, 32
    %v729 = vpop.permute.xlu0 %728
    %730 = vrot.lane.b32.xlu0 %v621, 32
    %v731 = vpop.permute.xlu0 %730
    %732 = vrot.lane.b32.xlu0 %v626, 32
    %v733 = vpop.permute.xlu0 %732
    %734 = vrot.lane.b32.xlu0 %v631, 32
    %v735 = vpop.permute.xlu0 %734
    %736 = vrot.lane.b32.xlu0 %v636, 32
    %v737 = vpop.permute.xlu0 %736
    %738 = vrot.lane.b32.xlu0 %v641, 32
    %v739 = vpop.permute.xlu0 %738
    %vm772 = vcmask 523520
    %773 = vst.msk [vmem:[%s217 + $0x1] sm:$0xff] %vm772, %v677
    %774 = vst.msk [vmem:[%s217 + $0x9] sm:$0xff] %vm772, %v679
    %775 = vst.msk [vmem:[%s217 + $0x19] sm:$0xff] %vm772, %v681
    %776 = vst.msk [vmem:[%s217 + $0x21] sm:$0xff] %vm772, %v683
    %777 = vst.msk [vmem:[%s217 + $0x31] sm:$0xff] %vm772, %v685
    %778 = vst.msk [vmem:[%s217 + $0x39] sm:$0xff] %vm772, %v687
    %779 = vst.msk [vmem:[%s217 + $0x49] sm:$0xff] %vm772, %v689
    %780 = vst.msk [vmem:[%s217 + $0x51] sm:$0xff] %vm772, %v691
    %781 = vst.msk [vmem:[%s217 + $0x61] sm:$0xff] %vm772, %v693
    %782 = vst.msk [vmem:[%s217 + $0x69] sm:$0xff] %vm772, %v695
    %783 = vst.msk [vmem:[%s217 + $0x79] sm:$0xff] %vm772, %v697
    %784 = vst.msk [vmem:[%s217 + $0x81] sm:$0xff] %vm772, %v699
    %785 = vst.msk [vmem:[%s217 + $0x91] sm:$0xff] %vm772, %v701
    %786 = vst.msk [vmem:[%s217 + $0x99] sm:$0xff] %vm772, %v703
    %787 = vst.msk [vmem:[%s217 + $0xa9] sm:$0xff] %vm772, %v705
    %788 = vst.msk [vmem:[%s217 + $0xb1] sm:$0xff] %vm772, %v707
    %789 = vst.msk [vmem:[%s217 + $0xc1] sm:$0xff] %vm772, %v709
    %790 = vst.msk [vmem:[%s217 + $0xc9] sm:$0xff] %vm772, %v711
    %791 = vst.msk [vmem:[%s217 + $0xd9] sm:$0xff] %vm772, %v713
    %792 = vst.msk [vmem:[%s217 + $0xe1] sm:$0xff] %vm772, %v715
    %793 = vst.msk [vmem:[%s217 + $0xf1] sm:$0xff] %vm772, %v717
    %794 = vst.msk [vmem:[%s217 + $0xf9] sm:$0xff] %vm772, %v719
    %795 = vst.msk [vmem:[%s217 + $0x109] sm:$0xff] %vm772, %v721
    %796 = vst.msk [vmem:[%s217 + $0x111] sm:$0xff] %vm772, %v723
    %797 = vst.msk [vmem:[%s217 + $0x121] sm:$0xff] %vm772, %v725
    %798 = vst.msk [vmem:[%s217 + $0x129] sm:$0xff] %vm772, %v727
    %799 = vst.msk [vmem:[%s217 + $0x139] sm:$0xff] %vm772, %v729
    %800 = vst.msk [vmem:[%s217 + $0x141] sm:$0xff] %vm772, %v731
    %801 = vst.msk [vmem:[%s217 + $0x151] sm:$0xff] %vm772, %v733
    %802 = vst.msk [vmem:[%s217 + $0x159] sm:$0xff] %vm772, %v735
    %803 = vst.msk [vmem:[%s217 + $0x169] sm:$0xff] %vm772, %v737
    %804 = vst.msk [vmem:[%s217 + $0x171] sm:$0xff] %vm772, %v739
    %s805 = scalar_lea.vmem [#allocation2], 456
    %806 = vst.msk [vmem:[%s805 + $0x1] sm:$0xff] %vm772, %v486
    %807 = vst.msk [vmem:[%s805 + $0x9] sm:$0xff] %vm772, %v491
    %808 = vst.msk [vmem:[%s805 + $0x19] sm:$0xff] %vm772, %v496
    %809 = vst.msk [vmem:[%s805 + $0x21] sm:$0xff] %vm772, %v501
    %810 = vst.msk [vmem:[%s805 + $0x31] sm:$0xff] %vm772, %v506
    %811 = vst.msk [vmem:[%s805 + $0x39] sm:$0xff] %vm772, %v511
    %812 = vst.msk [vmem:[%s805 + $0x49] sm:$0xff] %vm772, %v516
    %813 = vst.msk [vmem:[%s805 + $0x51] sm:$0xff] %vm772, %v521
    %814 = vst.msk [vmem:[%s805 + $0x61] sm:$0xff] %vm772, %v526
    %815 = vst.msk [vmem:[%s805 + $0x69] sm:$0xff] %vm772, %v531
    %816 = vst.msk [vmem:[%s805 + $0x79] sm:$0xff] %vm772, %v536
    %817 = vst.msk [vmem:[%s805 + $0x81] sm:$0xff] %vm772, %v541
    %818 = vst.msk [vmem:[%s805 + $0x91] sm:$0xff] %vm772, %v546
    %819 = vst.msk [vmem:[%s805 + $0x99] sm:$0xff] %vm772, %v551
    %820 = vst.msk [vmem:[%s805 + $0xa9] sm:$0xff] %vm772, %v556
    %821 = vst.msk [vmem:[%s805 + $0xb1] sm:$0xff] %vm772, %v561
    %822 = vst.msk [vmem:[%s805 + $0xc1] sm:$0xff] %vm772, %v566
    %823 = vst.msk [vmem:[%s805 + $0xc9] sm:$0xff] %vm772, %v571
    %824 = vst.msk [vmem:[%s805 + $0xd9] sm:$0xff] %vm772, %v576
    %825 = vst.msk [vmem:[%s805 + $0xe1] sm:$0xff] %vm772, %v581
    %826 = vst.msk [vmem:[%s805 + $0xf1] sm:$0xff] %vm772, %v586
    %827 = vst.msk [vmem:[%s805 + $0xf9] sm:$0xff] %vm772, %v591
    %828 = vst.msk [vmem:[%s805 + $0x109] sm:$0xff] %vm772, %v596
    %829 = vst.msk [vmem:[%s805 + $0x111] sm:$0xff] %vm772, %v601
    %830 = vst.msk [vmem:[%s805 + $0x121] sm:$0xff] %vm772, %v606
    %831 = vst.msk [vmem:[%s805 + $0x129] sm:$0xff] %vm772, %v611
    %832 = vst.msk [vmem:[%s805 + $0x139] sm:$0xff] %vm772, %v616
    %833 = vst.msk [vmem:[%s805 + $0x141] sm:$0xff] %vm772, %v621
    %834 = vst.msk [vmem:[%s805 + $0x151] sm:$0xff] %vm772, %v626
    %835 = vst.msk [vmem:[%s805 + $0x159] sm:$0xff] %vm772, %v631
    %836 = vst.msk [vmem:[%s805 + $0x169] sm:$0xff] %vm772, %v636
    %837 = vst.msk [vmem:[%s805 + $0x171] sm:$0xff] %vm772, %v641
    %v838 = vld [vmem:[#allocation2] sm:$0xff]
    %v839 = vld [vmem:[#allocation2 + $0x8] sm:$0xff]
    %v840 = vld [vmem:[#allocation2 + $0x18] sm:$0xff]
    %v841 = vld [vmem:[#allocation2 + $0x20] sm:$0xff]
    %v842 = vld [vmem:[#allocation2 + $0x30] sm:$0xff]
    %v843 = vld [vmem:[#allocation2 + $0x38] sm:$0xff]
    %v844 = vld [vmem:[#allocation2 + $0x48] sm:$0xff]
    %v845 = vld [vmem:[#allocation2 + $0x50] sm:$0xff]
    %v846 = vld [vmem:[#allocation2 + $0x60] sm:$0xff]
    %v847 = vld [vmem:[#allocation2 + $0x68] sm:$0xff]
    %v848 = vld [vmem:[#allocation2 + $0x78] sm:$0xff]
    %v849 = vld [vmem:[#allocation2 + $0x80] sm:$0xff]
    %v850 = vld [vmem:[#allocation2 + $0x90] sm:$0xff]
    %v851 = vld [vmem:[#allocation2 + $0x98] sm:$0xff]
    %v852 = vld [vmem:[#allocation2 + $0xa8] sm:$0xff]
    %v853 = vld [vmem:[#allocation2 + $0xb0] sm:$0xff]
    %v854 = vld [vmem:[#allocation2 + $0xc0] sm:$0xff]
    %v855 = vld [vmem:[#allocation2 + $0xc8] sm:$0xff]
    %v856 = vld [vmem:[#allocation2 + $0xd8] sm:$0xff]
    %v857 = vld [vmem:[#allocation2 + $0xe0] sm:$0xff]
    %v858 = vld [vmem:[#allocation2 + $0xf0] sm:$0xff]
    %v859 = vld [vmem:[#allocation2 + $0xf8] sm:$0xff]
    %v860 = vld [vmem:[#allocation2 + $0x108] sm:$0xff]
    %v861 = vld [vmem:[#allocation2 + $0x110] sm:$0xff]
    %v862 = vld [vmem:[#allocation2 + $0x120] sm:$0xff]
    %v863 = vld [vmem:[#allocation2 + $0x128] sm:$0xff]
    %v864 = vld [vmem:[#allocation2 + $0x138] sm:$0xff]
    %v865 = vld [vmem:[#allocation2 + $0x140] sm:$0xff]
    %v866 = vld [vmem:[#allocation2 + $0x150] sm:$0xff]
    %v867 = vld [vmem:[#allocation2 + $0x158] sm:$0xff]
    %v868 = vld [vmem:[#allocation2 + $0x168] sm:$0xff]
    %v869 = vld [vmem:[#allocation2 + $0x170] sm:$0xff]
    %v870 = vld [vmem:[#allocation2 + $0x1b0] sm:$0xff]
    %v871 = vld [vmem:[#allocation2 + $0x1b8] sm:$0xff]
    %v872 = vld [vmem:[#allocation2 + $0x1c8] sm:$0xff]
    %v873 = vld [vmem:[#allocation2 + $0x1d0] sm:$0xff]
    %v874 = vld [vmem:[#allocation2 + $0x1e0] sm:$0xff]
    %v875 = vld [vmem:[#allocation2 + $0x1e8] sm:$0xff]
    %v876 = vld [vmem:[#allocation2 + $0x1f8] sm:$0xff]
    %v877 = vld [vmem:[#allocation2 + $0x200] sm:$0xff]
    %v878 = vld [vmem:[#allocation2 + $0x210] sm:$0xff]
    %v879 = vld [vmem:[#allocation2 + $0x218] sm:$0xff]
    %v880 = vld [vmem:[#allocation2 + $0x228] sm:$0xff]
    %v881 = vld [vmem:[#allocation2 + $0x230] sm:$0xff]
    %v882 = vld [vmem:[#allocation2 + $0x240] sm:$0xff]
    %v883 = vld [vmem:[#allocation2 + $0x248] sm:$0xff]
    %v884 = vld [vmem:[#allocation2 + $0x258] sm:$0xff]
    %v885 = vld [vmem:[#allocation2 + $0x260] sm:$0xff]
    %v886 = vld [vmem:[#allocation2 + $0x270] sm:$0xff]
    %v887 = vld [vmem:[#allocation2 + $0x278] sm:$0xff]
    %v888 = vld [vmem:[#allocation2 + $0x288] sm:$0xff]
    %v889 = vld [vmem:[#allocation2 + $0x290] sm:$0xff]
    %v890 = vld [vmem:[#allocation2 + $0x2a0] sm:$0xff]
    %v891 = vld [vmem:[#allocation2 + $0x2a8] sm:$0xff]
    %v892 = vld [vmem:[#allocation2 + $0x2b8] sm:$0xff]
    %v893 = vld [vmem:[#allocation2 + $0x2c0] sm:$0xff]
    %v894 = vld [vmem:[#allocation2 + $0x2d0] sm:$0xff]
    %v895 = vld [vmem:[#allocation2 + $0x2d8] sm:$0xff]
    %v896 = vld [vmem:[#allocation2 + $0x2e8] sm:$0xff]
    %v897 = vld [vmem:[#allocation2 + $0x2f0] sm:$0xff]
    %v898 = vld [vmem:[#allocation2 + $0x300] sm:$0xff]
    %v899 = vld [vmem:[#allocation2 + $0x308] sm:$0xff]
    %v900 = vld [vmem:[#allocation2 + $0x318] sm:$0xff]
    %v901 = vld [vmem:[#allocation2 + $0x320] sm:$0xff]
    %v902 = vpack.c.bf16 %v839, %v838
    %v903 = vpack.c.bf16 %v841, %v840
    %v904 = vpack.c.bf16 %v843, %v842
    %v905 = vpack.c.bf16 %v845, %v844
    %v906 = vpack.c.bf16 %v847, %v846
    %v907 = vpack.c.bf16 %v849, %v848
    %v908 = vpack.c.bf16 %v851, %v850
    %v909 = vpack.c.bf16 %v853, %v852
    %v910 = vpack.c.bf16 %v855, %v854
    %v911 = vpack.c.bf16 %v857, %v856
    %v912 = vpack.c.bf16 %v859, %v858
    %v913 = vpack.c.bf16 %v861, %v860
    %v914 = vpack.c.bf16 %v863, %v862
    %v915 = vpack.c.bf16 %v865, %v864
    %v916 = vpack.c.bf16 %v867, %v866
    %v917 = vpack.c.bf16 %v869, %v868
    %v918 = vpack.c.bf16 %v871, %v870
    %v919 = vpack.c.bf16 %v873, %v872
    %v920 = vpack.c.bf16 %v875, %v874
    %v921 = vpack.c.bf16 %v877, %v876
    %v922 = vpack.c.bf16 %v879, %v878
    %v923 = vpack.c.bf16 %v881, %v880
    %v924 = vpack.c.bf16 %v883, %v882
    %v925 = vpack.c.bf16 %v885, %v884
    %v926 = vpack.c.bf16 %v887, %v886
    %v927 = vpack.c.bf16 %v889, %v888
    %v928 = vpack.c.bf16 %v891, %v890
    %v929 = vpack.c.bf16 %v893, %v892
    %v930 = vpack.c.bf16 %v895, %v894
    %v931 = vpack.c.bf16 %v897, %v896
    %v932 = vpack.c.bf16 %v899, %v898
    %v933 = vpack.c.bf16 %v901, %v900
    %v934 = vld [vmem:[#allocation2 + $0x1] sm:$0xff]
    %v935 = vld [vmem:[#allocation2 + $0x9] sm:$0xff]
    %v936 = vld [vmem:[#allocation2 + $0x19] sm:$0xff]
    %v937 = vld [vmem:[#allocation2 + $0x21] sm:$0xff]
    %v938 = vld [vmem:[#allocation2 + $0x31] sm:$0xff]
    %v939 = vld [vmem:[#allocation2 + $0x39] sm:$0xff]
    %v940 = vld [vmem:[#allocation2 + $0x49] sm:$0xff]
    %v941 = vld [vmem:[#allocation2 + $0x51] sm:$0xff]
    %v942 = vld [vmem:[#allocation2 + $0x61] sm:$0xff]
    %v943 = vld [vmem:[#allocation2 + $0x69] sm:$0xff]
    %v944 = vld [vmem:[#allocation2 + $0x79] sm:$0xff]
    %v945 = vld [vmem:[#allocation2 + $0x81] sm:$0xff]
    %v946 = vld [vmem:[#allocation2 + $0x91] sm:$0xff]
    %v947 = vld [vmem:[#allocation2 + $0x99] sm:$0xff]
    %v948 = vld [vmem:[#allocation2 + $0xa9] sm:$0xff]
    %v949 = vld [vmem:[#allocation2 + $0xb1] sm:$0xff]
    %v950 = vld [vmem:[#allocation2 + $0xc1] sm:$0xff]
    %v951 = vld [vmem:[#allocation2 + $0xc9] sm:$0xff]
    %v952 = vld [vmem:[#allocation2 + $0xd9] sm:$0xff]
    %v953 = vld [vmem:[#allocation2 + $0xe1] sm:$0xff]
    %v954 = vld [vmem:[#allocation2 + $0xf1] sm:$0xff]
    %v955 = vld [vmem:[#allocation2 + $0xf9] sm:$0xff]
    %v956 = vld [vmem:[#allocation2 + $0x109] sm:$0xff]
    %v957 = vld [vmem:[#allocation2 + $0x111] sm:$0xff]
    %v958 = vld [vmem:[#allocation2 + $0x121] sm:$0xff]
    %v959 = vld [vmem:[#allocation2 + $0x129] sm:$0xff]
    %v960 = vld [vmem:[#allocation2 + $0x139] sm:$0xff]
    %v961 = vld [vmem:[#allocation2 + $0x141] sm:$0xff]
    %v962 = vld [vmem:[#allocation2 + $0x151] sm:$0xff]
    %v963 = vld [vmem:[#allocation2 + $0x159] sm:$0xff]
    %v964 = vld [vmem:[#allocation2 + $0x169] sm:$0xff]
    %v965 = vld [vmem:[#allocation2 + $0x171] sm:$0xff]
    %v966 = vld [vmem:[#allocation2 + $0x1b1] sm:$0xff]
    %v967 = vld [vmem:[#allocation2 + $0x1b9] sm:$0xff]
    %v968 = vld [vmem:[#allocation2 + $0x1c9] sm:$0xff]
    %v969 = vld [vmem:[#allocation2 + $0x1d1] sm:$0xff]
    %v970 = vld [vmem:[#allocation2 + $0x1e1] sm:$0xff]
    %v971 = vld [vmem:[#allocation2 + $0x1e9] sm:$0xff]
    %v972 = vld [vmem:[#allocation2 + $0x1f9] sm:$0xff]
    %v973 = vld [vmem:[#allocation2 + $0x201] sm:$0xff]
    %v974 = vld [vmem:[#allocation2 + $0x211] sm:$0xff]
    %v975 = vld [vmem:[#allocation2 + $0x219] sm:$0xff]
    %v976 = vld [vmem:[#allocation2 + $0x229] sm:$0xff]
    %v977 = vld [vmem:[#allocation2 + $0x231] sm:$0xff]
    %v978 = vld [vmem:[#allocation2 + $0x241] sm:$0xff]
    %v979 = vld [vmem:[#allocation2 + $0x249] sm:$0xff]
    %v980 = vld [vmem:[#allocation2 + $0x259] sm:$0xff]
    %v981 = vld [vmem:[#allocation2 + $0x261] sm:$0xff]
    %v982 = vld [vmem:[#allocation2 + $0x271] sm:$0xff]
    %v983 = vld [vmem:[#allocation2 + $0x279] sm:$0xff]
    %v984 = vld [vmem:[#allocation2 + $0x289] sm:$0xff]
    %v985 = vld [vmem:[#allocation2 + $0x291] sm:$0xff]
    %v986 = vld [vmem:[#allocation2 + $0x2a1] sm:$0xff]
    %v987 = vld [vmem:[#allocation2 + $0x2a9] sm:$0xff]
    %v988 = vld [vmem:[#allocation2 + $0x2b9] sm:$0xff]
    %v989 = vld [vmem:[#allocation2 + $0x2c1] sm:$0xff]
    %v990 = vld [vmem:[#allocation2 + $0x2d1] sm:$0xff]
    %v991 = vld [vmem:[#allocation2 + $0x2d9] sm:$0xff]
    %v992 = vld [vmem:[#allocation2 + $0x2e9] sm:$0xff]
    %v993 = vld [vmem:[#allocation2 + $0x2f1] sm:$0xff]
    %v994 = vld [vmem:[#allocation2 + $0x301] sm:$0xff]
    %v995 = vld [vmem:[#allocation2 + $0x309] sm:$0xff]
    %v996 = vld [vmem:[#allocation2 + $0x319] sm:$0xff]
    %v997 = vld [vmem:[#allocation2 + $0x321] sm:$0xff]
    %v998 = vpack.c.bf16 %v935, %v934
    %v999 = vpack.c.bf16 %v937, %v936
    %v1000 = vpack.c.bf16 %v939, %v938
    %v1001 = vpack.c.bf16 %v941, %v940
    %v1002 = vpack.c.bf16 %v943, %v942
    %v1003 = vpack.c.bf16 %v945, %v944
    %v1004 = vpack.c.bf16 %v947, %v946
    %v1005 = vpack.c.bf16 %v949, %v948
    %v1006 = vpack.c.bf16 %v951, %v950
    %v1007 = vpack.c.bf16 %v953, %v952
    %v1008 = vpack.c.bf16 %v955, %v954
    %v1009 = vpack.c.bf16 %v957, %v956
    %v1010 = vpack.c.bf16 %v959, %v958
    %v1011 = vpack.c.bf16 %v961, %v960
    %v1012 = vpack.c.bf16 %v963, %v962
    %v1013 = vpack.c.bf16 %v965, %v964
    %v1014 = vpack.c.bf16 %v967, %v966
    %v1015 = vpack.c.bf16 %v969, %v968
    %v1016 = vpack.c.bf16 %v971, %v970
    %v1017 = vpack.c.bf16 %v973, %v972
    %v1018 = vpack.c.bf16 %v975, %v974
    %v1019 = vpack.c.bf16 %v977, %v976
    %v1020 = vpack.c.bf16 %v979, %v978
    %v1021 = vpack.c.bf16 %v981, %v980
    %v1022 = vpack.c.bf16 %v983, %v982
    %v1023 = vpack.c.bf16 %v985, %v984
    %v1024 = vpack.c.bf16 %v987, %v986
    %v1025 = vpack.c.bf16 %v989, %v988
    %v1026 = vpack.c.bf16 %v991, %v990
    %v1027 = vpack.c.bf16 %v993, %v992
    %v1028 = vpack.c.bf16 %v995, %v994
    %v1029 = vpack.c.bf16 %v997, %v996
    %v1030 = vld [vmem:[#allocation2 + $0x2] sm:$0xff]
    %v1031 = vld [vmem:[#allocation2 + $0xa] sm:$0xff]
    %v1032 = vld [vmem:[#allocation2 + $0x1a] sm:$0xff]
    %v1033 = vld [vmem:[#allocation2 + $0x22] sm:$0xff]
    %v1034 = vld [vmem:[#allocation2 + $0x32] sm:$0xff]
    %v1035 = vld [vmem:[#allocation2 + $0x3a] sm:$0xff]
    %v1036 = vld [vmem:[#allocation2 + $0x4a] sm:$0xff]
    %v1037 = vld [vmem:[#allocation2 + $0x52] sm:$0xff]
    %v1038 = vld [vmem:[#allocation2 + $0x62] sm:$0xff]
    %v1039 = vld [vmem:[#allocation2 + $0x6a] sm:$0xff]
    %v1040 = vld [vmem:[#allocation2 + $0x7a] sm:$0xff]
    %v1041 = vld [vmem:[#allocation2 + $0x82] sm:$0xff]
    %v1042 = vld [vmem:[#allocation2 + $0x92] sm:$0xff]
    %v1043 = vld [vmem:[#allocation2 + $0x9a] sm:$0xff]
    %v1044 = vld [vmem:[#allocation2 + $0xaa] sm:$0xff]
    %v1045 = vld [vmem:[#allocation2 + $0xb2] sm:$0xff]
    %v1046 = vld [vmem:[#allocation2 + $0xc2] sm:$0xff]
    %v1047 = vld [vmem:[#allocation2 + $0xca] sm:$0xff]
    %v1048 = vld [vmem:[#allocation2 + $0xda] sm:$0xff]
    %v1049 = vld [vmem:[#allocation2 + $0xe2] sm:$0xff]
    %v1050 = vld [vmem:[#allocation2 + $0xf2] sm:$0xff]
    %v1051 = vld [vmem:[#allocation2 + $0xfa] sm:$0xff]
    %v1052 = vld [vmem:[#allocation2 + $0x10a] sm:$0xff]
    %v1053 = vld [vmem:[#allocation2 + $0x112] sm:$0xff]
    %v1054 = vld [vmem:[#allocation2 + $0x122] sm:$0xff]
    %v1055 = vld [vmem:[#allocation2 + $0x12a] sm:$0xff]
    %v1056 = vld [vmem:[#allocation2 + $0x13a] sm:$0xff]
    %v1057 = vld [vmem:[#allocation2 + $0x142] sm:$0xff]
    %v1058 = vld [vmem:[#allocation2 + $0x152] sm:$0xff]
    %v1059 = vld [vmem:[#allocation2 + $0x15a] sm:$0xff]
    %v1060 = vld [vmem:[#allocation2 + $0x16a] sm:$0xff]
    %v1061 = vld [vmem:[#allocation2 + $0x172] sm:$0xff]
    %v1062 = vld [vmem:[#allocation2 + $0x1b2] sm:$0xff]
    %v1063 = vld [vmem:[#allocation2 + $0x1ba] sm:$0xff]
    %v1064 = vld [vmem:[#allocation2 + $0x1ca] sm:$0xff]
    %v1065 = vld [vmem:[#allocation2 + $0x1d2] sm:$0xff]
    %v1066 = vld [vmem:[#allocation2 + $0x1e2] sm:$0xff]
    %v1067 = vld [vmem:[#allocation2 + $0x1ea] sm:$0xff]
    %v1068 = vld [vmem:[#allocation2 + $0x1fa] sm:$0xff]
    %v1069 = vld [vmem:[#allocation2 + $0x202] sm:$0xff]
    %v1070 = vld [vmem:[#allocation2 + $0x212] sm:$0xff]
    %v1071 = vld [vmem:[#allocation2 + $0x21a] sm:$0xff]
    %v1072 = vld [vmem:[#allocation2 + $0x22a] sm:$0xff]
    %v1073 = vld [vmem:[#allocation2 + $0x232] sm:$0xff]
    %v1074 = vld [vmem:[#allocation2 + $0x242] sm:$0xff]
    %v1075 = vld [vmem:[#allocation2 + $0x24a] sm:$0xff]
    %v1076 = vld [vmem:[#allocation2 + $0x25a] sm:$0xff]
    %v1077 = vld [vmem:[#allocation2 + $0x262] sm:$0xff]
    %v1078 = vld [vmem:[#allocation2 + $0x272] sm:$0xff]
    %v1079 = vld [vmem:[#allocation2 + $0x27a] sm:$0xff]
    %v1080 = vld [vmem:[#allocation2 + $0x28a] sm:$0xff]
    %v1081 = vld [vmem:[#allocation2 + $0x292] sm:$0xff]
    %v1082 = vld [vmem:[#allocation2 + $0x2a2] sm:$0xff]
    %v1083 = vld [vmem:[#allocation2 + $0x2aa] sm:$0xff]
    %v1084 = vld [vmem:[#allocation2 + $0x2ba] sm:$0xff]
    %v1085 = vld [vmem:[#allocation2 + $0x2c2] sm:$0xff]
    %v1086 = vld [vmem:[#allocation2 + $0x2d2] sm:$0xff]
    %v1087 = vld [vmem:[#allocation2 + $0x2da] sm:$0xff]
    %v1088 = vld [vmem:[#allocation2 + $0x2ea] sm:$0xff]
    %v1089 = vld [vmem:[#allocation2 + $0x2f2] sm:$0xff]
    %v1090 = vld [vmem:[#allocation2 + $0x302] sm:$0xff]
    %v1091 = vld [vmem:[#allocation2 + $0x30a] sm:$0xff]
    %v1092 = vld [vmem:[#allocation2 + $0x31a] sm:$0xff]
    %v1093 = vld [vmem:[#allocation2 + $0x322] sm:$0xff]
    %v1094 = vpack.c.bf16 %v1031, %v1030
    %v1095 = vpack.c.bf16 %v1033, %v1032
    %v1096 = vpack.c.bf16 %v1035, %v1034
    %v1097 = vpack.c.bf16 %v1037, %v1036
    %v1098 = vpack.c.bf16 %v1039, %v1038
    %v1099 = vpack.c.bf16 %v1041, %v1040
    %v1100 = vpack.c.bf16 %v1043, %v1042
    %v1101 = vpack.c.bf16 %v1045, %v1044
    %v1102 = vpack.c.bf16 %v1047, %v1046
    %v1103 = vpack.c.bf16 %v1049, %v1048
    %v1104 = vpack.c.bf16 %v1051, %v1050
    %v1105 = vpack.c.bf16 %v1053, %v1052
    %v1106 = vpack.c.bf16 %v1055, %v1054
    %v1107 = vpack.c.bf16 %v1057, %v1056
    %v1108 = vpack.c.bf16 %v1059, %v1058
    %v1109 = vpack.c.bf16 %v1061, %v1060
    %v1110 = vpack.c.bf16 %v1063, %v1062
    %v1111 = vpack.c.bf16 %v1065, %v1064
    %v1112 = vpack.c.bf16 %v1067, %v1066
    %v1113 = vpack.c.bf16 %v1069, %v1068
    %v1114 = vpack.c.bf16 %v1071, %v1070
    %v1115 = vpack.c.bf16 %v1073, %v1072
    %v1116 = vpack.c.bf16 %v1075, %v1074
    %v1117 = vpack.c.bf16 %v1077, %v1076
    %v1118 = vpack.c.bf16 %v1079, %v1078
    %v1119 = vpack.c.bf16 %v1081, %v1080
    %v1120 = vpack.c.bf16 %v1083, %v1082
    %v1121 = vpack.c.bf16 %v1085, %v1084
    %v1122 = vpack.c.bf16 %v1087, %v1086
    %v1123 = vpack.c.bf16 %v1089, %v1088
    %v1124 = vpack.c.bf16 %v1091, %v1090
    %v1125 = vpack.c.bf16 %v1093, %v1092
    %v1126 = vld [vmem:[%s217] sm:$0xff]
    %v1127 = vld [vmem:[%s217 + $0x8] sm:$0xff]
    %v1128 = vld [vmem:[%s217 + $0x18] sm:$0xff]
    %v1129 = vld [vmem:[%s217 + $0x20] sm:$0xff]
    %v1130 = vld [vmem:[%s217 + $0x30] sm:$0xff]
    %v1131 = vld [vmem:[%s217 + $0x38] sm:$0xff]
    %v1132 = vld [vmem:[%s217 + $0x48] sm:$0xff]
    %v1133 = vld [vmem:[%s217 + $0x50] sm:$0xff]
    %v1134 = vld [vmem:[%s217 + $0x60] sm:$0xff]
    %v1135 = vld [vmem:[%s217 + $0x68] sm:$0xff]
    %v1136 = vld [vmem:[%s217 + $0x78] sm:$0xff]
    %v1137 = vld [vmem:[%s217 + $0x80] sm:$0xff]
    %v1138 = vld [vmem:[%s217 + $0x90] sm:$0xff]
    %v1139 = vld [vmem:[%s217 + $0x98] sm:$0xff]
    %v1140 = vld [vmem:[%s217 + $0xa8] sm:$0xff]
    %v1141 = vld [vmem:[%s217 + $0xb0] sm:$0xff]
    %v1142 = vld [vmem:[%s217 + $0xc0] sm:$0xff]
    %v1143 = vld [vmem:[%s217 + $0xc8] sm:$0xff]
    %v1144 = vld [vmem:[%s217 + $0xd8] sm:$0xff]
    %v1145 = vld [vmem:[%s217 + $0xe0] sm:$0xff]
    %v1146 = vld [vmem:[%s217 + $0xf0] sm:$0xff]
    %v1147 = vld [vmem:[%s217 + $0xf8] sm:$0xff]
    %v1148 = vld [vmem:[%s217 + $0x108] sm:$0xff]
    %v1149 = vld [vmem:[%s217 + $0x110] sm:$0xff]
    %v1150 = vld [vmem:[%s217 + $0x120] sm:$0xff]
    %v1151 = vld [vmem:[%s217 + $0x128] sm:$0xff]
    %v1152 = vld [vmem:[%s217 + $0x138] sm:$0xff]
    %v1153 = vld [vmem:[%s217 + $0x140] sm:$0xff]
    %v1154 = vld [vmem:[%s217 + $0x150] sm:$0xff]
    %v1155 = vld [vmem:[%s217 + $0x158] sm:$0xff]
    %v1156 = vld [vmem:[%s217 + $0x168] sm:$0xff]
    %v1157 = vld [vmem:[%s217 + $0x170] sm:$0xff]
    %v1158 = vld [vmem:[%s217 + $0x1b0] sm:$0xff]
    %v1159 = vld [vmem:[%s217 + $0x1b8] sm:$0xff]
    %v1160 = vld [vmem:[%s217 + $0x1c8] sm:$0xff]
    %v1161 = vld [vmem:[%s217 + $0x1d0] sm:$0xff]
    %v1162 = vld [vmem:[%s217 + $0x1e0] sm:$0xff]
    %v1163 = vld [vmem:[%s217 + $0x1e8] sm:$0xff]
    %v1164 = vld [vmem:[%s217 + $0x1f8] sm:$0xff]
    %v1165 = vld [vmem:[%s217 + $0x200] sm:$0xff]
    %v1166 = vld [vmem:[%s217 + $0x210] sm:$0xff]
    %v1167 = vld [vmem:[%s217 + $0x218] sm:$0xff]
    %v1168 = vld [vmem:[%s217 + $0x228] sm:$0xff]
    %v1169 = vld [vmem:[%s217 + $0x230] sm:$0xff]
    %v1170 = vld [vmem:[%s217 + $0x240] sm:$0xff]
    %v1171 = vld [vmem:[%s217 + $0x248] sm:$0xff]
    %v1172 = vld [vmem:[%s217 + $0x258] sm:$0xff]
    %v1173 = vld [vmem:[%s217 + $0x260] sm:$0xff]
    %v1174 = vld [vmem:[%s217 + $0x270] sm:$0xff]
    %v1175 = vld [vmem:[%s217 + $0x278] sm:$0xff]
    %v1176 = vld [vmem:[%s217 + $0x288] sm:$0xff]
    %v1177 = vld [vmem:[%s217 + $0x290] sm:$0xff]
    %v1178 = vld [vmem:[%s217 + $0x2a0] sm:$0xff]
    %v1179 = vld [vmem:[%s217 + $0x2a8] sm:$0xff]
    %v1180 = vld [vmem:[%s217 + $0x2b8] sm:$0xff]
    %v1181 = vld [vmem:[%s217 + $0x2c0] sm:$0xff]
    %v1182 = vld [vmem:[%s217 + $0x2d0] sm:$0xff]
    %v1183 = vld [vmem:[%s217 + $0x2d8] sm:$0xff]
    %v1184 = vld [vmem:[%s217 + $0x2e8] sm:$0xff]
    %v1185 = vld [vmem:[%s217 + $0x2f0] sm:$0xff]
    %v1186 = vld [vmem:[%s217 + $0x300] sm:$0xff]
    %v1187 = vld [vmem:[%s217 + $0x308] sm:$0xff]
    %v1188 = vld [vmem:[%s217 + $0x318] sm:$0xff]
    %v1189 = vld [vmem:[%s217 + $0x320] sm:$0xff]
    %v1190 = vpack.c.bf16 %v1127, %v1126
    %v1191 = vpack.c.bf16 %v1129, %v1128
    %v1192 = vpack.c.bf16 %v1131, %v1130
    %v1193 = vpack.c.bf16 %v1133, %v1132
    %v1194 = vpack.c.bf16 %v1135, %v1134
    %v1195 = vpack.c.bf16 %v1137, %v1136
    %v1196 = vpack.c.bf16 %v1139, %v1138
    %v1197 = vpack.c.bf16 %v1141, %v1140
    %v1198 = vpack.c.bf16 %v1143, %v1142
    %v1199 = vpack.c.bf16 %v1145, %v1144
    %v1200 = vpack.c.bf16 %v1147, %v1146
    %v1201 = vpack.c.bf16 %v1149, %v1148
    %v1202 = vpack.c.bf16 %v1151, %v1150
    %v1203 = vpack.c.bf16 %v1153, %v1152
    %v1204 = vpack.c.bf16 %v1155, %v1154
    %v1205 = vpack.c.bf16 %v1157, %v1156
    %v1206 = vpack.c.bf16 %v1159, %v1158
    %v1207 = vpack.c.bf16 %v1161, %v1160
    %v1208 = vpack.c.bf16 %v1163, %v1162
    %v1209 = vpack.c.bf16 %v1165, %v1164
    %v1210 = vpack.c.bf16 %v1167, %v1166
    %v1211 = vpack.c.bf16 %v1169, %v1168
    %v1212 = vpack.c.bf16 %v1171, %v1170
    %v1213 = vpack.c.bf16 %v1173, %v1172
    %v1214 = vpack.c.bf16 %v1175, %v1174
    %v1215 = vpack.c.bf16 %v1177, %v1176
    %v1216 = vpack.c.bf16 %v1179, %v1178
    %v1217 = vpack.c.bf16 %v1181, %v1180
    %v1218 = vpack.c.bf16 %v1183, %v1182
    %v1219 = vpack.c.bf16 %v1185, %v1184
    %v1220 = vpack.c.bf16 %v1187, %v1186
    %v1221 = vpack.c.bf16 %v1189, %v1188
    %v1222 = vld [vmem:[%s217 + $0x1] sm:$0xff]
    %v1223 = vld [vmem:[%s217 + $0x9] sm:$0xff]
    %v1224 = vld [vmem:[%s217 + $0x19] sm:$0xff]
    %v1225 = vld [vmem:[%s217 + $0x21] sm:$0xff]
    %v1226 = vld [vmem:[%s217 + $0x31] sm:$0xff]
    %v1227 = vld [vmem:[%s217 + $0x39] sm:$0xff]
    %v1228 = vld [vmem:[%s217 + $0x49] sm:$0xff]
    %v1229 = vld [vmem:[%s217 + $0x51] sm:$0xff]
    %v1230 = vld [vmem:[%s217 + $0x61] sm:$0xff]
    %v1231 = vld [vmem:[%s217 + $0x69] sm:$0xff]
    %v1232 = vld [vmem:[%s217 + $0x79] sm:$0xff]
    %v1233 = vld [vmem:[%s217 + $0x81] sm:$0xff]
    %v1234 = vld [vmem:[%s217 + $0x91] sm:$0xff]
    %v1235 = vld [vmem:[%s217 + $0x99] sm:$0xff]
    %v1236 = vld [vmem:[%s217 + $0xa9] sm:$0xff]
    %v1237 = vld [vmem:[%s217 + $0xb1] sm:$0xff]
    %v1238 = vld [vmem:[%s217 + $0xc1] sm:$0xff]
    %v1239 = vld [vmem:[%s217 + $0xc9] sm:$0xff]
    %v1240 = vld [vmem:[%s217 + $0xd9] sm:$0xff]
    %v1241 = vld [vmem:[%s217 + $0xe1] sm:$0xff]
    %v1242 = vld [vmem:[%s217 + $0xf1] sm:$0xff]
    %v1243 = vld [vmem:[%s217 + $0xf9] sm:$0xff]
    %v1244 = vld [vmem:[%s217 + $0x109] sm:$0xff]
    %v1245 = vld [vmem:[%s217 + $0x111] sm:$0xff]
    %v1246 = vld [vmem:[%s217 + $0x121] sm:$0xff]
    %v1247 = vld [vmem:[%s217 + $0x129] sm:$0xff]
    %v1248 = vld [vmem:[%s217 + $0x139] sm:$0xff]
    %v1249 = vld [vmem:[%s217 + $0x141] sm:$0xff]
    %v1250 = vld [vmem:[%s217 + $0x151] sm:$0xff]
    %v1251 = vld [vmem:[%s217 + $0x159] sm:$0xff]
    %v1252 = vld [vmem:[%s217 + $0x169] sm:$0xff]
    %v1253 = vld [vmem:[%s217 + $0x171] sm:$0xff]
    %v1254 = vld [vmem:[%s217 + $0x1b1] sm:$0xff]
    %v1255 = vld [vmem:[%s217 + $0x1b9] sm:$0xff]
    %v1256 = vld [vmem:[%s217 + $0x1c9] sm:$0xff]
    %v1257 = vld [vmem:[%s217 + $0x1d1] sm:$0xff]
    %v1258 = vld [vmem:[%s217 + $0x1e1] sm:$0xff]
    %v1259 = vld [vmem:[%s217 + $0x1e9] sm:$0xff]
    %v1260 = vld [vmem:[%s217 + $0x1f9] sm:$0xff]
    %v1261 = vld [vmem:[%s217 + $0x201] sm:$0xff]
    %v1262 = vld [vmem:[%s217 + $0x211] sm:$0xff]
    %v1263 = vld [vmem:[%s217 + $0x219] sm:$0xff]
    %v1264 = vld [vmem:[%s217 + $0x229] sm:$0xff]
    %v1265 = vld [vmem:[%s217 + $0x231] sm:$0xff]
    %v1266 = vld [vmem:[%s217 + $0x241] sm:$0xff]
    %v1267 = vld [vmem:[%s217 + $0x249] sm:$0xff]
    %v1268 = vld [vmem:[%s217 + $0x259] sm:$0xff]
    %v1269 = vld [vmem:[%s217 + $0x261] sm:$0xff]
    %v1270 = vld [vmem:[%s217 + $0x271] sm:$0xff]
    %v1271 = vld [vmem:[%s217 + $0x279] sm:$0xff]
    %v1272 = vld [vmem:[%s217 + $0x289] sm:$0xff]
    %v1273 = vld [vmem:[%s217 + $0x291] sm:$0xff]
    %v1274 = vld [vmem:[%s217 + $0x2a1] sm:$0xff]
    %v1275 = vld [vmem:[%s217 + $0x2a9] sm:$0xff]
    %v1276 = vld [vmem:[%s217 + $0x2b9] sm:$0xff]
    %v1277 = vld [vmem:[%s217 + $0x2c1] sm:$0xff]
    %v1278 = vld [vmem:[%s217 + $0x2d1] sm:$0xff]
    %v1279 = vld [vmem:[%s217 + $0x2d9] sm:$0xff]
    %v1280 = vld [vmem:[%s217 + $0x2e9] sm:$0xff]
    %v1281 = vld [vmem:[%s217 + $0x2f1] sm:$0xff]
    %v1282 = vld [vmem:[%s217 + $0x301] sm:$0xff]
    %v1283 = vld [vmem:[%s217 + $0x309] sm:$0xff]
    %v1284 = vld [vmem:[%s217 + $0x319] sm:$0xff]
    %v1285 = vld [vmem:[%s217 + $0x321] sm:$0xff]
    %v1286 = vpack.c.bf16 %v1223, %v1222
    %v1287 = vpack.c.bf16 %v1225, %v1224
    %v1288 = vpack.c.bf16 %v1227, %v1226
    %v1289 = vpack.c.bf16 %v1229, %v1228
    %v1290 = vpack.c.bf16 %v1231, %v1230
    %v1291 = vpack.c.bf16 %v1233, %v1232
    %v1292 = vpack.c.bf16 %v1235, %v1234
    %v1293 = vpack.c.bf16 %v1237, %v1236
    %v1294 = vpack.c.bf16 %v1239, %v1238
    %v1295 = vpack.c.bf16 %v1241, %v1240
    %v1296 = vpack.c.bf16 %v1243, %v1242
    %v1297 = vpack.c.bf16 %v1245, %v1244
    %v1298 = vpack.c.bf16 %v1247, %v1246
    %v1299 = vpack.c.bf16 %v1249, %v1248
    %v1300 = vpack.c.bf16 %v1251, %v1250
    %v1301 = vpack.c.bf16 %v1253, %v1252
    %v1302 = vpack.c.bf16 %v1255, %v1254
    %v1303 = vpack.c.bf16 %v1257, %v1256
    %v1304 = vpack.c.bf16 %v1259, %v1258
    %v1305 = vpack.c.bf16 %v1261, %v1260
    %v1306 = vpack.c.bf16 %v1263, %v1262
    %v1307 = vpack.c.bf16 %v1265, %v1264
    %v1308 = vpack.c.bf16 %v1267, %v1266
    %v1309 = vpack.c.bf16 %v1269, %v1268
    %v1310 = vpack.c.bf16 %v1271, %v1270
    %v1311 = vpack.c.bf16 %v1273, %v1272
    %v1312 = vpack.c.bf16 %v1275, %v1274
    %v1313 = vpack.c.bf16 %v1277, %v1276
    %v1314 = vpack.c.bf16 %v1279, %v1278
    %v1315 = vpack.c.bf16 %v1281, %v1280
    %v1316 = vpack.c.bf16 %v1283, %v1282
    %v1317 = vpack.c.bf16 %v1285, %v1284
    %v1318 = vld [vmem:[%s217 + $0x2] sm:$0xff]
    %v1319 = vld [vmem:[%s217 + $0xa] sm:$0xff]
    %v1320 = vld [vmem:[%s217 + $0x1a] sm:$0xff]
    %v1321 = vld [vmem:[%s217 + $0x22] sm:$0xff]
    %v1322 = vld [vmem:[%s217 + $0x32] sm:$0xff]
    %v1323 = vld [vmem:[%s217 + $0x3a] sm:$0xff]
    %v1324 = vld [vmem:[%s217 + $0x4a] sm:$0xff]
    %v1325 = vld [vmem:[%s217 + $0x52] sm:$0xff]
    %v1326 = vld [vmem:[%s217 + $0x62] sm:$0xff]
    %v1327 = vld [vmem:[%s217 + $0x6a] sm:$0xff]
    %v1328 = vld [vmem:[%s217 + $0x7a] sm:$0xff]
    %v1329 = vld [vmem:[%s217 + $0x82] sm:$0xff]
    %v1330 = vld [vmem:[%s217 + $0x92] sm:$0xff]
    %v1331 = vld [vmem:[%s217 + $0x9a] sm:$0xff]
    %v1332 = vld [vmem:[%s217 + $0xaa] sm:$0xff]
    %v1333 = vld [vmem:[%s217 + $0xb2] sm:$0xff]
    %v1334 = vld [vmem:[%s217 + $0xc2] sm:$0xff]
    %v1335 = vld [vmem:[%s217 + $0xca] sm:$0xff]
    %v1336 = vld [vmem:[%s217 + $0xda] sm:$0xff]
    %v1337 = vld [vmem:[%s217 + $0xe2] sm:$0xff]
    %v1338 = vld [vmem:[%s217 + $0xf2] sm:$0xff]
    %v1339 = vld [vmem:[%s217 + $0xfa] sm:$0xff]
    %v1340 = vld [vmem:[%s217 + $0x10a] sm:$0xff]
    %v1341 = vld [vmem:[%s217 + $0x112] sm:$0xff]
    %v1342 = vld [vmem:[%s217 + $0x122] sm:$0xff]
    %v1343 = vld [vmem:[%s217 + $0x12a] sm:$0xff]
    %v1344 = vld [vmem:[%s217 + $0x13a] sm:$0xff]
    %v1345 = vld [vmem:[%s217 + $0x142] sm:$0xff]
    %v1346 = vld [vmem:[%s217 + $0x152] sm:$0xff]
    %v1347 = vld [vmem:[%s217 + $0x15a] sm:$0xff]
    %v1348 = vld [vmem:[%s217 + $0x16a] sm:$0xff]
    %v1349 = vld [vmem:[%s217 + $0x172] sm:$0xff]
    %v1350 = vld [vmem:[%s217 + $0x1b2] sm:$0xff]
    %v1351 = vld [vmem:[%s217 + $0x1ba] sm:$0xff]
    %v1352 = vld [vmem:[%s217 + $0x1ca] sm:$0xff]
    %v1353 = vld [vmem:[%s217 + $0x1d2] sm:$0xff]
    %v1354 = vld [vmem:[%s217 + $0x1e2] sm:$0xff]
    %v1355 = vld [vmem:[%s217 + $0x1ea] sm:$0xff]
    %v1356 = vld [vmem:[%s217 + $0x1fa] sm:$0xff]
    %v1357 = vld [vmem:[%s217 + $0x202] sm:$0xff]
    %v1358 = vld [vmem:[%s217 + $0x212] sm:$0xff]
    %v1359 = vld [vmem:[%s217 + $0x21a] sm:$0xff]
    %v1360 = vld [vmem:[%s217 + $0x22a] sm:$0xff]
    %v1361 = vld [vmem:[%s217 + $0x232] sm:$0xff]
    %v1362 = vld [vmem:[%s217 + $0x242] sm:$0xff]
    %v1363 = vld [vmem:[%s217 + $0x24a] sm:$0xff]
    %v1364 = vld [vmem:[%s217 + $0x25a] sm:$0xff]
    %v1365 = vld [vmem:[%s217 + $0x262] sm:$0xff]
    %v1366 = vld [vmem:[%s217 + $0x272] sm:$0xff]
    %v1367 = vld [vmem:[%s217 + $0x27a] sm:$0xff]
    %v1368 = vld [vmem:[%s217 + $0x28a] sm:$0xff]
    %v1369 = vld [vmem:[%s217 + $0x292] sm:$0xff]
    %v1370 = vld [vmem:[%s217 + $0x2a2] sm:$0xff]
    %v1371 = vld [vmem:[%s217 + $0x2aa] sm:$0xff]
    %v1372 = vld [vmem:[%s217 + $0x2ba] sm:$0xff]
    %v1373 = vld [vmem:[%s217 + $0x2c2] sm:$0xff]
    %v1374 = vld [vmem:[%s217 + $0x2d2] sm:$0xff]
    %v1375 = vld [vmem:[%s217 + $0x2da] sm:$0xff]
    %v1376 = vld [vmem:[%s217 + $0x2ea] sm:$0xff]
    %v1377 = vld [vmem:[%s217 + $0x2f2] sm:$0xff]
    %v1378 = vld [vmem:[%s217 + $0x302] sm:$0xff]
    %v1379 = vld [vmem:[%s217 + $0x30a] sm:$0xff]
    %v1380 = vld [vmem:[%s217 + $0x31a] sm:$0xff]
    %v1381 = vld [vmem:[%s217 + $0x322] sm:$0xff]
    %v1382 = vpack.c.bf16 %v1319, %v1318
    %v1383 = vpack.c.bf16 %v1321, %v1320
    %v1384 = vpack.c.bf16 %v1323, %v1322
    %v1385 = vpack.c.bf16 %v1325, %v1324
    %v1386 = vpack.c.bf16 %v1327, %v1326
    %v1387 = vpack.c.bf16 %v1329, %v1328
    %v1388 = vpack.c.bf16 %v1331, %v1330
    %v1389 = vpack.c.bf16 %v1333, %v1332
    %v1390 = vpack.c.bf16 %v1335, %v1334
    %v1391 = vpack.c.bf16 %v1337, %v1336
    %v1392 = vpack.c.bf16 %v1339, %v1338
    %v1393 = vpack.c.bf16 %v1341, %v1340
    %v1394 = vpack.c.bf16 %v1343, %v1342
    %v1395 = vpack.c.bf16 %v1345, %v1344
    %v1396 = vpack.c.bf16 %v1347, %v1346
    %v1397 = vpack.c.bf16 %v1349, %v1348
    %v1398 = vpack.c.bf16 %v1351, %v1350
    %v1399 = vpack.c.bf16 %v1353, %v1352
    %v1400 = vpack.c.bf16 %v1355, %v1354
    %v1401 = vpack.c.bf16 %v1357, %v1356
    %v1402 = vpack.c.bf16 %v1359, %v1358
    %v1403 = vpack.c.bf16 %v1361, %v1360
    %v1404 = vpack.c.bf16 %v1363, %v1362
    %v1405 = vpack.c.bf16 %v1365, %v1364
    %v1406 = vpack.c.bf16 %v1367, %v1366
    %v1407 = vpack.c.bf16 %v1369, %v1368
    %v1408 = vpack.c.bf16 %v1371, %v1370
    %v1409 = vpack.c.bf16 %v1373, %v1372
    %v1410 = vpack.c.bf16 %v1375, %v1374
    %v1411 = vpack.c.bf16 %v1377, %v1376
    %v1412 = vpack.c.bf16 %v1379, %v1378
    %v1413 = vpack.c.bf16 %v1381, %v1380
    %s1414 = scalar_lea.vmem [#allocation2], 48
    %v1415 = vld [vmem:[%s1414] sm:$0xff]
    %v1416 = vld [vmem:[%s1414 + $0x8] sm:$0xff]
    %v1417 = vld [vmem:[%s1414 + $0x18] sm:$0xff]
    %v1418 = vld [vmem:[%s1414 + $0x20] sm:$0xff]
    %v1419 = vld [vmem:[%s1414 + $0x30] sm:$0xff]
    %v1420 = vld [vmem:[%s1414 + $0x38] sm:$0xff]
    %v1421 = vld [vmem:[%s1414 + $0x48] sm:$0xff]
    %v1422 = vld [vmem:[%s1414 + $0x50] sm:$0xff]
    %v1423 = vld [vmem:[%s1414 + $0x60] sm:$0xff]
    %v1424 = vld [vmem:[%s1414 + $0x68] sm:$0xff]
    %v1425 = vld [vmem:[%s1414 + $0x78] sm:$0xff]
    %v1426 = vld [vmem:[%s1414 + $0x80] sm:$0xff]
    %v1427 = vld [vmem:[%s1414 + $0x90] sm:$0xff]
    %v1428 = vld [vmem:[%s1414 + $0x98] sm:$0xff]
    %v1429 = vld [vmem:[%s1414 + $0xa8] sm:$0xff]
    %v1430 = vld [vmem:[%s1414 + $0xb0] sm:$0xff]
    %v1431 = vld [vmem:[%s1414 + $0xc0] sm:$0xff]
    %v1432 = vld [vmem:[%s1414 + $0xc8] sm:$0xff]
    %v1433 = vld [vmem:[%s1414 + $0xd8] sm:$0xff]
    %v1434 = vld [vmem:[%s1414 + $0xe0] sm:$0xff]
    %v1435 = vld [vmem:[%s1414 + $0xf0] sm:$0xff]
    %v1436 = vld [vmem:[%s1414 + $0xf8] sm:$0xff]
    %v1437 = vld [vmem:[%s1414 + $0x108] sm:$0xff]
    %v1438 = vld [vmem:[%s1414 + $0x110] sm:$0xff]
    %v1439 = vld [vmem:[%s1414 + $0x120] sm:$0xff]
    %v1440 = vld [vmem:[%s1414 + $0x128] sm:$0xff]
    %v1441 = vld [vmem:[%s1414 + $0x138] sm:$0xff]
    %v1442 = vld [vmem:[%s1414 + $0x140] sm:$0xff]
    %v1443 = vld [vmem:[%s1414 + $0x150] sm:$0xff]
    %v1444 = vld [vmem:[%s1414 + $0x158] sm:$0xff]
    %v1445 = vld [vmem:[%s1414 + $0x168] sm:$0xff]
    %v1446 = vld [vmem:[%s1414 + $0x170] sm:$0xff]
    %v1447 = vld [vmem:[%s1414 + $0x1b0] sm:$0xff]
    %v1448 = vld [vmem:[%s1414 + $0x1b8] sm:$0xff]
    %v1449 = vld [vmem:[%s1414 + $0x1c8] sm:$0xff]
    %v1450 = vld [vmem:[%s1414 + $0x1d0] sm:$0xff]
    %v1451 = vld [vmem:[%s1414 + $0x1e0] sm:$0xff]
    %v1452 = vld [vmem:[%s1414 + $0x1e8] sm:$0xff]
    %v1453 = vld [vmem:[%s1414 + $0x1f8] sm:$0xff]
    %v1454 = vld [vmem:[%s1414 + $0x200] sm:$0xff]
    %v1455 = vld [vmem:[%s1414 + $0x210] sm:$0xff]
    %v1456 = vld [vmem:[%s1414 + $0x218] sm:$0xff]
    %v1457 = vld [vmem:[%s1414 + $0x228] sm:$0xff]
    %v1458 = vld [vmem:[%s1414 + $0x230] sm:$0xff]
    %v1459 = vld [vmem:[%s1414 + $0x240] sm:$0xff]
    %v1460 = vld [vmem:[%s1414 + $0x248] sm:$0xff]
    %v1461 = vld [vmem:[%s1414 + $0x258] sm:$0xff]
    %v1462 = vld [vmem:[%s1414 + $0x260] sm:$0xff]
    %v1463 = vld [vmem:[%s1414 + $0x270] sm:$0xff]
    %v1464 = vld [vmem:[%s1414 + $0x278] sm:$0xff]
    %v1465 = vld [vmem:[%s1414 + $0x288] sm:$0xff]
    %v1466 = vld [vmem:[%s1414 + $0x290] sm:$0xff]
    %v1467 = vld [vmem:[%s1414 + $0x2a0] sm:$0xff]
    %v1468 = vld [vmem:[%s1414 + $0x2a8] sm:$0xff]
    %v1469 = vld [vmem:[%s1414 + $0x2b8] sm:$0xff]
    %v1470 = vld [vmem:[%s1414 + $0x2c0] sm:$0xff]
    %v1471 = vld [vmem:[%s1414 + $0x2d0] sm:$0xff]
    %v1472 = vld [vmem:[%s1414 + $0x2d8] sm:$0xff]
    %v1473 = vld [vmem:[%s1414 + $0x2e8] sm:$0xff]
    %v1474 = vld [vmem:[%s1414 + $0x2f0] sm:$0xff]
    %v1475 = vld [vmem:[%s1414 + $0x300] sm:$0xff]
    %v1476 = vld [vmem:[%s1414 + $0x308] sm:$0xff]
    %v1477 = vld [vmem:[%s1414 + $0x318] sm:$0xff]
    %v1478 = vld [vmem:[%s1414 + $0x320] sm:$0xff]
    %v1479 = vpack.c.bf16 %v1416, %v1415
    %v1480 = vpack.c.bf16 %v1418, %v1417
    %v1481 = vpack.c.bf16 %v1420, %v1419
    %v1482 = vpack.c.bf16 %v1422, %v1421
    %v1483 = vpack.c.bf16 %v1424, %v1423
    %v1484 = vpack.c.bf16 %v1426, %v1425
    %v1485 = vpack.c.bf16 %v1428, %v1427
    %v1486 = vpack.c.bf16 %v1430, %v1429
    %v1487 = vpack.c.bf16 %v1432, %v1431
    %v1488 = vpack.c.bf16 %v1434, %v1433
    %v1489 = vpack.c.bf16 %v1436, %v1435
    %v1490 = vpack.c.bf16 %v1438, %v1437
    %v1491 = vpack.c.bf16 %v1440, %v1439
    %v1492 = vpack.c.bf16 %v1442, %v1441
    %v1493 = vpack.c.bf16 %v1444, %v1443
    %v1494 = vpack.c.bf16 %v1446, %v1445
    %v1495 = vpack.c.bf16 %v1448, %v1447
    %v1496 = vpack.c.bf16 %v1450, %v1449
    %v1497 = vpack.c.bf16 %v1452, %v1451
    %v1498 = vpack.c.bf16 %v1454, %v1453
    %v1499 = vpack.c.bf16 %v1456, %v1455
    %v1500 = vpack.c.bf16 %v1458, %v1457
    %v1501 = vpack.c.bf16 %v1460, %v1459
    %v1502 = vpack.c.bf16 %v1462, %v1461
    %v1503 = vpack.c.bf16 %v1464, %v1463
    %v1504 = vpack.c.bf16 %v1466, %v1465
    %v1505 = vpack.c.bf16 %v1468, %v1467
    %v1506 = vpack.c.bf16 %v1470, %v1469
    %v1507 = vpack.c.bf16 %v1472, %v1471
    %v1508 = vpack.c.bf16 %v1474, %v1473
    %v1509 = vpack.c.bf16 %v1476, %v1475
    %v1510 = vpack.c.bf16 %v1478, %v1477
    %v1511 = vld [vmem:[%s1414 + $0x1] sm:$0xff]
    %v1512 = vld [vmem:[%s1414 + $0x9] sm:$0xff]
    %v1513 = vld [vmem:[%s1414 + $0x19] sm:$0xff]
    %v1514 = vld [vmem:[%s1414 + $0x21] sm:$0xff]
    %v1515 = vld [vmem:[%s1414 + $0x31] sm:$0xff]
    %v1516 = vld [vmem:[%s1414 + $0x39] sm:$0xff]
    %v1517 = vld [vmem:[%s1414 + $0x49] sm:$0xff]
    %v1518 = vld [vmem:[%s1414 + $0x51] sm:$0xff]
    %v1519 = vld [vmem:[%s1414 + $0x61] sm:$0xff]
    %v1520 = vld [vmem:[%s1414 + $0x69] sm:$0xff]
    %v1521 = vld [vmem:[%s1414 + $0x79] sm:$0xff]
    %v1522 = vld [vmem:[%s1414 + $0x81] sm:$0xff]
    %v1523 = vld [vmem:[%s1414 + $0x91] sm:$0xff]
    %v1524 = vld [vmem:[%s1414 + $0x99] sm:$0xff]
    %v1525 = vld [vmem:[%s1414 + $0xa9] sm:$0xff]
    %v1526 = vld [vmem:[%s1414 + $0xb1] sm:$0xff]
    %v1527 = vld [vmem:[%s1414 + $0xc1] sm:$0xff]
    %v1528 = vld [vmem:[%s1414 + $0xc9] sm:$0xff]
    %v1529 = vld [vmem:[%s1414 + $0xd9] sm:$0xff]
    %v1530 = vld [vmem:[%s1414 + $0xe1] sm:$0xff]
    %v1531 = vld [vmem:[%s1414 + $0xf1] sm:$0xff]
    %v1532 = vld [vmem:[%s1414 + $0xf9] sm:$0xff]
    %v1533 = vld [vmem:[%s1414 + $0x109] sm:$0xff]
    %v1534 = vld [vmem:[%s1414 + $0x111] sm:$0xff]
    %v1535 = vld [vmem:[%s1414 + $0x121] sm:$0xff]
    %v1536 = vld [vmem:[%s1414 + $0x129] sm:$0xff]
    %v1537 = vld [vmem:[%s1414 + $0x139] sm:$0xff]
    %v1538 = vld [vmem:[%s1414 + $0x141] sm:$0xff]
    %v1539 = vld [vmem:[%s1414 + $0x151] sm:$0xff]
    %v1540 = vld [vmem:[%s1414 + $0x159] sm:$0xff]
    %v1541 = vld [vmem:[%s1414 + $0x169] sm:$0xff]
    %v1542 = vld [vmem:[%s1414 + $0x171] sm:$0xff]
    %v1543 = vld [vmem:[%s1414 + $0x1b1] sm:$0xff]
    %v1544 = vld [vmem:[%s1414 + $0x1b9] sm:$0xff]
    %v1545 = vld [vmem:[%s1414 + $0x1c9] sm:$0xff]
    %v1546 = vld [vmem:[%s1414 + $0x1d1] sm:$0xff]
    %v1547 = vld [vmem:[%s1414 + $0x1e1] sm:$0xff]
    %v1548 = vld [vmem:[%s1414 + $0x1e9] sm:$0xff]
    %v1549 = vld [vmem:[%s1414 + $0x1f9] sm:$0xff]
    %v1550 = vld [vmem:[%s1414 + $0x201] sm:$0xff]
    %v1551 = vld [vmem:[%s1414 + $0x211] sm:$0xff]
    %v1552 = vld [vmem:[%s1414 + $0x219] sm:$0xff]
    %v1553 = vld [vmem:[%s1414 + $0x229] sm:$0xff]
    %v1554 = vld [vmem:[%s1414 + $0x231] sm:$0xff]
    %v1555 = vld [vmem:[%s1414 + $0x241] sm:$0xff]
    %v1556 = vld [vmem:[%s1414 + $0x249] sm:$0xff]
    %v1557 = vld [vmem:[%s1414 + $0x259] sm:$0xff]
    %v1558 = vld [vmem:[%s1414 + $0x261] sm:$0xff]
    %v1559 = vld [vmem:[%s1414 + $0x271] sm:$0xff]
    %v1560 = vld [vmem:[%s1414 + $0x279] sm:$0xff]
    %v1561 = vld [vmem:[%s1414 + $0x289] sm:$0xff]
    %v1562 = vld [vmem:[%s1414 + $0x291] sm:$0xff]
    %v1563 = vld [vmem:[%s1414 + $0x2a1] sm:$0xff]
    %v1564 = vld [vmem:[%s1414 + $0x2a9] sm:$0xff]
    %v1565 = vld [vmem:[%s1414 + $0x2b9] sm:$0xff]
    %v1566 = vld [vmem:[%s1414 + $0x2c1] sm:$0xff]
    %v1567 = vld [vmem:[%s1414 + $0x2d1] sm:$0xff]
    %v1568 = vld [vmem:[%s1414 + $0x2d9] sm:$0xff]
    %v1569 = vld [vmem:[%s1414 + $0x2e9] sm:$0xff]
    %v1570 = vld [vmem:[%s1414 + $0x2f1] sm:$0xff]
    %v1571 = vld [vmem:[%s1414 + $0x301] sm:$0xff]
    %v1572 = vld [vmem:[%s1414 + $0x309] sm:$0xff]
    %v1573 = vld [vmem:[%s1414 + $0x319] sm:$0xff]
    %v1574 = vld [vmem:[%s1414 + $0x321] sm:$0xff]
    %v1575 = vpack.c.bf16 %v1512, %v1511
    %v1576 = vpack.c.bf16 %v1514, %v1513
    %v1577 = vpack.c.bf16 %v1516, %v1515
    %v1578 = vpack.c.bf16 %v1518, %v1517
    %v1579 = vpack.c.bf16 %v1520, %v1519
    %v1580 = vpack.c.bf16 %v1522, %v1521
    %v1581 = vpack.c.bf16 %v1524, %v1523
    %v1582 = vpack.c.bf16 %v1526, %v1525
    %v1583 = vpack.c.bf16 %v1528, %v1527
    %v1584 = vpack.c.bf16 %v1530, %v1529
    %v1585 = vpack.c.bf16 %v1532, %v1531
    %v1586 = vpack.c.bf16 %v1534, %v1533
    %v1587 = vpack.c.bf16 %v1536, %v1535
    %v1588 = vpack.c.bf16 %v1538, %v1537
    %v1589 = vpack.c.bf16 %v1540, %v1539
    %v1590 = vpack.c.bf16 %v1542, %v1541
    %v1591 = vpack.c.bf16 %v1544, %v1543
    %v1592 = vpack.c.bf16 %v1546, %v1545
    %v1593 = vpack.c.bf16 %v1548, %v1547
    %v1594 = vpack.c.bf16 %v1550, %v1549
    %v1595 = vpack.c.bf16 %v1552, %v1551
    %v1596 = vpack.c.bf16 %v1554, %v1553
    %v1597 = vpack.c.bf16 %v1556, %v1555
    %v1598 = vpack.c.bf16 %v1558, %v1557
    %v1599 = vpack.c.bf16 %v1560, %v1559
    %v1600 = vpack.c.bf16 %v1562, %v1561
    %v1601 = vpack.c.bf16 %v1564, %v1563
    %v1602 = vpack.c.bf16 %v1566, %v1565
    %v1603 = vpack.c.bf16 %v1568, %v1567
    %v1604 = vpack.c.bf16 %v1570, %v1569
    %v1605 = vpack.c.bf16 %v1572, %v1571
    %v1606 = vpack.c.bf16 %v1574, %v1573
    %v1607 = vld [vmem:[%s1414 + $0x2] sm:$0xff]
    %v1608 = vld [vmem:[%s1414 + $0xa] sm:$0xff]
    %v1609 = vld [vmem:[%s1414 + $0x1a] sm:$0xff]
    %v1610 = vld [vmem:[%s1414 + $0x22] sm:$0xff]
    %v1611 = vld [vmem:[%s1414 + $0x32] sm:$0xff]
    %v1612 = vld [vmem:[%s1414 + $0x3a] sm:$0xff]
    %v1613 = vld [vmem:[%s1414 + $0x4a] sm:$0xff]
    %v1614 = vld [vmem:[%s1414 + $0x52] sm:$0xff]
    %v1615 = vld [vmem:[%s1414 + $0x62] sm:$0xff]
    %v1616 = vld [vmem:[%s1414 + $0x6a] sm:$0xff]
    %v1617 = vld [vmem:[%s1414 + $0x7a] sm:$0xff]
    %v1618 = vld [vmem:[%s1414 + $0x82] sm:$0xff]
    %v1619 = vld [vmem:[%s1414 + $0x92] sm:$0xff]
    %v1620 = vld [vmem:[%s1414 + $0x9a] sm:$0xff]
    %v1621 = vld [vmem:[%s1414 + $0xaa] sm:$0xff]
    %v1622 = vld [vmem:[%s1414 + $0xb2] sm:$0xff]
    %v1623 = vld [vmem:[%s1414 + $0xc2] sm:$0xff]
    %v1624 = vld [vmem:[%s1414 + $0xca] sm:$0xff]
    %v1625 = vld [vmem:[%s1414 + $0xda] sm:$0xff]
    %v1626 = vld [vmem:[%s1414 + $0xe2] sm:$0xff]
    %v1627 = vld [vmem:[%s1414 + $0xf2] sm:$0xff]
    %v1628 = vld [vmem:[%s1414 + $0xfa] sm:$0xff]
    %v1629 = vld [vmem:[%s1414 + $0x10a] sm:$0xff]
    %v1630 = vld [vmem:[%s1414 + $0x112] sm:$0xff]
    %v1631 = vld [vmem:[%s1414 + $0x122] sm:$0xff]
    %v1632 = vld [vmem:[%s1414 + $0x12a] sm:$0xff]
    %v1633 = vld [vmem:[%s1414 + $0x13a] sm:$0xff]
    %v1634 = vld [vmem:[%s1414 + $0x142] sm:$0xff]
    %v1635 = vld [vmem:[%s1414 + $0x152] sm:$0xff]
    %v1636 = vld [vmem:[%s1414 + $0x15a] sm:$0xff]
    %v1637 = vld [vmem:[%s1414 + $0x16a] sm:$0xff]
    %v1638 = vld [vmem:[%s1414 + $0x172] sm:$0xff]
    %v1639 = vld [vmem:[%s1414 + $0x1b2] sm:$0xff]
    %v1640 = vld [vmem:[%s1414 + $0x1ba] sm:$0xff]
    %v1641 = vld [vmem:[%s1414 + $0x1ca] sm:$0xff]
    %v1642 = vld [vmem:[%s1414 + $0x1d2] sm:$0xff]
    %v1643 = vld [vmem:[%s1414 + $0x1e2] sm:$0xff]
    %v1644 = vld [vmem:[%s1414 + $0x1ea] sm:$0xff]
    %v1645 = vld [vmem:[%s1414 + $0x1fa] sm:$0xff]
    %v1646 = vld [vmem:[%s1414 + $0x202] sm:$0xff]
    %v1647 = vld [vmem:[%s1414 + $0x212] sm:$0xff]
    %v1648 = vld [vmem:[%s1414 + $0x21a] sm:$0xff]
    %v1649 = vld [vmem:[%s1414 + $0x22a] sm:$0xff]
    %v1650 = vld [vmem:[%s1414 + $0x232] sm:$0xff]
    %v1651 = vld [vmem:[%s1414 + $0x242] sm:$0xff]
    %v1652 = vld [vmem:[%s1414 + $0x24a] sm:$0xff]
    %v1653 = vld [vmem:[%s1414 + $0x25a] sm:$0xff]
    %v1654 = vld [vmem:[%s1414 + $0x262] sm:$0xff]
    %v1655 = vld [vmem:[%s1414 + $0x272] sm:$0xff]
    %v1656 = vld [vmem:[%s1414 + $0x27a] sm:$0xff]
    %v1657 = vld [vmem:[%s1414 + $0x28a] sm:$0xff]
    %v1658 = vld [vmem:[%s1414 + $0x292] sm:$0xff]
    %v1659 = vld [vmem:[%s1414 + $0x2a2] sm:$0xff]
    %v1660 = vld [vmem:[%s1414 + $0x2aa] sm:$0xff]
    %v1661 = vld [vmem:[%s1414 + $0x2ba] sm:$0xff]
    %v1662 = vld [vmem:[%s1414 + $0x2c2] sm:$0xff]
    %v1663 = vld [vmem:[%s1414 + $0x2d2] sm:$0xff]
    %v1664 = vld [vmem:[%s1414 + $0x2da] sm:$0xff]
    %v1665 = vld [vmem:[%s1414 + $0x2ea] sm:$0xff]
    %v1666 = vld [vmem:[%s1414 + $0x2f2] sm:$0xff]
    %v1667 = vld [vmem:[%s1414 + $0x302] sm:$0xff]
    %v1668 = vld [vmem:[%s1414 + $0x30a] sm:$0xff]
    %v1669 = vld [vmem:[%s1414 + $0x31a] sm:$0xff]
    %v1670 = vld [vmem:[%s1414 + $0x322] sm:$0xff]
    %v1671 = vpack.c.bf16 %v1608, %v1607
    %v1672 = vpack.c.bf16 %v1610, %v1609
    %v1673 = vpack.c.bf16 %v1612, %v1611
    %v1674 = vpack.c.bf16 %v1614, %v1613
    %v1675 = vpack.c.bf16 %v1616, %v1615
    %v1676 = vpack.c.bf16 %v1618, %v1617
    %v1677 = vpack.c.bf16 %v1620, %v1619
    %v1678 = vpack.c.bf16 %v1622, %v1621
    %v1679 = vpack.c.bf16 %v1624, %v1623
    %v1680 = vpack.c.bf16 %v1626, %v1625
    %v1681 = vpack.c.bf16 %v1628, %v1627
    %v1682 = vpack.c.bf16 %v1630, %v1629
    %v1683 = vpack.c.bf16 %v1632, %v1631
    %v1684 = vpack.c.bf16 %v1634, %v1633
    %v1685 = vpack.c.bf16 %v1636, %v1635
    %v1686 = vpack.c.bf16 %v1638, %v1637
    %v1687 = vpack.c.bf16 %v1640, %v1639
    %v1688 = vpack.c.bf16 %v1642, %v1641
    %v1689 = vpack.c.bf16 %v1644, %v1643
    %v1690 = vpack.c.bf16 %v1646, %v1645
    %v1691 = vpack.c.bf16 %v1648, %v1647
    %v1692 = vpack.c.bf16 %v1650, %v1649
    %v1693 = vpack.c.bf16 %v1652, %v1651
    %v1694 = vpack.c.bf16 %v1654, %v1653
    %v1695 = vpack.c.bf16 %v1656, %v1655
    %v1696 = vpack.c.bf16 %v1658, %v1657
    %v1697 = vpack.c.bf16 %v1660, %v1659
    %v1698 = vpack.c.bf16 %v1662, %v1661
    %v1699 = vpack.c.bf16 %v1664, %v1663
    %v1700 = vpack.c.bf16 %v1666, %v1665
    %v1701 = vpack.c.bf16 %v1668, %v1667
    %v1702 = vpack.c.bf16 %v1670, %v1669
    %1735 = vrot.lane.b32.xlu0 %v998, 64
    %v1736 = vpop.permute.xlu0 %1735
    %1737 = vrot.lane.b32.xlu0 %v999, 64
    %v1738 = vpop.permute.xlu0 %1737
    %1739 = vrot.lane.b32.xlu0 %v1000, 64
    %v1740 = vpop.permute.xlu0 %1739
    %1741 = vrot.lane.b32.xlu0 %v1001, 64
    %v1742 = vpop.permute.xlu0 %1741
    %1743 = vrot.lane.b32.xlu0 %v1002, 64
    %v1744 = vpop.permute.xlu0 %1743
    %1745 = vrot.lane.b32.xlu0 %v1003, 64
    %v1746 = vpop.permute.xlu0 %1745
    %1747 = vrot.lane.b32.xlu0 %v1004, 64
    %v1748 = vpop.permute.xlu0 %1747
    %1749 = vrot.lane.b32.xlu0 %v1005, 64
    %v1750 = vpop.permute.xlu0 %1749
    %1751 = vrot.lane.b32.xlu0 %v1006, 64
    %v1752 = vpop.permute.xlu0 %1751
    %1753 = vrot.lane.b32.xlu0 %v1007, 64
    %v1754 = vpop.permute.xlu0 %1753
    %1755 = vrot.lane.b32.xlu0 %v1008, 64
    %v1756 = vpop.permute.xlu0 %1755
    %1757 = vrot.lane.b32.xlu0 %v1009, 64
    %v1758 = vpop.permute.xlu0 %1757
    %1759 = vrot.lane.b32.xlu0 %v1010, 64
    %v1760 = vpop.permute.xlu0 %1759
    %1761 = vrot.lane.b32.xlu0 %v1011, 64
    %v1762 = vpop.permute.xlu0 %1761
    %1763 = vrot.lane.b32.xlu0 %v1012, 64
    %v1764 = vpop.permute.xlu0 %1763
    %1765 = vrot.lane.b32.xlu0 %v1013, 64
    %v1766 = vpop.permute.xlu0 %1765
    %1767 = vrot.lane.b32.xlu0 %v1014, 64
    %v1768 = vpop.permute.xlu0 %1767
    %1769 = vrot.lane.b32.xlu0 %v1015, 64
    %v1770 = vpop.permute.xlu0 %1769
    %1771 = vrot.lane.b32.xlu0 %v1016, 64
    %v1772 = vpop.permute.xlu0 %1771
    %1773 = vrot.lane.b32.xlu0 %v1017, 64
    %v1774 = vpop.permute.xlu0 %1773
    %1775 = vrot.lane.b32.xlu0 %v1018, 64
    %v1776 = vpop.permute.xlu0 %1775
    %1777 = vrot.lane.b32.xlu0 %v1019, 64
    %v1778 = vpop.permute.xlu0 %1777
    %1779 = vrot.lane.b32.xlu0 %v1020, 64
    %v1780 = vpop.permute.xlu0 %1779
    %1781 = vrot.lane.b32.xlu0 %v1021, 64
    %v1782 = vpop.permute.xlu0 %1781
    %1783 = vrot.lane.b32.xlu0 %v1022, 64
    %v1784 = vpop.permute.xlu0 %1783
    %1785 = vrot.lane.b32.xlu0 %v1023, 64
    %v1786 = vpop.permute.xlu0 %1785
    %1787 = vrot.lane.b32.xlu0 %v1024, 64
    %v1788 = vpop.permute.xlu0 %1787
    %1789 = vrot.lane.b32.xlu0 %v1025, 64
    %v1790 = vpop.permute.xlu0 %1789
    %1791 = vrot.lane.b32.xlu0 %v1026, 64
    %v1792 = vpop.permute.xlu0 %1791
    %1793 = vrot.lane.b32.xlu0 %v1027, 64
    %v1794 = vpop.permute.xlu0 %1793
    %1795 = vrot.lane.b32.xlu0 %v1028, 64
    %v1796 = vpop.permute.xlu0 %1795
    %1797 = vrot.lane.b32.xlu0 %v1029, 64
    %v1798 = vpop.permute.xlu0 %1797
    %1831 = vrot.lane.b32.xlu0 %v1190, 64
    %v1832 = vpop.permute.xlu0 %1831
    %1833 = vrot.lane.b32.xlu0 %v1191, 64
    %v1834 = vpop.permute.xlu0 %1833
    %1835 = vrot.lane.b32.xlu0 %v1192, 64
    %v1836 = vpop.permute.xlu0 %1835
    %1837 = vrot.lane.b32.xlu0 %v1193, 64
    %v1838 = vpop.permute.xlu0 %1837
    %1839 = vrot.lane.b32.xlu0 %v1194, 64
    %v1840 = vpop.permute.xlu0 %1839
    %1841 = vrot.lane.b32.xlu0 %v1195, 64
    %v1842 = vpop.permute.xlu0 %1841
    %1843 = vrot.lane.b32.xlu0 %v1196, 64
    %v1844 = vpop.permute.xlu0 %1843
    %1845 = vrot.lane.b32.xlu0 %v1197, 64
    %v1846 = vpop.permute.xlu0 %1845
    %1847 = vrot.lane.b32.xlu0 %v1198, 64
    %v1848 = vpop.permute.xlu0 %1847
    %1849 = vrot.lane.b32.xlu0 %v1199, 64
    %v1850 = vpop.permute.xlu0 %1849
    %1851 = vrot.lane.b32.xlu0 %v1200, 64
    %v1852 = vpop.permute.xlu0 %1851
    %1853 = vrot.lane.b32.xlu0 %v1201, 64
    %v1854 = vpop.permute.xlu0 %1853
    %1855 = vrot.lane.b32.xlu0 %v1202, 64
    %v1856 = vpop.permute.xlu0 %1855
    %1857 = vrot.lane.b32.xlu0 %v1203, 64
    %v1858 = vpop.permute.xlu0 %1857
    %1859 = vrot.lane.b32.xlu0 %v1204, 64
    %v1860 = vpop.permute.xlu0 %1859
    %1861 = vrot.lane.b32.xlu0 %v1205, 64
    %v1862 = vpop.permute.xlu0 %1861
    %1863 = vrot.lane.b32.xlu0 %v1206, 64
    %v1864 = vpop.permute.xlu0 %1863
    %1865 = vrot.lane.b32.xlu0 %v1207, 64
    %v1866 = vpop.permute.xlu0 %1865
    %1867 = vrot.lane.b32.xlu0 %v1208, 64
    %v1868 = vpop.permute.xlu0 %1867
    %1869 = vrot.lane.b32.xlu0 %v1209, 64
    %v1870 = vpop.permute.xlu0 %1869
    %1871 = vrot.lane.b32.xlu0 %v1210, 64
    %v1872 = vpop.permute.xlu0 %1871
    %1873 = vrot.lane.b32.xlu0 %v1211, 64
    %v1874 = vpop.permute.xlu0 %1873
    %1875 = vrot.lane.b32.xlu0 %v1212, 64
    %v1876 = vpop.permute.xlu0 %1875
    %1877 = vrot.lane.b32.xlu0 %v1213, 64
    %v1878 = vpop.permute.xlu0 %1877
    %1879 = vrot.lane.b32.xlu0 %v1214, 64
    %v1880 = vpop.permute.xlu0 %1879
    %1881 = vrot.lane.b32.xlu0 %v1215, 64
    %v1882 = vpop.permute.xlu0 %1881
    %1883 = vrot.lane.b32.xlu0 %v1216, 64
    %v1884 = vpop.permute.xlu0 %1883
    %1885 = vrot.lane.b32.xlu0 %v1217, 64
    %v1886 = vpop.permute.xlu0 %1885
    %1887 = vrot.lane.b32.xlu0 %v1218, 64
    %v1888 = vpop.permute.xlu0 %1887
    %1889 = vrot.lane.b32.xlu0 %v1219, 64
    %v1890 = vpop.permute.xlu0 %1889
    %1891 = vrot.lane.b32.xlu0 %v1220, 64
    %v1892 = vpop.permute.xlu0 %1891
    %1893 = vrot.lane.b32.xlu0 %v1221, 64
    %v1894 = vpop.permute.xlu0 %1893
    %1927 = vrot.lane.b32.xlu0 %v1382, 64
    %v1928 = vpop.permute.xlu0 %1927
    %1929 = vrot.lane.b32.xlu0 %v1383, 64
    %v1930 = vpop.permute.xlu0 %1929
    %1931 = vrot.lane.b32.xlu0 %v1384, 64
    %v1932 = vpop.permute.xlu0 %1931
    %1933 = vrot.lane.b32.xlu0 %v1385, 64
    %v1934 = vpop.permute.xlu0 %1933
    %1935 = vrot.lane.b32.xlu0 %v1386, 64
    %v1936 = vpop.permute.xlu0 %1935
    %1937 = vrot.lane.b32.xlu0 %v1387, 64
    %v1938 = vpop.permute.xlu0 %1937
    %1939 = vrot.lane.b32.xlu0 %v1388, 64
    %v1940 = vpop.permute.xlu0 %1939
    %1941 = vrot.lane.b32.xlu0 %v1389, 64
    %v1942 = vpop.permute.xlu0 %1941
    %1943 = vrot.lane.b32.xlu0 %v1390, 64
    %v1944 = vpop.permute.xlu0 %1943
    %1945 = vrot.lane.b32.xlu0 %v1391, 64
    %v1946 = vpop.permute.xlu0 %1945
    %1947 = vrot.lane.b32.xlu0 %v1392, 64
    %v1948 = vpop.permute.xlu0 %1947
    %1949 = vrot.lane.b32.xlu0 %v1393, 64
    %v1950 = vpop.permute.xlu0 %1949
    %1951 = vrot.lane.b32.xlu0 %v1394, 64
    %v1952 = vpop.permute.xlu0 %1951
    %1953 = vrot.lane.b32.xlu0 %v1395, 64
    %v1954 = vpop.permute.xlu0 %1953
    %1955 = vrot.lane.b32.xlu0 %v1396, 64
    %v1956 = vpop.permute.xlu0 %1955
    %1957 = vrot.lane.b32.xlu0 %v1397, 64
    %v1958 = vpop.permute.xlu0 %1957
    %1959 = vrot.lane.b32.xlu0 %v1398, 64
    %v1960 = vpop.permute.xlu0 %1959
    %1961 = vrot.lane.b32.xlu0 %v1399, 64
    %v1962 = vpop.permute.xlu0 %1961
    %1963 = vrot.lane.b32.xlu0 %v1400, 64
    %v1964 = vpop.permute.xlu0 %1963
    %1965 = vrot.lane.b32.xlu0 %v1401, 64
    %v1966 = vpop.permute.xlu0 %1965
    %1967 = vrot.lane.b32.xlu0 %v1402, 64
    %v1968 = vpop.permute.xlu0 %1967
    %1969 = vrot.lane.b32.xlu0 %v1403, 64
    %v1970 = vpop.permute.xlu0 %1969
    %1971 = vrot.lane.b32.xlu0 %v1404, 64
    %v1972 = vpop.permute.xlu0 %1971
    %1973 = vrot.lane.b32.xlu0 %v1405, 64
    %v1974 = vpop.permute.xlu0 %1973
    %1975 = vrot.lane.b32.xlu0 %v1406, 64
    %v1976 = vpop.permute.xlu0 %1975
    %1977 = vrot.lane.b32.xlu0 %v1407, 64
    %v1978 = vpop.permute.xlu0 %1977
    %1979 = vrot.lane.b32.xlu0 %v1408, 64
    %v1980 = vpop.permute.xlu0 %1979
    %1981 = vrot.lane.b32.xlu0 %v1409, 64
    %v1982 = vpop.permute.xlu0 %1981
    %1983 = vrot.lane.b32.xlu0 %v1410, 64
    %v1984 = vpop.permute.xlu0 %1983
    %1985 = vrot.lane.b32.xlu0 %v1411, 64
    %v1986 = vpop.permute.xlu0 %1985
    %1987 = vrot.lane.b32.xlu0 %v1412, 64
    %v1988 = vpop.permute.xlu0 %1987
    %1989 = vrot.lane.b32.xlu0 %v1413, 64
    %v1990 = vpop.permute.xlu0 %1989
    %2023 = vrot.lane.b32.xlu0 %v1575, 64
    %v2024 = vpop.permute.xlu0 %2023
    %2025 = vrot.lane.b32.xlu0 %v1576, 64
    %v2026 = vpop.permute.xlu0 %2025
    %2027 = vrot.lane.b32.xlu0 %v1577, 64
    %v2028 = vpop.permute.xlu0 %2027
    %2029 = vrot.lane.b32.xlu0 %v1578, 64
    %v2030 = vpop.permute.xlu0 %2029
    %2031 = vrot.lane.b32.xlu0 %v1579, 64
    %v2032 = vpop.permute.xlu0 %2031
    %2033 = vrot.lane.b32.xlu0 %v1580, 64
    %v2034 = vpop.permute.xlu0 %2033
    %2035 = vrot.lane.b32.xlu0 %v1581, 64
    %v2036 = vpop.permute.xlu0 %2035
    %2037 = vrot.lane.b32.xlu0 %v1582, 64
    %v2038 = vpop.permute.xlu0 %2037
    %2039 = vrot.lane.b32.xlu0 %v1583, 64
    %v2040 = vpop.permute.xlu0 %2039
    %2041 = vrot.lane.b32.xlu0 %v1584, 64
    %v2042 = vpop.permute.xlu0 %2041
    %2043 = vrot.lane.b32.xlu0 %v1585, 64
    %v2044 = vpop.permute.xlu0 %2043
    %2045 = vrot.lane.b32.xlu0 %v1586, 64
    %v2046 = vpop.permute.xlu0 %2045
    %2047 = vrot.lane.b32.xlu0 %v1587, 64
    %v2048 = vpop.permute.xlu0 %2047
    %2049 = vrot.lane.b32.xlu0 %v1588, 64
    %v2050 = vpop.permute.xlu0 %2049
    %2051 = vrot.lane.b32.xlu0 %v1589, 64
    %v2052 = vpop.permute.xlu0 %2051
    %2053 = vrot.lane.b32.xlu0 %v1590, 64
    %v2054 = vpop.permute.xlu0 %2053
    %2055 = vrot.lane.b32.xlu0 %v1591, 64
    %v2056 = vpop.permute.xlu0 %2055
    %2057 = vrot.lane.b32.xlu0 %v1592, 64
    %v2058 = vpop.permute.xlu0 %2057
    %2059 = vrot.lane.b32.xlu0 %v1593, 64
    %v2060 = vpop.permute.xlu0 %2059
    %2061 = vrot.lane.b32.xlu0 %v1594, 64
    %v2062 = vpop.permute.xlu0 %2061
    %2063 = vrot.lane.b32.xlu0 %v1595, 64
    %v2064 = vpop.permute.xlu0 %2063
    %2065 = vrot.lane.b32.xlu0 %v1596, 64
    %v2066 = vpop.permute.xlu0 %2065
    %2067 = vrot.lane.b32.xlu0 %v1597, 64
    %v2068 = vpop.permute.xlu0 %2067
    %2069 = vrot.lane.b32.xlu0 %v1598, 64
    %v2070 = vpop.permute.xlu0 %2069
    %2071 = vrot.lane.b32.xlu0 %v1599, 64
    %v2072 = vpop.permute.xlu0 %2071
    %2073 = vrot.lane.b32.xlu0 %v1600, 64
    %v2074 = vpop.permute.xlu0 %2073
    %2075 = vrot.lane.b32.xlu0 %v1601, 64
    %v2076 = vpop.permute.xlu0 %2075
    %2077 = vrot.lane.b32.xlu0 %v1602, 64
    %v2078 = vpop.permute.xlu0 %2077
    %2079 = vrot.lane.b32.xlu0 %v1603, 64
    %v2080 = vpop.permute.xlu0 %2079
    %2081 = vrot.lane.b32.xlu0 %v1604, 64
    %v2082 = vpop.permute.xlu0 %2081
    %2083 = vrot.lane.b32.xlu0 %v1605, 64
    %v2084 = vpop.permute.xlu0 %2083
    %2085 = vrot.lane.b32.xlu0 %v1606, 64
    %v2086 = vpop.permute.xlu0 %2085
    %v2089 = vsel %vm43, %v902, %v1736
    %v2093 = vsel %vm43, %v903, %v1738
    %v2097 = vsel %vm43, %v904, %v1740
    %v2101 = vsel %vm43, %v905, %v1742
    %v2105 = vsel %vm43, %v906, %v1744
    %v2109 = vsel %vm43, %v907, %v1746
    %v2113 = vsel %vm43, %v908, %v1748
    %v2117 = vsel %vm43, %v909, %v1750
    %v2121 = vsel %vm43, %v910, %v1752
    %v2125 = vsel %vm43, %v911, %v1754
    %v2129 = vsel %vm43, %v912, %v1756
    %v2133 = vsel %vm43, %v913, %v1758
    %v2137 = vsel %vm43, %v914, %v1760
    %v2141 = vsel %vm43, %v915, %v1762
    %v2145 = vsel %vm43, %v916, %v1764
    %v2149 = vsel %vm43, %v917, %v1766
    %v2153 = vsel %vm43, %v918, %v1768
    %v2157 = vsel %vm43, %v919, %v1770
    %v2161 = vsel %vm43, %v920, %v1772
    %v2165 = vsel %vm43, %v921, %v1774
    %v2169 = vsel %vm43, %v922, %v1776
    %v2173 = vsel %vm43, %v923, %v1778
    %v2177 = vsel %vm43, %v924, %v1780
    %v2181 = vsel %vm43, %v925, %v1782
    %v2185 = vsel %vm43, %v926, %v1784
    %v2189 = vsel %vm43, %v927, %v1786
    %v2193 = vsel %vm43, %v928, %v1788
    %v2197 = vsel %vm43, %v929, %v1790
    %v2201 = vsel %vm43, %v930, %v1792
    %v2205 = vsel %vm43, %v931, %v1794
    %v2209 = vsel %vm43, %v932, %v1796
    %v2213 = vsel %vm43, %v933, %v1798
    %v2217 = vsel %vm43, %v1094, %v1832
    %v2221 = vsel %vm43, %v1095, %v1834
    %v2225 = vsel %vm43, %v1096, %v1836
    %v2229 = vsel %vm43, %v1097, %v1838
    %v2233 = vsel %vm43, %v1098, %v1840
    %v2237 = vsel %vm43, %v1099, %v1842
    %v2241 = vsel %vm43, %v1100, %v1844
    %v2245 = vsel %vm43, %v1101, %v1846
    %v2249 = vsel %vm43, %v1102, %v1848
    %v2253 = vsel %vm43, %v1103, %v1850
    %v2257 = vsel %vm43, %v1104, %v1852
    %v2261 = vsel %vm43, %v1105, %v1854
    %v2265 = vsel %vm43, %v1106, %v1856
    %v2269 = vsel %vm43, %v1107, %v1858
    %v2273 = vsel %vm43, %v1108, %v1860
    %v2277 = vsel %vm43, %v1109, %v1862
    %v2281 = vsel %vm43, %v1110, %v1864
    %v2285 = vsel %vm43, %v1111, %v1866
    %v2289 = vsel %vm43, %v1112, %v1868
    %v2293 = vsel %vm43, %v1113, %v1870
    %v2297 = vsel %vm43, %v1114, %v1872
    %v2301 = vsel %vm43, %v1115, %v1874
    %v2305 = vsel %vm43, %v1116, %v1876
    %v2309 = vsel %vm43, %v1117, %v1878
    %v2313 = vsel %vm43, %v1118, %v1880
    %v2317 = vsel %vm43, %v1119, %v1882
    %v2321 = vsel %vm43, %v1120, %v1884
    %v2325 = vsel %vm43, %v1121, %v1886
    %v2329 = vsel %vm43, %v1122, %v1888
    %v2333 = vsel %vm43, %v1123, %v1890
    %v2337 = vsel %vm43, %v1124, %v1892
    %v2341 = vsel %vm43, %v1125, %v1894
    %v2345 = vsel %vm43, %v1286, %v1928
    %v2349 = vsel %vm43, %v1287, %v1930
    %v2353 = vsel %vm43, %v1288, %v1932
    %v2357 = vsel %vm43, %v1289, %v1934
    %v2361 = vsel %vm43, %v1290, %v1936
    %v2365 = vsel %vm43, %v1291, %v1938
    %v2369 = vsel %vm43, %v1292, %v1940
    %v2373 = vsel %vm43, %v1293, %v1942
    %v2377 = vsel %vm43, %v1294, %v1944
    %v2381 = vsel %vm43, %v1295, %v1946
    %v2385 = vsel %vm43, %v1296, %v1948
    %v2389 = vsel %vm43, %v1297, %v1950
    %v2393 = vsel %vm43, %v1298, %v1952
    %v2397 = vsel %vm43, %v1299, %v1954
    %v2401 = vsel %vm43, %v1300, %v1956
    %v2405 = vsel %vm43, %v1301, %v1958
    %v2409 = vsel %vm43, %v1302, %v1960
    %v2413 = vsel %vm43, %v1303, %v1962
    %v2417 = vsel %vm43, %v1304, %v1964
    %v2421 = vsel %vm43, %v1305, %v1966
    %v2425 = vsel %vm43, %v1306, %v1968
    %v2429 = vsel %vm43, %v1307, %v1970
    %v2433 = vsel %vm43, %v1308, %v1972
    %v2437 = vsel %vm43, %v1309, %v1974
    %v2441 = vsel %vm43, %v1310, %v1976
    %v2445 = vsel %vm43, %v1311, %v1978
    %v2449 = vsel %vm43, %v1312, %v1980
    %v2453 = vsel %vm43, %v1313, %v1982
    %v2457 = vsel %vm43, %v1314, %v1984
    %v2461 = vsel %vm43, %v1315, %v1986
    %v2465 = vsel %vm43, %v1316, %v1988
    %v2469 = vsel %vm43, %v1317, %v1990
    %v2473 = vsel %vm43, %v1479, %v2024
    %v2477 = vsel %vm43, %v1480, %v2026
    %v2481 = vsel %vm43, %v1481, %v2028
    %v2485 = vsel %vm43, %v1482, %v2030
    %v2489 = vsel %vm43, %v1483, %v2032
    %v2493 = vsel %vm43, %v1484, %v2034
    %v2497 = vsel %vm43, %v1485, %v2036
    %v2501 = vsel %vm43, %v1486, %v2038
    %v2505 = vsel %vm43, %v1487, %v2040
    %v2509 = vsel %vm43, %v1488, %v2042
    %v2513 = vsel %vm43, %v1489, %v2044
    %v2517 = vsel %vm43, %v1490, %v2046
    %v2521 = vsel %vm43, %v1491, %v2048
    %v2525 = vsel %vm43, %v1492, %v2050
    %v2529 = vsel %vm43, %v1493, %v2052
    %v2533 = vsel %vm43, %v1494, %v2054
    %v2537 = vsel %vm43, %v1495, %v2056
    %v2541 = vsel %vm43, %v1496, %v2058
    %v2545 = vsel %vm43, %v1497, %v2060
    %v2549 = vsel %vm43, %v1498, %v2062
    %v2553 = vsel %vm43, %v1499, %v2064
    %v2557 = vsel %vm43, %v1500, %v2066
    %v2561 = vsel %vm43, %v1501, %v2068
    %v2565 = vsel %vm43, %v1502, %v2070
    %v2569 = vsel %vm43, %v1503, %v2072
    %v2573 = vsel %vm43, %v1504, %v2074
    %v2577 = vsel %vm43, %v1505, %v2076
    %v2581 = vsel %vm43, %v1506, %v2078
    %v2585 = vsel %vm43, %v1507, %v2080
    %v2589 = vsel %vm43, %v1508, %v2082
    %v2593 = vsel %vm43, %v1509, %v2084
    %v2597 = vsel %vm43, %v1510, %v2086
    %v2599 = vld [vmem:[%s3] sm:$0xf]
    %v2600 = vld [vmem:[%s3 + $0x4] sm:$0xf]
    %v2601 = vld [vmem:[%s3 + $0x8] sm:$0xf]
    %v2602 = vld [vmem:[%s3 + $0xc] sm:$0xf]
    %v2603 = vld [vmem:[%s3 + $0x10] sm:$0xf]
    %v2604 = vld [vmem:[%s3 + $0x14] sm:$0xf]
    %v2605 = vld [vmem:[%s3 + $0x18] sm:$0xf]
    %v2606 = vld [vmem:[%s3 + $0x1c] sm:$0xf]
    %v2607 = vld [vmem:[%s3 + $0x20] sm:$0xf]
    %v2608 = vld [vmem:[%s3 + $0x24] sm:$0xf]
    %v2609 = vld [vmem:[%s3 + $0x28] sm:$0xf]
    %v2610 = vld [vmem:[%s3 + $0x2c] sm:$0xf]
    %v2611 = vld [vmem:[%s3 + $0x30] sm:$0xf]
    %v2612 = vld [vmem:[%s3 + $0x34] sm:$0xf]
    %v2613 = vld [vmem:[%s3 + $0x38] sm:$0xf]
    %v2614 = vld [vmem:[%s3 + $0x3c] sm:$0xf]
    %v2615 = vld [vmem:[%s3 + $0x40] sm:$0xf]
    %v2616 = vld [vmem:[%s3 + $0x44] sm:$0xf]
    %v2617 = vld [vmem:[%s3 + $0x48] sm:$0xf]
    %v2618 = vld [vmem:[%s3 + $0x4c] sm:$0xf]
    %v2619 = vld [vmem:[%s3 + $0x50] sm:$0xf]
    %v2620 = vld [vmem:[%s3 + $0x54] sm:$0xf]
    %v2621 = vld [vmem:[%s3 + $0x58] sm:$0xf]
    %v2622 = vld [vmem:[%s3 + $0x5c] sm:$0xf]
    %v2623 = vld [vmem:[%s3 + $0x60] sm:$0xf]
    %v2624 = vld [vmem:[%s3 + $0x64] sm:$0xf]
    %v2625 = vld [vmem:[%s3 + $0x68] sm:$0xf]
    %v2626 = vld [vmem:[%s3 + $0x6c] sm:$0xf]
    %v2627 = vld [vmem:[%s3 + $0x70] sm:$0xf]
    %v2628 = vld [vmem:[%s3 + $0x74] sm:$0xf]
    %v2629 = vld [vmem:[%s3 + $0x78] sm:$0xf]
    %v2630 = vld [vmem:[%s3 + $0x7c] sm:$0xf]
    %v2631 = vld [vmem:[%s3 + $0x80] sm:$0xf]
    %v2632 = vld [vmem:[%s3 + $0x84] sm:$0xf]
    %v2633 = vld [vmem:[%s3 + $0x88] sm:$0xf]
    %v2634 = vld [vmem:[%s3 + $0x8c] sm:$0xf]
    %v2635 = vld [vmem:[%s3 + $0x90] sm:$0xf]
    %v2636 = vld [vmem:[%s3 + $0x94] sm:$0xf]
    %v2637 = vld [vmem:[%s3 + $0x98] sm:$0xf]
    %v2638 = vld [vmem:[%s3 + $0x9c] sm:$0xf]
    %v2639 = vld [vmem:[%s3 + $0xa0] sm:$0xf]
    %v2640 = vld [vmem:[%s3 + $0xa4] sm:$0xf]
    %v2641 = vld [vmem:[%s3 + $0xa8] sm:$0xf]
    %v2642 = vld [vmem:[%s3 + $0xac] sm:$0xf]
    %v2643 = vld [vmem:[%s3 + $0xb0] sm:$0xf]
    %v2644 = vld [vmem:[%s3 + $0xb4] sm:$0xf]
    %v2645 = vld [vmem:[%s3 + $0xb8] sm:$0xf]
    %v2646 = vld [vmem:[%s3 + $0xbc] sm:$0xf]
    %v2647 = vld [vmem:[%s3 + $0xc0] sm:$0xf]
    %v2648 = vld [vmem:[%s3 + $0xc4] sm:$0xf]
    %v2649 = vld [vmem:[%s3 + $0xc8] sm:$0xf]
    %v2650 = vld [vmem:[%s3 + $0xcc] sm:$0xf]
    %v2651 = vld [vmem:[%s3 + $0xd0] sm:$0xf]
    %v2652 = vld [vmem:[%s3 + $0xd4] sm:$0xf]
    %v2653 = vld [vmem:[%s3 + $0xd8] sm:$0xf]
    %v2654 = vld [vmem:[%s3 + $0xdc] sm:$0xf]
    %v2655 = vld [vmem:[%s3 + $0xe0] sm:$0xf]
    %v2656 = vld [vmem:[%s3 + $0xe4] sm:$0xf]
    %v2657 = vld [vmem:[%s3 + $0xe8] sm:$0xf]
    %v2658 = vld [vmem:[%s3 + $0xec] sm:$0xf]
    %v2659 = vld [vmem:[%s3 + $0xf0] sm:$0xf]
    %v2660 = vld [vmem:[%s3 + $0xf4] sm:$0xf]
    %v2661 = vld [vmem:[%s3 + $0xf8] sm:$0xf]
    %v2662 = vld [vmem:[%s3 + $0xfc] sm:$0xf]
    %v2663 = vld [vmem:[%s3 + $0x100] sm:$0xf]
    %v2664 = vld [vmem:[%s3 + $0x104] sm:$0xf]
    %v2665 = vld [vmem:[%s3 + $0x108] sm:$0xf]
    %v2666 = vld [vmem:[%s3 + $0x10c] sm:$0xf]
    %v2667 = vld [vmem:[%s3 + $0x110] sm:$0xf]
    %v2668 = vld [vmem:[%s3 + $0x114] sm:$0xf]
    %v2669 = vld [vmem:[%s3 + $0x118] sm:$0xf]
    %v2670 = vld [vmem:[%s3 + $0x11c] sm:$0xf]
    %v2743 = vunpack.c.l.b16 %v2599
    %v2744 = vunpack.c.l.b16 %v2600
    %v2745 = vunpack.c.l.b16 %v2601
    %v2746 = vunpack.c.l.b16 %v2602
    %v2747 = vunpack.c.l.b16 %v2603
    %v2748 = vunpack.c.l.b16 %v2604
    %v2749 = vunpack.c.l.b16 %v2605
    %v2750 = vunpack.c.l.b16 %v2606
    %v2751 = vunpack.c.l.b16 %v2607
    %v2752 = vunpack.c.l.b16 %v2608
    %v2753 = vunpack.c.l.b16 %v2609
    %v2754 = vunpack.c.l.b16 %v2610
    %v2755 = vunpack.c.l.b16 %v2611
    %v2756 = vunpack.c.l.b16 %v2612
    %v2757 = vunpack.c.l.b16 %v2613
    %v2758 = vunpack.c.l.b16 %v2614
    %v2759 = vunpack.c.l.b16 %v2615
    %v2760 = vunpack.c.l.b16 %v2616
    %v2761 = vunpack.c.l.b16 %v2617
    %v2762 = vunpack.c.l.b16 %v2618
    %v2763 = vunpack.c.l.b16 %v2619
    %v2764 = vunpack.c.l.b16 %v2620
    %v2765 = vunpack.c.l.b16 %v2621
    %v2766 = vunpack.c.l.b16 %v2622
    %v2767 = vunpack.c.l.b16 %v2623
    %v2768 = vunpack.c.l.b16 %v2624
    %v2769 = vunpack.c.l.b16 %v2625
    %v2770 = vunpack.c.l.b16 %v2626
    %v2771 = vunpack.c.l.b16 %v2627
    %v2772 = vunpack.c.l.b16 %v2628
    %v2773 = vunpack.c.l.b16 %v2629
    %v2774 = vunpack.c.l.b16 %v2630
    %v2775 = vunpack.c.l.b16 %v2631
    %v2776 = vunpack.c.l.b16 %v2632
    %v2777 = vunpack.c.l.b16 %v2633
    %v2778 = vunpack.c.l.b16 %v2634
    %v2779 = vunpack.c.l.b16 %v2635
    %v2780 = vunpack.c.l.b16 %v2636
    %v2781 = vunpack.c.l.b16 %v2637
    %v2782 = vunpack.c.l.b16 %v2638
    %v2783 = vunpack.c.l.b16 %v2639
    %v2784 = vunpack.c.l.b16 %v2640
    %v2785 = vunpack.c.l.b16 %v2641
    %v2786 = vunpack.c.l.b16 %v2642
    %v2787 = vunpack.c.l.b16 %v2643
    %v2788 = vunpack.c.l.b16 %v2644
    %v2789 = vunpack.c.l.b16 %v2645
    %v2790 = vunpack.c.l.b16 %v2646
    %v2791 = vunpack.c.l.b16 %v2647
    %v2792 = vunpack.c.l.b16 %v2648
    %v2793 = vunpack.c.l.b16 %v2649
    %v2794 = vunpack.c.l.b16 %v2650
    %v2795 = vunpack.c.l.b16 %v2651
    %v2796 = vunpack.c.l.b16 %v2652
    %v2797 = vunpack.c.l.b16 %v2653
    %v2798 = vunpack.c.l.b16 %v2654
    %v2799 = vunpack.c.l.b16 %v2655
    %v2800 = vunpack.c.l.b16 %v2656
    %v2801 = vunpack.c.l.b16 %v2657
    %v2802 = vunpack.c.l.b16 %v2658
    %v2803 = vunpack.c.l.b16 %v2659
    %v2804 = vunpack.c.l.b16 %v2660
    %v2805 = vunpack.c.l.b16 %v2661
    %v2806 = vunpack.c.l.b16 %v2662
    %v2807 = vunpack.c.l.b16 %v2663
    %v2808 = vunpack.c.l.b16 %v2664
    %v2809 = vunpack.c.l.b16 %v2665
    %v2810 = vunpack.c.l.b16 %v2666
    %v2811 = vunpack.c.l.b16 %v2667
    %v2812 = vunpack.c.l.b16 %v2668
    %v2813 = vunpack.c.l.b16 %v2669
    %v2814 = vunpack.c.l.b16 %v2670
    %v2815 = vpack.c.b16 %v2744, %v2743
    %v2816 = vpack.c.b16 %v2746, %v2745
    %v2817 = vpack.c.b16 %v2748, %v2747
    %v2818 = vpack.c.b16 %v2750, %v2749
    %v2819 = vpack.c.b16 %v2752, %v2751
    %v2820 = vpack.c.b16 %v2754, %v2753
    %v2821 = vpack.c.b16 %v2756, %v2755
    %v2822 = vpack.c.b16 %v2758, %v2757
    %v2823 = vpack.c.b16 %v2760, %v2759
    %v2824 = vpack.c.b16 %v2762, %v2761
    %v2825 = vpack.c.b16 %v2764, %v2763
    %v2826 = vpack.c.b16 %v2766, %v2765
    %v2827 = vpack.c.b16 %v2768, %v2767
    %v2828 = vpack.c.b16 %v2770, %v2769
    %v2829 = vpack.c.b16 %v2772, %v2771
    %v2830 = vpack.c.b16 %v2774, %v2773
    %v2831 = vpack.c.b16 %v2776, %v2775
    %v2832 = vpack.c.b16 %v2778, %v2777
    %v2833 = vpack.c.b16 %v2780, %v2779
    %v2834 = vpack.c.b16 %v2782, %v2781
    %v2835 = vpack.c.b16 %v2784, %v2783
    %v2836 = vpack.c.b16 %v2786, %v2785
    %v2837 = vpack.c.b16 %v2788, %v2787
    %v2838 = vpack.c.b16 %v2790, %v2789
    %v2839 = vpack.c.b16 %v2792, %v2791
    %v2840 = vpack.c.b16 %v2794, %v2793
    %v2841 = vpack.c.b16 %v2796, %v2795
    %v2842 = vpack.c.b16 %v2798, %v2797
    %v2843 = vpack.c.b16 %v2800, %v2799
    %v2844 = vpack.c.b16 %v2802, %v2801
    %v2845 = vpack.c.b16 %v2804, %v2803
    %v2846 = vpack.c.b16 %v2806, %v2805
    %v2847 = vpack.c.b16 %v2808, %v2807
    %v2848 = vpack.c.b16 %v2810, %v2809
    %v2849 = vpack.c.b16 %v2812, %v2811
    %v2850 = vpack.c.b16 %v2814, %v2813
    %v2888 = vsel %vm43, %v1671, 0
    %v2891 = vsel %vm43, %v1672, 0
    %v2894 = vsel %vm43, %v1673, 0
    %v2897 = vsel %vm43, %v1674, 0
    %v2900 = vsel %vm43, %v1675, 0
    %v2903 = vsel %vm43, %v1676, 0
    %v2906 = vsel %vm43, %v1677, 0
    %v2909 = vsel %vm43, %v1678, 0
    %v2912 = vsel %vm43, %v1679, 0
    %v2915 = vsel %vm43, %v1680, 0
    %v2918 = vsel %vm43, %v1681, 0
    %v2921 = vsel %vm43, %v1682, 0
    %v2924 = vsel %vm43, %v1683, 0
    %v2927 = vsel %vm43, %v1684, 0
    %v2930 = vsel %vm43, %v1685, 0
    %v2933 = vsel %vm43, %v1686, 0
    %v2936 = vsel %vm43, %v1687, 0
    %v2939 = vsel %vm43, %v1688, 0
    %v2942 = vsel %vm43, %v1689, 0
    %v2945 = vsel %vm43, %v1690, 0
    %v2948 = vsel %vm43, %v1691, 0
    %v2951 = vsel %vm43, %v1692, 0
    %v2954 = vsel %vm43, %v1693, 0
    %v2957 = vsel %vm43, %v1694, 0
    %v2960 = vsel %vm43, %v1695, 0
    %v2963 = vsel %vm43, %v1696, 0
    %v2966 = vsel %vm43, %v1697, 0
    %v2969 = vsel %vm43, %v1698, 0
    %v2972 = vsel %vm43, %v1699, 0
    %v2975 = vsel %vm43, %v1700, 0
    %v2978 = vsel %vm43, %v1701, 0
    %v2981 = vsel %vm43, %v1702, 0
    %2983 = vmatprep.subr.bf16.mxu0 0
    %2984 = vmatpush1.bf16.msra.mxu0 %v2815
    %2985 = vmatprep.subr.bf16.mxu0 0
    %2986 = vmatpush1.bf16.msra.mxu0 %v2816
    %2987 = vmatprep.subr.bf16.mxu0 0
    %2988 = vmatpush1.bf16.msra.mxu0 %v2817
    %2989 = vmatprep.subr.bf16.mxu0 0
    %2990 = vmatpush1.bf16.msra.mxu0 %v2818
    %2991 = vmatprep.subr.bf16.mxu0 0
    %2992 = vmatpush1.bf16.msra.mxu0 %v2819
    %2993 = vmatprep.subr.bf16.mxu0 0
    %2994 = vmatpush1.bf16.msra.mxu0 %v2820
    %2995 = vmatprep.subr.bf16.mxu0 0
    %2996 = vmatpush1.bf16.msra.mxu0 %v2821
    %2997 = vmatprep.subr.bf16.mxu0 0
    %2998 = vmatpush1.bf16.msra.mxu0 %v2822
    %2999 = vmatprep.subr.bf16.mxu0 0
    %3000 = vmatpush1.bf16.msra.mxu0 %v2823
    %3001 = vmatprep.subr.bf16.mxu0 0
    %3002 = vmatpush1.bf16.msra.mxu0 %v2824
    %3003 = vmatprep.subr.bf16.mxu0 0
    %3004 = vmatpush1.bf16.msra.mxu0 %v2825
    %3005 = vmatprep.subr.bf16.mxu0 0
    %3006 = vmatpush1.bf16.msra.mxu0 %v2826
    %3007 = vmatprep.subr.bf16.mxu0 0
    %3008 = vmatpush1.bf16.msra.mxu0 %v2827
    %3009 = vmatprep.subr.bf16.mxu0 0
    %3010 = vmatpush1.bf16.msra.mxu0 %v2828
    %3011 = vmatprep.subr.bf16.mxu0 0
    %3012 = vmatpush1.bf16.msra.mxu0 %v2829
    %3013 = vmatprep.subr.bf16.mxu0 0
    %3014 = vmatpush1.bf16.msra.mxu0 %v2830
    %3015 = vmatprep.mubr.bf16.mxu0 %v2217
    %3016 = vmatmul.mubr.bf16.gmra.mrb[0].mxu0 %v2089
    %v3017 = vpop.f32.mrb[0].mxu0
    %v3018 = vadd.f32 0.0, %v3017
    %v3019 = vpop.f32.mrb[0].mxu0
    %v3020 = vpop.f32.mrb[0].mxu0
    %v3021 = vadd.f32 0.0, %v3020
    %v3022 = vpop.f32.mrb[0].mxu0
    %3023 = vmatprep.mubr.bf16.mxu0 %v2221
    %3024 = vmatmul.mubr.bf16.gmra.mrb[0].mxu0 %v2093
    %v3025 = vpop.f32.mrb[0].mxu0
    %v3026 = vadd.f32 0.0, %v3025
    %v3027 = vpop.f32.mrb[0].mxu0
    %v3028 = vpop.f32.mrb[0].mxu0
    %v3029 = vadd.f32 0.0, %v3028
    %v3030 = vpop.f32.mrb[0].mxu0
    %3031 = vmatprep.mubr.bf16.mxu0 %v2225
    %3032 = vmatmul.mubr.bf16.gmra.mrb[0].mxu0 %v2097
    %v3033 = vpop.f32.mrb[0].mxu0
    %v3034 = vadd.f32 0.0, %v3033
    %v3035 = vpop.f32.mrb[0].mxu0
    %v3036 = vpop.f32.mrb[0].mxu0
    %v3037 = vadd.f32 0.0, %v3036
    %v3038 = vpop.f32.mrb[0].mxu0
    %3039 = vmatprep.mubr.bf16.mxu0 %v2229
    %3040 = vmatmul.mubr.bf16.gmra.mrb[0].mxu0 %v2101
    %v3041 = vpop.f32.mrb[0].mxu0
    %v3042 = vadd.f32 0.0, %v3041
    %v3043 = vpop.f32.mrb[0].mxu0
    %v3044 = vpop.f32.mrb[0].mxu0
    %v3045 = vadd.f32 0.0, %v3044
    %v3046 = vpop.f32.mrb[0].mxu0
    %3047 = vmatprep.mubr.bf16.mxu0 %v2233
    %3048 = vmatmul.mubr.bf16.gmra.mrb[0].mxu0 %v2105
    %v3049 = vpop.f32.mrb[0].mxu0
    %v3050 = vadd.f32 0.0, %v3049
    %v3051 = vpop.f32.mrb[0].mxu0
    %v3052 = vpop.f32.mrb[0].mxu0
    %v3053 = vadd.f32 0.0, %v3052
    %v3054 = vpop.f32.mrb[0].mxu0
    %3055 = vmatprep.mubr.bf16.mxu0 %v2237
    %3056 = vmatmul.mubr.bf16.gmra.mrb[0].mxu0 %v2109
    %v3057 = vpop.f32.mrb[0].mxu0
    %v3058 = vadd.f32 0.0, %v3057
    %v3059 = vpop.f32.mrb[0].mxu0
    %v3060 = vpop.f32.mrb[0].mxu0
    %v3061 = vadd.f32 0.0, %v3060
    %v3062 = vpop.f32.mrb[0].mxu0
    %3063 = vmatprep.mubr.bf16.mxu0 %v2241
    %3064 = vmatmul.mubr.bf16.gmra.mrb[0].mxu0 %v2113
    %v3065 = vpop.f32.mrb[0].mxu0
    %v3066 = vadd.f32 0.0, %v3065
    %v3067 = vpop.f32.mrb[0].mxu0
    %v3068 = vpop.f32.mrb[0].mxu0
    %v3069 = vadd.f32 0.0, %v3068
    %v3070 = vpop.f32.mrb[0].mxu0
    %3071 = vmatprep.mubr.bf16.mxu0 %v2245
    %3072 = vmatmul.mubr.bf16.gmra.mrb[0].mxu0 %v2117
    %v3073 = vpop.f32.mrb[0].mxu0
    %v3074 = vadd.f32 0.0, %v3073
    %v3075 = vpop.f32.mrb[0].mxu0
    %v3076 = vpop.f32.mrb[0].mxu0
    %v3077 = vadd.f32 0.0, %v3076
    %v3078 = vpop.f32.mrb[0].mxu0
    %3079 = vmatprep.mubr.bf16.mxu0 %v2249
    %3080 = vmatmul.mubr.bf16.gmra.mrb[0].mxu0 %v2121
    %v3081 = vpop.f32.mrb[0].mxu0
    %v3082 = vadd.f32 0.0, %v3081
    %v3083 = vpop.f32.mrb[0].mxu0
    %v3084 = vpop.f32.mrb[0].mxu0
    %v3085 = vadd.f32 0.0, %v3084
    %v3086 = vpop.f32.mrb[0].mxu0
    %3087 = vmatprep.mubr.bf16.mxu0 %v2253
    %3088 = vmatmul.mubr.bf16.gmra.mrb[0].mxu0 %v2125
    %v3089 = vpop.f32.mrb[0].mxu0
    %v3090 = vadd.f32 0.0, %v3089
    %v3091 = vpop.f32.mrb[0].mxu0
    %v3092 = vpop.f32.mrb[0].mxu0
    %v3093 = vadd.f32 0.0, %v3092
    %v3094 = vpop.f32.mrb[0].mxu0
    %3095 = vmatprep.mubr.bf16.mxu0 %v2257
    %3096 = vmatmul.mubr.bf16.gmra.mrb[0].mxu0 %v2129
    %v3097 = vpop.f32.mrb[0].mxu0
    %v3098 = vadd.f32 0.0, %v3097
    %v3099 = vpop.f32.mrb[0].mxu0
    %v3100 = vpop.f32.mrb[0].mxu0
    %v3101 = vadd.f32 0.0, %v3100
    %v3102 = vpop.f32.mrb[0].mxu0
    %3103 = vmatprep.mubr.bf16.mxu0 %v2261
    %3104 = vmatmul.mubr.bf16.gmra.mrb[0].mxu0 %v2133
    %v3105 = vpop.f32.mrb[0].mxu0
    %v3106 = vadd.f32 0.0, %v3105
    %v3107 = vpop.f32.mrb[0].mxu0
    %v3108 = vpop.f32.mrb[0].mxu0
    %v3109 = vadd.f32 0.0, %v3108
    %v3110 = vpop.f32.mrb[0].mxu0
    %3111 = vmatprep.mubr.bf16.mxu0 %v2265
    %3112 = vmatmul.mubr.bf16.gmra.mrb[0].mxu0 %v2137
    %v3113 = vpop.f32.mrb[0].mxu0
    %v3114 = vadd.f32 0.0, %v3113
    %v3115 = vpop.f32.mrb[0].mxu0
    %v3116 = vpop.f32.mrb[0].mxu0
    %v3117 = vadd.f32 0.0, %v3116
    %v3118 = vpop.f32.mrb[0].mxu0
    %3119 = vmatprep.mubr.bf16.mxu0 %v2269
    %3120 = vmatmul.mubr.bf16.gmra.mrb[0].mxu0 %v2141
    %v3121 = vpop.f32.mrb[0].mxu0
    %v3122 = vadd.f32 0.0, %v3121
    %v3123 = vpop.f32.mrb[0].mxu0
    %v3124 = vpop.f32.mrb[0].mxu0
    %v3125 = vadd.f32 0.0, %v3124
    %v3126 = vpop.f32.mrb[0].mxu0
    %3127 = vmatprep.mubr.bf16.mxu0 %v2273
    %3128 = vmatmul.mubr.bf16.gmra.mrb[0].mxu0 %v2145
    %v3129 = vpop.f32.mrb[0].mxu0
    %v3130 = vadd.f32 0.0, %v3129
    %v3131 = vpop.f32.mrb[0].mxu0
    %v3132 = vpop.f32.mrb[0].mxu0
    %v3133 = vadd.f32 0.0, %v3132
    %v3134 = vpop.f32.mrb[0].mxu0
    %3135 = vmatprep.mubr.bf16.mxu0 %v2277
    %3136 = vmatmul.mubr.bf16.gmra.mrb[0].mxu0 %v2149
    %v3137 = vpop.f32.mrb[0].mxu0
    %v3138 = vadd.f32 0.0, %v3137
    %v3139 = vpop.f32.mrb[0].mxu0
    %v3140 = vpop.f32.mrb[0].mxu0
    %v3141 = vadd.f32 0.0, %v3140
    %v3142 = vpop.f32.mrb[0].mxu0
    %3143 = vmatprep.mubr.bf16.mxu0 %v2281
    %3144 = vmatmul.mubr.bf16.gmra.mrb[0].mxu0 %v2153
    %v3145 = vpop.f32.mrb[0].mxu0
    %v3146 = vadd.f32 0.0, %v3145
    %v3147 = vpop.f32.mrb[0].mxu0
    %v3148 = vpop.f32.mrb[0].mxu0
    %v3149 = vadd.f32 0.0, %v3148
    %v3150 = vpop.f32.mrb[0].mxu0
    %3151 = vmatprep.mubr.bf16.mxu0 %v2285
    %3152 = vmatmul.mubr.bf16.gmra.mrb[0].mxu0 %v2157
    %v3153 = vpop.f32.mrb[0].mxu0
    %v3154 = vadd.f32 0.0, %v3153
    %v3155 = vpop.f32.mrb[0].mxu0
    %v3156 = vpop.f32.mrb[0].mxu0
    %v3157 = vadd.f32 0.0, %v3156
    %v3158 = vpop.f32.mrb[0].mxu0
    %3159 = vmatprep.mubr.bf16.mxu0 %v2289
    %3160 = vmatmul.mubr.bf16.gmra.mrb[0].mxu0 %v2161
    %v3161 = vpop.f32.mrb[0].mxu0
    %v3162 = vadd.f32 0.0, %v3161
    %v3163 = vpop.f32.mrb[0].mxu0
    %v3164 = vpop.f32.mrb[0].mxu0
    %v3165 = vadd.f32 0.0, %v3164
    %v3166 = vpop.f32.mrb[0].mxu0
    %3167 = vmatprep.mubr.bf16.mxu0 %v2293
    %3168 = vmatmul.mubr.bf16.gmra.mrb[0].mxu0 %v2165
    %v3169 = vpop.f32.mrb[0].mxu0
    %v3170 = vadd.f32 0.0, %v3169
    %v3171 = vpop.f32.mrb[0].mxu0
    %v3172 = vpop.f32.mrb[0].mxu0
    %v3173 = vadd.f32 0.0, %v3172
    %v3174 = vpop.f32.mrb[0].mxu0
    %3175 = vmatprep.mubr.bf16.mxu0 %v2297
    %3176 = vmatmul.mubr.bf16.gmra.mrb[0].mxu0 %v2169
    %v3177 = vpop.f32.mrb[0].mxu0
    %v3178 = vadd.f32 0.0, %v3177
    %v3179 = vpop.f32.mrb[0].mxu0
    %v3180 = vpop.f32.mrb[0].mxu0
    %v3181 = vadd.f32 0.0, %v3180
    %v3182 = vpop.f32.mrb[0].mxu0
    %3183 = vmatprep.mubr.bf16.mxu0 %v2301
    %3184 = vmatmul.mubr.bf16.gmra.mrb[0].mxu0 %v2173
    %v3185 = vpop.f32.mrb[0].mxu0
    %v3186 = vadd.f32 0.0, %v3185
    %v3187 = vpop.f32.mrb[0].mxu0
    %v3188 = vpop.f32.mrb[0].mxu0
    %v3189 = vadd.f32 0.0, %v3188
    %v3190 = vpop.f32.mrb[0].mxu0
    %3191 = vmatprep.mubr.bf16.mxu0 %v2305
    %3192 = vmatmul.mubr.bf16.gmra.mrb[0].mxu0 %v2177
    %v3193 = vpop.f32.mrb[0].mxu0
    %v3194 = vadd.f32 0.0, %v3193
    %v3195 = vpop.f32.mrb[0].mxu0
    %v3196 = vpop.f32.mrb[0].mxu0
    %v3197 = vadd.f32 0.0, %v3196
    %v3198 = vpop.f32.mrb[0].mxu0
    %3199 = vmatprep.mubr.bf16.mxu0 %v2309
    %3200 = vmatmul.mubr.bf16.gmra.mrb[0].mxu0 %v2181
    %v3201 = vpop.f32.mrb[0].mxu0
    %v3202 = vadd.f32 0.0, %v3201
    %v3203 = vpop.f32.mrb[0].mxu0
    %v3204 = vpop.f32.mrb[0].mxu0
    %v3205 = vadd.f32 0.0, %v3204
    %v3206 = vpop.f32.mrb[0].mxu0
    %3207 = vmatprep.mubr.bf16.mxu0 %v2313
    %3208 = vmatmul.mubr.bf16.gmra.mrb[0].mxu0 %v2185
    %v3209 = vpop.f32.mrb[0].mxu0
    %v3210 = vadd.f32 0.0, %v3209
    %v3211 = vpop.f32.mrb[0].mxu0
    %v3212 = vpop.f32.mrb[0].mxu0
    %v3213 = vadd.f32 0.0, %v3212
    %v3214 = vpop.f32.mrb[0].mxu0
    %3215 = vmatprep.mubr.bf16.mxu0 %v2317
    %3216 = vmatmul.mubr.bf16.gmra.mrb[0].mxu0 %v2189
    %v3217 = vpop.f32.mrb[0].mxu0
    %v3218 = vadd.f32 0.0, %v3217
    %v3219 = vpop.f32.mrb[0].mxu0
    %v3220 = vpop.f32.mrb[0].mxu0
    %v3221 = vadd.f32 0.0, %v3220
    %v3222 = vpop.f32.mrb[0].mxu0
    %3223 = vmatprep.mubr.bf16.mxu0 %v2321
    %3224 = vmatmul.mubr.bf16.gmra.mrb[0].mxu0 %v2193
    %v3225 = vpop.f32.mrb[0].mxu0
    %v3226 = vadd.f32 0.0, %v3225
    %v3227 = vpop.f32.mrb[0].mxu0
    %v3228 = vpop.f32.mrb[0].mxu0
    %v3229 = vadd.f32 0.0, %v3228
    %v3230 = vpop.f32.mrb[0].mxu0
    %3231 = vmatprep.mubr.bf16.mxu0 %v2325
    %3232 = vmatmul.mubr.bf16.gmra.mrb[0].mxu0 %v2197
    %v3233 = vpop.f32.mrb[0].mxu0
    %v3234 = vadd.f32 0.0, %v3233
    %v3235 = vpop.f32.mrb[0].mxu0
    %v3236 = vpop.f32.mrb[0].mxu0
    %v3237 = vadd.f32 0.0, %v3236
    %v3238 = vpop.f32.mrb[0].mxu0
    %3239 = vmatprep.mubr.bf16.mxu0 %v2329
    %3240 = vmatmul.mubr.bf16.gmra.mrb[0].mxu0 %v2201
    %v3241 = vpop.f32.mrb[0].mxu0
    %v3242 = vadd.f32 0.0, %v3241
    %v3243 = vpop.f32.mrb[0].mxu0
    %v3244 = vpop.f32.mrb[0].mxu0
    %v3245 = vadd.f32 0.0, %v3244
    %v3246 = vpop.f32.mrb[0].mxu0
    %3247 = vmatprep.mubr.bf16.mxu0 %v2333
    %3248 = vmatmul.mubr.bf16.gmra.mrb[0].mxu0 %v2205
    %v3249 = vpop.f32.mrb[0].mxu0
    %v3250 = vadd.f32 0.0, %v3249
    %v3251 = vpop.f32.mrb[0].mxu0
    %v3252 = vpop.f32.mrb[0].mxu0
    %v3253 = vadd.f32 0.0, %v3252
    %v3254 = vpop.f32.mrb[0].mxu0
    %3255 = vmatprep.mubr.bf16.mxu0 %v2337
    %3256 = vmatmul.mubr.bf16.gmra.mrb[0].mxu0 %v2209
    %v3257 = vpop.f32.mrb[0].mxu0
    %v3258 = vadd.f32 0.0, %v3257
    %v3259 = vpop.f32.mrb[0].mxu0
    %v3260 = vpop.f32.mrb[0].mxu0
    %v3261 = vadd.f32 0.0, %v3260
    %v3262 = vpop.f32.mrb[0].mxu0
    %3263 = vmatprep.mubr.bf16.mxu0 %v2341
    %3264 = vmatmul.mubr.bf16.gmra.mrb[0].mxu0 %v2213
    %v3265 = vpop.f32.mrb[0].mxu0
    %v3266 = vadd.f32 0.0, %v3265
    %v3267 = vpop.f32.mrb[0].mxu0
    %v3268 = vpop.f32.mrb[0].mxu0
    %v3269 = vadd.f32 0.0, %v3268
    %v3270 = vpop.f32.mrb[0].mxu0
    %3271 = vdwg.mxu0
    %3272 = vmatprep.subr.bf16.mxu0 0
    %3273 = vmatpush1.bf16.msra.mxu0 %v2831
    %3274 = vmatprep.subr.bf16.mxu0 0
    %3275 = vmatpush1.bf16.msra.mxu0 %v2832
    %3276 = vmatprep.subr.bf16.mxu0 0
    %3277 = vmatpush1.bf16.msra.mxu0 %v2833
    %3278 = vmatprep.subr.bf16.mxu0 0
    %3279 = vmatpush1.bf16.msra.mxu0 %v2834
    %3280 = vmatprep.subr.bf16.mxu0 0
    %3281 = vmatpush1.bf16.msra.mxu0 %v2835
    %3282 = vmatprep.subr.bf16.mxu0 0
    %3283 = vmatpush1.bf16.msra.mxu0 %v2836
    %3284 = vmatprep.subr.bf16.mxu0 0
    %3285 = vmatpush1.bf16.msra.mxu0 %v2837
    %3286 = vmatprep.subr.bf16.mxu0 0
    %3287 = vmatpush1.bf16.msra.mxu0 %v2838
    %3288 = vmatprep.subr.bf16.mxu0 0
    %3289 = vmatpush1.bf16.msra.mxu0 %v2839
    %3290 = vmatprep.subr.bf16.mxu0 0
    %3291 = vmatpush1.bf16.msra.mxu0 %v2840
    %3292 = vmatprep.subr.bf16.mxu0 0
    %3293 = vmatpush1.bf16.msra.mxu0 %v2841
    %3294 = vmatprep.subr.bf16.mxu0 0
    %3295 = vmatpush1.bf16.msra.mxu0 %v2842
    %3296 = vmatprep.subr.bf16.mxu0 0
    %3297 = vmatpush1.bf16.msra.mxu0 %v2843
    %3298 = vmatprep.subr.bf16.mxu0 0
    %3299 = vmatpush1.bf16.msra.mxu0 %v2844
    %3300 = vmatprep.subr.bf16.mxu0 0
    %3301 = vmatpush1.bf16.msra.mxu0 %v2845
    %3302 = vmatprep.subr.bf16.mxu0 0
    %3303 = vmatpush1.bf16.msra.mxu0 %v2846
    %3304 = vmatprep.mubr.bf16.mxu0 %v2473
    %3305 = vmatmul.mubr.bf16.gmra.mrb[0].mxu0 %v2345
    %v3306 = vpop.f32.mrb[0].mxu0
    %v3307 = vadd.f32 %v3018, %v3306
    %v3308 = vpop.f32.mrb[0].mxu0
    %v3309 = vpop.f32.mrb[0].mxu0
    %v3310 = vadd.f32 %v3021, %v3309
    %v3311 = vpop.f32.mrb[0].mxu0
    %3312 = vmatprep.mubr.bf16.mxu0 %v2477
    %3313 = vmatmul.mubr.bf16.gmra.mrb[0].mxu0 %v2349
    %v3314 = vpop.f32.mrb[0].mxu0
    %v3315 = vadd.f32 %v3026, %v3314
    %v3316 = vpop.f32.mrb[0].mxu0
    %v3317 = vpop.f32.mrb[0].mxu0
    %v3318 = vadd.f32 %v3029, %v3317
    %v3319 = vpop.f32.mrb[0].mxu0
    %3320 = vmatprep.mubr.bf16.mxu0 %v2481
    %3321 = vmatmul.mubr.bf16.gmra.mrb[0].mxu0 %v2353
    %v3322 = vpop.f32.mrb[0].mxu0
    %v3323 = vadd.f32 %v3034, %v3322
    %v3324 = vpop.f32.mrb[0].mxu0
    %v3325 = vpop.f32.mrb[0].mxu0
    %v3326 = vadd.f32 %v3037, %v3325
    %v3327 = vpop.f32.mrb[0].mxu0
    %3328 = vmatprep.mubr.bf16.mxu0 %v2485
    %3329 = vmatmul.mubr.bf16.gmra.mrb[0].mxu0 %v2357
    %v3330 = vpop.f32.mrb[0].mxu0
    %v3331 = vadd.f32 %v3042, %v3330
    %v3332 = vpop.f32.mrb[0].mxu0
    %v3333 = vpop.f32.mrb[0].mxu0
    %v3334 = vadd.f32 %v3045, %v3333
    %v3335 = vpop.f32.mrb[0].mxu0
    %3336 = vmatprep.mubr.bf16.mxu0 %v2489
    %3337 = vmatmul.mubr.bf16.gmra.mrb[0].mxu0 %v2361
    %v3338 = vpop.f32.mrb[0].mxu0
    %v3339 = vadd.f32 %v3050, %v3338
    %v3340 = vpop.f32.mrb[0].mxu0
    %v3341 = vpop.f32.mrb[0].mxu0
    %v3342 = vadd.f32 %v3053, %v3341
    %v3343 = vpop.f32.mrb[0].mxu0
    %3344 = vmatprep.mubr.bf16.mxu0 %v2493
    %3345 = vmatmul.mubr.bf16.gmra.mrb[0].mxu0 %v2365
    %v3346 = vpop.f32.mrb[0].mxu0
    %v3347 = vadd.f32 %v3058, %v3346
    %v3348 = vpop.f32.mrb[0].mxu0
    %v3349 = vpop.f32.mrb[0].mxu0
    %v3350 = vadd.f32 %v3061, %v3349
    %v3351 = vpop.f32.mrb[0].mxu0
    %3352 = vmatprep.mubr.bf16.mxu0 %v2497
    %3353 = vmatmul.mubr.bf16.gmra.mrb[0].mxu0 %v2369
    %v3354 = vpop.f32.mrb[0].mxu0
    %v3355 = vadd.f32 %v3066, %v3354
    %v3356 = vpop.f32.mrb[0].mxu0
    %v3357 = vpop.f32.mrb[0].mxu0
    %v3358 = vadd.f32 %v3069, %v3357
    %v3359 = vpop.f32.mrb[0].mxu0
    %3360 = vmatprep.mubr.bf16.mxu0 %v2501
    %3361 = vmatmul.mubr.bf16.gmra.mrb[0].mxu0 %v2373
    %v3362 = vpop.f32.mrb[0].mxu0
    %v3363 = vadd.f32 %v3074, %v3362
    %v3364 = vpop.f32.mrb[0].mxu0
    %v3365 = vpop.f32.mrb[0].mxu0
    %v3366 = vadd.f32 %v3077, %v3365
    %v3367 = vpop.f32.mrb[0].mxu0
    %3368 = vmatprep.mubr.bf16.mxu0 %v2505
    %3369 = vmatmul.mubr.bf16.gmra.mrb[0].mxu0 %v2377
    %v3370 = vpop.f32.mrb[0].mxu0
    %v3371 = vadd.f32 %v3082, %v3370
    %v3372 = vpop.f32.mrb[0].mxu0
    %v3373 = vpop.f32.mrb[0].mxu0
    %v3374 = vadd.f32 %v3085, %v3373
    %v3375 = vpop.f32.mrb[0].mxu0
    %3376 = vmatprep.mubr.bf16.mxu0 %v2509
    %3377 = vmatmul.mubr.bf16.gmra.mrb[0].mxu0 %v2381
    %v3378 = vpop.f32.mrb[0].mxu0
    %v3379 = vadd.f32 %v3090, %v3378
    %v3380 = vpop.f32.mrb[0].mxu0
    %v3381 = vpop.f32.mrb[0].mxu0
    %v3382 = vadd.f32 %v3093, %v3381
    %v3383 = vpop.f32.mrb[0].mxu0
    %3384 = vmatprep.mubr.bf16.mxu0 %v2513
    %3385 = vmatmul.mubr.bf16.gmra.mrb[0].mxu0 %v2385
    %v3386 = vpop.f32.mrb[0].mxu0
    %v3387 = vadd.f32 %v3098, %v3386
    %v3388 = vpop.f32.mrb[0].mxu0
    %v3389 = vpop.f32.mrb[0].mxu0
    %v3390 = vadd.f32 %v3101, %v3389
    %v3391 = vpop.f32.mrb[0].mxu0
    %3392 = vmatprep.mubr.bf16.mxu0 %v2517
    %3393 = vmatmul.mubr.bf16.gmra.mrb[0].mxu0 %v2389
    %v3394 = vpop.f32.mrb[0].mxu0
    %v3395 = vadd.f32 %v3106, %v3394
    %v3396 = vpop.f32.mrb[0].mxu0
    %v3397 = vpop.f32.mrb[0].mxu0
    %v3398 = vadd.f32 %v3109, %v3397
    %v3399 = vpop.f32.mrb[0].mxu0
    %3400 = vmatprep.mubr.bf16.mxu0 %v2521
    %3401 = vmatmul.mubr.bf16.gmra.mrb[0].mxu0 %v2393
    %v3402 = vpop.f32.mrb[0].mxu0
    %v3403 = vadd.f32 %v3114, %v3402
    %v3404 = vpop.f32.mrb[0].mxu0
    %v3405 = vpop.f32.mrb[0].mxu0
    %v3406 = vadd.f32 %v3117, %v3405
    %v3407 = vpop.f32.mrb[0].mxu0
    %3408 = vmatprep.mubr.bf16.mxu0 %v2525
    %3409 = vmatmul.mubr.bf16.gmra.mrb[0].mxu0 %v2397
    %v3410 = vpop.f32.mrb[0].mxu0
    %v3411 = vadd.f32 %v3122, %v3410
    %v3412 = vpop.f32.mrb[0].mxu0
    %v3413 = vpop.f32.mrb[0].mxu0
    %v3414 = vadd.f32 %v3125, %v3413
    %v3415 = vpop.f32.mrb[0].mxu0
    %3416 = vmatprep.mubr.bf16.mxu0 %v2529
    %3417 = vmatmul.mubr.bf16.gmra.mrb[0].mxu0 %v2401
    %v3418 = vpop.f32.mrb[0].mxu0
    %v3419 = vadd.f32 %v3130, %v3418
    %v3420 = vpop.f32.mrb[0].mxu0
    %v3421 = vpop.f32.mrb[0].mxu0
    %v3422 = vadd.f32 %v3133, %v3421
    %v3423 = vpop.f32.mrb[0].mxu0
    %3424 = vmatprep.mubr.bf16.mxu0 %v2533
    %3425 = vmatmul.mubr.bf16.gmra.mrb[0].mxu0 %v2405
    %v3426 = vpop.f32.mrb[0].mxu0
    %v3427 = vadd.f32 %v3138, %v3426
    %v3428 = vpop.f32.mrb[0].mxu0
    %v3429 = vpop.f32.mrb[0].mxu0
    %v3430 = vadd.f32 %v3141, %v3429
    %v3431 = vpop.f32.mrb[0].mxu0
    %3432 = vmatprep.mubr.bf16.mxu0 %v2537
    %3433 = vmatmul.mubr.bf16.gmra.mrb[0].mxu0 %v2409
    %v3434 = vpop.f32.mrb[0].mxu0
    %v3435 = vadd.f32 %v3146, %v3434
    %v3436 = vpop.f32.mrb[0].mxu0
    %v3437 = vpop.f32.mrb[0].mxu0
    %v3438 = vadd.f32 %v3149, %v3437
    %v3439 = vpop.f32.mrb[0].mxu0
    %3440 = vmatprep.mubr.bf16.mxu0 %v2541
    %3441 = vmatmul.mubr.bf16.gmra.mrb[0].mxu0 %v2413
    %v3442 = vpop.f32.mrb[0].mxu0
    %v3443 = vadd.f32 %v3154, %v3442
    %v3444 = vpop.f32.mrb[0].mxu0
    %v3445 = vpop.f32.mrb[0].mxu0
    %v3446 = vadd.f32 %v3157, %v3445
    %v3447 = vpop.f32.mrb[0].mxu0
    %3448 = vmatprep.mubr.bf16.mxu0 %v2545
    %3449 = vmatmul.mubr.bf16.gmra.mrb[0].mxu0 %v2417
    %v3450 = vpop.f32.mrb[0].mxu0
    %v3451 = vadd.f32 %v3162, %v3450
    %v3452 = vpop.f32.mrb[0].mxu0
    %v3453 = vpop.f32.mrb[0].mxu0
    %v3454 = vadd.f32 %v3165, %v3453
    %v3455 = vpop.f32.mrb[0].mxu0
    %3456 = vmatprep.mubr.bf16.mxu0 %v2549
    %3457 = vmatmul.mubr.bf16.gmra.mrb[0].mxu0 %v2421
    %v3458 = vpop.f32.mrb[0].mxu0
    %v3459 = vadd.f32 %v3170, %v3458
    %v3460 = vpop.f32.mrb[0].mxu0
    %v3461 = vpop.f32.mrb[0].mxu0
    %v3462 = vadd.f32 %v3173, %v3461
    %v3463 = vpop.f32.mrb[0].mxu0
    %3464 = vmatprep.mubr.bf16.mxu0 %v2553
    %3465 = vmatmul.mubr.bf16.gmra.mrb[0].mxu0 %v2425
    %v3466 = vpop.f32.mrb[0].mxu0
    %v3467 = vadd.f32 %v3178, %v3466
    %v3468 = vpop.f32.mrb[0].mxu0
    %v3469 = vpop.f32.mrb[0].mxu0
    %v3470 = vadd.f32 %v3181, %v3469
    %v3471 = vpop.f32.mrb[0].mxu0
    %3472 = vmatprep.mubr.bf16.mxu0 %v2557
    %3473 = vmatmul.mubr.bf16.gmra.mrb[0].mxu0 %v2429
    %v3474 = vpop.f32.mrb[0].mxu0
    %v3475 = vadd.f32 %v3186, %v3474
    %v3476 = vpop.f32.mrb[0].mxu0
    %v3477 = vpop.f32.mrb[0].mxu0
    %v3478 = vadd.f32 %v3189, %v3477
    %v3479 = vpop.f32.mrb[0].mxu0
    %3480 = vmatprep.mubr.bf16.mxu0 %v2561
    %3481 = vmatmul.mubr.bf16.gmra.mrb[0].mxu0 %v2433
    %v3482 = vpop.f32.mrb[0].mxu0
    %v3483 = vadd.f32 %v3194, %v3482
    %v3484 = vpop.f32.mrb[0].mxu0
    %v3485 = vpop.f32.mrb[0].mxu0
    %v3486 = vadd.f32 %v3197, %v3485
    %v3487 = vpop.f32.mrb[0].mxu0
    %3488 = vmatprep.mubr.bf16.mxu0 %v2565
    %3489 = vmatmul.mubr.bf16.gmra.mrb[0].mxu0 %v2437
    %v3490 = vpop.f32.mrb[0].mxu0
    %v3491 = vadd.f32 %v3202, %v3490
    %v3492 = vpop.f32.mrb[0].mxu0
    %v3493 = vpop.f32.mrb[0].mxu0
    %v3494 = vadd.f32 %v3205, %v3493
    %v3495 = vpop.f32.mrb[0].mxu0
    %3496 = vmatprep.mubr.bf16.mxu0 %v2569
    %3497 = vmatmul.mubr.bf16.gmra.mrb[0].mxu0 %v2441
    %v3498 = vpop.f32.mrb[0].mxu0
    %v3499 = vadd.f32 %v3210, %v3498
    %v3500 = vpop.f32.mrb[0].mxu0
    %v3501 = vpop.f32.mrb[0].mxu0
    %v3502 = vadd.f32 %v3213, %v3501
    %v3503 = vpop.f32.mrb[0].mxu0
    %3504 = vmatprep.mubr.bf16.mxu0 %v2573
    %3505 = vmatmul.mubr.bf16.gmra.mrb[0].mxu0 %v2445
    %v3506 = vpop.f32.mrb[0].mxu0
    %v3507 = vadd.f32 %v3218, %v3506
    %v3508 = vpop.f32.mrb[0].mxu0
    %v3509 = vpop.f32.mrb[0].mxu0
    %v3510 = vadd.f32 %v3221, %v3509
    %v3511 = vpop.f32.mrb[0].mxu0
    %3512 = vmatprep.mubr.bf16.mxu0 %v2577
    %3513 = vmatmul.mubr.bf16.gmra.mrb[0].mxu0 %v2449
    %v3514 = vpop.f32.mrb[0].mxu0
    %v3515 = vadd.f32 %v3226, %v3514
    %v3516 = vpop.f32.mrb[0].mxu0
    %v3517 = vpop.f32.mrb[0].mxu0
    %v3518 = vadd.f32 %v3229, %v3517
    %v3519 = vpop.f32.mrb[0].mxu0
    %3520 = vmatprep.mubr.bf16.mxu0 %v2581
    %3521 = vmatmul.mubr.bf16.gmra.mrb[0].mxu0 %v2453
    %v3522 = vpop.f32.mrb[0].mxu0
    %v3523 = vadd.f32 %v3234, %v3522
    %v3524 = vpop.f32.mrb[0].mxu0
    %v3525 = vpop.f32.mrb[0].mxu0
    %v3526 = vadd.f32 %v3237, %v3525
    %v3527 = vpop.f32.mrb[0].mxu0
    %3528 = vmatprep.mubr.bf16.mxu0 %v2585
    %3529 = vmatmul.mubr.bf16.gmra.mrb[0].mxu0 %v2457
    %v3530 = vpop.f32.mrb[0].mxu0
    %v3531 = vadd.f32 %v3242, %v3530
    %v3532 = vpop.f32.mrb[0].mxu0
    %v3533 = vpop.f32.mrb[0].mxu0
    %v3534 = vadd.f32 %v3245, %v3533
    %v3535 = vpop.f32.mrb[0].mxu0
    %3536 = vmatprep.mubr.bf16.mxu0 %v2589
    %3537 = vmatmul.mubr.bf16.gmra.mrb[0].mxu0 %v2461
    %v3538 = vpop.f32.mrb[0].mxu0
    %v3539 = vadd.f32 %v3250, %v3538
    %v3540 = vpop.f32.mrb[0].mxu0
    %v3541 = vpop.f32.mrb[0].mxu0
    %v3542 = vadd.f32 %v3253, %v3541
    %v3543 = vpop.f32.mrb[0].mxu0
    %3544 = vmatprep.mubr.bf16.mxu0 %v2593
    %3545 = vmatmul.mubr.bf16.gmra.mrb[0].mxu0 %v2465
    %v3546 = vpop.f32.mrb[0].mxu0
    %v3547 = vadd.f32 %v3258, %v3546
    %v3548 = vpop.f32.mrb[0].mxu0
    %v3549 = vpop.f32.mrb[0].mxu0
    %v3550 = vadd.f32 %v3261, %v3549
    %v3551 = vpop.f32.mrb[0].mxu0
    %3552 = vmatprep.mubr.bf16.mxu0 %v2597
    %3553 = vmatmul.mubr.bf16.gmra.mrb[0].mxu0 %v2469
    %v3554 = vpop.f32.mrb[0].mxu0
    %v3555 = vadd.f32 %v3266, %v3554
    %v3556 = vpop.f32.mrb[0].mxu0
    %v3557 = vpop.f32.mrb[0].mxu0
    %v3558 = vadd.f32 %v3269, %v3557
    %v3559 = vpop.f32.mrb[0].mxu0
    %3560 = vdwg.mxu0
    %3561 = vmatprep.subr.bf16.mxu0 0
    %3562 = vmatpush1.bf16.msra.mxu0 %v2847
    %3563 = vmatprep.subr.bf16.mxu0 0
    %3564 = vmatpush1.bf16.msra.mxu0 %v2848
    %3565 = vmatprep.subr.bf16.mxu0 0
    %3566 = vmatpush1.bf16.msra.mxu0 %v2849
    %3567 = vmatprep.subr.bf16.mxu0 0
    %3568 = vmatpush1.bf16.msra.mxu0 %v2850
    %3569 = vmatprep.subr.bf16.mxu0 0
    %3570 = vmatpush1.bf16.msra.mxu0 0
    %3571 = vmatprep.subr.bf16.mxu0 0
    %3572 = vmatpush1.bf16.msra.mxu0 0
    %3573 = vmatprep.subr.bf16.mxu0 0
    %3574 = vmatpush1.bf16.msra.mxu0 0
    %3575 = vmatprep.subr.bf16.mxu0 0
    %3576 = vmatpush1.bf16.msra.mxu0 0
    %3577 = vmatprep.subr.bf16.mxu0 0
    %3578 = vmatpush1.bf16.msra.mxu0 0
    %3579 = vmatprep.subr.bf16.mxu0 0
    %3580 = vmatpush1.bf16.msra.mxu0 0
    %3581 = vmatprep.subr.bf16.mxu0 0
    %3582 = vmatpush1.bf16.msra.mxu0 0
    %3583 = vmatprep.subr.bf16.mxu0 0
    %3584 = vmatpush1.bf16.msra.mxu0 0
    %3585 = vmatprep.subr.bf16.mxu0 0
    %3586 = vmatpush1.bf16.msra.mxu0 0
    %3587 = vmatprep.subr.bf16.mxu0 0
    %3588 = vmatpush1.bf16.msra.mxu0 0
    %3589 = vmatprep.subr.bf16.mxu0 0
    %3590 = vmatpush1.bf16.msra.mxu0 0
    %3591 = vmatprep.subr.bf16.mxu0 0
    %3592 = vmatpush1.bf16.msra.mxu0 0
    %3593 = vmatprep.mubr.bf16.mxu0 0
    %3594 = vmatmul.mubr.bf16.gmra.mrb[0].mxu0 %v2888
    %v3595 = vpop.f32.mrb[0].mxu0
    %v3596 = vadd.f32 %v3307, %v3595
    %v3597 = vpop.f32.mrb[0].mxu0
    %v3598 = vpop.f32.mrb[0].mxu0
    %v3599 = vadd.f32 %v3310, %v3598
    %v3600 = vpop.f32.mrb[0].mxu0
    %3601 = vmatprep.mubr.bf16.mxu0 0
    %3602 = vmatmul.mubr.bf16.gmra.mrb[0].mxu0 %v2891
    %v3603 = vpop.f32.mrb[0].mxu0
    %v3604 = vadd.f32 %v3315, %v3603
    %v3605 = vpop.f32.mrb[0].mxu0
    %v3606 = vpop.f32.mrb[0].mxu0
    %v3607 = vadd.f32 %v3318, %v3606
    %v3608 = vpop.f32.mrb[0].mxu0
    %3609 = vmatprep.mubr.bf16.mxu0 0
    %3610 = vmatmul.mubr.bf16.gmra.mrb[0].mxu0 %v2894
    %v3611 = vpop.f32.mrb[0].mxu0
    %v3612 = vadd.f32 %v3323, %v3611
    %v3613 = vpop.f32.mrb[0].mxu0
    %v3614 = vpop.f32.mrb[0].mxu0
    %v3615 = vadd.f32 %v3326, %v3614
    %v3616 = vpop.f32.mrb[0].mxu0
    %3617 = vmatprep.mubr.bf16.mxu0 0
    %3618 = vmatmul.mubr.bf16.gmra.mrb[0].mxu0 %v2897
    %v3619 = vpop.f32.mrb[0].mxu0
    %v3620 = vadd.f32 %v3331, %v3619
    %v3621 = vpop.f32.mrb[0].mxu0
    %v3622 = vpop.f32.mrb[0].mxu0
    %v3623 = vadd.f32 %v3334, %v3622
    %v3624 = vpop.f32.mrb[0].mxu0
    %3625 = vmatprep.mubr.bf16.mxu0 0
    %3626 = vmatmul.mubr.bf16.gmra.mrb[0].mxu0 %v2900
    %v3627 = vpop.f32.mrb[0].mxu0
    %v3628 = vadd.f32 %v3339, %v3627
    %v3629 = vpop.f32.mrb[0].mxu0
    %v3630 = vpop.f32.mrb[0].mxu0
    %v3631 = vadd.f32 %v3342, %v3630
    %v3632 = vpop.f32.mrb[0].mxu0
    %3633 = vmatprep.mubr.bf16.mxu0 0
    %3634 = vmatmul.mubr.bf16.gmra.mrb[0].mxu0 %v2903
    %v3635 = vpop.f32.mrb[0].mxu0
    %v3636 = vadd.f32 %v3347, %v3635
    %v3637 = vpop.f32.mrb[0].mxu0
    %v3638 = vpop.f32.mrb[0].mxu0
    %v3639 = vadd.f32 %v3350, %v3638
    %v3640 = vpop.f32.mrb[0].mxu0
    %3641 = vmatprep.mubr.bf16.mxu0 0
    %3642 = vmatmul.mubr.bf16.gmra.mrb[0].mxu0 %v2906
    %v3643 = vpop.f32.mrb[0].mxu0
    %v3644 = vadd.f32 %v3355, %v3643
    %v3645 = vpop.f32.mrb[0].mxu0
    %v3646 = vpop.f32.mrb[0].mxu0
    %v3647 = vadd.f32 %v3358, %v3646
    %v3648 = vpop.f32.mrb[0].mxu0
    %3649 = vmatprep.mubr.bf16.mxu0 0
    %3650 = vmatmul.mubr.bf16.gmra.mrb[0].mxu0 %v2909
    %v3651 = vpop.f32.mrb[0].mxu0
    %v3652 = vadd.f32 %v3363, %v3651
    %v3653 = vpop.f32.mrb[0].mxu0
    %v3654 = vpop.f32.mrb[0].mxu0
    %v3655 = vadd.f32 %v3366, %v3654
    %v3656 = vpop.f32.mrb[0].mxu0
    %3657 = vmatprep.mubr.bf16.mxu0 0
    %3658 = vmatmul.mubr.bf16.gmra.mrb[0].mxu0 %v2912
    %v3659 = vpop.f32.mrb[0].mxu0
    %v3660 = vadd.f32 %v3371, %v3659
    %v3661 = vpop.f32.mrb[0].mxu0
    %v3662 = vpop.f32.mrb[0].mxu0
    %v3663 = vadd.f32 %v3374, %v3662
    %v3664 = vpop.f32.mrb[0].mxu0
    %3665 = vmatprep.mubr.bf16.mxu0 0
    %3666 = vmatmul.mubr.bf16.gmra.mrb[0].mxu0 %v2915
    %v3667 = vpop.f32.mrb[0].mxu0
    %v3668 = vadd.f32 %v3379, %v3667
    %v3669 = vpop.f32.mrb[0].mxu0
    %v3670 = vpop.f32.mrb[0].mxu0
    %v3671 = vadd.f32 %v3382, %v3670
    %v3672 = vpop.f32.mrb[0].mxu0
    %3673 = vmatprep.mubr.bf16.mxu0 0
    %3674 = vmatmul.mubr.bf16.gmra.mrb[0].mxu0 %v2918
    %v3675 = vpop.f32.mrb[0].mxu0
    %v3676 = vadd.f32 %v3387, %v3675
    %v3677 = vpop.f32.mrb[0].mxu0
    %v3678 = vpop.f32.mrb[0].mxu0
    %v3679 = vadd.f32 %v3390, %v3678
    %v3680 = vpop.f32.mrb[0].mxu0
    %3681 = vmatprep.mubr.bf16.mxu0 0
    %3682 = vmatmul.mubr.bf16.gmra.mrb[0].mxu0 %v2921
    %v3683 = vpop.f32.mrb[0].mxu0
    %v3684 = vadd.f32 %v3395, %v3683
    %v3685 = vpop.f32.mrb[0].mxu0
    %v3686 = vpop.f32.mrb[0].mxu0
    %v3687 = vadd.f32 %v3398, %v3686
    %v3688 = vpop.f32.mrb[0].mxu0
    %3689 = vmatprep.mubr.bf16.mxu0 0
    %3690 = vmatmul.mubr.bf16.gmra.mrb[0].mxu0 %v2924
    %v3691 = vpop.f32.mrb[0].mxu0
    %v3692 = vadd.f32 %v3403, %v3691
    %v3693 = vpop.f32.mrb[0].mxu0
    %v3694 = vpop.f32.mrb[0].mxu0
    %v3695 = vadd.f32 %v3406, %v3694
    %v3696 = vpop.f32.mrb[0].mxu0
    %3697 = vmatprep.mubr.bf16.mxu0 0
    %3698 = vmatmul.mubr.bf16.gmra.mrb[0].mxu0 %v2927
    %v3699 = vpop.f32.mrb[0].mxu0
    %v3700 = vadd.f32 %v3411, %v3699
    %v3701 = vpop.f32.mrb[0].mxu0
    %v3702 = vpop.f32.mrb[0].mxu0
    %v3703 = vadd.f32 %v3414, %v3702
    %v3704 = vpop.f32.mrb[0].mxu0
    %3705 = vmatprep.mubr.bf16.mxu0 0
    %3706 = vmatmul.mubr.bf16.gmra.mrb[0].mxu0 %v2930
    %v3707 = vpop.f32.mrb[0].mxu0
    %v3708 = vadd.f32 %v3419, %v3707
    %v3709 = vpop.f32.mrb[0].mxu0
    %v3710 = vpop.f32.mrb[0].mxu0
    %v3711 = vadd.f32 %v3422, %v3710
    %v3712 = vpop.f32.mrb[0].mxu0
    %3713 = vmatprep.mubr.bf16.mxu0 0
    %3714 = vmatmul.mubr.bf16.gmra.mrb[0].mxu0 %v2933
    %v3715 = vpop.f32.mrb[0].mxu0
    %v3716 = vadd.f32 %v3427, %v3715
    %v3717 = vpop.f32.mrb[0].mxu0
    %v3718 = vpop.f32.mrb[0].mxu0
    %v3719 = vadd.f32 %v3430, %v3718
    %v3720 = vpop.f32.mrb[0].mxu0
    %3721 = vmatprep.mubr.bf16.mxu0 0
    %3722 = vmatmul.mubr.bf16.gmra.mrb[0].mxu0 %v2936
    %v3723 = vpop.f32.mrb[0].mxu0
    %v3724 = vadd.f32 %v3435, %v3723
    %v3725 = vpop.f32.mrb[0].mxu0
    %v3726 = vpop.f32.mrb[0].mxu0
    %v3727 = vadd.f32 %v3438, %v3726
    %v3728 = vpop.f32.mrb[0].mxu0
    %3729 = vmatprep.mubr.bf16.mxu0 0
    %3730 = vmatmul.mubr.bf16.gmra.mrb[0].mxu0 %v2939
    %v3731 = vpop.f32.mrb[0].mxu0
    %v3732 = vadd.f32 %v3443, %v3731
    %v3733 = vpop.f32.mrb[0].mxu0
    %v3734 = vpop.f32.mrb[0].mxu0
    %v3735 = vadd.f32 %v3446, %v3734
    %v3736 = vpop.f32.mrb[0].mxu0
    %3737 = vmatprep.mubr.bf16.mxu0 0
    %3738 = vmatmul.mubr.bf16.gmra.mrb[0].mxu0 %v2942
    %v3739 = vpop.f32.mrb[0].mxu0
    %v3740 = vadd.f32 %v3451, %v3739
    %v3741 = vpop.f32.mrb[0].mxu0
    %v3742 = vpop.f32.mrb[0].mxu0
    %v3743 = vadd.f32 %v3454, %v3742
    %v3744 = vpop.f32.mrb[0].mxu0
    %3745 = vmatprep.mubr.bf16.mxu0 0
    %3746 = vmatmul.mubr.bf16.gmra.mrb[0].mxu0 %v2945
    %v3747 = vpop.f32.mrb[0].mxu0
    %v3748 = vadd.f32 %v3459, %v3747
    %v3749 = vpop.f32.mrb[0].mxu0
    %v3750 = vpop.f32.mrb[0].mxu0
    %v3751 = vadd.f32 %v3462, %v3750
    %v3752 = vpop.f32.mrb[0].mxu0
    %3753 = vmatprep.mubr.bf16.mxu0 0
    %3754 = vmatmul.mubr.bf16.gmra.mrb[0].mxu0 %v2948
    %v3755 = vpop.f32.mrb[0].mxu0
    %v3756 = vadd.f32 %v3467, %v3755
    %v3757 = vpop.f32.mrb[0].mxu0
    %v3758 = vpop.f32.mrb[0].mxu0
    %v3759 = vadd.f32 %v3470, %v3758
    %v3760 = vpop.f32.mrb[0].mxu0
    %3761 = vmatprep.mubr.bf16.mxu0 0
    %3762 = vmatmul.mubr.bf16.gmra.mrb[0].mxu0 %v2951
    %v3763 = vpop.f32.mrb[0].mxu0
    %v3764 = vadd.f32 %v3475, %v3763
    %v3765 = vpop.f32.mrb[0].mxu0
    %v3766 = vpop.f32.mrb[0].mxu0
    %v3767 = vadd.f32 %v3478, %v3766
    %v3768 = vpop.f32.mrb[0].mxu0
    %3769 = vmatprep.mubr.bf16.mxu0 0
    %3770 = vmatmul.mubr.bf16.gmra.mrb[0].mxu0 %v2954
    %v3771 = vpop.f32.mrb[0].mxu0
    %v3772 = vadd.f32 %v3483, %v3771
    %v3773 = vpop.f32.mrb[0].mxu0
    %v3774 = vpop.f32.mrb[0].mxu0
    %v3775 = vadd.f32 %v3486, %v3774
    %v3776 = vpop.f32.mrb[0].mxu0
    %3777 = vmatprep.mubr.bf16.mxu0 0
    %3778 = vmatmul.mubr.bf16.gmra.mrb[0].mxu0 %v2957
    %v3779 = vpop.f32.mrb[0].mxu0
    %v3780 = vadd.f32 %v3491, %v3779
    %v3781 = vpop.f32.mrb[0].mxu0
    %v3782 = vpop.f32.mrb[0].mxu0
    %v3783 = vadd.f32 %v3494, %v3782
    %v3784 = vpop.f32.mrb[0].mxu0
    %3785 = vmatprep.mubr.bf16.mxu0 0
    %3786 = vmatmul.mubr.bf16.gmra.mrb[0].mxu0 %v2960
    %v3787 = vpop.f32.mrb[0].mxu0
    %v3788 = vadd.f32 %v3499, %v3787
    %v3789 = vpop.f32.mrb[0].mxu0
    %v3790 = vpop.f32.mrb[0].mxu0
    %v3791 = vadd.f32 %v3502, %v3790
    %v3792 = vpop.f32.mrb[0].mxu0
    %3793 = vmatprep.mubr.bf16.mxu0 0
    %3794 = vmatmul.mubr.bf16.gmra.mrb[0].mxu0 %v2963
    %v3795 = vpop.f32.mrb[0].mxu0
    %v3796 = vadd.f32 %v3507, %v3795
    %v3797 = vpop.f32.mrb[0].mxu0
    %v3798 = vpop.f32.mrb[0].mxu0
    %v3799 = vadd.f32 %v3510, %v3798
    %v3800 = vpop.f32.mrb[0].mxu0
    %3801 = vmatprep.mubr.bf16.mxu0 0
    %3802 = vmatmul.mubr.bf16.gmra.mrb[0].mxu0 %v2966
    %v3803 = vpop.f32.mrb[0].mxu0
    %v3804 = vadd.f32 %v3515, %v3803
    %v3805 = vpop.f32.mrb[0].mxu0
    %v3806 = vpop.f32.mrb[0].mxu0
    %v3807 = vadd.f32 %v3518, %v3806
    %v3808 = vpop.f32.mrb[0].mxu0
    %3809 = vmatprep.mubr.bf16.mxu0 0
    %3810 = vmatmul.mubr.bf16.gmra.mrb[0].mxu0 %v2969
    %v3811 = vpop.f32.mrb[0].mxu0
    %v3812 = vadd.f32 %v3523, %v3811
    %v3813 = vpop.f32.mrb[0].mxu0
    %v3814 = vpop.f32.mrb[0].mxu0
    %v3815 = vadd.f32 %v3526, %v3814
    %v3816 = vpop.f32.mrb[0].mxu0
    %3817 = vmatprep.mubr.bf16.mxu0 0
    %3818 = vmatmul.mubr.bf16.gmra.mrb[0].mxu0 %v2972
    %v3819 = vpop.f32.mrb[0].mxu0
    %v3820 = vadd.f32 %v3531, %v3819
    %v3821 = vpop.f32.mrb[0].mxu0
    %v3822 = vpop.f32.mrb[0].mxu0
    %v3823 = vadd.f32 %v3534, %v3822
    %v3824 = vpop.f32.mrb[0].mxu0
    %3825 = vmatprep.mubr.bf16.mxu0 0
    %3826 = vmatmul.mubr.bf16.gmra.mrb[0].mxu0 %v2975
    %v3827 = vpop.f32.mrb[0].mxu0
    %v3828 = vadd.f32 %v3539, %v3827
    %v3829 = vpop.f32.mrb[0].mxu0
    %v3830 = vpop.f32.mrb[0].mxu0
    %v3831 = vadd.f32 %v3542, %v3830
    %v3832 = vpop.f32.mrb[0].mxu0
    %3833 = vmatprep.mubr.bf16.mxu0 0
    %3834 = vmatmul.mubr.bf16.gmra.mrb[0].mxu0 %v2978
    %v3835 = vpop.f32.mrb[0].mxu0
    %v3836 = vadd.f32 %v3547, %v3835
    %v3837 = vpop.f32.mrb[0].mxu0
    %v3838 = vpop.f32.mrb[0].mxu0
    %v3839 = vadd.f32 %v3550, %v3838
    %v3840 = vpop.f32.mrb[0].mxu0
    %3841 = vmatprep.mubr.bf16.mxu0 0
    %3842 = vmatmul.mubr.bf16.gmra.mrb[0].mxu0 %v2981
    %v3843 = vpop.f32.mrb[0].mxu0
    %v3844 = vadd.f32 %v3555, %v3843
    %v3845 = vpop.f32.mrb[0].mxu0
    %v3846 = vpop.f32.mrb[0].mxu0
    %v3847 = vadd.f32 %v3558, %v3846
    %v3848 = vpop.f32.mrb[0].mxu0
    %3849 = vdwg.mxu0
    %v3850 = vsel %vm218, %v3596, 0.0
    %v3851 = vsel %vm218, %v3599, 0.0
    %v3852 = vadd.f32 %v3850, %v3851
    %v3853 = vsel %vm218, %v3604, 0.0
    %v3854 = vadd.f32 %v3852, %v3853
    %v3855 = vsel %vm218, %v3607, 0.0
    %v3856 = vadd.f32 %v3854, %v3855
    %v3857 = vsel %vm218, %v3612, 0.0
    %v3858 = vadd.f32 %v3856, %v3857
    %v3859 = vsel %vm218, %v3615, 0.0
    %v3860 = vadd.f32 %v3858, %v3859
    %v3861 = vsel %vm218, %v3620, 0.0
    %v3862 = vadd.f32 %v3860, %v3861
    %v3863 = vsel %vm218, %v3623, 0.0
    %v3864 = vadd.f32 %v3862, %v3863
    %v3865 = vsel %vm218, %v3628, 0.0
    %v3866 = vadd.f32 %v3864, %v3865
    %v3867 = vsel %vm218, %v3631, 0.0
    %v3868 = vadd.f32 %v3866, %v3867
    %v3869 = vsel %vm218, %v3636, 0.0
    %v3870 = vadd.f32 %v3868, %v3869
    %v3871 = vsel %vm218, %v3639, 0.0
    %v3872 = vadd.f32 %v3870, %v3871
    %v3873 = vsel %vm218, %v3644, 0.0
    %v3874 = vadd.f32 %v3872, %v3873
    %v3875 = vsel %vm218, %v3647, 0.0
    %v3876 = vadd.f32 %v3874, %v3875
    %v3877 = vsel %vm218, %v3652, 0.0
    %v3878 = vadd.f32 %v3876, %v3877
    %v3879 = vsel %vm218, %v3655, 0.0
    %v3880 = vadd.f32 %v3878, %v3879
    %v3881 = vsel %vm218, %v3660, 0.0
    %v3882 = vadd.f32 %v3880, %v3881
    %v3883 = vsel %vm218, %v3663, 0.0
    %v3884 = vadd.f32 %v3882, %v3883
    %v3885 = vsel %vm218, %v3668, 0.0
    %v3886 = vadd.f32 %v3884, %v3885
    %v3887 = vsel %vm218, %v3671, 0.0
    %v3888 = vadd.f32 %v3886, %v3887
    %v3889 = vsel %vm218, %v3676, 0.0
    %v3890 = vadd.f32 %v3888, %v3889
    %v3891 = vsel %vm218, %v3679, 0.0
    %v3892 = vadd.f32 %v3890, %v3891
    %v3893 = vsel %vm218, %v3684, 0.0
    %v3894 = vadd.f32 %v3892, %v3893
    %v3895 = vsel %vm218, %v3687, 0.0
    %v3896 = vadd.f32 %v3894, %v3895
    %v3897 = vsel %vm218, %v3692, 0.0
    %v3898 = vadd.f32 %v3896, %v3897
    %v3899 = vsel %vm218, %v3695, 0.0
    %v3900 = vadd.f32 %v3898, %v3899
    %v3901 = vsel %vm218, %v3700, 0.0
    %v3902 = vadd.f32 %v3900, %v3901
    %v3903 = vsel %vm218, %v3703, 0.0
    %v3904 = vadd.f32 %v3902, %v3903
    %v3905 = vsel %vm218, %v3708, 0.0
    %v3906 = vadd.f32 %v3904, %v3905
    %v3907 = vsel %vm218, %v3711, 0.0
    %v3908 = vadd.f32 %v3906, %v3907
    %v3909 = vsel %vm218, %v3716, 0.0
    %v3910 = vadd.f32 %v3908, %v3909
    %v3911 = vsel %vm218, %v3719, 0.0
    %v3912 = vadd.f32 %v3910, %v3911
    %v3913 = vsel %vm218, %v3724, 0.0
    %v3914 = vadd.f32 %v3912, %v3913
    %v3915 = vsel %vm218, %v3727, 0.0
    %v3916 = vadd.f32 %v3914, %v3915
    %v3917 = vsel %vm218, %v3732, 0.0
    %v3918 = vadd.f32 %v3916, %v3917
    %v3919 = vsel %vm218, %v3735, 0.0
    %v3920 = vadd.f32 %v3918, %v3919
    %v3921 = vsel %vm218, %v3740, 0.0
    %v3922 = vadd.f32 %v3920, %v3921
    %v3923 = vsel %vm218, %v3743, 0.0
    %v3924 = vadd.f32 %v3922, %v3923
    %v3925 = vsel %vm218, %v3748, 0.0
    %v3926 = vadd.f32 %v3924, %v3925
    %v3927 = vsel %vm218, %v3751, 0.0
    %v3928 = vadd.f32 %v3926, %v3927
    %v3929 = vsel %vm218, %v3756, 0.0
    %v3930 = vadd.f32 %v3928, %v3929
    %v3931 = vsel %vm218, %v3759, 0.0
    %v3932 = vadd.f32 %v3930, %v3931
    %v3933 = vsel %vm218, %v3764, 0.0
    %v3934 = vadd.f32 %v3932, %v3933
    %v3935 = vsel %vm218, %v3767, 0.0
    %v3936 = vadd.f32 %v3934, %v3935
    %v3937 = vsel %vm218, %v3772, 0.0
    %v3938 = vadd.f32 %v3936, %v3937
    %v3939 = vsel %vm218, %v3775, 0.0
    %v3940 = vadd.f32 %v3938, %v3939
    %v3941 = vsel %vm218, %v3780, 0.0
    %v3942 = vadd.f32 %v3940, %v3941
    %v3943 = vsel %vm218, %v3783, 0.0
    %v3944 = vadd.f32 %v3942, %v3943
    %v3945 = vsel %vm218, %v3788, 0.0
    %v3946 = vadd.f32 %v3944, %v3945
    %v3947 = vsel %vm218, %v3791, 0.0
    %v3948 = vadd.f32 %v3946, %v3947
    %v3949 = vsel %vm218, %v3796, 0.0
    %v3950 = vadd.f32 %v3948, %v3949
    %v3951 = vsel %vm218, %v3799, 0.0
    %v3952 = vadd.f32 %v3950, %v3951
    %v3953 = vsel %vm218, %v3804, 0.0
    %v3954 = vadd.f32 %v3952, %v3953
    %v3955 = vsel %vm218, %v3807, 0.0
    %v3956 = vadd.f32 %v3954, %v3955
    %v3957 = vsel %vm218, %v3812, 0.0
    %v3958 = vadd.f32 %v3956, %v3957
    %v3959 = vsel %vm218, %v3815, 0.0
    %v3960 = vadd.f32 %v3958, %v3959
    %v3961 = vsel %vm218, %v3820, 0.0
    %v3962 = vadd.f32 %v3960, %v3961
    %v3963 = vsel %vm218, %v3823, 0.0
    %v3964 = vadd.f32 %v3962, %v3963
    %v3965 = vsel %vm218, %v3828, 0.0
    %v3966 = vadd.f32 %v3964, %v3965
    %v3967 = vsel %vm218, %v3831, 0.0
    %v3968 = vadd.f32 %v3966, %v3967
    %v3969 = vsel %vm218, %v3836, 0.0
    %v3970 = vadd.f32 %v3968, %v3969
    %v3971 = vsel %vm218, %v3839, 0.0
    %v3972 = vadd.f32 %v3970, %v3971
    %v3973 = vsel %vm218, %v3844, 0.0
    %v3974 = vadd.f32 %v3972, %v3973
    %v3975 = vsel %vm218, %v3847, 0.0
    %v3976 = vadd.f32 %v3974, %v3975
    %v3977 = vrot.slane %v3976, 4
    %v3978 = vadd.f32 %v3976, %v3977
    %v3979 = vrot.slane %v3978, 2
    %v3980 = vadd.f32 %v3978, %v3979
    %v3981 = vrot.slane %v3980, 1
    %v3982 = vadd.f32 %v3980, %v3981
    %v3983 = vrcp.pop 512.0
    %v3984 = vmul.f32 %v3982, %v3983
    %v3985 = vsub.f32 %v3596, %v3984
    %v3986 = vsub.f32 %v3599, %v3984
    %v3987 = vsub.f32 %v3604, %v3984
    %v3988 = vsub.f32 %v3607, %v3984
    %v3989 = vsub.f32 %v3612, %v3984
    %v3990 = vsub.f32 %v3615, %v3984
    %v3991 = vsub.f32 %v3620, %v3984
    %v3992 = vsub.f32 %v3623, %v3984
    %v3993 = vsub.f32 %v3628, %v3984
    %v3994 = vsub.f32 %v3631, %v3984
    %v3995 = vsub.f32 %v3636, %v3984
    %v3996 = vsub.f32 %v3639, %v3984
    %v3997 = vsub.f32 %v3644, %v3984
    %v3998 = vsub.f32 %v3647, %v3984
    %v3999 = vsub.f32 %v3652, %v3984
    %v4000 = vsub.f32 %v3655, %v3984
    %v4001 = vsub.f32 %v3660, %v3984
    %v4002 = vsub.f32 %v3663, %v3984
    %v4003 = vsub.f32 %v3668, %v3984
    %v4004 = vsub.f32 %v3671, %v3984
    %v4005 = vsub.f32 %v3676, %v3984
    %v4006 = vsub.f32 %v3679, %v3984
    %v4007 = vsub.f32 %v3684, %v3984
    %v4008 = vsub.f32 %v3687, %v3984
    %v4009 = vsub.f32 %v3692, %v3984
    %v4010 = vsub.f32 %v3695, %v3984
    %v4011 = vsub.f32 %v3700, %v3984
    %v4012 = vsub.f32 %v3703, %v3984
    %v4013 = vsub.f32 %v3708, %v3984
    %v4014 = vsub.f32 %v3711, %v3984
    %v4015 = vsub.f32 %v3716, %v3984
    %v4016 = vsub.f32 %v3719, %v3984
    %v4017 = vsub.f32 %v3724, %v3984
    %v4018 = vsub.f32 %v3727, %v3984
    %v4019 = vsub.f32 %v3732, %v3984
    %v4020 = vsub.f32 %v3735, %v3984
    %v4021 = vsub.f32 %v3740, %v3984
    %v4022 = vsub.f32 %v3743, %v3984
    %v4023 = vsub.f32 %v3748, %v3984
    %v4024 = vsub.f32 %v3751, %v3984
    %v4025 = vsub.f32 %v3756, %v3984
    %v4026 = vsub.f32 %v3759, %v3984
    %v4027 = vsub.f32 %v3764, %v3984
    %v4028 = vsub.f32 %v3767, %v3984
    %v4029 = vsub.f32 %v3772, %v3984
    %v4030 = vsub.f32 %v3775, %v3984
    %v4031 = vsub.f32 %v3780, %v3984
    %v4032 = vsub.f32 %v3783, %v3984
    %v4033 = vsub.f32 %v3788, %v3984
    %v4034 = vsub.f32 %v3791, %v3984
    %v4035 = vsub.f32 %v3796, %v3984
    %v4036 = vsub.f32 %v3799, %v3984
    %v4037 = vsub.f32 %v3804, %v3984
    %v4038 = vsub.f32 %v3807, %v3984
    %v4039 = vsub.f32 %v3812, %v3984
    %v4040 = vsub.f32 %v3815, %v3984
    %v4041 = vsub.f32 %v3820, %v3984
    %v4042 = vsub.f32 %v3823, %v3984
    %v4043 = vsub.f32 %v3828, %v3984
    %v4044 = vsub.f32 %v3831, %v3984
    %v4045 = vsub.f32 %v3836, %v3984
    %v4046 = vsub.f32 %v3839, %v3984
    %v4047 = vsub.f32 %v3844, %v3984
    %v4048 = vsub.f32 %v3847, %v3984
    %v4049 = vmul.f32 %v3985, %v3985
    %v4050 = vmul.f32 %v3986, %v3986
    %v4051 = vmul.f32 %v3987, %v3987
    %v4052 = vmul.f32 %v3988, %v3988
    %v4053 = vmul.f32 %v3989, %v3989
    %v4054 = vmul.f32 %v3990, %v3990
    %v4055 = vmul.f32 %v3991, %v3991
    %v4056 = vmul.f32 %v3992, %v3992
    %v4057 = vmul.f32 %v3993, %v3993
    %v4058 = vmul.f32 %v3994, %v3994
    %v4059 = vmul.f32 %v3995, %v3995
    %v4060 = vmul.f32 %v3996, %v3996
    %v4061 = vmul.f32 %v3997, %v3997
    %v4062 = vmul.f32 %v3998, %v3998
    %v4063 = vmul.f32 %v3999, %v3999
    %v4064 = vmul.f32 %v4000, %v4000
    %v4065 = vmul.f32 %v4001, %v4001
    %v4066 = vmul.f32 %v4002, %v4002
    %v4067 = vmul.f32 %v4003, %v4003
    %v4068 = vmul.f32 %v4004, %v4004
    %v4069 = vmul.f32 %v4005, %v4005
    %v4070 = vmul.f32 %v4006, %v4006
    %v4071 = vmul.f32 %v4007, %v4007
    %v4072 = vmul.f32 %v4008, %v4008
    %v4073 = vmul.f32 %v4009, %v4009
    %v4074 = vmul.f32 %v4010, %v4010
    %v4075 = vmul.f32 %v4011, %v4011
    %v4076 = vmul.f32 %v4012, %v4012
    %v4077 = vmul.f32 %v4013, %v4013
    %v4078 = vmul.f32 %v4014, %v4014
    %v4079 = vmul.f32 %v4015, %v4015
    %v4080 = vmul.f32 %v4016, %v4016
    %v4081 = vmul.f32 %v4017, %v4017
    %v4082 = vmul.f32 %v4018, %v4018
    %v4083 = vmul.f32 %v4019, %v4019
    %v4084 = vmul.f32 %v4020, %v4020
    %v4085 = vmul.f32 %v4021, %v4021
    %v4086 = vmul.f32 %v4022, %v4022
    %v4087 = vmul.f32 %v4023, %v4023
    %v4088 = vmul.f32 %v4024, %v4024
    %v4089 = vmul.f32 %v4025, %v4025
    %v4090 = vmul.f32 %v4026, %v4026
    %v4091 = vmul.f32 %v4027, %v4027
    %v4092 = vmul.f32 %v4028, %v4028
    %v4093 = vmul.f32 %v4029, %v4029
    %v4094 = vmul.f32 %v4030, %v4030
    %v4095 = vmul.f32 %v4031, %v4031
    %v4096 = vmul.f32 %v4032, %v4032
    %v4097 = vmul.f32 %v4033, %v4033
    %v4098 = vmul.f32 %v4034, %v4034
    %v4099 = vmul.f32 %v4035, %v4035
    %v4100 = vmul.f32 %v4036, %v4036
    %v4101 = vmul.f32 %v4037, %v4037
    %v4102 = vmul.f32 %v4038, %v4038
    %v4103 = vmul.f32 %v4039, %v4039
    %v4104 = vmul.f32 %v4040, %v4040
    %v4105 = vmul.f32 %v4041, %v4041
    %v4106 = vmul.f32 %v4042, %v4042
    %v4107 = vmul.f32 %v4043, %v4043
    %v4108 = vmul.f32 %v4044, %v4044
    %v4109 = vmul.f32 %v4045, %v4045
    %v4110 = vmul.f32 %v4046, %v4046
    %v4111 = vmul.f32 %v4047, %v4047
    %v4112 = vmul.f32 %v4048, %v4048
    %v4113 = vsel %vm218, %v4049, 0.0
    %v4114 = vsel %vm218, %v4050, 0.0
    %v4115 = vadd.f32 %v4113, %v4114
    %v4116 = vsel %vm218, %v4051, 0.0
    %v4117 = vadd.f32 %v4115, %v4116
    %v4118 = vsel %vm218, %v4052, 0.0
    %v4119 = vadd.f32 %v4117, %v4118
    %v4120 = vsel %vm218, %v4053, 0.0
    %v4121 = vadd.f32 %v4119, %v4120
    %v4122 = vsel %vm218, %v4054, 0.0
    %v4123 = vadd.f32 %v4121, %v4122
    %v4124 = vsel %vm218, %v4055, 0.0
    %v4125 = vadd.f32 %v4123, %v4124
    %v4126 = vsel %vm218, %v4056, 0.0
    %v4127 = vadd.f32 %v4125, %v4126
    %v4128 = vsel %vm218, %v4057, 0.0
    %v4129 = vadd.f32 %v4127, %v4128
    %v4130 = vsel %vm218, %v4058, 0.0
    %v4131 = vadd.f32 %v4129, %v4130
    %v4132 = vsel %vm218, %v4059, 0.0
    %v4133 = vadd.f32 %v4131, %v4132
    %v4134 = vsel %vm218, %v4060, 0.0
    %v4135 = vadd.f32 %v4133, %v4134
    %v4136 = vsel %vm218, %v4061, 0.0
    %v4137 = vadd.f32 %v4135, %v4136
    %v4138 = vsel %vm218, %v4062, 0.0
    %v4139 = vadd.f32 %v4137, %v4138
    %v4140 = vsel %vm218, %v4063, 0.0
    %v4141 = vadd.f32 %v4139, %v4140
    %v4142 = vsel %vm218, %v4064, 0.0
    %v4143 = vadd.f32 %v4141, %v4142
    %v4144 = vsel %vm218, %v4065, 0.0
    %v4145 = vadd.f32 %v4143, %v4144
    %v4146 = vsel %vm218, %v4066, 0.0
    %v4147 = vadd.f32 %v4145, %v4146
    %v4148 = vsel %vm218, %v4067, 0.0
    %v4149 = vadd.f32 %v4147, %v4148
    %v4150 = vsel %vm218, %v4068, 0.0
    %v4151 = vadd.f32 %v4149, %v4150
    %v4152 = vsel %vm218, %v4069, 0.0
    %v4153 = vadd.f32 %v4151, %v4152
    %v4154 = vsel %vm218, %v4070, 0.0
    %v4155 = vadd.f32 %v4153, %v4154
    %v4156 = vsel %vm218, %v4071, 0.0
    %v4157 = vadd.f32 %v4155, %v4156
    %v4158 = vsel %vm218, %v4072, 0.0
    %v4159 = vadd.f32 %v4157, %v4158
    %v4160 = vsel %vm218, %v4073, 0.0
    %v4161 = vadd.f32 %v4159, %v4160
    %v4162 = vsel %vm218, %v4074, 0.0
    %v4163 = vadd.f32 %v4161, %v4162
    %v4164 = vsel %vm218, %v4075, 0.0
    %v4165 = vadd.f32 %v4163, %v4164
    %v4166 = vsel %vm218, %v4076, 0.0
    %v4167 = vadd.f32 %v4165, %v4166
    %v4168 = vsel %vm218, %v4077, 0.0
    %v4169 = vadd.f32 %v4167, %v4168
    %v4170 = vsel %vm218, %v4078, 0.0
    %v4171 = vadd.f32 %v4169, %v4170
    %v4172 = vsel %vm218, %v4079, 0.0
    %v4173 = vadd.f32 %v4171, %v4172
    %v4174 = vsel %vm218, %v4080, 0.0
    %v4175 = vadd.f32 %v4173, %v4174
    %v4176 = vsel %vm218, %v4081, 0.0
    %v4177 = vadd.f32 %v4175, %v4176
    %v4178 = vsel %vm218, %v4082, 0.0
    %v4179 = vadd.f32 %v4177, %v4178
    %v4180 = vsel %vm218, %v4083, 0.0
    %v4181 = vadd.f32 %v4179, %v4180
    %v4182 = vsel %vm218, %v4084, 0.0
    %v4183 = vadd.f32 %v4181, %v4182
    %v4184 = vsel %vm218, %v4085, 0.0
    %v4185 = vadd.f32 %v4183, %v4184
    %v4186 = vsel %vm218, %v4086, 0.0
    %v4187 = vadd.f32 %v4185, %v4186
    %v4188 = vsel %vm218, %v4087, 0.0
    %v4189 = vadd.f32 %v4187, %v4188
    %v4190 = vsel %vm218, %v4088, 0.0
    %v4191 = vadd.f32 %v4189, %v4190
    %v4192 = vsel %vm218, %v4089, 0.0
    %v4193 = vadd.f32 %v4191, %v4192
    %v4194 = vsel %vm218, %v4090, 0.0
    %v4195 = vadd.f32 %v4193, %v4194
    %v4196 = vsel %vm218, %v4091, 0.0
    %v4197 = vadd.f32 %v4195, %v4196
    %v4198 = vsel %vm218, %v4092, 0.0
    %v4199 = vadd.f32 %v4197, %v4198
    %v4200 = vsel %vm218, %v4093, 0.0
    %v4201 = vadd.f32 %v4199, %v4200
    %v4202 = vsel %vm218, %v4094, 0.0
    %v4203 = vadd.f32 %v4201, %v4202
    %v4204 = vsel %vm218, %v4095, 0.0
    %v4205 = vadd.f32 %v4203, %v4204
    %v4206 = vsel %vm218, %v4096, 0.0
    %v4207 = vadd.f32 %v4205, %v4206
    %v4208 = vsel %vm218, %v4097, 0.0
    %v4209 = vadd.f32 %v4207, %v4208
    %v4210 = vsel %vm218, %v4098, 0.0
    %v4211 = vadd.f32 %v4209, %v4210
    %v4212 = vsel %vm218, %v4099, 0.0
    %v4213 = vadd.f32 %v4211, %v4212
    %v4214 = vsel %vm218, %v4100, 0.0
    %v4215 = vadd.f32 %v4213, %v4214
    %v4216 = vsel %vm218, %v4101, 0.0
    %v4217 = vadd.f32 %v4215, %v4216
    %v4218 = vsel %vm218, %v4102, 0.0
    %v4219 = vadd.f32 %v4217, %v4218
    %v4220 = vsel %vm218, %v4103, 0.0
    %v4221 = vadd.f32 %v4219, %v4220
    %v4222 = vsel %vm218, %v4104, 0.0
    %v4223 = vadd.f32 %v4221, %v4222
    %v4224 = vsel %vm218, %v4105, 0.0
    %v4225 = vadd.f32 %v4223, %v4224
    %v4226 = vsel %vm218, %v4106, 0.0
    %v4227 = vadd.f32 %v4225, %v4226
    %v4228 = vsel %vm218, %v4107, 0.0
    %v4229 = vadd.f32 %v4227, %v4228
    %v4230 = vsel %vm218, %v4108, 0.0
    %v4231 = vadd.f32 %v4229, %v4230
    %v4232 = vsel %vm218, %v4109, 0.0
    %v4233 = vadd.f32 %v4231, %v4232
    %v4234 = vsel %vm218, %v4110, 0.0
    %v4235 = vadd.f32 %v4233, %v4234
    %v4236 = vsel %vm218, %v4111, 0.0
    %v4237 = vadd.f32 %v4235, %v4236
    %v4238 = vsel %vm218, %v4112, 0.0
    %v4239 = vadd.f32 %v4237, %v4238
    %v4240 = vrot.slane %v4239, 4
    %v4241 = vadd.f32 %v4239, %v4240
    %v4242 = vrot.slane %v4241, 2
    %v4243 = vadd.f32 %v4241, %v4242
    %v4244 = vrot.slane %v4243, 1
    %v4245 = vadd.f32 %v4243, %v4244
    %v4246 = vmul.f32 %v4245, %v3983
    %v4247 = vld [vmem:[%s5] sm:$0x1]
    %v4248 = vadd.f32 %v4246, 1e-05
    %v4249 = vrsqrt.pop %v4248
    %v4250 = vmul.f32 %v4247, %v4249
    %v4251 = vld [vmem:[%s6] sm:$0x1]
    %v4252 = vmul.f32 %v3984, %v4250
    %v4253 = vsub.f32 %v4251, %v4252
    %v4255 = vlaneseq
    %v4256 = vshrl.u32 %v4255, 7
    %v4257 = vsub.s32 0, %v4256
    %v4258 = vrot.slane %v4250, %v4257
    %v4260 = vmul.f32 %v3596, %v4258
    %v4261 = vmul.f32 %v3599, %v4258
    %v4262 = vmul.f32 %v3604, %v4258
    %v4263 = vmul.f32 %v3607, %v4258
    %v4264 = vmul.f32 %v3612, %v4258
    %v4265 = vmul.f32 %v3615, %v4258
    %v4266 = vmul.f32 %v3620, %v4258
    %v4267 = vmul.f32 %v3623, %v4258
    %v4268 = vmul.f32 %v3628, %v4258
    %v4269 = vmul.f32 %v3631, %v4258
    %v4270 = vmul.f32 %v3636, %v4258
    %v4271 = vmul.f32 %v3639, %v4258
    %v4272 = vmul.f32 %v3644, %v4258
    %v4273 = vmul.f32 %v3647, %v4258
    %v4274 = vmul.f32 %v3652, %v4258
    %v4275 = vmul.f32 %v3655, %v4258
    %v4276 = vmul.f32 %v3660, %v4258
    %v4277 = vmul.f32 %v3663, %v4258
    %v4278 = vmul.f32 %v3668, %v4258
    %v4279 = vmul.f32 %v3671, %v4258
    %v4280 = vmul.f32 %v3676, %v4258
    %v4281 = vmul.f32 %v3679, %v4258
    %v4282 = vmul.f32 %v3684, %v4258
    %v4283 = vmul.f32 %v3687, %v4258
    %v4284 = vmul.f32 %v3692, %v4258
    %v4285 = vmul.f32 %v3695, %v4258
    %v4286 = vmul.f32 %v3700, %v4258
    %v4287 = vmul.f32 %v3703, %v4258
    %v4288 = vmul.f32 %v3708, %v4258
    %v4289 = vmul.f32 %v3711, %v4258
    %v4290 = vmul.f32 %v3716, %v4258
    %v4291 = vmul.f32 %v3719, %v4258
    %v4292 = vmul.f32 %v3724, %v4258
    %v4293 = vmul.f32 %v3727, %v4258
    %v4294 = vmul.f32 %v3732, %v4258
    %v4295 = vmul.f32 %v3735, %v4258
    %v4296 = vmul.f32 %v3740, %v4258
    %v4297 = vmul.f32 %v3743, %v4258
    %v4298 = vmul.f32 %v3748, %v4258
    %v4299 = vmul.f32 %v3751, %v4258
    %v4300 = vmul.f32 %v3756, %v4258
    %v4301 = vmul.f32 %v3759, %v4258
    %v4302 = vmul.f32 %v3764, %v4258
    %v4303 = vmul.f32 %v3767, %v4258
    %v4304 = vmul.f32 %v3772, %v4258
    %v4305 = vmul.f32 %v3775, %v4258
    %v4306 = vmul.f32 %v3780, %v4258
    %v4307 = vmul.f32 %v3783, %v4258
    %v4308 = vmul.f32 %v3788, %v4258
    %v4309 = vmul.f32 %v3791, %v4258
    %v4310 = vmul.f32 %v3796, %v4258
    %v4311 = vmul.f32 %v3799, %v4258
    %v4312 = vmul.f32 %v3804, %v4258
    %v4313 = vmul.f32 %v3807, %v4258
    %v4314 = vmul.f32 %v3812, %v4258
    %v4315 = vmul.f32 %v3815, %v4258
    %v4316 = vmul.f32 %v3820, %v4258
    %v4317 = vmul.f32 %v3823, %v4258
    %v4318 = vmul.f32 %v3828, %v4258
    %v4319 = vmul.f32 %v3831, %v4258
    %v4320 = vmul.f32 %v3836, %v4258
    %v4321 = vmul.f32 %v3839, %v4258
    %v4322 = vmul.f32 %v3844, %v4258
    %v4323 = vmul.f32 %v3847, %v4258
    %v4325 = vlaneseq
    %v4326 = vshrl.u32 %v4325, 7
    %v4327 = vsub.s32 0, %v4326
    %v4328 = vrot.slane %v4253, %v4327
    %v4330 = vadd.f32 %v4260, %v4328
    %v4331 = vadd.f32 %v4261, %v4328
    %v4332 = vadd.f32 %v4262, %v4328
    %v4333 = vadd.f32 %v4263, %v4328
    %v4334 = vadd.f32 %v4264, %v4328
    %v4335 = vadd.f32 %v4265, %v4328
    %v4336 = vadd.f32 %v4266, %v4328
    %v4337 = vadd.f32 %v4267, %v4328
    %v4338 = vadd.f32 %v4268, %v4328
    %v4339 = vadd.f32 %v4269, %v4328
    %v4340 = vadd.f32 %v4270, %v4328
    %v4341 = vadd.f32 %v4271, %v4328
    %v4342 = vadd.f32 %v4272, %v4328
    %v4343 = vadd.f32 %v4273, %v4328
    %v4344 = vadd.f32 %v4274, %v4328
    %v4345 = vadd.f32 %v4275, %v4328
    %v4346 = vadd.f32 %v4276, %v4328
    %v4347 = vadd.f32 %v4277, %v4328
    %v4348 = vadd.f32 %v4278, %v4328
    %v4349 = vadd.f32 %v4279, %v4328
    %v4350 = vadd.f32 %v4280, %v4328
    %v4351 = vadd.f32 %v4281, %v4328
    %v4352 = vadd.f32 %v4282, %v4328
    %v4353 = vadd.f32 %v4283, %v4328
    %v4354 = vadd.f32 %v4284, %v4328
    %v4355 = vadd.f32 %v4285, %v4328
    %v4356 = vadd.f32 %v4286, %v4328
    %v4357 = vadd.f32 %v4287, %v4328
    %v4358 = vadd.f32 %v4288, %v4328
    %v4359 = vadd.f32 %v4289, %v4328
    %v4360 = vadd.f32 %v4290, %v4328
    %v4361 = vadd.f32 %v4291, %v4328
    %v4362 = vadd.f32 %v4292, %v4328
    %v4363 = vadd.f32 %v4293, %v4328
    %v4364 = vadd.f32 %v4294, %v4328
    %v4365 = vadd.f32 %v4295, %v4328
    %v4366 = vadd.f32 %v4296, %v4328
    %v4367 = vadd.f32 %v4297, %v4328
    %v4368 = vadd.f32 %v4298, %v4328
    %v4369 = vadd.f32 %v4299, %v4328
    %v4370 = vadd.f32 %v4300, %v4328
    %v4371 = vadd.f32 %v4301, %v4328
    %v4372 = vadd.f32 %v4302, %v4328
    %v4373 = vadd.f32 %v4303, %v4328
    %v4374 = vadd.f32 %v4304, %v4328
    %v4375 = vadd.f32 %v4305, %v4328
    %v4376 = vadd.f32 %v4306, %v4328
    %v4377 = vadd.f32 %v4307, %v4328
    %v4378 = vadd.f32 %v4308, %v4328
    %v4379 = vadd.f32 %v4309, %v4328
    %v4380 = vadd.f32 %v4310, %v4328
    %v4381 = vadd.f32 %v4311, %v4328
    %v4382 = vadd.f32 %v4312, %v4328
    %v4383 = vadd.f32 %v4313, %v4328
    %v4384 = vadd.f32 %v4314, %v4328
    %v4385 = vadd.f32 %v4315, %v4328
    %v4386 = vadd.f32 %v4316, %v4328
    %v4387 = vadd.f32 %v4317, %v4328
    %v4388 = vadd.f32 %v4318, %v4328
    %v4389 = vadd.f32 %v4319, %v4328
    %v4390 = vadd.f32 %v4320, %v4328
    %v4391 = vadd.f32 %v4321, %v4328
    %v4392 = vadd.f32 %v4322, %v4328
    %v4393 = vadd.f32 %v4323, %v4328
    %v4394 = vmax.f32 %v4330, 0.0
    %v4395 = vmax.f32 %v4331, 0.0
    %v4396 = vmax.f32 %v4332, 0.0
    %v4397 = vmax.f32 %v4333, 0.0
    %v4398 = vmax.f32 %v4334, 0.0
    %v4399 = vmax.f32 %v4335, 0.0
    %v4400 = vmax.f32 %v4336, 0.0
    %v4401 = vmax.f32 %v4337, 0.0
    %v4402 = vmax.f32 %v4338, 0.0
    %v4403 = vmax.f32 %v4339, 0.0
    %v4404 = vmax.f32 %v4340, 0.0
    %v4405 = vmax.f32 %v4341, 0.0
    %v4406 = vmax.f32 %v4342, 0.0
    %v4407 = vmax.f32 %v4343, 0.0
    %v4408 = vmax.f32 %v4344, 0.0
    %v4409 = vmax.f32 %v4345, 0.0
    %v4410 = vmax.f32 %v4346, 0.0
    %v4411 = vmax.f32 %v4347, 0.0
    %v4412 = vmax.f32 %v4348, 0.0
    %v4413 = vmax.f32 %v4349, 0.0
    %v4414 = vmax.f32 %v4350, 0.0
    %v4415 = vmax.f32 %v4351, 0.0
    %v4416 = vmax.f32 %v4352, 0.0
    %v4417 = vmax.f32 %v4353, 0.0
    %v4418 = vmax.f32 %v4354, 0.0
    %v4419 = vmax.f32 %v4355, 0.0
    %v4420 = vmax.f32 %v4356, 0.0
    %v4421 = vmax.f32 %v4357, 0.0
    %v4422 = vmax.f32 %v4358, 0.0
    %v4423 = vmax.f32 %v4359, 0.0
    %v4424 = vmax.f32 %v4360, 0.0
    %v4425 = vmax.f32 %v4361, 0.0
    %v4426 = vmax.f32 %v4362, 0.0
    %v4427 = vmax.f32 %v4363, 0.0
    %v4428 = vmax.f32 %v4364, 0.0
    %v4429 = vmax.f32 %v4365, 0.0
    %v4430 = vmax.f32 %v4366, 0.0
    %v4431 = vmax.f32 %v4367, 0.0
    %v4432 = vmax.f32 %v4368, 0.0
    %v4433 = vmax.f32 %v4369, 0.0
    %v4434 = vmax.f32 %v4370, 0.0
    %v4435 = vmax.f32 %v4371, 0.0
    %v4436 = vmax.f32 %v4372, 0.0
    %v4437 = vmax.f32 %v4373, 0.0
    %v4438 = vmax.f32 %v4374, 0.0
    %v4439 = vmax.f32 %v4375, 0.0
    %v4440 = vmax.f32 %v4376, 0.0
    %v4441 = vmax.f32 %v4377, 0.0
    %v4442 = vmax.f32 %v4378, 0.0
    %v4443 = vmax.f32 %v4379, 0.0
    %v4444 = vmax.f32 %v4380, 0.0
    %v4445 = vmax.f32 %v4381, 0.0
    %v4446 = vmax.f32 %v4382, 0.0
    %v4447 = vmax.f32 %v4383, 0.0
    %v4448 = vmax.f32 %v4384, 0.0
    %v4449 = vmax.f32 %v4385, 0.0
    %v4450 = vmax.f32 %v4386, 0.0
    %v4451 = vmax.f32 %v4387, 0.0
    %v4452 = vmax.f32 %v4388, 0.0
    %v4453 = vmax.f32 %v4389, 0.0
    %v4454 = vmax.f32 %v4390, 0.0
    %v4455 = vmax.f32 %v4391, 0.0
    %v4456 = vmax.f32 %v4392, 0.0
    %v4457 = vmax.f32 %v4393, 0.0
    %4458 = vst.msk [vmem:[#allocation3] sm:$0xff] %vm218, 0.0
    %4459 = vst.msk [vmem:[#allocation3 + $0x8] sm:$0xff] %vm218, 0.0
    %vm4460 = vcmask 254976
    %4461 = vst.msk [vmem:[#allocation3 + $0x10] sm:$0x3] %vm4460, 0.0
    %4462 = vst.msk [vmem:[#allocation3 + $0x18] sm:$0xff] %vm218, 0.0
    %4463 = vst.msk [vmem:[#allocation3 + $0x20] sm:$0xff] %vm218, 0.0
    %4464 = vst.msk [vmem:[#allocation3 + $0x28] sm:$0x3] %vm4460, 0.0
    %4465 = vst.msk [vmem:[#allocation3 + $0x30] sm:$0xff] %vm218, 0.0
    %4466 = vst.msk [vmem:[#allocation3 + $0x38] sm:$0xff] %vm218, 0.0
    %4467 = vst.msk [vmem:[#allocation3 + $0x40] sm:$0x3] %vm4460, 0.0
    %4468 = vst.msk [vmem:[#allocation3 + $0x48] sm:$0xff] %vm218, 0.0
    %4469 = vst.msk [vmem:[#allocation3 + $0x50] sm:$0xff] %vm218, 0.0
    %4470 = vst.msk [vmem:[#allocation3 + $0x58] sm:$0x3] %vm4460, 0.0
    %4471 = vst.msk [vmem:[#allocation3 + $0x60] sm:$0xff] %vm218, 0.0
    %4472 = vst.msk [vmem:[#allocation3 + $0x68] sm:$0xff] %vm218, 0.0
    %4473 = vst.msk [vmem:[#allocation3 + $0x70] sm:$0x3] %vm4460, 0.0
    %4474 = vst.msk [vmem:[#allocation3 + $0x78] sm:$0xff] %vm218, 0.0
    %4475 = vst.msk [vmem:[#allocation3 + $0x80] sm:$0xff] %vm218, 0.0
    %4476 = vst.msk [vmem:[#allocation3 + $0x88] sm:$0x3] %vm4460, 0.0
    %4477 = vst.msk [vmem:[#allocation3 + $0x90] sm:$0xff] %vm218, 0.0
    %4478 = vst.msk [vmem:[#allocation3 + $0x98] sm:$0xff] %vm218, 0.0
    %4479 = vst.msk [vmem:[#allocation3 + $0xa0] sm:$0x3] %vm4460, 0.0
    %4480 = vst.msk [vmem:[#allocation3 + $0xa8] sm:$0xff] %vm218, 0.0
    %4481 = vst.msk [vmem:[#allocation3 + $0xb0] sm:$0xff] %vm218, 0.0
    %4482 = vst.msk [vmem:[#allocation3 + $0xb8] sm:$0x3] %vm4460, 0.0
    %4483 = vst.msk [vmem:[#allocation3 + $0xc0] sm:$0xff] %vm218, 0.0
    %4484 = vst.msk [vmem:[#allocation3 + $0xc8] sm:$0xff] %vm218, 0.0
    %4485 = vst.msk [vmem:[#allocation3 + $0xd0] sm:$0x3] %vm4460, 0.0
    %4486 = vst.msk [vmem:[#allocation3 + $0xd8] sm:$0xff] %vm218, 0.0
    %4487 = vst.msk [vmem:[#allocation3 + $0xe0] sm:$0xff] %vm218, 0.0
    %4488 = vst.msk [vmem:[#allocation3 + $0xe8] sm:$0x3] %vm4460, 0.0
    %4489 = vst.msk [vmem:[#allocation3 + $0xf0] sm:$0xff] %vm218, 0.0
    %4490 = vst.msk [vmem:[#allocation3 + $0xf8] sm:$0xff] %vm218, 0.0
    %4491 = vst.msk [vmem:[#allocation3 + $0x100] sm:$0x3] %vm4460, 0.0
    %4492 = vst.msk [vmem:[#allocation3 + $0x108] sm:$0xff] %vm218, 0.0
    %4493 = vst.msk [vmem:[#allocation3 + $0x110] sm:$0xff] %vm218, 0.0
    %4494 = vst.msk [vmem:[#allocation3 + $0x118] sm:$0x3] %vm4460, 0.0
    %4495 = vst.msk [vmem:[#allocation3 + $0x120] sm:$0xff] %vm218, 0.0
    %4496 = vst.msk [vmem:[#allocation3 + $0x128] sm:$0xff] %vm218, 0.0
    %4497 = vst.msk [vmem:[#allocation3 + $0x130] sm:$0x3] %vm4460, 0.0
    %4498 = vst.msk [vmem:[#allocation3 + $0x138] sm:$0xff] %vm218, 0.0
    %4499 = vst.msk [vmem:[#allocation3 + $0x140] sm:$0xff] %vm218, 0.0
    %4500 = vst.msk [vmem:[#allocation3 + $0x148] sm:$0x3] %vm4460, 0.0
    %4501 = vst.msk [vmem:[#allocation3 + $0x150] sm:$0xff] %vm218, 0.0
    %4502 = vst.msk [vmem:[#allocation3 + $0x158] sm:$0xff] %vm218, 0.0
    %4503 = vst.msk [vmem:[#allocation3 + $0x160] sm:$0x3] %vm4460, 0.0
    %4504 = vst.msk [vmem:[#allocation3 + $0x168] sm:$0xff] %vm218, 0.0
    %4505 = vst.msk [vmem:[#allocation3 + $0x170] sm:$0xff] %vm218, 0.0
    %4506 = vst.msk [vmem:[#allocation3 + $0x178] sm:$0x3] %vm4460, 0.0
    %4507 = vst.msk [vmem:[#allocation3 + $0x180] sm:$0xff] %vm218, 0.0
    %4508 = vst.msk [vmem:[#allocation3 + $0x188] sm:$0xff] %vm218, 0.0
    %4509 = vst.msk [vmem:[#allocation3 + $0x190] sm:$0x3] %vm4460, 0.0
    %4510 = vst.msk [vmem:[#allocation3 + $0x198] sm:$0xff] %vm218, 0.0
    %4511 = vst.msk [vmem:[#allocation3 + $0x1a0] sm:$0xff] %vm218, 0.0
    %4512 = vst.msk [vmem:[#allocation3 + $0x1a8] sm:$0x3] %vm4460, 0.0
    %4513 = vst.msk [vmem:[#allocation3 + $0x1b0] sm:$0xff] %vm218, 0.0
    %4514 = vst.msk [vmem:[#allocation3 + $0x1b8] sm:$0xff] %vm218, 0.0
    %4515 = vst.msk [vmem:[#allocation3 + $0x1c0] sm:$0x3] %vm4460, 0.0
    %4516 = vst.msk [vmem:[#allocation3 + $0x1c8] sm:$0xff] %vm218, 0.0
    %4517 = vst.msk [vmem:[#allocation3 + $0x1d0] sm:$0xff] %vm218, 0.0
    %4518 = vst.msk [vmem:[#allocation3 + $0x1d8] sm:$0x3] %vm4460, 0.0
    %4519 = vst.msk [vmem:[#allocation3 + $0x1e0] sm:$0xff] %vm218, 0.0
    %4520 = vst.msk [vmem:[#allocation3 + $0x1e8] sm:$0xff] %vm218, 0.0
    %4521 = vst.msk [vmem:[#allocation3 + $0x1f0] sm:$0x3] %vm4460, 0.0
    %4522 = vst.msk [vmem:[#allocation3 + $0x1f8] sm:$0xff] %vm218, 0.0
    %4523 = vst.msk [vmem:[#allocation3 + $0x200] sm:$0xff] %vm218, 0.0
    %4524 = vst.msk [vmem:[#allocation3 + $0x208] sm:$0x3] %vm4460, 0.0
    %4525 = vst.msk [vmem:[#allocation3 + $0x210] sm:$0xff] %vm218, 0.0
    %4526 = vst.msk [vmem:[#allocation3 + $0x218] sm:$0xff] %vm218, 0.0
    %4527 = vst.msk [vmem:[#allocation3 + $0x220] sm:$0x3] %vm4460, 0.0
    %4528 = vst.msk [vmem:[#allocation3 + $0x228] sm:$0xff] %vm218, 0.0
    %4529 = vst.msk [vmem:[#allocation3 + $0x230] sm:$0xff] %vm218, 0.0
    %4530 = vst.msk [vmem:[#allocation3 + $0x238] sm:$0x3] %vm4460, 0.0
    %4531 = vst.msk [vmem:[#allocation3 + $0x240] sm:$0xff] %vm218, 0.0
    %4532 = vst.msk [vmem:[#allocation3 + $0x248] sm:$0xff] %vm218, 0.0
    %4533 = vst.msk [vmem:[#allocation3 + $0x250] sm:$0x3] %vm4460, 0.0
    %4534 = vst.msk [vmem:[#allocation3 + $0x258] sm:$0xff] %vm218, 0.0
    %4535 = vst.msk [vmem:[#allocation3 + $0x260] sm:$0xff] %vm218, 0.0
    %4536 = vst.msk [vmem:[#allocation3 + $0x268] sm:$0x3] %vm4460, 0.0
    %4537 = vst.msk [vmem:[#allocation3 + $0x270] sm:$0xff] %vm218, 0.0
    %4538 = vst.msk [vmem:[#allocation3 + $0x278] sm:$0xff] %vm218, 0.0
    %4539 = vst.msk [vmem:[#allocation3 + $0x280] sm:$0x3] %vm4460, 0.0
    %4540 = vst.msk [vmem:[#allocation3 + $0x288] sm:$0xff] %vm218, 0.0
    %4541 = vst.msk [vmem:[#allocation3 + $0x290] sm:$0xff] %vm218, 0.0
    %4542 = vst.msk [vmem:[#allocation3 + $0x298] sm:$0x3] %vm4460, 0.0
    %4543 = vst.msk [vmem:[#allocation3 + $0x2a0] sm:$0xff] %vm218, 0.0
    %4544 = vst.msk [vmem:[#allocation3 + $0x2a8] sm:$0xff] %vm218, 0.0
    %4545 = vst.msk [vmem:[#allocation3 + $0x2b0] sm:$0x3] %vm4460, 0.0
    %4546 = vst.msk [vmem:[#allocation3 + $0x2b8] sm:$0xff] %vm218, 0.0
    %4547 = vst.msk [vmem:[#allocation3 + $0x2c0] sm:$0xff] %vm218, 0.0
    %4548 = vst.msk [vmem:[#allocation3 + $0x2c8] sm:$0x3] %vm4460, 0.0
    %4549 = vst.msk [vmem:[#allocation3 + $0x2d0] sm:$0xff] %vm218, 0.0
    %4550 = vst.msk [vmem:[#allocation3 + $0x2d8] sm:$0xff] %vm218, 0.0
    %4551 = vst.msk [vmem:[#allocation3 + $0x2e0] sm:$0x3] %vm4460, 0.0
    %4552 = vst.msk [vmem:[#allocation3 + $0x2e8] sm:$0xff] %vm218, 0.0
    %4553 = vst.msk [vmem:[#allocation3 + $0x2f0] sm:$0xff] %vm218, 0.0
    %4554 = vst.msk [vmem:[#allocation3 + $0x2f8] sm:$0x3] %vm4460, 0.0
    %4555 = vst.msk [vmem:[#allocation3 + $0x300] sm:$0xff] %vm218, 0.0
    %4556 = vst.msk [vmem:[#allocation3 + $0x308] sm:$0xff] %vm218, 0.0
    %4557 = vst.msk [vmem:[#allocation3 + $0x310] sm:$0x3] %vm4460, 0.0
    %4558 = vst.msk [vmem:[#allocation3 + $0x318] sm:$0xff] %vm218, 0.0
    %4559 = vst.msk [vmem:[#allocation3 + $0x320] sm:$0xff] %vm218, 0.0
    %4560 = vst.msk [vmem:[#allocation3 + $0x328] sm:$0x3] %vm4460, 0.0
    %4561 = vst.msk [vmem:[#allocation3 + $0x330] sm:$0xff] %vm218, 0.0
    %4562 = vst.msk [vmem:[#allocation3 + $0x338] sm:$0xff] %vm218, 0.0
    %4563 = vst.msk [vmem:[#allocation3 + $0x340] sm:$0x3] %vm4460, 0.0
    %4564 = vst.msk [vmem:[#allocation3 + $0x348] sm:$0xff] %vm218, 0.0
    %4565 = vst.msk [vmem:[#allocation3 + $0x350] sm:$0xff] %vm218, 0.0
    %4566 = vst.msk [vmem:[#allocation3 + $0x358] sm:$0x3] %vm4460, 0.0
    %s4567 = scalar_lea.vmem [#allocation3], 24
    %4568 = vst.msk [vmem:[%s4567 + $0x1] sm:$0xff] %vm218, %v4394
    %4569 = vst.msk [vmem:[%s4567 + $0x9] sm:$0xff] %vm218, %v4395
    %4570 = vst.msk [vmem:[%s4567 + $0x19] sm:$0xff] %vm218, %v4396
    %4571 = vst.msk [vmem:[%s4567 + $0x21] sm:$0xff] %vm218, %v4397
    %4572 = vst.msk [vmem:[%s4567 + $0x31] sm:$0xff] %vm218, %v4398
    %4573 = vst.msk [vmem:[%s4567 + $0x39] sm:$0xff] %vm218, %v4399
    %4574 = vst.msk [vmem:[%s4567 + $0x49] sm:$0xff] %vm218, %v4400
    %4575 = vst.msk [vmem:[%s4567 + $0x51] sm:$0xff] %vm218, %v4401
    %4576 = vst.msk [vmem:[%s4567 + $0x61] sm:$0xff] %vm218, %v4402
    %4577 = vst.msk [vmem:[%s4567 + $0x69] sm:$0xff] %vm218, %v4403
    %4578 = vst.msk [vmem:[%s4567 + $0x79] sm:$0xff] %vm218, %v4404
    %4579 = vst.msk [vmem:[%s4567 + $0x81] sm:$0xff] %vm218, %v4405
    %4580 = vst.msk [vmem:[%s4567 + $0x91] sm:$0xff] %vm218, %v4406
    %4581 = vst.msk [vmem:[%s4567 + $0x99] sm:$0xff] %vm218, %v4407
    %4582 = vst.msk [vmem:[%s4567 + $0xa9] sm:$0xff] %vm218, %v4408
    %4583 = vst.msk [vmem:[%s4567 + $0xb1] sm:$0xff] %vm218, %v4409
    %4584 = vst.msk [vmem:[%s4567 + $0xc1] sm:$0xff] %vm218, %v4410
    %4585 = vst.msk [vmem:[%s4567 + $0xc9] sm:$0xff] %vm218, %v4411
    %4586 = vst.msk [vmem:[%s4567 + $0xd9] sm:$0xff] %vm218, %v4412
    %4587 = vst.msk [vmem:[%s4567 + $0xe1] sm:$0xff] %vm218, %v4413
    %4588 = vst.msk [vmem:[%s4567 + $0xf1] sm:$0xff] %vm218, %v4414
    %4589 = vst.msk [vmem:[%s4567 + $0xf9] sm:$0xff] %vm218, %v4415
    %4590 = vst.msk [vmem:[%s4567 + $0x109] sm:$0xff] %vm218, %v4416
    %4591 = vst.msk [vmem:[%s4567 + $0x111] sm:$0xff] %vm218, %v4417
    %4592 = vst.msk [vmem:[%s4567 + $0x121] sm:$0xff] %vm218, %v4418
    %4593 = vst.msk [vmem:[%s4567 + $0x129] sm:$0xff] %vm218, %v4419
    %4594 = vst.msk [vmem:[%s4567 + $0x139] sm:$0xff] %vm218, %v4420
    %4595 = vst.msk [vmem:[%s4567 + $0x141] sm:$0xff] %vm218, %v4421
    %4596 = vst.msk [vmem:[%s4567 + $0x151] sm:$0xff] %vm218, %v4422
    %4597 = vst.msk [vmem:[%s4567 + $0x159] sm:$0xff] %vm218, %v4423
    %4598 = vst.msk [vmem:[%s4567 + $0x169] sm:$0xff] %vm218, %v4424
    %4599 = vst.msk [vmem:[%s4567 + $0x171] sm:$0xff] %vm218, %v4425
    %4600 = vst.msk [vmem:[%s4567 + $0x1b1] sm:$0xff] %vm218, %v4426
    %4601 = vst.msk [vmem:[%s4567 + $0x1b9] sm:$0xff] %vm218, %v4427
    %4602 = vst.msk [vmem:[%s4567 + $0x1c9] sm:$0xff] %vm218, %v4428
    %4603 = vst.msk [vmem:[%s4567 + $0x1d1] sm:$0xff] %vm218, %v4429
    %4604 = vst.msk [vmem:[%s4567 + $0x1e1] sm:$0xff] %vm218, %v4430
    %4605 = vst.msk [vmem:[%s4567 + $0x1e9] sm:$0xff] %vm218, %v4431
    %4606 = vst.msk [vmem:[%s4567 + $0x1f9] sm:$0xff] %vm218, %v4432
    %4607 = vst.msk [vmem:[%s4567 + $0x201] sm:$0xff] %vm218, %v4433
    %4608 = vst.msk [vmem:[%s4567 + $0x211] sm:$0xff] %vm218, %v4434
    %4609 = vst.msk [vmem:[%s4567 + $0x219] sm:$0xff] %vm218, %v4435
    %4610 = vst.msk [vmem:[%s4567 + $0x229] sm:$0xff] %vm218, %v4436
    %4611 = vst.msk [vmem:[%s4567 + $0x231] sm:$0xff] %vm218, %v4437
    %4612 = vst.msk [vmem:[%s4567 + $0x241] sm:$0xff] %vm218, %v4438
    %4613 = vst.msk [vmem:[%s4567 + $0x249] sm:$0xff] %vm218, %v4439
    %4614 = vst.msk [vmem:[%s4567 + $0x259] sm:$0xff] %vm218, %v4440
    %4615 = vst.msk [vmem:[%s4567 + $0x261] sm:$0xff] %vm218, %v4441
    %4616 = vst.msk [vmem:[%s4567 + $0x271] sm:$0xff] %vm218, %v4442
    %4617 = vst.msk [vmem:[%s4567 + $0x279] sm:$0xff] %vm218, %v4443
    %4618 = vst.msk [vmem:[%s4567 + $0x289] sm:$0xff] %vm218, %v4444
    %4619 = vst.msk [vmem:[%s4567 + $0x291] sm:$0xff] %vm218, %v4445
    %4620 = vst.msk [vmem:[%s4567 + $0x2a1] sm:$0xff] %vm218, %v4446
    %4621 = vst.msk [vmem:[%s4567 + $0x2a9] sm:$0xff] %vm218, %v4447
    %4622 = vst.msk [vmem:[%s4567 + $0x2b9] sm:$0xff] %vm218, %v4448
    %4623 = vst.msk [vmem:[%s4567 + $0x2c1] sm:$0xff] %vm218, %v4449
    %4624 = vst.msk [vmem:[%s4567 + $0x2d1] sm:$0xff] %vm218, %v4450
    %4625 = vst.msk [vmem:[%s4567 + $0x2d9] sm:$0xff] %vm218, %v4451
    %4626 = vst.msk [vmem:[%s4567 + $0x2e9] sm:$0xff] %vm218, %v4452
    %4627 = vst.msk [vmem:[%s4567 + $0x2f1] sm:$0xff] %vm218, %v4453
    %4628 = vst.msk [vmem:[%s4567 + $0x301] sm:$0xff] %vm218, %v4454
    %4629 = vst.msk [vmem:[%s4567 + $0x309] sm:$0xff] %vm218, %v4455
    %4630 = vst.msk [vmem:[%s4567 + $0x319] sm:$0xff] %vm218, %v4456
    %4631 = vst.msk [vmem:[%s4567 + $0x321] sm:$0xff] %vm218, %v4457
    %v4632 = vld [vmem:[#allocation3] sm:$0xff]
    %v4633 = vld [vmem:[#allocation3 + $0x8] sm:$0xff]
    %v4634 = vld [vmem:[#allocation3 + $0x18] sm:$0xff]
    %v4635 = vld [vmem:[#allocation3 + $0x20] sm:$0xff]
    %v4636 = vld [vmem:[#allocation3 + $0x30] sm:$0xff]
    %v4637 = vld [vmem:[#allocation3 + $0x38] sm:$0xff]
    %v4638 = vld [vmem:[#allocation3 + $0x48] sm:$0xff]
    %v4639 = vld [vmem:[#allocation3 + $0x50] sm:$0xff]
    %v4640 = vld [vmem:[#allocation3 + $0x60] sm:$0xff]
    %v4641 = vld [vmem:[#allocation3 + $0x68] sm:$0xff]
    %v4642 = vld [vmem:[#allocation3 + $0x78] sm:$0xff]
    %v4643 = vld [vmem:[#allocation3 + $0x80] sm:$0xff]
    %v4644 = vld [vmem:[#allocation3 + $0x90] sm:$0xff]
    %v4645 = vld [vmem:[#allocation3 + $0x98] sm:$0xff]
    %v4646 = vld [vmem:[#allocation3 + $0xa8] sm:$0xff]
    %v4647 = vld [vmem:[#allocation3 + $0xb0] sm:$0xff]
    %v4648 = vld [vmem:[#allocation3 + $0xc0] sm:$0xff]
    %v4649 = vld [vmem:[#allocation3 + $0xc8] sm:$0xff]
    %v4650 = vld [vmem:[#allocation3 + $0xd8] sm:$0xff]
    %v4651 = vld [vmem:[#allocation3 + $0xe0] sm:$0xff]
    %v4652 = vld [vmem:[#allocation3 + $0xf0] sm:$0xff]
    %v4653 = vld [vmem:[#allocation3 + $0xf8] sm:$0xff]
    %v4654 = vld [vmem:[#allocation3 + $0x108] sm:$0xff]
    %v4655 = vld [vmem:[#allocation3 + $0x110] sm:$0xff]
    %v4656 = vld [vmem:[#allocation3 + $0x120] sm:$0xff]
    %v4657 = vld [vmem:[#allocation3 + $0x128] sm:$0xff]
    %v4658 = vld [vmem:[#allocation3 + $0x138] sm:$0xff]
    %v4659 = vld [vmem:[#allocation3 + $0x140] sm:$0xff]
    %v4660 = vld [vmem:[#allocation3 + $0x150] sm:$0xff]
    %v4661 = vld [vmem:[#allocation3 + $0x158] sm:$0xff]
    %v4662 = vld [vmem:[#allocation3 + $0x168] sm:$0xff]
    %v4663 = vld [vmem:[#allocation3 + $0x170] sm:$0xff]
    %v4664 = vld [vmem:[#allocation3 + $0x1b0] sm:$0xff]
    %v4665 = vld [vmem:[#allocation3 + $0x1b8] sm:$0xff]
    %v4666 = vld [vmem:[#allocation3 + $0x1c8] sm:$0xff]
    %v4667 = vld [vmem:[#allocation3 + $0x1d0] sm:$0xff]
    %v4668 = vld [vmem:[#allocation3 + $0x1e0] sm:$0xff]
    %v4669 = vld [vmem:[#allocation3 + $0x1e8] sm:$0xff]
    %v4670 = vld [vmem:[#allocation3 + $0x1f8] sm:$0xff]
    %v4671 = vld [vmem:[#allocation3 + $0x200] sm:$0xff]
    %v4672 = vld [vmem:[#allocation3 + $0x210] sm:$0xff]
    %v4673 = vld [vmem:[#allocation3 + $0x218] sm:$0xff]
    %v4674 = vld [vmem:[#allocation3 + $0x228] sm:$0xff]
    %v4675 = vld [vmem:[#allocation3 + $0x230] sm:$0xff]
    %v4676 = vld [vmem:[#allocation3 + $0x240] sm:$0xff]
    %v4677 = vld [vmem:[#allocation3 + $0x248] sm:$0xff]
    %v4678 = vld [vmem:[#allocation3 + $0x258] sm:$0xff]
    %v4679 = vld [vmem:[#allocation3 + $0x260] sm:$0xff]
    %v4680 = vld [vmem:[#allocation3 + $0x270] sm:$0xff]
    %v4681 = vld [vmem:[#allocation3 + $0x278] sm:$0xff]
    %v4682 = vld [vmem:[#allocation3 + $0x288] sm:$0xff]
    %v4683 = vld [vmem:[#allocation3 + $0x290] sm:$0xff]
    %v4684 = vld [vmem:[#allocation3 + $0x2a0] sm:$0xff]
    %v4685 = vld [vmem:[#allocation3 + $0x2a8] sm:$0xff]
    %v4686 = vld [vmem:[#allocation3 + $0x2b8] sm:$0xff]
    %v4687 = vld [vmem:[#allocation3 + $0x2c0] sm:$0xff]
    %v4688 = vld [vmem:[#allocation3 + $0x2d0] sm:$0xff]
    %v4689 = vld [vmem:[#allocation3 + $0x2d8] sm:$0xff]
    %v4690 = vld [vmem:[#allocation3 + $0x2e8] sm:$0xff]
    %v4691 = vld [vmem:[#allocation3 + $0x2f0] sm:$0xff]
    %v4692 = vld [vmem:[#allocation3 + $0x300] sm:$0xff]
    %v4693 = vld [vmem:[#allocation3 + $0x308] sm:$0xff]
    %v4694 = vld [vmem:[#allocation3 + $0x318] sm:$0xff]
    %v4695 = vld [vmem:[#allocation3 + $0x320] sm:$0xff]
    %v4696 = vpack.c.bf16 %v4633, %v4632
    %v4697 = vpack.c.bf16 %v4635, %v4634
    %v4698 = vpack.c.bf16 %v4637, %v4636
    %v4699 = vpack.c.bf16 %v4639, %v4638
    %v4700 = vpack.c.bf16 %v4641, %v4640
    %v4701 = vpack.c.bf16 %v4643, %v4642
    %v4702 = vpack.c.bf16 %v4645, %v4644
    %v4703 = vpack.c.bf16 %v4647, %v4646
    %v4704 = vpack.c.bf16 %v4649, %v4648
    %v4705 = vpack.c.bf16 %v4651, %v4650
    %v4706 = vpack.c.bf16 %v4653, %v4652
    %v4707 = vpack.c.bf16 %v4655, %v4654
    %v4708 = vpack.c.bf16 %v4657, %v4656
    %v4709 = vpack.c.bf16 %v4659, %v4658
    %v4710 = vpack.c.bf16 %v4661, %v4660
    %v4711 = vpack.c.bf16 %v4663, %v4662
    %v4712 = vpack.c.bf16 %v4665, %v4664
    %v4713 = vpack.c.bf16 %v4667, %v4666
    %v4714 = vpack.c.bf16 %v4669, %v4668
    %v4715 = vpack.c.bf16 %v4671, %v4670
    %v4716 = vpack.c.bf16 %v4673, %v4672
    %v4717 = vpack.c.bf16 %v4675, %v4674
    %v4718 = vpack.c.bf16 %v4677, %v4676
    %v4719 = vpack.c.bf16 %v4679, %v4678
    %v4720 = vpack.c.bf16 %v4681, %v4680
    %v4721 = vpack.c.bf16 %v4683, %v4682
    %v4722 = vpack.c.bf16 %v4685, %v4684
    %v4723 = vpack.c.bf16 %v4687, %v4686
    %v4724 = vpack.c.bf16 %v4689, %v4688
    %v4725 = vpack.c.bf16 %v4691, %v4690
    %v4726 = vpack.c.bf16 %v4693, %v4692
    %v4727 = vpack.c.bf16 %v4695, %v4694
    %v4728 = vld [vmem:[#allocation3 + $0x1] sm:$0xff]
    %v4729 = vld [vmem:[#allocation3 + $0x9] sm:$0xff]
    %v4730 = vld [vmem:[#allocation3 + $0x19] sm:$0xff]
    %v4731 = vld [vmem:[#allocation3 + $0x21] sm:$0xff]
    %v4732 = vld [vmem:[#allocation3 + $0x31] sm:$0xff]
    %v4733 = vld [vmem:[#allocation3 + $0x39] sm:$0xff]
    %v4734 = vld [vmem:[#allocation3 + $0x49] sm:$0xff]
    %v4735 = vld [vmem:[#allocation3 + $0x51] sm:$0xff]
    %v4736 = vld [vmem:[#allocation3 + $0x61] sm:$0xff]
    %v4737 = vld [vmem:[#allocation3 + $0x69] sm:$0xff]
    %v4738 = vld [vmem:[#allocation3 + $0x79] sm:$0xff]
    %v4739 = vld [vmem:[#allocation3 + $0x81] sm:$0xff]
    %v4740 = vld [vmem:[#allocation3 + $0x91] sm:$0xff]
    %v4741 = vld [vmem:[#allocation3 + $0x99] sm:$0xff]
    %v4742 = vld [vmem:[#allocation3 + $0xa9] sm:$0xff]
    %v4743 = vld [vmem:[#allocation3 + $0xb1] sm:$0xff]
    %v4744 = vld [vmem:[#allocation3 + $0xc1] sm:$0xff]
    %v4745 = vld [vmem:[#allocation3 + $0xc9] sm:$0xff]
    %v4746 = vld [vmem:[#allocation3 + $0xd9] sm:$0xff]
    %v4747 = vld [vmem:[#allocation3 + $0xe1] sm:$0xff]
    %v4748 = vld [vmem:[#allocation3 + $0xf1] sm:$0xff]
    %v4749 = vld [vmem:[#allocation3 + $0xf9] sm:$0xff]
    %v4750 = vld [vmem:[#allocation3 + $0x109] sm:$0xff]
    %v4751 = vld [vmem:[#allocation3 + $0x111] sm:$0xff]
    %v4752 = vld [vmem:[#allocation3 + $0x121] sm:$0xff]
    %v4753 = vld [vmem:[#allocation3 + $0x129] sm:$0xff]
    %v4754 = vld [vmem:[#allocation3 + $0x139] sm:$0xff]
    %v4755 = vld [vmem:[#allocation3 + $0x141] sm:$0xff]
    %v4756 = vld [vmem:[#allocation3 + $0x151] sm:$0xff]
    %v4757 = vld [vmem:[#allocation3 + $0x159] sm:$0xff]
    %v4758 = vld [vmem:[#allocation3 + $0x169] sm:$0xff]
    %v4759 = vld [vmem:[#allocation3 + $0x171] sm:$0xff]
    %v4760 = vld [vmem:[#allocation3 + $0x1b1] sm:$0xff]
    %v4761 = vld [vmem:[#allocation3 + $0x1b9] sm:$0xff]
    %v4762 = vld [vmem:[#allocation3 + $0x1c9] sm:$0xff]
    %v4763 = vld [vmem:[#allocation3 + $0x1d1] sm:$0xff]
    %v4764 = vld [vmem:[#allocation3 + $0x1e1] sm:$0xff]
    %v4765 = vld [vmem:[#allocation3 + $0x1e9] sm:$0xff]
    %v4766 = vld [vmem:[#allocation3 + $0x1f9] sm:$0xff]
    %v4767 = vld [vmem:[#allocation3 + $0x201] sm:$0xff]
    %v4768 = vld [vmem:[#allocation3 + $0x211] sm:$0xff]
    %v4769 = vld [vmem:[#allocation3 + $0x219] sm:$0xff]
    %v4770 = vld [vmem:[#allocation3 + $0x229] sm:$0xff]
    %v4771 = vld [vmem:[#allocation3 + $0x231] sm:$0xff]
    %v4772 = vld [vmem:[#allocation3 + $0x241] sm:$0xff]
    %v4773 = vld [vmem:[#allocation3 + $0x249] sm:$0xff]
    %v4774 = vld [vmem:[#allocation3 + $0x259] sm:$0xff]
    %v4775 = vld [vmem:[#allocation3 + $0x261] sm:$0xff]
    %v4776 = vld [vmem:[#allocation3 + $0x271] sm:$0xff]
    %v4777 = vld [vmem:[#allocation3 + $0x279] sm:$0xff]
    %v4778 = vld [vmem:[#allocation3 + $0x289] sm:$0xff]
    %v4779 = vld [vmem:[#allocation3 + $0x291] sm:$0xff]
    %v4780 = vld [vmem:[#allocation3 + $0x2a1] sm:$0xff]
    %v4781 = vld [vmem:[#allocation3 + $0x2a9] sm:$0xff]
    %v4782 = vld [vmem:[#allocation3 + $0x2b9] sm:$0xff]
    %v4783 = vld [vmem:[#allocation3 + $0x2c1] sm:$0xff]
    %v4784 = vld [vmem:[#allocation3 + $0x2d1] sm:$0xff]
    %v4785 = vld [vmem:[#allocation3 + $0x2d9] sm:$0xff]
    %v4786 = vld [vmem:[#allocation3 + $0x2e9] sm:$0xff]
    %v4787 = vld [vmem:[#allocation3 + $0x2f1] sm:$0xff]
    %v4788 = vld [vmem:[#allocation3 + $0x301] sm:$0xff]
    %v4789 = vld [vmem:[#allocation3 + $0x309] sm:$0xff]
    %v4790 = vld [vmem:[#allocation3 + $0x319] sm:$0xff]
    %v4791 = vld [vmem:[#allocation3 + $0x321] sm:$0xff]
    %v4792 = vpack.c.bf16 %v4729, %v4728
    %v4793 = vpack.c.bf16 %v4731, %v4730
    %v4794 = vpack.c.bf16 %v4733, %v4732
    %v4795 = vpack.c.bf16 %v4735, %v4734
    %v4796 = vpack.c.bf16 %v4737, %v4736
    %v4797 = vpack.c.bf16 %v4739, %v4738
    %v4798 = vpack.c.bf16 %v4741, %v4740
    %v4799 = vpack.c.bf16 %v4743, %v4742
    %v4800 = vpack.c.bf16 %v4745, %v4744
    %v4801 = vpack.c.bf16 %v4747, %v4746
    %v4802 = vpack.c.bf16 %v4749, %v4748
    %v4803 = vpack.c.bf16 %v4751, %v4750
    %v4804 = vpack.c.bf16 %v4753, %v4752
    %v4805 = vpack.c.bf16 %v4755, %v4754
    %v4806 = vpack.c.bf16 %v4757, %v4756
    %v4807 = vpack.c.bf16 %v4759, %v4758
    %v4808 = vpack.c.bf16 %v4761, %v4760
    %v4809 = vpack.c.bf16 %v4763, %v4762
    %v4810 = vpack.c.bf16 %v4765, %v4764
    %v4811 = vpack.c.bf16 %v4767, %v4766
    %v4812 = vpack.c.bf16 %v4769, %v4768
    %v4813 = vpack.c.bf16 %v4771, %v4770
    %v4814 = vpack.c.bf16 %v4773, %v4772
    %v4815 = vpack.c.bf16 %v4775, %v4774
    %v4816 = vpack.c.bf16 %v4777, %v4776
    %v4817 = vpack.c.bf16 %v4779, %v4778
    %v4818 = vpack.c.bf16 %v4781, %v4780
    %v4819 = vpack.c.bf16 %v4783, %v4782
    %v4820 = vpack.c.bf16 %v4785, %v4784
    %v4821 = vpack.c.bf16 %v4787, %v4786
    %v4822 = vpack.c.bf16 %v4789, %v4788
    %v4823 = vpack.c.bf16 %v4791, %v4790
    %v4824 = vld [vmem:[#allocation3 + $0x2] sm:$0xff]
    %v4825 = vld [vmem:[#allocation3 + $0xa] sm:$0xff]
    %v4826 = vld [vmem:[#allocation3 + $0x1a] sm:$0xff]
    %v4827 = vld [vmem:[#allocation3 + $0x22] sm:$0xff]
    %v4828 = vld [vmem:[#allocation3 + $0x32] sm:$0xff]
    %v4829 = vld [vmem:[#allocation3 + $0x3a] sm:$0xff]
    %v4830 = vld [vmem:[#allocation3 + $0x4a] sm:$0xff]
    %v4831 = vld [vmem:[#allocation3 + $0x52] sm:$0xff]
    %v4832 = vld [vmem:[#allocation3 + $0x62] sm:$0xff]
    %v4833 = vld [vmem:[#allocation3 + $0x6a] sm:$0xff]
    %v4834 = vld [vmem:[#allocation3 + $0x7a] sm:$0xff]
    %v4835 = vld [vmem:[#allocation3 + $0x82] sm:$0xff]
    %v4836 = vld [vmem:[#allocation3 + $0x92] sm:$0xff]
    %v4837 = vld [vmem:[#allocation3 + $0x9a] sm:$0xff]
    %v4838 = vld [vmem:[#allocation3 + $0xaa] sm:$0xff]
    %v4839 = vld [vmem:[#allocation3 + $0xb2] sm:$0xff]
    %v4840 = vld [vmem:[#allocation3 + $0xc2] sm:$0xff]
    %v4841 = vld [vmem:[#allocation3 + $0xca] sm:$0xff]
    %v4842 = vld [vmem:[#allocation3 + $0xda] sm:$0xff]
    %v4843 = vld [vmem:[#allocation3 + $0xe2] sm:$0xff]
    %v4844 = vld [vmem:[#allocation3 + $0xf2] sm:$0xff]
    %v4845 = vld [vmem:[#allocation3 + $0xfa] sm:$0xff]
    %v4846 = vld [vmem:[#allocation3 + $0x10a] sm:$0xff]
    %v4847 = vld [vmem:[#allocation3 + $0x112] sm:$0xff]
    %v4848 = vld [vmem:[#allocation3 + $0x122] sm:$0xff]
    %v4849 = vld [vmem:[#allocation3 + $0x12a] sm:$0xff]
    %v4850 = vld [vmem:[#allocation3 + $0x13a] sm:$0xff]
    %v4851 = vld [vmem:[#allocation3 + $0x142] sm:$0xff]
    %v4852 = vld [vmem:[#allocation3 + $0x152] sm:$0xff]
    %v4853 = vld [vmem:[#allocation3 + $0x15a] sm:$0xff]
    %v4854 = vld [vmem:[#allocation3 + $0x16a] sm:$0xff]
    %v4855 = vld [vmem:[#allocation3 + $0x172] sm:$0xff]
    %v4856 = vld [vmem:[#allocation3 + $0x1b2] sm:$0xff]
    %v4857 = vld [vmem:[#allocation3 + $0x1ba] sm:$0xff]
    %v4858 = vld [vmem:[#allocation3 + $0x1ca] sm:$0xff]
    %v4859 = vld [vmem:[#allocation3 + $0x1d2] sm:$0xff]
    %v4860 = vld [vmem:[#allocation3 + $0x1e2] sm:$0xff]
    %v4861 = vld [vmem:[#allocation3 + $0x1ea] sm:$0xff]
    %v4862 = vld [vmem:[#allocation3 + $0x1fa] sm:$0xff]
    %v4863 = vld [vmem:[#allocation3 + $0x202] sm:$0xff]
    %v4864 = vld [vmem:[#allocation3 + $0x212] sm:$0xff]
    %v4865 = vld [vmem:[#allocation3 + $0x21a] sm:$0xff]
    %v4866 = vld [vmem:[#allocation3 + $0x22a] sm:$0xff]
    %v4867 = vld [vmem:[#allocation3 + $0x232] sm:$0xff]
    %v4868 = vld [vmem:[#allocation3 + $0x242] sm:$0xff]
    %v4869 = vld [vmem:[#allocation3 + $0x24a] sm:$0xff]
    %v4870 = vld [vmem:[#allocation3 + $0x25a] sm:$0xff]
    %v4871 = vld [vmem:[#allocation3 + $0x262] sm:$0xff]
    %v4872 = vld [vmem:[#allocation3 + $0x272] sm:$0xff]
    %v4873 = vld [vmem:[#allocation3 + $0x27a] sm:$0xff]
    %v4874 = vld [vmem:[#allocation3 + $0x28a] sm:$0xff]
    %v4875 = vld [vmem:[#allocation3 + $0x292] sm:$0xff]
    %v4876 = vld [vmem:[#allocation3 + $0x2a2] sm:$0xff]
    %v4877 = vld [vmem:[#allocation3 + $0x2aa] sm:$0xff]
    %v4878 = vld [vmem:[#allocation3 + $0x2ba] sm:$0xff]
    %v4879 = vld [vmem:[#allocation3 + $0x2c2] sm:$0xff]
    %v4880 = vld [vmem:[#allocation3 + $0x2d2] sm:$0xff]
    %v4881 = vld [vmem:[#allocation3 + $0x2da] sm:$0xff]
    %v4882 = vld [vmem:[#allocation3 + $0x2ea] sm:$0xff]
    %v4883 = vld [vmem:[#allocation3 + $0x2f2] sm:$0xff]
    %v4884 = vld [vmem:[#allocation3 + $0x302] sm:$0xff]
    %v4885 = vld [vmem:[#allocation3 + $0x30a] sm:$0xff]
    %v4886 = vld [vmem:[#allocation3 + $0x31a] sm:$0xff]
    %v4887 = vld [vmem:[#allocation3 + $0x322] sm:$0xff]
    %v4888 = vpack.c.bf16 %v4825, %v4824
    %v4889 = vpack.c.bf16 %v4827, %v4826
    %v4890 = vpack.c.bf16 %v4829, %v4828
    %v4891 = vpack.c.bf16 %v4831, %v4830
    %v4892 = vpack.c.bf16 %v4833, %v4832
    %v4893 = vpack.c.bf16 %v4835, %v4834
    %v4894 = vpack.c.bf16 %v4837, %v4836
    %v4895 = vpack.c.bf16 %v4839, %v4838
    %v4896 = vpack.c.bf16 %v4841, %v4840
    %v4897 = vpack.c.bf16 %v4843, %v4842
    %v4898 = vpack.c.bf16 %v4845, %v4844
    %v4899 = vpack.c.bf16 %v4847, %v4846
    %v4900 = vpack.c.bf16 %v4849, %v4848
    %v4901 = vpack.c.bf16 %v4851, %v4850
    %v4902 = vpack.c.bf16 %v4853, %v4852
    %v4903 = vpack.c.bf16 %v4855, %v4854
    %v4904 = vpack.c.bf16 %v4857, %v4856
    %v4905 = vpack.c.bf16 %v4859, %v4858
    %v4906 = vpack.c.bf16 %v4861, %v4860
    %v4907 = vpack.c.bf16 %v4863, %v4862
    %v4908 = vpack.c.bf16 %v4865, %v4864
    %v4909 = vpack.c.bf16 %v4867, %v4866
    %v4910 = vpack.c.bf16 %v4869, %v4868
    %v4911 = vpack.c.bf16 %v4871, %v4870
    %v4912 = vpack.c.bf16 %v4873, %v4872
    %v4913 = vpack.c.bf16 %v4875, %v4874
    %v4914 = vpack.c.bf16 %v4877, %v4876
    %v4915 = vpack.c.bf16 %v4879, %v4878
    %v4916 = vpack.c.bf16 %v4881, %v4880
    %v4917 = vpack.c.bf16 %v4883, %v4882
    %v4918 = vpack.c.bf16 %v4885, %v4884
    %v4919 = vpack.c.bf16 %v4887, %v4886
    %v4920 = vld [vmem:[%s4567] sm:$0xff]
    %v4921 = vld [vmem:[%s4567 + $0x8] sm:$0xff]
    %v4922 = vld [vmem:[%s4567 + $0x18] sm:$0xff]
    %v4923 = vld [vmem:[%s4567 + $0x20] sm:$0xff]
    %v4924 = vld [vmem:[%s4567 + $0x30] sm:$0xff]
    %v4925 = vld [vmem:[%s4567 + $0x38] sm:$0xff]
    %v4926 = vld [vmem:[%s4567 + $0x48] sm:$0xff]
    %v4927 = vld [vmem:[%s4567 + $0x50] sm:$0xff]
    %v4928 = vld [vmem:[%s4567 + $0x60] sm:$0xff]
    %v4929 = vld [vmem:[%s4567 + $0x68] sm:$0xff]
    %v4930 = vld [vmem:[%s4567 + $0x78] sm:$0xff]
    %v4931 = vld [vmem:[%s4567 + $0x80] sm:$0xff]
    %v4932 = vld [vmem:[%s4567 + $0x90] sm:$0xff]
    %v4933 = vld [vmem:[%s4567 + $0x98] sm:$0xff]
    %v4934 = vld [vmem:[%s4567 + $0xa8] sm:$0xff]
    %v4935 = vld [vmem:[%s4567 + $0xb0] sm:$0xff]
    %v4936 = vld [vmem:[%s4567 + $0xc0] sm:$0xff]
    %v4937 = vld [vmem:[%s4567 + $0xc8] sm:$0xff]
    %v4938 = vld [vmem:[%s4567 + $0xd8] sm:$0xff]
    %v4939 = vld [vmem:[%s4567 + $0xe0] sm:$0xff]
    %v4940 = vld [vmem:[%s4567 + $0xf0] sm:$0xff]
    %v4941 = vld [vmem:[%s4567 + $0xf8] sm:$0xff]
    %v4942 = vld [vmem:[%s4567 + $0x108] sm:$0xff]
    %v4943 = vld [vmem:[%s4567 + $0x110] sm:$0xff]
    %v4944 = vld [vmem:[%s4567 + $0x120] sm:$0xff]
    %v4945 = vld [vmem:[%s4567 + $0x128] sm:$0xff]
    %v4946 = vld [vmem:[%s4567 + $0x138] sm:$0xff]
    %v4947 = vld [vmem:[%s4567 + $0x140] sm:$0xff]
    %v4948 = vld [vmem:[%s4567 + $0x150] sm:$0xff]
    %v4949 = vld [vmem:[%s4567 + $0x158] sm:$0xff]
    %v4950 = vld [vmem:[%s4567 + $0x168] sm:$0xff]
    %v4951 = vld [vmem:[%s4567 + $0x170] sm:$0xff]
    %v4952 = vld [vmem:[%s4567 + $0x1b0] sm:$0xff]
    %v4953 = vld [vmem:[%s4567 + $0x1b8] sm:$0xff]
    %v4954 = vld [vmem:[%s4567 + $0x1c8] sm:$0xff]
    %v4955 = vld [vmem:[%s4567 + $0x1d0] sm:$0xff]
    %v4956 = vld [vmem:[%s4567 + $0x1e0] sm:$0xff]
    %v4957 = vld [vmem:[%s4567 + $0x1e8] sm:$0xff]
    %v4958 = vld [vmem:[%s4567 + $0x1f8] sm:$0xff]
    %v4959 = vld [vmem:[%s4567 + $0x200] sm:$0xff]
    %v4960 = vld [vmem:[%s4567 + $0x210] sm:$0xff]
    %v4961 = vld [vmem:[%s4567 + $0x218] sm:$0xff]
    %v4962 = vld [vmem:[%s4567 + $0x228] sm:$0xff]
    %v4963 = vld [vmem:[%s4567 + $0x230] sm:$0xff]
    %v4964 = vld [vmem:[%s4567 + $0x240] sm:$0xff]
    %v4965 = vld [vmem:[%s4567 + $0x248] sm:$0xff]
    %v4966 = vld [vmem:[%s4567 + $0x258] sm:$0xff]
    %v4967 = vld [vmem:[%s4567 + $0x260] sm:$0xff]
    %v4968 = vld [vmem:[%s4567 + $0x270] sm:$0xff]
    %v4969 = vld [vmem:[%s4567 + $0x278] sm:$0xff]
    %v4970 = vld [vmem:[%s4567 + $0x288] sm:$0xff]
    %v4971 = vld [vmem:[%s4567 + $0x290] sm:$0xff]
    %v4972 = vld [vmem:[%s4567 + $0x2a0] sm:$0xff]
    %v4973 = vld [vmem:[%s4567 + $0x2a8] sm:$0xff]
    %v4974 = vld [vmem:[%s4567 + $0x2b8] sm:$0xff]
    %v4975 = vld [vmem:[%s4567 + $0x2c0] sm:$0xff]
    %v4976 = vld [vmem:[%s4567 + $0x2d0] sm:$0xff]
    %v4977 = vld [vmem:[%s4567 + $0x2d8] sm:$0xff]
    %v4978 = vld [vmem:[%s4567 + $0x2e8] sm:$0xff]
    %v4979 = vld [vmem:[%s4567 + $0x2f0] sm:$0xff]
    %v4980 = vld [vmem:[%s4567 + $0x300] sm:$0xff]
    %v4981 = vld [vmem:[%s4567 + $0x308] sm:$0xff]
    %v4982 = vld [vmem:[%s4567 + $0x318] sm:$0xff]
    %v4983 = vld [vmem:[%s4567 + $0x320] sm:$0xff]
    %v4984 = vpack.c.bf16 %v4921, %v4920
    %v4985 = vpack.c.bf16 %v4923, %v4922
    %v4986 = vpack.c.bf16 %v4925, %v4924
    %v4987 = vpack.c.bf16 %v4927, %v4926
    %v4988 = vpack.c.bf16 %v4929, %v4928
    %v4989 = vpack.c.bf16 %v4931, %v4930
    %v4990 = vpack.c.bf16 %v4933, %v4932
    %v4991 = vpack.c.bf16 %v4935, %v4934
    %v4992 = vpack.c.bf16 %v4937, %v4936
    %v4993 = vpack.c.bf16 %v4939, %v4938
    %v4994 = vpack.c.bf16 %v4941, %v4940
    %v4995 = vpack.c.bf16 %v4943, %v4942
    %v4996 = vpack.c.bf16 %v4945, %v4944
    %v4997 = vpack.c.bf16 %v4947, %v4946
    %v4998 = vpack.c.bf16 %v4949, %v4948
    %v4999 = vpack.c.bf16 %v4951, %v4950
    %v5000 = vpack.c.bf16 %v4953, %v4952
    %v5001 = vpack.c.bf16 %v4955, %v4954
    %v5002 = vpack.c.bf16 %v4957, %v4956
    %v5003 = vpack.c.bf16 %v4959, %v4958
    %v5004 = vpack.c.bf16 %v4961, %v4960
    %v5005 = vpack.c.bf16 %v4963, %v4962
    %v5006 = vpack.c.bf16 %v4965, %v4964
    %v5007 = vpack.c.bf16 %v4967, %v4966
    %v5008 = vpack.c.bf16 %v4969, %v4968
    %v5009 = vpack.c.bf16 %v4971, %v4970
    %v5010 = vpack.c.bf16 %v4973, %v4972
    %v5011 = vpack.c.bf16 %v4975, %v4974
    %v5012 = vpack.c.bf16 %v4977, %v4976
    %v5013 = vpack.c.bf16 %v4979, %v4978
    %v5014 = vpack.c.bf16 %v4981, %v4980
    %v5015 = vpack.c.bf16 %v4983, %v4982
    %v5016 = vld [vmem:[%s4567 + $0x1] sm:$0xff]
    %v5017 = vld [vmem:[%s4567 + $0x9] sm:$0xff]
    %v5018 = vld [vmem:[%s4567 + $0x19] sm:$0xff]
    %v5019 = vld [vmem:[%s4567 + $0x21] sm:$0xff]
    %v5020 = vld [vmem:[%s4567 + $0x31] sm:$0xff]
    %v5021 = vld [vmem:[%s4567 + $0x39] sm:$0xff]
    %v5022 = vld [vmem:[%s4567 + $0x49] sm:$0xff]
    %v5023 = vld [vmem:[%s4567 + $0x51] sm:$0xff]
    %v5024 = vld [vmem:[%s4567 + $0x61] sm:$0xff]
    %v5025 = vld [vmem:[%s4567 + $0x69] sm:$0xff]
    %v5026 = vld [vmem:[%s4567 + $0x79] sm:$0xff]
    %v5027 = vld [vmem:[%s4567 + $0x81] sm:$0xff]
    %v5028 = vld [vmem:[%s4567 + $0x91] sm:$0xff]
    %v5029 = vld [vmem:[%s4567 + $0x99] sm:$0xff]
    %v5030 = vld [vmem:[%s4567 + $0xa9] sm:$0xff]
    %v5031 = vld [vmem:[%s4567 + $0xb1] sm:$0xff]
    %v5032 = vld [vmem:[%s4567 + $0xc1] sm:$0xff]
    %v5033 = vld [vmem:[%s4567 + $0xc9] sm:$0xff]
    %v5034 = vld [vmem:[%s4567 + $0xd9] sm:$0xff]
    %v5035 = vld [vmem:[%s4567 + $0xe1] sm:$0xff]
    %v5036 = vld [vmem:[%s4567 + $0xf1] sm:$0xff]
    %v5037 = vld [vmem:[%s4567 + $0xf9] sm:$0xff]
    %v5038 = vld [vmem:[%s4567 + $0x109] sm:$0xff]
    %v5039 = vld [vmem:[%s4567 + $0x111] sm:$0xff]
    %v5040 = vld [vmem:[%s4567 + $0x121] sm:$0xff]
    %v5041 = vld [vmem:[%s4567 + $0x129] sm:$0xff]
    %v5042 = vld [vmem:[%s4567 + $0x139] sm:$0xff]
    %v5043 = vld [vmem:[%s4567 + $0x141] sm:$0xff]
    %v5044 = vld [vmem:[%s4567 + $0x151] sm:$0xff]
    %v5045 = vld [vmem:[%s4567 + $0x159] sm:$0xff]
    %v5046 = vld [vmem:[%s4567 + $0x169] sm:$0xff]
    %v5047 = vld [vmem:[%s4567 + $0x171] sm:$0xff]
    %v5048 = vld [vmem:[%s4567 + $0x1b1] sm:$0xff]
    %v5049 = vld [vmem:[%s4567 + $0x1b9] sm:$0xff]
    %v5050 = vld [vmem:[%s4567 + $0x1c9] sm:$0xff]
    %v5051 = vld [vmem:[%s4567 + $0x1d1] sm:$0xff]
    %v5052 = vld [vmem:[%s4567 + $0x1e1] sm:$0xff]
    %v5053 = vld [vmem:[%s4567 + $0x1e9] sm:$0xff]
    %v5054 = vld [vmem:[%s4567 + $0x1f9] sm:$0xff]
    %v5055 = vld [vmem:[%s4567 + $0x201] sm:$0xff]
    %v5056 = vld [vmem:[%s4567 + $0x211] sm:$0xff]
    %v5057 = vld [vmem:[%s4567 + $0x219] sm:$0xff]
    %v5058 = vld [vmem:[%s4567 + $0x229] sm:$0xff]
    %v5059 = vld [vmem:[%s4567 + $0x231] sm:$0xff]
    %v5060 = vld [vmem:[%s4567 + $0x241] sm:$0xff]
    %v5061 = vld [vmem:[%s4567 + $0x249] sm:$0xff]
    %v5062 = vld [vmem:[%s4567 + $0x259] sm:$0xff]
    %v5063 = vld [vmem:[%s4567 + $0x261] sm:$0xff]
    %v5064 = vld [vmem:[%s4567 + $0x271] sm:$0xff]
    %v5065 = vld [vmem:[%s4567 + $0x279] sm:$0xff]
    %v5066 = vld [vmem:[%s4567 + $0x289] sm:$0xff]
    %v5067 = vld [vmem:[%s4567 + $0x291] sm:$0xff]
    %v5068 = vld [vmem:[%s4567 + $0x2a1] sm:$0xff]
    %v5069 = vld [vmem:[%s4567 + $0x2a9] sm:$0xff]
    %v5070 = vld [vmem:[%s4567 + $0x2b9] sm:$0xff]
    %v5071 = vld [vmem:[%s4567 + $0x2c1] sm:$0xff]
    %v5072 = vld [vmem:[%s4567 + $0x2d1] sm:$0xff]
    %v5073 = vld [vmem:[%s4567 + $0x2d9] sm:$0xff]
    %v5074 = vld [vmem:[%s4567 + $0x2e9] sm:$0xff]
    %v5075 = vld [vmem:[%s4567 + $0x2f1] sm:$0xff]
    %v5076 = vld [vmem:[%s4567 + $0x301] sm:$0xff]
    %v5077 = vld [vmem:[%s4567 + $0x309] sm:$0xff]
    %v5078 = vld [vmem:[%s4567 + $0x319] sm:$0xff]
    %v5079 = vld [vmem:[%s4567 + $0x321] sm:$0xff]
    %v5080 = vpack.c.bf16 %v5017, %v5016
    %v5081 = vpack.c.bf16 %v5019, %v5018
    %v5082 = vpack.c.bf16 %v5021, %v5020
    %v5083 = vpack.c.bf16 %v5023, %v5022
    %v5084 = vpack.c.bf16 %v5025, %v5024
    %v5085 = vpack.c.bf16 %v5027, %v5026
    %v5086 = vpack.c.bf16 %v5029, %v5028
    %v5087 = vpack.c.bf16 %v5031, %v5030
    %v5088 = vpack.c.bf16 %v5033, %v5032
    %v5089 = vpack.c.bf16 %v5035, %v5034
    %v5090 = vpack.c.bf16 %v5037, %v5036
    %v5091 = vpack.c.bf16 %v5039, %v5038
    %v5092 = vpack.c.bf16 %v5041, %v5040
    %v5093 = vpack.c.bf16 %v5043, %v5042
    %v5094 = vpack.c.bf16 %v5045, %v5044
    %v5095 = vpack.c.bf16 %v5047, %v5046
    %v5096 = vpack.c.bf16 %v5049, %v5048
    %v5097 = vpack.c.bf16 %v5051, %v5050
    %v5098 = vpack.c.bf16 %v5053, %v5052
    %v5099 = vpack.c.bf16 %v5055, %v5054
    %v5100 = vpack.c.bf16 %v5057, %v5056
    %v5101 = vpack.c.bf16 %v5059, %v5058
    %v5102 = vpack.c.bf16 %v5061, %v5060
    %v5103 = vpack.c.bf16 %v5063, %v5062
    %v5104 = vpack.c.bf16 %v5065, %v5064
    %v5105 = vpack.c.bf16 %v5067, %v5066
    %v5106 = vpack.c.bf16 %v5069, %v5068
    %v5107 = vpack.c.bf16 %v5071, %v5070
    %v5108 = vpack.c.bf16 %v5073, %v5072
    %v5109 = vpack.c.bf16 %v5075, %v5074
    %v5110 = vpack.c.bf16 %v5077, %v5076
    %v5111 = vpack.c.bf16 %v5079, %v5078
    %v5112 = vld [vmem:[%s4567 + $0x2] sm:$0xff]
    %v5113 = vld [vmem:[%s4567 + $0xa] sm:$0xff]
    %v5114 = vld [vmem:[%s4567 + $0x1a] sm:$0xff]
    %v5115 = vld [vmem:[%s4567 + $0x22] sm:$0xff]
    %v5116 = vld [vmem:[%s4567 + $0x32] sm:$0xff]
    %v5117 = vld [vmem:[%s4567 + $0x3a] sm:$0xff]
    %v5118 = vld [vmem:[%s4567 + $0x4a] sm:$0xff]
    %v5119 = vld [vmem:[%s4567 + $0x52] sm:$0xff]
    %v5120 = vld [vmem:[%s4567 + $0x62] sm:$0xff]
    %v5121 = vld [vmem:[%s4567 + $0x6a] sm:$0xff]
    %v5122 = vld [vmem:[%s4567 + $0x7a] sm:$0xff]
    %v5123 = vld [vmem:[%s4567 + $0x82] sm:$0xff]
    %v5124 = vld [vmem:[%s4567 + $0x92] sm:$0xff]
    %v5125 = vld [vmem:[%s4567 + $0x9a] sm:$0xff]
    %v5126 = vld [vmem:[%s4567 + $0xaa] sm:$0xff]
    %v5127 = vld [vmem:[%s4567 + $0xb2] sm:$0xff]
    %v5128 = vld [vmem:[%s4567 + $0xc2] sm:$0xff]
    %v5129 = vld [vmem:[%s4567 + $0xca] sm:$0xff]
    %v5130 = vld [vmem:[%s4567 + $0xda] sm:$0xff]
    %v5131 = vld [vmem:[%s4567 + $0xe2] sm:$0xff]
    %v5132 = vld [vmem:[%s4567 + $0xf2] sm:$0xff]
    %v5133 = vld [vmem:[%s4567 + $0xfa] sm:$0xff]
    %v5134 = vld [vmem:[%s4567 + $0x10a] sm:$0xff]
    %v5135 = vld [vmem:[%s4567 + $0x112] sm:$0xff]
    %v5136 = vld [vmem:[%s4567 + $0x122] sm:$0xff]
    %v5137 = vld [vmem:[%s4567 + $0x12a] sm:$0xff]
    %v5138 = vld [vmem:[%s4567 + $0x13a] sm:$0xff]
    %v5139 = vld [vmem:[%s4567 + $0x142] sm:$0xff]
    %v5140 = vld [vmem:[%s4567 + $0x152] sm:$0xff]
    %v5141 = vld [vmem:[%s4567 + $0x15a] sm:$0xff]
    %v5142 = vld [vmem:[%s4567 + $0x16a] sm:$0xff]
    %v5143 = vld [vmem:[%s4567 + $0x172] sm:$0xff]
    %v5144 = vld [vmem:[%s4567 + $0x1b2] sm:$0xff]
    %v5145 = vld [vmem:[%s4567 + $0x1ba] sm:$0xff]
    %v5146 = vld [vmem:[%s4567 + $0x1ca] sm:$0xff]
    %v5147 = vld [vmem:[%s4567 + $0x1d2] sm:$0xff]
    %v5148 = vld [vmem:[%s4567 + $0x1e2] sm:$0xff]
    %v5149 = vld [vmem:[%s4567 + $0x1ea] sm:$0xff]
    %v5150 = vld [vmem:[%s4567 + $0x1fa] sm:$0xff]
    %v5151 = vld [vmem:[%s4567 + $0x202] sm:$0xff]
    %v5152 = vld [vmem:[%s4567 + $0x212] sm:$0xff]
    %v5153 = vld [vmem:[%s4567 + $0x21a] sm:$0xff]
    %v5154 = vld [vmem:[%s4567 + $0x22a] sm:$0xff]
    %v5155 = vld [vmem:[%s4567 + $0x232] sm:$0xff]
    %v5156 = vld [vmem:[%s4567 + $0x242] sm:$0xff]
    %v5157 = vld [vmem:[%s4567 + $0x24a] sm:$0xff]
    %v5158 = vld [vmem:[%s4567 + $0x25a] sm:$0xff]
    %v5159 = vld [vmem:[%s4567 + $0x262] sm:$0xff]
    %v5160 = vld [vmem:[%s4567 + $0x272] sm:$0xff]
    %v5161 = vld [vmem:[%s4567 + $0x27a] sm:$0xff]
    %v5162 = vld [vmem:[%s4567 + $0x28a] sm:$0xff]
    %v5163 = vld [vmem:[%s4567 + $0x292] sm:$0xff]
    %v5164 = vld [vmem:[%s4567 + $0x2a2] sm:$0xff]
    %v5165 = vld [vmem:[%s4567 + $0x2aa] sm:$0xff]
    %v5166 = vld [vmem:[%s4567 + $0x2ba] sm:$0xff]
    %v5167 = vld [vmem:[%s4567 + $0x2c2] sm:$0xff]
    %v5168 = vld [vmem:[%s4567 + $0x2d2] sm:$0xff]
    %v5169 = vld [vmem:[%s4567 + $0x2da] sm:$0xff]
    %v5170 = vld [vmem:[%s4567 + $0x2ea] sm:$0xff]
    %v5171 = vld [vmem:[%s4567 + $0x2f2] sm:$0xff]
    %v5172 = vld [vmem:[%s4567 + $0x302] sm:$0xff]
    %v5173 = vld [vmem:[%s4567 + $0x30a] sm:$0xff]
    %v5174 = vld [vmem:[%s4567 + $0x31a] sm:$0xff]
    %v5175 = vld [vmem:[%s4567 + $0x322] sm:$0xff]
    %v5176 = vpack.c.bf16 %v5113, %v5112
    %v5177 = vpack.c.bf16 %v5115, %v5114
    %v5178 = vpack.c.bf16 %v5117, %v5116
    %v5179 = vpack.c.bf16 %v5119, %v5118
    %v5180 = vpack.c.bf16 %v5121, %v5120
    %v5181 = vpack.c.bf16 %v5123, %v5122
    %v5182 = vpack.c.bf16 %v5125, %v5124
    %v5183 = vpack.c.bf16 %v5127, %v5126
    %v5184 = vpack.c.bf16 %v5129, %v5128
    %v5185 = vpack.c.bf16 %v5131, %v5130
    %v5186 = vpack.c.bf16 %v5133, %v5132
    %v5187 = vpack.c.bf16 %v5135, %v5134
    %v5188 = vpack.c.bf16 %v5137, %v5136
    %v5189 = vpack.c.bf16 %v5139, %v5138
    %v5190 = vpack.c.bf16 %v5141, %v5140
    %v5191 = vpack.c.bf16 %v5143, %v5142
    %v5192 = vpack.c.bf16 %v5145, %v5144
    %v5193 = vpack.c.bf16 %v5147, %v5146
    %v5194 = vpack.c.bf16 %v5149, %v5148
    %v5195 = vpack.c.bf16 %v5151, %v5150
    %v5196 = vpack.c.bf16 %v5153, %v5152
    %v5197 = vpack.c.bf16 %v5155, %v5154
    %v5198 = vpack.c.bf16 %v5157, %v5156
    %v5199 = vpack.c.bf16 %v5159, %v5158
    %v5200 = vpack.c.bf16 %v5161, %v5160
    %v5201 = vpack.c.bf16 %v5163, %v5162
    %v5202 = vpack.c.bf16 %v5165, %v5164
    %v5203 = vpack.c.bf16 %v5167, %v5166
    %v5204 = vpack.c.bf16 %v5169, %v5168
    %v5205 = vpack.c.bf16 %v5171, %v5170
    %v5206 = vpack.c.bf16 %v5173, %v5172
    %v5207 = vpack.c.bf16 %v5175, %v5174
    %s5208 = scalar_lea.vmem [#allocation3], 48
    %v5209 = vld [vmem:[%s5208] sm:$0xff]
    %v5210 = vld [vmem:[%s5208 + $0x8] sm:$0xff]
    %v5211 = vld [vmem:[%s5208 + $0x18] sm:$0xff]
    %v5212 = vld [vmem:[%s5208 + $0x20] sm:$0xff]
    %v5213 = vld [vmem:[%s5208 + $0x30] sm:$0xff]
    %v5214 = vld [vmem:[%s5208 + $0x38] sm:$0xff]
    %v5215 = vld [vmem:[%s5208 + $0x48] sm:$0xff]
    %v5216 = vld [vmem:[%s5208 + $0x50] sm:$0xff]
    %v5217 = vld [vmem:[%s5208 + $0x60] sm:$0xff]
    %v5218 = vld [vmem:[%s5208 + $0x68] sm:$0xff]
    %v5219 = vld [vmem:[%s5208 + $0x78] sm:$0xff]
    %v5220 = vld [vmem:[%s5208 + $0x80] sm:$0xff]
    %v5221 = vld [vmem:[%s5208 + $0x90] sm:$0xff]
    %v5222 = vld [vmem:[%s5208 + $0x98] sm:$0xff]
    %v5223 = vld [vmem:[%s5208 + $0xa8] sm:$0xff]
    %v5224 = vld [vmem:[%s5208 + $0xb0] sm:$0xff]
    %v5225 = vld [vmem:[%s5208 + $0xc0] sm:$0xff]
    %v5226 = vld [vmem:[%s5208 + $0xc8] sm:$0xff]
    %v5227 = vld [vmem:[%s5208 + $0xd8] sm:$0xff]
    %v5228 = vld [vmem:[%s5208 + $0xe0] sm:$0xff]
    %v5229 = vld [vmem:[%s5208 + $0xf0] sm:$0xff]
    %v5230 = vld [vmem:[%s5208 + $0xf8] sm:$0xff]
    %v5231 = vld [vmem:[%s5208 + $0x108] sm:$0xff]
    %v5232 = vld [vmem:[%s5208 + $0x110] sm:$0xff]
    %v5233 = vld [vmem:[%s5208 + $0x120] sm:$0xff]
    %v5234 = vld [vmem:[%s5208 + $0x128] sm:$0xff]
    %v5235 = vld [vmem:[%s5208 + $0x138] sm:$0xff]
    %v5236 = vld [vmem:[%s5208 + $0x140] sm:$0xff]
    %v5237 = vld [vmem:[%s5208 + $0x150] sm:$0xff]
    %v5238 = vld [vmem:[%s5208 + $0x158] sm:$0xff]
    %v5239 = vld [vmem:[%s5208 + $0x168] sm:$0xff]
    %v5240 = vld [vmem:[%s5208 + $0x170] sm:$0xff]
    %v5241 = vld [vmem:[%s5208 + $0x1b0] sm:$0xff]
    %v5242 = vld [vmem:[%s5208 + $0x1b8] sm:$0xff]
    %v5243 = vld [vmem:[%s5208 + $0x1c8] sm:$0xff]
    %v5244 = vld [vmem:[%s5208 + $0x1d0] sm:$0xff]
    %v5245 = vld [vmem:[%s5208 + $0x1e0] sm:$0xff]
    %v5246 = vld [vmem:[%s5208 + $0x1e8] sm:$0xff]
    %v5247 = vld [vmem:[%s5208 + $0x1f8] sm:$0xff]
    %v5248 = vld [vmem:[%s5208 + $0x200] sm:$0xff]
    %v5249 = vld [vmem:[%s5208 + $0x210] sm:$0xff]
    %v5250 = vld [vmem:[%s5208 + $0x218] sm:$0xff]
    %v5251 = vld [vmem:[%s5208 + $0x228] sm:$0xff]
    %v5252 = vld [vmem:[%s5208 + $0x230] sm:$0xff]
    %v5253 = vld [vmem:[%s5208 + $0x240] sm:$0xff]
    %v5254 = vld [vmem:[%s5208 + $0x248] sm:$0xff]
    %v5255 = vld [vmem:[%s5208 + $0x258] sm:$0xff]
    %v5256 = vld [vmem:[%s5208 + $0x260] sm:$0xff]
    %v5257 = vld [vmem:[%s5208 + $0x270] sm:$0xff]
    %v5258 = vld [vmem:[%s5208 + $0x278] sm:$0xff]
    %v5259 = vld [vmem:[%s5208 + $0x288] sm:$0xff]
    %v5260 = vld [vmem:[%s5208 + $0x290] sm:$0xff]
    %v5261 = vld [vmem:[%s5208 + $0x2a0] sm:$0xff]
    %v5262 = vld [vmem:[%s5208 + $0x2a8] sm:$0xff]
    %v5263 = vld [vmem:[%s5208 + $0x2b8] sm:$0xff]
    %v5264 = vld [vmem:[%s5208 + $0x2c0] sm:$0xff]
    %v5265 = vld [vmem:[%s5208 + $0x2d0] sm:$0xff]
    %v5266 = vld [vmem:[%s5208 + $0x2d8] sm:$0xff]
    %v5267 = vld [vmem:[%s5208 + $0x2e8] sm:$0xff]
    %v5268 = vld [vmem:[%s5208 + $0x2f0] sm:$0xff]
    %v5269 = vld [vmem:[%s5208 + $0x300] sm:$0xff]
    %v5270 = vld [vmem:[%s5208 + $0x308] sm:$0xff]
    %v5271 = vld [vmem:[%s5208 + $0x318] sm:$0xff]
    %v5272 = vld [vmem:[%s5208 + $0x320] sm:$0xff]
    %v5273 = vpack.c.bf16 %v5210, %v5209
    %v5274 = vpack.c.bf16 %v5212, %v5211
    %v5275 = vpack.c.bf16 %v5214, %v5213
    %v5276 = vpack.c.bf16 %v5216, %v5215
    %v5277 = vpack.c.bf16 %v5218, %v5217
    %v5278 = vpack.c.bf16 %v5220, %v5219
    %v5279 = vpack.c.bf16 %v5222, %v5221
    %v5280 = vpack.c.bf16 %v5224, %v5223
    %v5281 = vpack.c.bf16 %v5226, %v5225
    %v5282 = vpack.c.bf16 %v5228, %v5227
    %v5283 = vpack.c.bf16 %v5230, %v5229
    %v5284 = vpack.c.bf16 %v5232, %v5231
    %v5285 = vpack.c.bf16 %v5234, %v5233
    %v5286 = vpack.c.bf16 %v5236, %v5235
    %v5287 = vpack.c.bf16 %v5238, %v5237
    %v5288 = vpack.c.bf16 %v5240, %v5239
    %v5289 = vpack.c.bf16 %v5242, %v5241
    %v5290 = vpack.c.bf16 %v5244, %v5243
    %v5291 = vpack.c.bf16 %v5246, %v5245
    %v5292 = vpack.c.bf16 %v5248, %v5247
    %v5293 = vpack.c.bf16 %v5250, %v5249
    %v5294 = vpack.c.bf16 %v5252, %v5251
    %v5295 = vpack.c.bf16 %v5254, %v5253
    %v5296 = vpack.c.bf16 %v5256, %v5255
    %v5297 = vpack.c.bf16 %v5258, %v5257
    %v5298 = vpack.c.bf16 %v5260, %v5259
    %v5299 = vpack.c.bf16 %v5262, %v5261
    %v5300 = vpack.c.bf16 %v5264, %v5263
    %v5301 = vpack.c.bf16 %v5266, %v5265
    %v5302 = vpack.c.bf16 %v5268, %v5267
    %v5303 = vpack.c.bf16 %v5270, %v5269
    %v5304 = vpack.c.bf16 %v5272, %v5271
    %v5305 = vld [vmem:[%s5208 + $0x1] sm:$0xff]
    %v5306 = vld [vmem:[%s5208 + $0x9] sm:$0xff]
    %v5307 = vld [vmem:[%s5208 + $0x19] sm:$0xff]
    %v5308 = vld [vmem:[%s5208 + $0x21] sm:$0xff]
    %v5309 = vld [vmem:[%s5208 + $0x31] sm:$0xff]
    %v5310 = vld [vmem:[%s5208 + $0x39] sm:$0xff]
    %v5311 = vld [vmem:[%s5208 + $0x49] sm:$0xff]
    %v5312 = vld [vmem:[%s5208 + $0x51] sm:$0xff]
    %v5313 = vld [vmem:[%s5208 + $0x61] sm:$0xff]
    %v5314 = vld [vmem:[%s5208 + $0x69] sm:$0xff]
    %v5315 = vld [vmem:[%s5208 + $0x79] sm:$0xff]
    %v5316 = vld [vmem:[%s5208 + $0x81] sm:$0xff]
    %v5317 = vld [vmem:[%s5208 + $0x91] sm:$0xff]
    %v5318 = vld [vmem:[%s5208 + $0x99] sm:$0xff]
    %v5319 = vld [vmem:[%s5208 + $0xa9] sm:$0xff]
    %v5320 = vld [vmem:[%s5208 + $0xb1] sm:$0xff]
    %v5321 = vld [vmem:[%s5208 + $0xc1] sm:$0xff]
    %v5322 = vld [vmem:[%s5208 + $0xc9] sm:$0xff]
    %v5323 = vld [vmem:[%s5208 + $0xd9] sm:$0xff]
    %v5324 = vld [vmem:[%s5208 + $0xe1] sm:$0xff]
    %v5325 = vld [vmem:[%s5208 + $0xf1] sm:$0xff]
    %v5326 = vld [vmem:[%s5208 + $0xf9] sm:$0xff]
    %v5327 = vld [vmem:[%s5208 + $0x109] sm:$0xff]
    %v5328 = vld [vmem:[%s5208 + $0x111] sm:$0xff]
    %v5329 = vld [vmem:[%s5208 + $0x121] sm:$0xff]
    %v5330 = vld [vmem:[%s5208 + $0x129] sm:$0xff]
    %v5331 = vld [vmem:[%s5208 + $0x139] sm:$0xff]
    %v5332 = vld [vmem:[%s5208 + $0x141] sm:$0xff]
    %v5333 = vld [vmem:[%s5208 + $0x151] sm:$0xff]
    %v5334 = vld [vmem:[%s5208 + $0x159] sm:$0xff]
    %v5335 = vld [vmem:[%s5208 + $0x169] sm:$0xff]
    %v5336 = vld [vmem:[%s5208 + $0x171] sm:$0xff]
    %v5337 = vld [vmem:[%s5208 + $0x1b1] sm:$0xff]
    %v5338 = vld [vmem:[%s5208 + $0x1b9] sm:$0xff]
    %v5339 = vld [vmem:[%s5208 + $0x1c9] sm:$0xff]
    %v5340 = vld [vmem:[%s5208 + $0x1d1] sm:$0xff]
    %v5341 = vld [vmem:[%s5208 + $0x1e1] sm:$0xff]
    %v5342 = vld [vmem:[%s5208 + $0x1e9] sm:$0xff]
    %v5343 = vld [vmem:[%s5208 + $0x1f9] sm:$0xff]
    %v5344 = vld [vmem:[%s5208 + $0x201] sm:$0xff]
    %v5345 = vld [vmem:[%s5208 + $0x211] sm:$0xff]
    %v5346 = vld [vmem:[%s5208 + $0x219] sm:$0xff]
    %v5347 = vld [vmem:[%s5208 + $0x229] sm:$0xff]
    %v5348 = vld [vmem:[%s5208 + $0x231] sm:$0xff]
    %v5349 = vld [vmem:[%s5208 + $0x241] sm:$0xff]
    %v5350 = vld [vmem:[%s5208 + $0x249] sm:$0xff]
    %v5351 = vld [vmem:[%s5208 + $0x259] sm:$0xff]
    %v5352 = vld [vmem:[%s5208 + $0x261] sm:$0xff]
    %v5353 = vld [vmem:[%s5208 + $0x271] sm:$0xff]
    %v5354 = vld [vmem:[%s5208 + $0x279] sm:$0xff]
    %v5355 = vld [vmem:[%s5208 + $0x289] sm:$0xff]
    %v5356 = vld [vmem:[%s5208 + $0x291] sm:$0xff]
    %v5357 = vld [vmem:[%s5208 + $0x2a1] sm:$0xff]
    %v5358 = vld [vmem:[%s5208 + $0x2a9] sm:$0xff]
    %v5359 = vld [vmem:[%s5208 + $0x2b9] sm:$0xff]
    %v5360 = vld [vmem:[%s5208 + $0x2c1] sm:$0xff]
    %v5361 = vld [vmem:[%s5208 + $0x2d1] sm:$0xff]
    %v5362 = vld [vmem:[%s5208 + $0x2d9] sm:$0xff]
    %v5363 = vld [vmem:[%s5208 + $0x2e9] sm:$0xff]
    %v5364 = vld [vmem:[%s5208 + $0x2f1] sm:$0xff]
    %v5365 = vld [vmem:[%s5208 + $0x301] sm:$0xff]
    %v5366 = vld [vmem:[%s5208 + $0x309] sm:$0xff]
    %v5367 = vld [vmem:[%s5208 + $0x319] sm:$0xff]
    %v5368 = vld [vmem:[%s5208 + $0x321] sm:$0xff]
    %v5369 = vpack.c.bf16 %v5306, %v5305
    %v5370 = vpack.c.bf16 %v5308, %v5307
    %v5371 = vpack.c.bf16 %v5310, %v5309
    %v5372 = vpack.c.bf16 %v5312, %v5311
    %v5373 = vpack.c.bf16 %v5314, %v5313
    %v5374 = vpack.c.bf16 %v5316, %v5315
    %v5375 = vpack.c.bf16 %v5318, %v5317
    %v5376 = vpack.c.bf16 %v5320, %v5319
    %v5377 = vpack.c.bf16 %v5322, %v5321
    %v5378 = vpack.c.bf16 %v5324, %v5323
    %v5379 = vpack.c.bf16 %v5326, %v5325
    %v5380 = vpack.c.bf16 %v5328, %v5327
    %v5381 = vpack.c.bf16 %v5330, %v5329
    %v5382 = vpack.c.bf16 %v5332, %v5331
    %v5383 = vpack.c.bf16 %v5334, %v5333
    %v5384 = vpack.c.bf16 %v5336, %v5335
    %v5385 = vpack.c.bf16 %v5338, %v5337
    %v5386 = vpack.c.bf16 %v5340, %v5339
    %v5387 = vpack.c.bf16 %v5342, %v5341
    %v5388 = vpack.c.bf16 %v5344, %v5343
    %v5389 = vpack.c.bf16 %v5346, %v5345
    %v5390 = vpack.c.bf16 %v5348, %v5347
    %v5391 = vpack.c.bf16 %v5350, %v5349
    %v5392 = vpack.c.bf16 %v5352, %v5351
    %v5393 = vpack.c.bf16 %v5354, %v5353
    %v5394 = vpack.c.bf16 %v5356, %v5355
    %v5395 = vpack.c.bf16 %v5358, %v5357
    %v5396 = vpack.c.bf16 %v5360, %v5359
    %v5397 = vpack.c.bf16 %v5362, %v5361
    %v5398 = vpack.c.bf16 %v5364, %v5363
    %v5399 = vpack.c.bf16 %v5366, %v5365
    %v5400 = vpack.c.bf16 %v5368, %v5367
    %v5401 = vld [vmem:[%s5208 + $0x2] sm:$0xff]
    %v5402 = vld [vmem:[%s5208 + $0xa] sm:$0xff]
    %v5403 = vld [vmem:[%s5208 + $0x1a] sm:$0xff]
    %v5404 = vld [vmem:[%s5208 + $0x22] sm:$0xff]
    %v5405 = vld [vmem:[%s5208 + $0x32] sm:$0xff]
    %v5406 = vld [vmem:[%s5208 + $0x3a] sm:$0xff]
    %v5407 = vld [vmem:[%s5208 + $0x4a] sm:$0xff]
    %v5408 = vld [vmem:[%s5208 + $0x52] sm:$0xff]
    %v5409 = vld [vmem:[%s5208 + $0x62] sm:$0xff]
    %v5410 = vld [vmem:[%s5208 + $0x6a] sm:$0xff]
    %v5411 = vld [vmem:[%s5208 + $0x7a] sm:$0xff]
    %v5412 = vld [vmem:[%s5208 + $0x82] sm:$0xff]
    %v5413 = vld [vmem:[%s5208 + $0x92] sm:$0xff]
    %v5414 = vld [vmem:[%s5208 + $0x9a] sm:$0xff]
    %v5415 = vld [vmem:[%s5208 + $0xaa] sm:$0xff]
    %v5416 = vld [vmem:[%s5208 + $0xb2] sm:$0xff]
    %v5417 = vld [vmem:[%s5208 + $0xc2] sm:$0xff]
    %v5418 = vld [vmem:[%s5208 + $0xca] sm:$0xff]
    %v5419 = vld [vmem:[%s5208 + $0xda] sm:$0xff]
    %v5420 = vld [vmem:[%s5208 + $0xe2] sm:$0xff]
    %v5421 = vld [vmem:[%s5208 + $0xf2] sm:$0xff]
    %v5422 = vld [vmem:[%s5208 + $0xfa] sm:$0xff]
    %v5423 = vld [vmem:[%s5208 + $0x10a] sm:$0xff]
    %v5424 = vld [vmem:[%s5208 + $0x112] sm:$0xff]
    %v5425 = vld [vmem:[%s5208 + $0x122] sm:$0xff]
    %v5426 = vld [vmem:[%s5208 + $0x12a] sm:$0xff]
    %v5427 = vld [vmem:[%s5208 + $0x13a] sm:$0xff]
    %v5428 = vld [vmem:[%s5208 + $0x142] sm:$0xff]
    %v5429 = vld [vmem:[%s5208 + $0x152] sm:$0xff]
    %v5430 = vld [vmem:[%s5208 + $0x15a] sm:$0xff]
    %v5431 = vld [vmem:[%s5208 + $0x16a] sm:$0xff]
    %v5432 = vld [vmem:[%s5208 + $0x172] sm:$0xff]
    %v5433 = vld [vmem:[%s5208 + $0x1b2] sm:$0xff]
    %v5434 = vld [vmem:[%s5208 + $0x1ba] sm:$0xff]
    %v5435 = vld [vmem:[%s5208 + $0x1ca] sm:$0xff]
    %v5436 = vld [vmem:[%s5208 + $0x1d2] sm:$0xff]
    %v5437 = vld [vmem:[%s5208 + $0x1e2] sm:$0xff]
    %v5438 = vld [vmem:[%s5208 + $0x1ea] sm:$0xff]
    %v5439 = vld [vmem:[%s5208 + $0x1fa] sm:$0xff]
    %v5440 = vld [vmem:[%s5208 + $0x202] sm:$0xff]
    %v5441 = vld [vmem:[%s5208 + $0x212] sm:$0xff]
    %v5442 = vld [vmem:[%s5208 + $0x21a] sm:$0xff]
    %v5443 = vld [vmem:[%s5208 + $0x22a] sm:$0xff]
    %v5444 = vld [vmem:[%s5208 + $0x232] sm:$0xff]
    %v5445 = vld [vmem:[%s5208 + $0x242] sm:$0xff]
    %v5446 = vld [vmem:[%s5208 + $0x24a] sm:$0xff]
    %v5447 = vld [vmem:[%s5208 + $0x25a] sm:$0xff]
    %v5448 = vld [vmem:[%s5208 + $0x262] sm:$0xff]
    %v5449 = vld [vmem:[%s5208 + $0x272] sm:$0xff]
    %v5450 = vld [vmem:[%s5208 + $0x27a] sm:$0xff]
    %v5451 = vld [vmem:[%s5208 + $0x28a] sm:$0xff]
    %v5452 = vld [vmem:[%s5208 + $0x292] sm:$0xff]
    %v5453 = vld [vmem:[%s5208 + $0x2a2] sm:$0xff]
    %v5454 = vld [vmem:[%s5208 + $0x2aa] sm:$0xff]
    %v5455 = vld [vmem:[%s5208 + $0x2ba] sm:$0xff]
    %v5456 = vld [vmem:[%s5208 + $0x2c2] sm:$0xff]
    %v5457 = vld [vmem:[%s5208 + $0x2d2] sm:$0xff]
    %v5458 = vld [vmem:[%s5208 + $0x2da] sm:$0xff]
    %v5459 = vld [vmem:[%s5208 + $0x2ea] sm:$0xff]
    %v5460 = vld [vmem:[%s5208 + $0x2f2] sm:$0xff]
    %v5461 = vld [vmem:[%s5208 + $0x302] sm:$0xff]
    %v5462 = vld [vmem:[%s5208 + $0x30a] sm:$0xff]
    %v5463 = vld [vmem:[%s5208 + $0x31a] sm:$0xff]
    %v5464 = vld [vmem:[%s5208 + $0x322] sm:$0xff]
    %v5465 = vpack.c.bf16 %v5402, %v5401
    %v5466 = vpack.c.bf16 %v5404, %v5403
    %v5467 = vpack.c.bf16 %v5406, %v5405
    %v5468 = vpack.c.bf16 %v5408, %v5407
    %v5469 = vpack.c.bf16 %v5410, %v5409
    %v5470 = vpack.c.bf16 %v5412, %v5411
    %v5471 = vpack.c.bf16 %v5414, %v5413
    %v5472 = vpack.c.bf16 %v5416, %v5415
    %v5473 = vpack.c.bf16 %v5418, %v5417
    %v5474 = vpack.c.bf16 %v5420, %v5419
    %v5475 = vpack.c.bf16 %v5422, %v5421
    %v5476 = vpack.c.bf16 %v5424, %v5423
    %v5477 = vpack.c.bf16 %v5426, %v5425
    %v5478 = vpack.c.bf16 %v5428, %v5427
    %v5479 = vpack.c.bf16 %v5430, %v5429
    %v5480 = vpack.c.bf16 %v5432, %v5431
    %v5481 = vpack.c.bf16 %v5434, %v5433
    %v5482 = vpack.c.bf16 %v5436, %v5435
    %v5483 = vpack.c.bf16 %v5438, %v5437
    %v5484 = vpack.c.bf16 %v5440, %v5439
    %v5485 = vpack.c.bf16 %v5442, %v5441
    %v5486 = vpack.c.bf16 %v5444, %v5443
    %v5487 = vpack.c.bf16 %v5446, %v5445
    %v5488 = vpack.c.bf16 %v5448, %v5447
    %v5489 = vpack.c.bf16 %v5450, %v5449
    %v5490 = vpack.c.bf16 %v5452, %v5451
    %v5491 = vpack.c.bf16 %v5454, %v5453
    %v5492 = vpack.c.bf16 %v5456, %v5455
    %v5493 = vpack.c.bf16 %v5458, %v5457
    %v5494 = vpack.c.bf16 %v5460, %v5459
    %v5495 = vpack.c.bf16 %v5462, %v5461
    %v5496 = vpack.c.bf16 %v5464, %v5463
    %5529 = vrot.lane.b32.xlu0 %v4792, 32
    %v5530 = vpop.permute.xlu0 %5529
    %5531 = vrot.lane.b32.xlu0 %v4793, 32
    %v5532 = vpop.permute.xlu0 %5531
    %5533 = vrot.lane.b32.xlu0 %v4794, 32
    %v5534 = vpop.permute.xlu0 %5533
    %5535 = vrot.lane.b32.xlu0 %v4795, 32
    %v5536 = vpop.permute.xlu0 %5535
    %5537 = vrot.lane.b32.xlu0 %v4796, 32
    %v5538 = vpop.permute.xlu0 %5537
    %5539 = vrot.lane.b32.xlu0 %v4797, 32
    %v5540 = vpop.permute.xlu0 %5539
    %5541 = vrot.lane.b32.xlu0 %v4798, 32
    %v5542 = vpop.permute.xlu0 %5541
    %5543 = vrot.lane.b32.xlu0 %v4799, 32
    %v5544 = vpop.permute.xlu0 %5543
    %5545 = vrot.lane.b32.xlu0 %v4800, 32
    %v5546 = vpop.permute.xlu0 %5545
    %5547 = vrot.lane.b32.xlu0 %v4801, 32
    %v5548 = vpop.permute.xlu0 %5547
    %5549 = vrot.lane.b32.xlu0 %v4802, 32
    %v5550 = vpop.permute.xlu0 %5549
    %5551 = vrot.lane.b32.xlu0 %v4803, 32
    %v5552 = vpop.permute.xlu0 %5551
    %5553 = vrot.lane.b32.xlu0 %v4804, 32
    %v5554 = vpop.permute.xlu0 %5553
    %5555 = vrot.lane.b32.xlu0 %v4805, 32
    %v5556 = vpop.permute.xlu0 %5555
    %5557 = vrot.lane.b32.xlu0 %v4806, 32
    %v5558 = vpop.permute.xlu0 %5557
    %5559 = vrot.lane.b32.xlu0 %v4807, 32
    %v5560 = vpop.permute.xlu0 %5559
    %5561 = vrot.lane.b32.xlu0 %v4808, 32
    %v5562 = vpop.permute.xlu0 %5561
    %5563 = vrot.lane.b32.xlu0 %v4809, 32
    %v5564 = vpop.permute.xlu0 %5563
    %5565 = vrot.lane.b32.xlu0 %v4810, 32
    %v5566 = vpop.permute.xlu0 %5565
    %5567 = vrot.lane.b32.xlu0 %v4811, 32
    %v5568 = vpop.permute.xlu0 %5567
    %5569 = vrot.lane.b32.xlu0 %v4812, 32
    %v5570 = vpop.permute.xlu0 %5569
    %5571 = vrot.lane.b32.xlu0 %v4813, 32
    %v5572 = vpop.permute.xlu0 %5571
    %5573 = vrot.lane.b32.xlu0 %v4814, 32
    %v5574 = vpop.permute.xlu0 %5573
    %5575 = vrot.lane.b32.xlu0 %v4815, 32
    %v5576 = vpop.permute.xlu0 %5575
    %5577 = vrot.lane.b32.xlu0 %v4816, 32
    %v5578 = vpop.permute.xlu0 %5577
    %5579 = vrot.lane.b32.xlu0 %v4817, 32
    %v5580 = vpop.permute.xlu0 %5579
    %5581 = vrot.lane.b32.xlu0 %v4818, 32
    %v5582 = vpop.permute.xlu0 %5581
    %5583 = vrot.lane.b32.xlu0 %v4819, 32
    %v5584 = vpop.permute.xlu0 %5583
    %5585 = vrot.lane.b32.xlu0 %v4820, 32
    %v5586 = vpop.permute.xlu0 %5585
    %5587 = vrot.lane.b32.xlu0 %v4821, 32
    %v5588 = vpop.permute.xlu0 %5587
    %5589 = vrot.lane.b32.xlu0 %v4822, 32
    %v5590 = vpop.permute.xlu0 %5589
    %5591 = vrot.lane.b32.xlu0 %v4823, 32
    %v5592 = vpop.permute.xlu0 %5591
    %5625 = vrot.lane.b32.xlu0 %v4888, 64
    %v5626 = vpop.permute.xlu0 %5625
    %5627 = vrot.lane.b32.xlu0 %v4889, 64
    %v5628 = vpop.permute.xlu0 %5627
    %5629 = vrot.lane.b32.xlu0 %v4890, 64
    %v5630 = vpop.permute.xlu0 %5629
    %5631 = vrot.lane.b32.xlu0 %v4891, 64
    %v5632 = vpop.permute.xlu0 %5631
    %5633 = vrot.lane.b32.xlu0 %v4892, 64
    %v5634 = vpop.permute.xlu0 %5633
    %5635 = vrot.lane.b32.xlu0 %v4893, 64
    %v5636 = vpop.permute.xlu0 %5635
    %5637 = vrot.lane.b32.xlu0 %v4894, 64
    %v5638 = vpop.permute.xlu0 %5637
    %5639 = vrot.lane.b32.xlu0 %v4895, 64
    %v5640 = vpop.permute.xlu0 %5639
    %5641 = vrot.lane.b32.xlu0 %v4896, 64
    %v5642 = vpop.permute.xlu0 %5641
    %5643 = vrot.lane.b32.xlu0 %v4897, 64
    %v5644 = vpop.permute.xlu0 %5643
    %5645 = vrot.lane.b32.xlu0 %v4898, 64
    %v5646 = vpop.permute.xlu0 %5645
    %5647 = vrot.lane.b32.xlu0 %v4899, 64
    %v5648 = vpop.permute.xlu0 %5647
    %5649 = vrot.lane.b32.xlu0 %v4900, 64
    %v5650 = vpop.permute.xlu0 %5649
    %5651 = vrot.lane.b32.xlu0 %v4901, 64
    %v5652 = vpop.permute.xlu0 %5651
    %5653 = vrot.lane.b32.xlu0 %v4902, 64
    %v5654 = vpop.permute.xlu0 %5653
    %5655 = vrot.lane.b32.xlu0 %v4903, 64
    %v5656 = vpop.permute.xlu0 %5655
    %5657 = vrot.lane.b32.xlu0 %v4904, 64
    %v5658 = vpop.permute.xlu0 %5657
    %5659 = vrot.lane.b32.xlu0 %v4905, 64
    %v5660 = vpop.permute.xlu0 %5659
    %5661 = vrot.lane.b32.xlu0 %v4906, 64
    %v5662 = vpop.permute.xlu0 %5661
    %5663 = vrot.lane.b32.xlu0 %v4907, 64
    %v5664 = vpop.permute.xlu0 %5663
    %5665 = vrot.lane.b32.xlu0 %v4908, 64
    %v5666 = vpop.permute.xlu0 %5665
    %5667 = vrot.lane.b32.xlu0 %v4909, 64
    %v5668 = vpop.permute.xlu0 %5667
    %5669 = vrot.lane.b32.xlu0 %v4910, 64
    %v5670 = vpop.permute.xlu0 %5669
    %5671 = vrot.lane.b32.xlu0 %v4911, 64
    %v5672 = vpop.permute.xlu0 %5671
    %5673 = vrot.lane.b32.xlu0 %v4912, 64
    %v5674 = vpop.permute.xlu0 %5673
    %5675 = vrot.lane.b32.xlu0 %v4913, 64
    %v5676 = vpop.permute.xlu0 %5675
    %5677 = vrot.lane.b32.xlu0 %v4914, 64
    %v5678 = vpop.permute.xlu0 %5677
    %5679 = vrot.lane.b32.xlu0 %v4915, 64
    %v5680 = vpop.permute.xlu0 %5679
    %5681 = vrot.lane.b32.xlu0 %v4916, 64
    %v5682 = vpop.permute.xlu0 %5681
    %5683 = vrot.lane.b32.xlu0 %v4917, 64
    %v5684 = vpop.permute.xlu0 %5683
    %5685 = vrot.lane.b32.xlu0 %v4918, 64
    %v5686 = vpop.permute.xlu0 %5685
    %5687 = vrot.lane.b32.xlu0 %v4919, 64
    %v5688 = vpop.permute.xlu0 %5687
    %5721 = vrot.lane.b32.xlu0 %v4984, 96
    %v5722 = vpop.permute.xlu0 %5721
    %5723 = vrot.lane.b32.xlu0 %v4985, 96
    %v5724 = vpop.permute.xlu0 %5723
    %5725 = vrot.lane.b32.xlu0 %v4986, 96
    %v5726 = vpop.permute.xlu0 %5725
    %5727 = vrot.lane.b32.xlu0 %v4987, 96
    %v5728 = vpop.permute.xlu0 %5727
    %5729 = vrot.lane.b32.xlu0 %v4988, 96
    %v5730 = vpop.permute.xlu0 %5729
    %5731 = vrot.lane.b32.xlu0 %v4989, 96
    %v5732 = vpop.permute.xlu0 %5731
    %5733 = vrot.lane.b32.xlu0 %v4990, 96
    %v5734 = vpop.permute.xlu0 %5733
    %5735 = vrot.lane.b32.xlu0 %v4991, 96
    %v5736 = vpop.permute.xlu0 %5735
    %5737 = vrot.lane.b32.xlu0 %v4992, 96
    %v5738 = vpop.permute.xlu0 %5737
    %5739 = vrot.lane.b32.xlu0 %v4993, 96
    %v5740 = vpop.permute.xlu0 %5739
    %5741 = vrot.lane.b32.xlu0 %v4994, 96
    %v5742 = vpop.permute.xlu0 %5741
    %5743 = vrot.lane.b32.xlu0 %v4995, 96
    %v5744 = vpop.permute.xlu0 %5743
    %5745 = vrot.lane.b32.xlu0 %v4996, 96
    %v5746 = vpop.permute.xlu0 %5745
    %5747 = vrot.lane.b32.xlu0 %v4997, 96
    %v5748 = vpop.permute.xlu0 %5747
    %5749 = vrot.lane.b32.xlu0 %v4998, 96
    %v5750 = vpop.permute.xlu0 %5749
    %5751 = vrot.lane.b32.xlu0 %v4999, 96
    %v5752 = vpop.permute.xlu0 %5751
    %5753 = vrot.lane.b32.xlu0 %v5000, 96
    %v5754 = vpop.permute.xlu0 %5753
    %5755 = vrot.lane.b32.xlu0 %v5001, 96
    %v5756 = vpop.permute.xlu0 %5755
    %5757 = vrot.lane.b32.xlu0 %v5002, 96
    %v5758 = vpop.permute.xlu0 %5757
    %5759 = vrot.lane.b32.xlu0 %v5003, 96
    %v5760 = vpop.permute.xlu0 %5759
    %5761 = vrot.lane.b32.xlu0 %v5004, 96
    %v5762 = vpop.permute.xlu0 %5761
    %5763 = vrot.lane.b32.xlu0 %v5005, 96
    %v5764 = vpop.permute.xlu0 %5763
    %5765 = vrot.lane.b32.xlu0 %v5006, 96
    %v5766 = vpop.permute.xlu0 %5765
    %5767 = vrot.lane.b32.xlu0 %v5007, 96
    %v5768 = vpop.permute.xlu0 %5767
    %5769 = vrot.lane.b32.xlu0 %v5008, 96
    %v5770 = vpop.permute.xlu0 %5769
    %5771 = vrot.lane.b32.xlu0 %v5009, 96
    %v5772 = vpop.permute.xlu0 %5771
    %5773 = vrot.lane.b32.xlu0 %v5010, 96
    %v5774 = vpop.permute.xlu0 %5773
    %5775 = vrot.lane.b32.xlu0 %v5011, 96
    %v5776 = vpop.permute.xlu0 %5775
    %5777 = vrot.lane.b32.xlu0 %v5012, 96
    %v5778 = vpop.permute.xlu0 %5777
    %5779 = vrot.lane.b32.xlu0 %v5013, 96
    %v5780 = vpop.permute.xlu0 %5779
    %5781 = vrot.lane.b32.xlu0 %v5014, 96
    %v5782 = vpop.permute.xlu0 %5781
    %5783 = vrot.lane.b32.xlu0 %v5015, 96
    %v5784 = vpop.permute.xlu0 %5783
    %5817 = vrot.lane.b32.xlu0 %v5176, 32
    %v5818 = vpop.permute.xlu0 %5817
    %5819 = vrot.lane.b32.xlu0 %v5177, 32
    %v5820 = vpop.permute.xlu0 %5819
    %5821 = vrot.lane.b32.xlu0 %v5178, 32
    %v5822 = vpop.permute.xlu0 %5821
    %5823 = vrot.lane.b32.xlu0 %v5179, 32
    %v5824 = vpop.permute.xlu0 %5823
    %5825 = vrot.lane.b32.xlu0 %v5180, 32
    %v5826 = vpop.permute.xlu0 %5825
    %5827 = vrot.lane.b32.xlu0 %v5181, 32
    %v5828 = vpop.permute.xlu0 %5827
    %5829 = vrot.lane.b32.xlu0 %v5182, 32
    %v5830 = vpop.permute.xlu0 %5829
    %5831 = vrot.lane.b32.xlu0 %v5183, 32
    %v5832 = vpop.permute.xlu0 %5831
    %5833 = vrot.lane.b32.xlu0 %v5184, 32
    %v5834 = vpop.permute.xlu0 %5833
    %5835 = vrot.lane.b32.xlu0 %v5185, 32
    %v5836 = vpop.permute.xlu0 %5835
    %5837 = vrot.lane.b32.xlu0 %v5186, 32
    %v5838 = vpop.permute.xlu0 %5837
    %5839 = vrot.lane.b32.xlu0 %v5187, 32
    %v5840 = vpop.permute.xlu0 %5839
    %5841 = vrot.lane.b32.xlu0 %v5188, 32
    %v5842 = vpop.permute.xlu0 %5841
    %5843 = vrot.lane.b32.xlu0 %v5189, 32
    %v5844 = vpop.permute.xlu0 %5843
    %5845 = vrot.lane.b32.xlu0 %v5190, 32
    %v5846 = vpop.permute.xlu0 %5845
    %5847 = vrot.lane.b32.xlu0 %v5191, 32
    %v5848 = vpop.permute.xlu0 %5847
    %5849 = vrot.lane.b32.xlu0 %v5192, 32
    %v5850 = vpop.permute.xlu0 %5849
    %5851 = vrot.lane.b32.xlu0 %v5193, 32
    %v5852 = vpop.permute.xlu0 %5851
    %5853 = vrot.lane.b32.xlu0 %v5194, 32
    %v5854 = vpop.permute.xlu0 %5853
    %5855 = vrot.lane.b32.xlu0 %v5195, 32
    %v5856 = vpop.permute.xlu0 %5855
    %5857 = vrot.lane.b32.xlu0 %v5196, 32
    %v5858 = vpop.permute.xlu0 %5857
    %5859 = vrot.lane.b32.xlu0 %v5197, 32
    %v5860 = vpop.permute.xlu0 %5859
    %5861 = vrot.lane.b32.xlu0 %v5198, 32
    %v5862 = vpop.permute.xlu0 %5861
    %5863 = vrot.lane.b32.xlu0 %v5199, 32
    %v5864 = vpop.permute.xlu0 %5863
    %5865 = vrot.lane.b32.xlu0 %v5200, 32
    %v5866 = vpop.permute.xlu0 %5865
    %5867 = vrot.lane.b32.xlu0 %v5201, 32
    %v5868 = vpop.permute.xlu0 %5867
    %5869 = vrot.lane.b32.xlu0 %v5202, 32
    %v5870 = vpop.permute.xlu0 %5869
    %5871 = vrot.lane.b32.xlu0 %v5203, 32
    %v5872 = vpop.permute.xlu0 %5871
    %5873 = vrot.lane.b32.xlu0 %v5204, 32
    %v5874 = vpop.permute.xlu0 %5873
    %5875 = vrot.lane.b32.xlu0 %v5205, 32
    %v5876 = vpop.permute.xlu0 %5875
    %5877 = vrot.lane.b32.xlu0 %v5206, 32
    %v5878 = vpop.permute.xlu0 %5877
    %5879 = vrot.lane.b32.xlu0 %v5207, 32
    %v5880 = vpop.permute.xlu0 %5879
    %5913 = vrot.lane.b32.xlu0 %v5273, 64
    %v5914 = vpop.permute.xlu0 %5913
    %5915 = vrot.lane.b32.xlu0 %v5274, 64
    %v5916 = vpop.permute.xlu0 %5915
    %5917 = vrot.lane.b32.xlu0 %v5275, 64
    %v5918 = vpop.permute.xlu0 %5917
    %5919 = vrot.lane.b32.xlu0 %v5276, 64
    %v5920 = vpop.permute.xlu0 %5919
    %5921 = vrot.lane.b32.xlu0 %v5277, 64
    %v5922 = vpop.permute.xlu0 %5921
    %5923 = vrot.lane.b32.xlu0 %v5278, 64
    %v5924 = vpop.permute.xlu0 %5923
    %5925 = vrot.lane.b32.xlu0 %v5279, 64
    %v5926 = vpop.permute.xlu0 %5925
    %5927 = vrot.lane.b32.xlu0 %v5280, 64
    %v5928 = vpop.permute.xlu0 %5927
    %5929 = vrot.lane.b32.xlu0 %v5281, 64
    %v5930 = vpop.permute.xlu0 %5929
    %5931 = vrot.lane.b32.xlu0 %v5282, 64
    %v5932 = vpop.permute.xlu0 %5931
    %5933 = vrot.lane.b32.xlu0 %v5283, 64
    %v5934 = vpop.permute.xlu0 %5933
    %5935 = vrot.lane.b32.xlu0 %v5284, 64
    %v5936 = vpop.permute.xlu0 %5935
    %5937 = vrot.lane.b32.xlu0 %v5285, 64
    %v5938 = vpop.permute.xlu0 %5937
    %5939 = vrot.lane.b32.xlu0 %v5286, 64
    %v5940 = vpop.permute.xlu0 %5939
    %5941 = vrot.lane.b32.xlu0 %v5287, 64
    %v5942 = vpop.permute.xlu0 %5941
    %5943 = vrot.lane.b32.xlu0 %v5288, 64
    %v5944 = vpop.permute.xlu0 %5943
    %5945 = vrot.lane.b32.xlu0 %v5289, 64
    %v5946 = vpop.permute.xlu0 %5945
    %5947 = vrot.lane.b32.xlu0 %v5290, 64
    %v5948 = vpop.permute.xlu0 %5947
    %5949 = vrot.lane.b32.xlu0 %v5291, 64
    %v5950 = vpop.permute.xlu0 %5949
    %5951 = vrot.lane.b32.xlu0 %v5292, 64
    %v5952 = vpop.permute.xlu0 %5951
    %5953 = vrot.lane.b32.xlu0 %v5293, 64
    %v5954 = vpop.permute.xlu0 %5953
    %5955 = vrot.lane.b32.xlu0 %v5294, 64
    %v5956 = vpop.permute.xlu0 %5955
    %5957 = vrot.lane.b32.xlu0 %v5295, 64
    %v5958 = vpop.permute.xlu0 %5957
    %5959 = vrot.lane.b32.xlu0 %v5296, 64
    %v5960 = vpop.permute.xlu0 %5959
    %5961 = vrot.lane.b32.xlu0 %v5297, 64
    %v5962 = vpop.permute.xlu0 %5961
    %5963 = vrot.lane.b32.xlu0 %v5298, 64
    %v5964 = vpop.permute.xlu0 %5963
    %5965 = vrot.lane.b32.xlu0 %v5299, 64
    %v5966 = vpop.permute.xlu0 %5965
    %5967 = vrot.lane.b32.xlu0 %v5300, 64
    %v5968 = vpop.permute.xlu0 %5967
    %5969 = vrot.lane.b32.xlu0 %v5301, 64
    %v5970 = vpop.permute.xlu0 %5969
    %5971 = vrot.lane.b32.xlu0 %v5302, 64
    %v5972 = vpop.permute.xlu0 %5971
    %5973 = vrot.lane.b32.xlu0 %v5303, 64
    %v5974 = vpop.permute.xlu0 %5973
    %5975 = vrot.lane.b32.xlu0 %v5304, 64
    %v5976 = vpop.permute.xlu0 %5975
    %6009 = vrot.lane.b32.xlu0 %v5369, 96
    %v6010 = vpop.permute.xlu0 %6009
    %6011 = vrot.lane.b32.xlu0 %v5370, 96
    %v6012 = vpop.permute.xlu0 %6011
    %6013 = vrot.lane.b32.xlu0 %v5371, 96
    %v6014 = vpop.permute.xlu0 %6013
    %6015 = vrot.lane.b32.xlu0 %v5372, 96
    %v6016 = vpop.permute.xlu0 %6015
    %6017 = vrot.lane.b32.xlu0 %v5373, 96
    %v6018 = vpop.permute.xlu0 %6017
    %6019 = vrot.lane.b32.xlu0 %v5374, 96
    %v6020 = vpop.permute.xlu0 %6019
    %6021 = vrot.lane.b32.xlu0 %v5375, 96
    %v6022 = vpop.permute.xlu0 %6021
    %6023 = vrot.lane.b32.xlu0 %v5376, 96
    %v6024 = vpop.permute.xlu0 %6023
    %6025 = vrot.lane.b32.xlu0 %v5377, 96
    %v6026 = vpop.permute.xlu0 %6025
    %6027 = vrot.lane.b32.xlu0 %v5378, 96
    %v6028 = vpop.permute.xlu0 %6027
    %6029 = vrot.lane.b32.xlu0 %v5379, 96
    %v6030 = vpop.permute.xlu0 %6029
    %6031 = vrot.lane.b32.xlu0 %v5380, 96
    %v6032 = vpop.permute.xlu0 %6031
    %6033 = vrot.lane.b32.xlu0 %v5381, 96
    %v6034 = vpop.permute.xlu0 %6033
    %6035 = vrot.lane.b32.xlu0 %v5382, 96
    %v6036 = vpop.permute.xlu0 %6035
    %6037 = vrot.lane.b32.xlu0 %v5383, 96
    %v6038 = vpop.permute.xlu0 %6037
    %6039 = vrot.lane.b32.xlu0 %v5384, 96
    %v6040 = vpop.permute.xlu0 %6039
    %6041 = vrot.lane.b32.xlu0 %v5385, 96
    %v6042 = vpop.permute.xlu0 %6041
    %6043 = vrot.lane.b32.xlu0 %v5386, 96
    %v6044 = vpop.permute.xlu0 %6043
    %6045 = vrot.lane.b32.xlu0 %v5387, 96
    %v6046 = vpop.permute.xlu0 %6045
    %6047 = vrot.lane.b32.xlu0 %v5388, 96
    %v6048 = vpop.permute.xlu0 %6047
    %6049 = vrot.lane.b32.xlu0 %v5389, 96
    %v6050 = vpop.permute.xlu0 %6049
    %6051 = vrot.lane.b32.xlu0 %v5390, 96
    %v6052 = vpop.permute.xlu0 %6051
    %6053 = vrot.lane.b32.xlu0 %v5391, 96
    %v6054 = vpop.permute.xlu0 %6053
    %6055 = vrot.lane.b32.xlu0 %v5392, 96
    %v6056 = vpop.permute.xlu0 %6055
    %6057 = vrot.lane.b32.xlu0 %v5393, 96
    %v6058 = vpop.permute.xlu0 %6057
    %6059 = vrot.lane.b32.xlu0 %v5394, 96
    %v6060 = vpop.permute.xlu0 %6059
    %6061 = vrot.lane.b32.xlu0 %v5395, 96
    %v6062 = vpop.permute.xlu0 %6061
    %6063 = vrot.lane.b32.xlu0 %v5396, 96
    %v6064 = vpop.permute.xlu0 %6063
    %6065 = vrot.lane.b32.xlu0 %v5397, 96
    %v6066 = vpop.permute.xlu0 %6065
    %6067 = vrot.lane.b32.xlu0 %v5398, 96
    %v6068 = vpop.permute.xlu0 %6067
    %6069 = vrot.lane.b32.xlu0 %v5399, 96
    %v6070 = vpop.permute.xlu0 %6069
    %6071 = vrot.lane.b32.xlu0 %v5400, 96
    %v6072 = vpop.permute.xlu0 %6071
    %v6075 = vsel %vm218, %v4696, %v5530
    %v6078 = vsel %vm218, %v4697, %v5532
    %v6081 = vsel %vm218, %v4698, %v5534
    %v6084 = vsel %vm218, %v4699, %v5536
    %v6087 = vsel %vm218, %v4700, %v5538
    %v6090 = vsel %vm218, %v4701, %v5540
    %v6093 = vsel %vm218, %v4702, %v5542
    %v6096 = vsel %vm218, %v4703, %v5544
    %v6099 = vsel %vm218, %v4704, %v5546
    %v6102 = vsel %vm218, %v4705, %v5548
    %v6105 = vsel %vm218, %v4706, %v5550
    %v6108 = vsel %vm218, %v4707, %v5552
    %v6111 = vsel %vm218, %v4708, %v5554
    %v6114 = vsel %vm218, %v4709, %v5556
    %v6117 = vsel %vm218, %v4710, %v5558
    %v6120 = vsel %vm218, %v4711, %v5560
    %v6123 = vsel %vm218, %v4712, %v5562
    %v6126 = vsel %vm218, %v4713, %v5564
    %v6129 = vsel %vm218, %v4714, %v5566
    %v6132 = vsel %vm218, %v4715, %v5568
    %v6135 = vsel %vm218, %v4716, %v5570
    %v6138 = vsel %vm218, %v4717, %v5572
    %v6141 = vsel %vm218, %v4718, %v5574
    %v6144 = vsel %vm218, %v4719, %v5576
    %v6147 = vsel %vm218, %v4720, %v5578
    %v6150 = vsel %vm218, %v4721, %v5580
    %v6153 = vsel %vm218, %v4722, %v5582
    %v6156 = vsel %vm218, %v4723, %v5584
    %v6159 = vsel %vm218, %v4724, %v5586
    %v6162 = vsel %vm218, %v4725, %v5588
    %v6165 = vsel %vm218, %v4726, %v5590
    %v6168 = vsel %vm218, %v4727, %v5592
    %v6170 = vsel %vm43, %v6075, %v5626
    %v6172 = vsel %vm43, %v6078, %v5628
    %v6174 = vsel %vm43, %v6081, %v5630
    %v6176 = vsel %vm43, %v6084, %v5632
    %v6178 = vsel %vm43, %v6087, %v5634
    %v6180 = vsel %vm43, %v6090, %v5636
    %v6182 = vsel %vm43, %v6093, %v5638
    %v6184 = vsel %vm43, %v6096, %v5640
    %v6186 = vsel %vm43, %v6099, %v5642
    %v6188 = vsel %vm43, %v6102, %v5644
    %v6190 = vsel %vm43, %v6105, %v5646
    %v6192 = vsel %vm43, %v6108, %v5648
    %v6194 = vsel %vm43, %v6111, %v5650
    %v6196 = vsel %vm43, %v6114, %v5652
    %v6198 = vsel %vm43, %v6117, %v5654
    %v6200 = vsel %vm43, %v6120, %v5656
    %v6202 = vsel %vm43, %v6123, %v5658
    %v6204 = vsel %vm43, %v6126, %v5660
    %v6206 = vsel %vm43, %v6129, %v5662
    %v6208 = vsel %vm43, %v6132, %v5664
    %v6210 = vsel %vm43, %v6135, %v5666
    %v6212 = vsel %vm43, %v6138, %v5668
    %v6214 = vsel %vm43, %v6141, %v5670
    %v6216 = vsel %vm43, %v6144, %v5672
    %v6218 = vsel %vm43, %v6147, %v5674
    %v6220 = vsel %vm43, %v6150, %v5676
    %v6222 = vsel %vm43, %v6153, %v5678
    %v6224 = vsel %vm43, %v6156, %v5680
    %v6226 = vsel %vm43, %v6159, %v5682
    %v6228 = vsel %vm43, %v6162, %v5684
    %v6230 = vsel %vm43, %v6165, %v5686
    %v6232 = vsel %vm43, %v6168, %v5688
    %vm6233 = vcmask 785408
    %v6235 = vsel %vm6233, %v6170, %v5722
    %v6238 = vsel %vm6233, %v6172, %v5724
    %v6241 = vsel %vm6233, %v6174, %v5726
    %v6244 = vsel %vm6233, %v6176, %v5728
    %v6247 = vsel %vm6233, %v6178, %v5730
    %v6250 = vsel %vm6233, %v6180, %v5732
    %v6253 = vsel %vm6233, %v6182, %v5734
    %v6256 = vsel %vm6233, %v6184, %v5736
    %v6259 = vsel %vm6233, %v6186, %v5738
    %v6262 = vsel %vm6233, %v6188, %v5740
    %v6265 = vsel %vm6233, %v6190, %v5742
    %v6268 = vsel %vm6233, %v6192, %v5744
    %v6271 = vsel %vm6233, %v6194, %v5746
    %v6274 = vsel %vm6233, %v6196, %v5748
    %v6277 = vsel %vm6233, %v6198, %v5750
    %v6280 = vsel %vm6233, %v6200, %v5752
    %v6283 = vsel %vm6233, %v6202, %v5754
    %v6286 = vsel %vm6233, %v6204, %v5756
    %v6289 = vsel %vm6233, %v6206, %v5758
    %v6292 = vsel %vm6233, %v6208, %v5760
    %v6295 = vsel %vm6233, %v6210, %v5762
    %v6298 = vsel %vm6233, %v6212, %v5764
    %v6301 = vsel %vm6233, %v6214, %v5766
    %v6304 = vsel %vm6233, %v6216, %v5768
    %v6307 = vsel %vm6233, %v6218, %v5770
    %v6310 = vsel %vm6233, %v6220, %v5772
    %v6313 = vsel %vm6233, %v6222, %v5774
    %v6316 = vsel %vm6233, %v6224, %v5776
    %v6319 = vsel %vm6233, %v6226, %v5778
    %v6322 = vsel %vm6233, %v6228, %v5780
    %v6325 = vsel %vm6233, %v6230, %v5782
    %v6328 = vsel %vm6233, %v6232, %v5784
    %v6332 = vsel %vm218, %v5080, %v5818
    %v6335 = vsel %vm218, %v5081, %v5820
    %v6338 = vsel %vm218, %v5082, %v5822
    %v6341 = vsel %vm218, %v5083, %v5824
    %v6344 = vsel %vm218, %v5084, %v5826
    %v6347 = vsel %vm218, %v5085, %v5828
    %v6350 = vsel %vm218, %v5086, %v5830
    %v6353 = vsel %vm218, %v5087, %v5832
    %v6356 = vsel %vm218, %v5088, %v5834
    %v6359 = vsel %vm218, %v5089, %v5836
    %v6362 = vsel %vm218, %v5090, %v5838
    %v6365 = vsel %vm218, %v5091, %v5840
    %v6368 = vsel %vm218, %v5092, %v5842
    %v6371 = vsel %vm218, %v5093, %v5844
    %v6374 = vsel %vm218, %v5094, %v5846
    %v6377 = vsel %vm218, %v5095, %v5848
    %v6380 = vsel %vm218, %v5096, %v5850
    %v6383 = vsel %vm218, %v5097, %v5852
    %v6386 = vsel %vm218, %v5098, %v5854
    %v6389 = vsel %vm218, %v5099, %v5856
    %v6392 = vsel %vm218, %v5100, %v5858
    %v6395 = vsel %vm218, %v5101, %v5860
    %v6398 = vsel %vm218, %v5102, %v5862
    %v6401 = vsel %vm218, %v5103, %v5864
    %v6404 = vsel %vm218, %v5104, %v5866
    %v6407 = vsel %vm218, %v5105, %v5868
    %v6410 = vsel %vm218, %v5106, %v5870
    %v6413 = vsel %vm218, %v5107, %v5872
    %v6416 = vsel %vm218, %v5108, %v5874
    %v6419 = vsel %vm218, %v5109, %v5876
    %v6422 = vsel %vm218, %v5110, %v5878
    %v6425 = vsel %vm218, %v5111, %v5880
    %v6427 = vsel %vm43, %v6332, %v5914
    %v6429 = vsel %vm43, %v6335, %v5916
    %v6431 = vsel %vm43, %v6338, %v5918
    %v6433 = vsel %vm43, %v6341, %v5920
    %v6435 = vsel %vm43, %v6344, %v5922
    %v6437 = vsel %vm43, %v6347, %v5924
    %v6439 = vsel %vm43, %v6350, %v5926
    %v6441 = vsel %vm43, %v6353, %v5928
    %v6443 = vsel %vm43, %v6356, %v5930
    %v6445 = vsel %vm43, %v6359, %v5932
    %v6447 = vsel %vm43, %v6362, %v5934
    %v6449 = vsel %vm43, %v6365, %v5936
    %v6451 = vsel %vm43, %v6368, %v5938
    %v6453 = vsel %vm43, %v6371, %v5940
    %v6455 = vsel %vm43, %v6374, %v5942
    %v6457 = vsel %vm43, %v6377, %v5944
    %v6459 = vsel %vm43, %v6380, %v5946
    %v6461 = vsel %vm43, %v6383, %v5948
    %v6463 = vsel %vm43, %v6386, %v5950
    %v6465 = vsel %vm43, %v6389, %v5952
    %v6467 = vsel %vm43, %v6392, %v5954
    %v6469 = vsel %vm43, %v6395, %v5956
    %v6471 = vsel %vm43, %v6398, %v5958
    %v6473 = vsel %vm43, %v6401, %v5960
    %v6475 = vsel %vm43, %v6404, %v5962
    %v6477 = vsel %vm43, %v6407, %v5964
    %v6479 = vsel %vm43, %v6410, %v5966
    %v6481 = vsel %vm43, %v6413, %v5968
    %v6483 = vsel %vm43, %v6416, %v5970
    %v6485 = vsel %vm43, %v6419, %v5972
    %v6487 = vsel %vm43, %v6422, %v5974
    %v6489 = vsel %vm43, %v6425, %v5976
    %v6491 = vsel %vm6233, %v6427, %v6010
    %v6494 = vsel %vm6233, %v6429, %v6012
    %v6497 = vsel %vm6233, %v6431, %v6014
    %v6500 = vsel %vm6233, %v6433, %v6016
    %v6503 = vsel %vm6233, %v6435, %v6018
    %v6506 = vsel %vm6233, %v6437, %v6020
    %v6509 = vsel %vm6233, %v6439, %v6022
    %v6512 = vsel %vm6233, %v6441, %v6024
    %v6515 = vsel %vm6233, %v6443, %v6026
    %v6518 = vsel %vm6233, %v6445, %v6028
    %v6521 = vsel %vm6233, %v6447, %v6030
    %v6524 = vsel %vm6233, %v6449, %v6032
    %v6527 = vsel %vm6233, %v6451, %v6034
    %v6530 = vsel %vm6233, %v6453, %v6036
    %v6533 = vsel %vm6233, %v6455, %v6038
    %v6536 = vsel %vm6233, %v6457, %v6040
    %v6539 = vsel %vm6233, %v6459, %v6042
    %v6542 = vsel %vm6233, %v6461, %v6044
    %v6545 = vsel %vm6233, %v6463, %v6046
    %v6548 = vsel %vm6233, %v6465, %v6048
    %v6551 = vsel %vm6233, %v6467, %v6050
    %v6554 = vsel %vm6233, %v6469, %v6052
    %v6557 = vsel %vm6233, %v6471, %v6054
    %v6560 = vsel %vm6233, %v6473, %v6056
    %v6563 = vsel %vm6233, %v6475, %v6058
    %v6566 = vsel %vm6233, %v6477, %v6060
    %v6569 = vsel %vm6233, %v6479, %v6062
    %v6572 = vsel %vm6233, %v6481, %v6064
    %v6575 = vsel %vm6233, %v6483, %v6066
    %v6578 = vsel %vm6233, %v6485, %v6068
    %v6581 = vsel %vm6233, %v6487, %v6070
    %v6584 = vsel %vm6233, %v6489, %v6072
    %v6586 = vld [vmem:[%s4] sm:$0xf]
    %v6587 = vld [vmem:[%s4 + $0x4] sm:$0xf]
    %v6588 = vld [vmem:[%s4 + $0x8] sm:$0xf]
    %v6589 = vld [vmem:[%s4 + $0xc] sm:$0xf]
    %v6590 = vld [vmem:[%s4 + $0x10] sm:$0xf]
    %v6591 = vld [vmem:[%s4 + $0x14] sm:$0xf]
    %v6592 = vld [vmem:[%s4 + $0x18] sm:$0xf]
    %v6593 = vld [vmem:[%s4 + $0x1c] sm:$0xf]
    %v6594 = vld [vmem:[%s4 + $0x20] sm:$0xf]
    %v6595 = vld [vmem:[%s4 + $0x24] sm:$0xf]
    %v6596 = vld [vmem:[%s4 + $0x28] sm:$0xf]
    %v6597 = vld [vmem:[%s4 + $0x2c] sm:$0xf]
    %v6598 = vld [vmem:[%s4 + $0x30] sm:$0xf]
    %v6599 = vld [vmem:[%s4 + $0x34] sm:$0xf]
    %v6600 = vld [vmem:[%s4 + $0x38] sm:$0xf]
    %v6601 = vld [vmem:[%s4 + $0x3c] sm:$0xf]
    %v6602 = vld [vmem:[%s4 + $0x40] sm:$0xf]
    %v6603 = vld [vmem:[%s4 + $0x44] sm:$0xf]
    %v6604 = vld [vmem:[%s4 + $0x48] sm:$0xf]
    %v6605 = vld [vmem:[%s4 + $0x4c] sm:$0xf]
    %v6606 = vld [vmem:[%s4 + $0x50] sm:$0xf]
    %v6607 = vld [vmem:[%s4 + $0x54] sm:$0xf]
    %v6608 = vld [vmem:[%s4 + $0x58] sm:$0xf]
    %v6609 = vld [vmem:[%s4 + $0x5c] sm:$0xf]
    %v6610 = vld [vmem:[%s4 + $0x60] sm:$0xf]
    %v6611 = vld [vmem:[%s4 + $0x64] sm:$0xf]
    %v6612 = vld [vmem:[%s4 + $0x68] sm:$0xf]
    %v6613 = vld [vmem:[%s4 + $0x6c] sm:$0xf]
    %v6614 = vld [vmem:[%s4 + $0x70] sm:$0xf]
    %v6615 = vld [vmem:[%s4 + $0x74] sm:$0xf]
    %v6616 = vld [vmem:[%s4 + $0x78] sm:$0xf]
    %v6617 = vld [vmem:[%s4 + $0x7c] sm:$0xf]
    %v6618 = vld [vmem:[%s4 + $0x80] sm:$0xf]
    %v6619 = vld [vmem:[%s4 + $0x84] sm:$0xf]
    %v6620 = vld [vmem:[%s4 + $0x88] sm:$0xf]
    %v6621 = vld [vmem:[%s4 + $0x8c] sm:$0xf]
    %v6658 = vunpack.c.l.b16 %v6586
    %v6659 = vunpack.c.l.b16 %v6587
    %v6660 = vunpack.c.l.b16 %v6588
    %v6661 = vunpack.c.l.b16 %v6589
    %v6662 = vunpack.c.l.b16 %v6590
    %v6663 = vunpack.c.l.b16 %v6591
    %v6664 = vunpack.c.l.b16 %v6592
    %v6665 = vunpack.c.l.b16 %v6593
    %v6666 = vunpack.c.l.b16 %v6594
    %v6667 = vunpack.c.l.b16 %v6595
    %v6668 = vunpack.c.l.b16 %v6596
    %v6669 = vunpack.c.l.b16 %v6597
    %v6670 = vunpack.c.l.b16 %v6598
    %v6671 = vunpack.c.l.b16 %v6599
    %v6672 = vunpack.c.l.b16 %v6600
    %v6673 = vunpack.c.l.b16 %v6601
    %v6674 = vunpack.c.l.b16 %v6602
    %v6675 = vunpack.c.l.b16 %v6603
    %v6676 = vunpack.c.l.b16 %v6604
    %v6677 = vunpack.c.l.b16 %v6605
    %v6678 = vunpack.c.l.b16 %v6606
    %v6679 = vunpack.c.l.b16 %v6607
    %v6680 = vunpack.c.l.b16 %v6608
    %v6681 = vunpack.c.l.b16 %v6609
    %v6682 = vunpack.c.l.b16 %v6610
    %v6683 = vunpack.c.l.b16 %v6611
    %v6684 = vunpack.c.l.b16 %v6612
    %v6685 = vunpack.c.l.b16 %v6613
    %v6686 = vunpack.c.l.b16 %v6614
    %v6687 = vunpack.c.l.b16 %v6615
    %v6688 = vunpack.c.l.b16 %v6616
    %v6689 = vunpack.c.l.b16 %v6617
    %v6690 = vunpack.c.l.b16 %v6618
    %v6691 = vunpack.c.l.b16 %v6619
    %v6692 = vunpack.c.l.b16 %v6620
    %v6693 = vunpack.c.l.b16 %v6621
    %v6694 = vpack.c.b16 %v6659, %v6658
    %v6695 = vpack.c.b16 %v6661, %v6660
    %v6696 = vpack.c.b16 %v6663, %v6662
    %v6697 = vpack.c.b16 %v6665, %v6664
    %v6698 = vpack.c.b16 %v6667, %v6666
    %v6699 = vpack.c.b16 %v6669, %v6668
    %v6700 = vpack.c.b16 %v6671, %v6670
    %v6701 = vpack.c.b16 %v6673, %v6672
    %v6702 = vpack.c.b16 %v6675, %v6674
    %v6703 = vpack.c.b16 %v6677, %v6676
    %v6704 = vpack.c.b16 %v6679, %v6678
    %v6705 = vpack.c.b16 %v6681, %v6680
    %v6706 = vpack.c.b16 %v6683, %v6682
    %v6707 = vpack.c.b16 %v6685, %v6684
    %v6708 = vpack.c.b16 %v6687, %v6686
    %v6709 = vpack.c.b16 %v6689, %v6688
    %v6710 = vpack.c.b16 %v6691, %v6690
    %v6711 = vpack.c.b16 %v6693, %v6692
    %v6731 = vsel %vm218, %v5465, 0
    %v6734 = vsel %vm218, %v5466, 0
    %v6737 = vsel %vm218, %v5467, 0
    %v6740 = vsel %vm218, %v5468, 0
    %v6743 = vsel %vm218, %v5469, 0
    %v6746 = vsel %vm218, %v5470, 0
    %v6749 = vsel %vm218, %v5471, 0
    %v6752 = vsel %vm218, %v5472, 0
    %v6755 = vsel %vm218, %v5473, 0
    %v6758 = vsel %vm218, %v5474, 0
    %v6761 = vsel %vm218, %v5475, 0
    %v6764 = vsel %vm218, %v5476, 0
    %v6767 = vsel %vm218, %v5477, 0
    %v6770 = vsel %vm218, %v5478, 0
    %v6773 = vsel %vm218, %v5479, 0
    %v6776 = vsel %vm218, %v5480, 0
    %v6779 = vsel %vm218, %v5481, 0
    %v6782 = vsel %vm218, %v5482, 0
    %v6785 = vsel %vm218, %v5483, 0
    %v6788 = vsel %vm218, %v5484, 0
    %v6791 = vsel %vm218, %v5485, 0
    %v6794 = vsel %vm218, %v5486, 0
    %v6797 = vsel %vm218, %v5487, 0
    %v6800 = vsel %vm218, %v5488, 0
    %v6803 = vsel %vm218, %v5489, 0
    %v6806 = vsel %vm218, %v5490, 0
    %v6809 = vsel %vm218, %v5491, 0
    %v6812 = vsel %vm218, %v5492, 0
    %v6815 = vsel %vm218, %v5493, 0
    %v6818 = vsel %vm218, %v5494, 0
    %v6821 = vsel %vm218, %v5495, 0
    %v6824 = vsel %vm218, %v5496, 0
    %6826 = vmatprep.subr.bf16.mxu0 0
    %6827 = vmatpush1.bf16.msra.mxu0 %v6694
    %6828 = vmatprep.subr.bf16.mxu0 0
    %6829 = vmatpush1.bf16.msra.mxu0 %v6695
    %6830 = vmatprep.subr.bf16.mxu0 0
    %6831 = vmatpush1.bf16.msra.mxu0 %v6696
    %6832 = vmatprep.subr.bf16.mxu0 0
    %6833 = vmatpush1.bf16.msra.mxu0 %v6697
    %6834 = vmatprep.subr.bf16.mxu0 0
    %6835 = vmatpush1.bf16.msra.mxu0 %v6698
    %6836 = vmatprep.subr.bf16.mxu0 0
    %6837 = vmatpush1.bf16.msra.mxu0 %v6699
    %6838 = vmatprep.subr.bf16.mxu0 0
    %6839 = vmatpush1.bf16.msra.mxu0 %v6700
    %6840 = vmatprep.subr.bf16.mxu0 0
    %6841 = vmatpush1.bf16.msra.mxu0 %v6701
    %6842 = vmatprep.subr.bf16.mxu0 0
    %6843 = vmatpush1.bf16.msra.mxu0 %v6702
    %6844 = vmatprep.subr.bf16.mxu0 0
    %6845 = vmatpush1.bf16.msra.mxu0 %v6703
    %6846 = vmatprep.subr.bf16.mxu0 0
    %6847 = vmatpush1.bf16.msra.mxu0 %v6704
    %6848 = vmatprep.subr.bf16.mxu0 0
    %6849 = vmatpush1.bf16.msra.mxu0 %v6705
    %6850 = vmatprep.subr.bf16.mxu0 0
    %6851 = vmatpush1.bf16.msra.mxu0 %v6706
    %6852 = vmatprep.subr.bf16.mxu0 0
    %6853 = vmatpush1.bf16.msra.mxu0 %v6707
    %6854 = vmatprep.subr.bf16.mxu0 0
    %6855 = vmatpush1.bf16.msra.mxu0 %v6708
    %6856 = vmatprep.subr.bf16.mxu0 0
    %6857 = vmatpush1.bf16.msra.mxu0 %v6709
    %6858 = vmatprep.mubr.bf16.mxu0 %v6491
    %6859 = vmatmul.mubr.bf16.gmra.mrb[0].mxu0 %v6235
    %v6860 = vpop.f32.mrb[0].mxu0
    %v6861 = vadd.f32 0.0, %v6860
    %v6862 = vpop.f32.mrb[0].mxu0
    %v6863 = vpop.f32.mrb[0].mxu0
    %v6864 = vadd.f32 0.0, %v6863
    %v6865 = vpop.f32.mrb[0].mxu0
    %6866 = vmatprep.mubr.bf16.mxu0 %v6494
    %6867 = vmatmul.mubr.bf16.gmra.mrb[0].mxu0 %v6238
    %v6868 = vpop.f32.mrb[0].mxu0
    %v6869 = vadd.f32 0.0, %v6868
    %v6870 = vpop.f32.mrb[0].mxu0
    %v6871 = vpop.f32.mrb[0].mxu0
    %v6872 = vadd.f32 0.0, %v6871
    %v6873 = vpop.f32.mrb[0].mxu0
    %6874 = vmatprep.mubr.bf16.mxu0 %v6497
    %6875 = vmatmul.mubr.bf16.gmra.mrb[0].mxu0 %v6241
    %v6876 = vpop.f32.mrb[0].mxu0
    %v6877 = vadd.f32 0.0, %v6876
    %v6878 = vpop.f32.mrb[0].mxu0
    %v6879 = vpop.f32.mrb[0].mxu0
    %v6880 = vadd.f32 0.0, %v6879
    %v6881 = vpop.f32.mrb[0].mxu0
    %6882 = vmatprep.mubr.bf16.mxu0 %v6500
    %6883 = vmatmul.mubr.bf16.gmra.mrb[0].mxu0 %v6244
    %v6884 = vpop.f32.mrb[0].mxu0
    %v6885 = vadd.f32 0.0, %v6884
    %v6886 = vpop.f32.mrb[0].mxu0
    %v6887 = vpop.f32.mrb[0].mxu0
    %v6888 = vadd.f32 0.0, %v6887
    %v6889 = vpop.f32.mrb[0].mxu0
    %6890 = vmatprep.mubr.bf16.mxu0 %v6503
    %6891 = vmatmul.mubr.bf16.gmra.mrb[0].mxu0 %v6247
    %v6892 = vpop.f32.mrb[0].mxu0
    %v6893 = vadd.f32 0.0, %v6892
    %v6894 = vpop.f32.mrb[0].mxu0
    %v6895 = vpop.f32.mrb[0].mxu0
    %v6896 = vadd.f32 0.0, %v6895
    %v6897 = vpop.f32.mrb[0].mxu0
    %6898 = vmatprep.mubr.bf16.mxu0 %v6506
    %6899 = vmatmul.mubr.bf16.gmra.mrb[0].mxu0 %v6250
    %v6900 = vpop.f32.mrb[0].mxu0
    %v6901 = vadd.f32 0.0, %v6900
    %v6902 = vpop.f32.mrb[0].mxu0
    %v6903 = vpop.f32.mrb[0].mxu0
    %v6904 = vadd.f32 0.0, %v6903
    %v6905 = vpop.f32.mrb[0].mxu0
    %6906 = vmatprep.mubr.bf16.mxu0 %v6509
    %6907 = vmatmul.mubr.bf16.gmra.mrb[0].mxu0 %v6253
    %v6908 = vpop.f32.mrb[0].mxu0
    %v6909 = vadd.f32 0.0, %v6908
    %v6910 = vpop.f32.mrb[0].mxu0
    %v6911 = vpop.f32.mrb[0].mxu0
    %v6912 = vadd.f32 0.0, %v6911
    %v6913 = vpop.f32.mrb[0].mxu0
    %6914 = vmatprep.mubr.bf16.mxu0 %v6512
    %6915 = vmatmul.mubr.bf16.gmra.mrb[0].mxu0 %v6256
    %v6916 = vpop.f32.mrb[0].mxu0
    %v6917 = vadd.f32 0.0, %v6916
    %v6918 = vpop.f32.mrb[0].mxu0
    %v6919 = vpop.f32.mrb[0].mxu0
    %v6920 = vadd.f32 0.0, %v6919
    %v6921 = vpop.f32.mrb[0].mxu0
    %6922 = vmatprep.mubr.bf16.mxu0 %v6515
    %6923 = vmatmul.mubr.bf16.gmra.mrb[0].mxu0 %v6259
    %v6924 = vpop.f32.mrb[0].mxu0
    %v6925 = vadd.f32 0.0, %v6924
    %v6926 = vpop.f32.mrb[0].mxu0
    %v6927 = vpop.f32.mrb[0].mxu0
    %v6928 = vadd.f32 0.0, %v6927
    %v6929 = vpop.f32.mrb[0].mxu0
    %6930 = vmatprep.mubr.bf16.mxu0 %v6518
    %6931 = vmatmul.mubr.bf16.gmra.mrb[0].mxu0 %v6262
    %v6932 = vpop.f32.mrb[0].mxu0
    %v6933 = vadd.f32 0.0, %v6932
    %v6934 = vpop.f32.mrb[0].mxu0
    %v6935 = vpop.f32.mrb[0].mxu0
    %v6936 = vadd.f32 0.0, %v6935
    %v6937 = vpop.f32.mrb[0].mxu0
    %6938 = vmatprep.mubr.bf16.mxu0 %v6521
    %6939 = vmatmul.mubr.bf16.gmra.mrb[0].mxu0 %v6265
    %v6940 = vpop.f32.mrb[0].mxu0
    %v6941 = vadd.f32 0.0, %v6940
    %v6942 = vpop.f32.mrb[0].mxu0
    %v6943 = vpop.f32.mrb[0].mxu0
    %v6944 = vadd.f32 0.0, %v6943
    %v6945 = vpop.f32.mrb[0].mxu0
    %6946 = vmatprep.mubr.bf16.mxu0 %v6524
    %6947 = vmatmul.mubr.bf16.gmra.mrb[0].mxu0 %v6268
    %v6948 = vpop.f32.mrb[0].mxu0
    %v6949 = vadd.f32 0.0, %v6948
    %v6950 = vpop.f32.mrb[0].mxu0
    %v6951 = vpop.f32.mrb[0].mxu0
    %v6952 = vadd.f32 0.0, %v6951
    %v6953 = vpop.f32.mrb[0].mxu0
    %6954 = vmatprep.mubr.bf16.mxu0 %v6527
    %6955 = vmatmul.mubr.bf16.gmra.mrb[0].mxu0 %v6271
    %v6956 = vpop.f32.mrb[0].mxu0
    %v6957 = vadd.f32 0.0, %v6956
    %v6958 = vpop.f32.mrb[0].mxu0
    %v6959 = vpop.f32.mrb[0].mxu0
    %v6960 = vadd.f32 0.0, %v6959
    %v6961 = vpop.f32.mrb[0].mxu0
    %6962 = vmatprep.mubr.bf16.mxu0 %v6530
    %6963 = vmatmul.mubr.bf16.gmra.mrb[0].mxu0 %v6274
    %v6964 = vpop.f32.mrb[0].mxu0
    %v6965 = vadd.f32 0.0, %v6964
    %v6966 = vpop.f32.mrb[0].mxu0
    %v6967 = vpop.f32.mrb[0].mxu0
    %v6968 = vadd.f32 0.0, %v6967
    %v6969 = vpop.f32.mrb[0].mxu0
    %6970 = vmatprep.mubr.bf16.mxu0 %v6533
    %6971 = vmatmul.mubr.bf16.gmra.mrb[0].mxu0 %v6277
    %v6972 = vpop.f32.mrb[0].mxu0
    %v6973 = vadd.f32 0.0, %v6972
    %v6974 = vpop.f32.mrb[0].mxu0
    %v6975 = vpop.f32.mrb[0].mxu0
    %v6976 = vadd.f32 0.0, %v6975
    %v6977 = vpop.f32.mrb[0].mxu0
    %6978 = vmatprep.mubr.bf16.mxu0 %v6536
    %6979 = vmatmul.mubr.bf16.gmra.mrb[0].mxu0 %v6280
    %v6980 = vpop.f32.mrb[0].mxu0
    %v6981 = vadd.f32 0.0, %v6980
    %v6982 = vpop.f32.mrb[0].mxu0
    %v6983 = vpop.f32.mrb[0].mxu0
    %v6984 = vadd.f32 0.0, %v6983
    %v6985 = vpop.f32.mrb[0].mxu0
    %6986 = vmatprep.mubr.bf16.mxu0 %v6539
    %6987 = vmatmul.mubr.bf16.gmra.mrb[0].mxu0 %v6283
    %v6988 = vpop.f32.mrb[0].mxu0
    %v6989 = vadd.f32 0.0, %v6988
    %v6990 = vpop.f32.mrb[0].mxu0
    %v6991 = vpop.f32.mrb[0].mxu0
    %v6992 = vadd.f32 0.0, %v6991
    %v6993 = vpop.f32.mrb[0].mxu0
    %6994 = vmatprep.mubr.bf16.mxu0 %v6542
    %6995 = vmatmul.mubr.bf16.gmra.mrb[0].mxu0 %v6286
    %v6996 = vpop.f32.mrb[0].mxu0
    %v6997 = vadd.f32 0.0, %v6996
    %v6998 = vpop.f32.mrb[0].mxu0
    %v6999 = vpop.f32.mrb[0].mxu0
    %v7000 = vadd.f32 0.0, %v6999
    %v7001 = vpop.f32.mrb[0].mxu0
    %7002 = vmatprep.mubr.bf16.mxu0 %v6545
    %7003 = vmatmul.mubr.bf16.gmra.mrb[0].mxu0 %v6289
    %v7004 = vpop.f32.mrb[0].mxu0
    %v7005 = vadd.f32 0.0, %v7004
    %v7006 = vpop.f32.mrb[0].mxu0
    %v7007 = vpop.f32.mrb[0].mxu0
    %v7008 = vadd.f32 0.0, %v7007
    %v7009 = vpop.f32.mrb[0].mxu0
    %7010 = vmatprep.mubr.bf16.mxu0 %v6548
    %7011 = vmatmul.mubr.bf16.gmra.mrb[0].mxu0 %v6292
    %v7012 = vpop.f32.mrb[0].mxu0
    %v7013 = vadd.f32 0.0, %v7012
    %v7014 = vpop.f32.mrb[0].mxu0
    %v7015 = vpop.f32.mrb[0].mxu0
    %v7016 = vadd.f32 0.0, %v7015
    %v7017 = vpop.f32.mrb[0].mxu0
    %7018 = vmatprep.mubr.bf16.mxu0 %v6551
    %7019 = vmatmul.mubr.bf16.gmra.mrb[0].mxu0 %v6295
    %v7020 = vpop.f32.mrb[0].mxu0
    %v7021 = vadd.f32 0.0, %v7020
    %v7022 = vpop.f32.mrb[0].mxu0
    %v7023 = vpop.f32.mrb[0].mxu0
    %v7024 = vadd.f32 0.0, %v7023
    %v7025 = vpop.f32.mrb[0].mxu0
    %7026 = vmatprep.mubr.bf16.mxu0 %v6554
    %7027 = vmatmul.mubr.bf16.gmra.mrb[0].mxu0 %v6298
    %v7028 = vpop.f32.mrb[0].mxu0
    %v7029 = vadd.f32 0.0, %v7028
    %v7030 = vpop.f32.mrb[0].mxu0
    %v7031 = vpop.f32.mrb[0].mxu0
    %v7032 = vadd.f32 0.0, %v7031
    %v7033 = vpop.f32.mrb[0].mxu0
    %7034 = vmatprep.mubr.bf16.mxu0 %v6557
    %7035 = vmatmul.mubr.bf16.gmra.mrb[0].mxu0 %v6301
    %v7036 = vpop.f32.mrb[0].mxu0
    %v7037 = vadd.f32 0.0, %v7036
    %v7038 = vpop.f32.mrb[0].mxu0
    %v7039 = vpop.f32.mrb[0].mxu0
    %v7040 = vadd.f32 0.0, %v7039
    %v7041 = vpop.f32.mrb[0].mxu0
    %7042 = vmatprep.mubr.bf16.mxu0 %v6560
    %7043 = vmatmul.mubr.bf16.gmra.mrb[0].mxu0 %v6304
    %v7044 = vpop.f32.mrb[0].mxu0
    %v7045 = vadd.f32 0.0, %v7044
    %v7046 = vpop.f32.mrb[0].mxu0
    %v7047 = vpop.f32.mrb[0].mxu0
    %v7048 = vadd.f32 0.0, %v7047
    %v7049 = vpop.f32.mrb[0].mxu0
    %7050 = vmatprep.mubr.bf16.mxu0 %v6563
    %7051 = vmatmul.mubr.bf16.gmra.mrb[0].mxu0 %v6307
    %v7052 = vpop.f32.mrb[0].mxu0
    %v7053 = vadd.f32 0.0, %v7052
    %v7054 = vpop.f32.mrb[0].mxu0
    %v7055 = vpop.f32.mrb[0].mxu0
    %v7056 = vadd.f32 0.0, %v7055
    %v7057 = vpop.f32.mrb[0].mxu0
    %7058 = vmatprep.mubr.bf16.mxu0 %v6566
    %7059 = vmatmul.mubr.bf16.gmra.mrb[0].mxu0 %v6310
    %v7060 = vpop.f32.mrb[0].mxu0
    %v7061 = vadd.f32 0.0, %v7060
    %v7062 = vpop.f32.mrb[0].mxu0
    %v7063 = vpop.f32.mrb[0].mxu0
    %v7064 = vadd.f32 0.0, %v7063
    %v7065 = vpop.f32.mrb[0].mxu0
    %7066 = vmatprep.mubr.bf16.mxu0 %v6569
    %7067 = vmatmul.mubr.bf16.gmra.mrb[0].mxu0 %v6313
    %v7068 = vpop.f32.mrb[0].mxu0
    %v7069 = vadd.f32 0.0, %v7068
    %v7070 = vpop.f32.mrb[0].mxu0
    %v7071 = vpop.f32.mrb[0].mxu0
    %v7072 = vadd.f32 0.0, %v7071
    %v7073 = vpop.f32.mrb[0].mxu0
    %7074 = vmatprep.mubr.bf16.mxu0 %v6572
    %7075 = vmatmul.mubr.bf16.gmra.mrb[0].mxu0 %v6316
    %v7076 = vpop.f32.mrb[0].mxu0
    %v7077 = vadd.f32 0.0, %v7076
    %v7078 = vpop.f32.mrb[0].mxu0
    %v7079 = vpop.f32.mrb[0].mxu0
    %v7080 = vadd.f32 0.0, %v7079
    %v7081 = vpop.f32.mrb[0].mxu0
    %7082 = vmatprep.mubr.bf16.mxu0 %v6575
    %7083 = vmatmul.mubr.bf16.gmra.mrb[0].mxu0 %v6319
    %v7084 = vpop.f32.mrb[0].mxu0
    %v7085 = vadd.f32 0.0, %v7084
    %v7086 = vpop.f32.mrb[0].mxu0
    %v7087 = vpop.f32.mrb[0].mxu0
    %v7088 = vadd.f32 0.0, %v7087
    %v7089 = vpop.f32.mrb[0].mxu0
    %7090 = vmatprep.mubr.bf16.mxu0 %v6578
    %7091 = vmatmul.mubr.bf16.gmra.mrb[0].mxu0 %v6322
    %v7092 = vpop.f32.mrb[0].mxu0
    %v7093 = vadd.f32 0.0, %v7092
    %v7094 = vpop.f32.mrb[0].mxu0
    %v7095 = vpop.f32.mrb[0].mxu0
    %v7096 = vadd.f32 0.0, %v7095
    %v7097 = vpop.f32.mrb[0].mxu0
    %7098 = vmatprep.mubr.bf16.mxu0 %v6581
    %7099 = vmatmul.mubr.bf16.gmra.mrb[0].mxu0 %v6325
    %v7100 = vpop.f32.mrb[0].mxu0
    %v7101 = vadd.f32 0.0, %v7100
    %v7102 = vpop.f32.mrb[0].mxu0
    %v7103 = vpop.f32.mrb[0].mxu0
    %v7104 = vadd.f32 0.0, %v7103
    %v7105 = vpop.f32.mrb[0].mxu0
    %7106 = vmatprep.mubr.bf16.mxu0 %v6584
    %7107 = vmatmul.mubr.bf16.gmra.mrb[0].mxu0 %v6328
    %v7108 = vpop.f32.mrb[0].mxu0
    %v7109 = vadd.f32 0.0, %v7108
    %v7110 = vpop.f32.mrb[0].mxu0
    %v7111 = vpop.f32.mrb[0].mxu0
    %v7112 = vadd.f32 0.0, %v7111
    %v7113 = vpop.f32.mrb[0].mxu0
    %7114 = vdwg.mxu0
    %7115 = vmatprep.subr.bf16.mxu0 0
    %7116 = vmatpush1.bf16.msra.mxu0 %v6710
    %7117 = vmatprep.subr.bf16.mxu0 0
    %7118 = vmatpush1.bf16.msra.mxu0 %v6711
    %7119 = vmatprep.subr.bf16.mxu0 0
    %7120 = vmatpush1.bf16.msra.mxu0 0
    %7121 = vmatprep.subr.bf16.mxu0 0
    %7122 = vmatpush1.bf16.msra.mxu0 0
    %7123 = vmatprep.subr.bf16.mxu0 0
    %7124 = vmatpush1.bf16.msra.mxu0 0
    %7125 = vmatprep.subr.bf16.mxu0 0
    %7126 = vmatpush1.bf16.msra.mxu0 0
    %7127 = vmatprep.subr.bf16.mxu0 0
    %7128 = vmatpush1.bf16.msra.mxu0 0
    %7129 = vmatprep.subr.bf16.mxu0 0
    %7130 = vmatpush1.bf16.msra.mxu0 0
    %7131 = vmatprep.subr.bf16.mxu0 0
    %7132 = vmatpush1.bf16.msra.mxu0 0
    %7133 = vmatprep.subr.bf16.mxu0 0
    %7134 = vmatpush1.bf16.msra.mxu0 0
    %7135 = vmatprep.subr.bf16.mxu0 0
    %7136 = vmatpush1.bf16.msra.mxu0 0
    %7137 = vmatprep.subr.bf16.mxu0 0
    %7138 = vmatpush1.bf16.msra.mxu0 0
    %7139 = vmatprep.subr.bf16.mxu0 0
    %7140 = vmatpush1.bf16.msra.mxu0 0
    %7141 = vmatprep.subr.bf16.mxu0 0
    %7142 = vmatpush1.bf16.msra.mxu0 0
    %7143 = vmatprep.subr.bf16.mxu0 0
    %7144 = vmatpush1.bf16.msra.mxu0 0
    %7145 = vmatprep.subr.bf16.mxu0 0
    %7146 = vmatpush1.bf16.msra.mxu0 0
    %7147 = vmatprep.mubr.bf16.mxu0 0
    %7148 = vmatmul.mubr.bf16.gmra.mrb[0].mxu0 %v6731
    %v7149 = vpop.f32.mrb[0].mxu0
    %v7150 = vadd.f32 %v6861, %v7149
    %v7151 = vpop.f32.mrb[0].mxu0
    %v7152 = vpop.f32.mrb[0].mxu0
    %v7153 = vadd.f32 %v6864, %v7152
    %v7154 = vpop.f32.mrb[0].mxu0
    %7155 = vmatprep.mubr.bf16.mxu0 0
    %7156 = vmatmul.mubr.bf16.gmra.mrb[0].mxu0 %v6734
    %v7157 = vpop.f32.mrb[0].mxu0
    %v7158 = vadd.f32 %v6869, %v7157
    %v7159 = vpop.f32.mrb[0].mxu0
    %v7160 = vpop.f32.mrb[0].mxu0
    %v7161 = vadd.f32 %v6872, %v7160
    %v7162 = vpop.f32.mrb[0].mxu0
    %7163 = vmatprep.mubr.bf16.mxu0 0
    %7164 = vmatmul.mubr.bf16.gmra.mrb[0].mxu0 %v6737
    %v7165 = vpop.f32.mrb[0].mxu0
    %v7166 = vadd.f32 %v6877, %v7165
    %v7167 = vpop.f32.mrb[0].mxu0
    %v7168 = vpop.f32.mrb[0].mxu0
    %v7169 = vadd.f32 %v6880, %v7168
    %v7170 = vpop.f32.mrb[0].mxu0
    %7171 = vmatprep.mubr.bf16.mxu0 0
    %7172 = vmatmul.mubr.bf16.gmra.mrb[0].mxu0 %v6740
    %v7173 = vpop.f32.mrb[0].mxu0
    %v7174 = vadd.f32 %v6885, %v7173
    %v7175 = vpop.f32.mrb[0].mxu0
    %v7176 = vpop.f32.mrb[0].mxu0
    %v7177 = vadd.f32 %v6888, %v7176
    %v7178 = vpop.f32.mrb[0].mxu0
    %7179 = vmatprep.mubr.bf16.mxu0 0
    %7180 = vmatmul.mubr.bf16.gmra.mrb[0].mxu0 %v6743
    %v7181 = vpop.f32.mrb[0].mxu0
    %v7182 = vadd.f32 %v6893, %v7181
    %v7183 = vpop.f32.mrb[0].mxu0
    %v7184 = vpop.f32.mrb[0].mxu0
    %v7185 = vadd.f32 %v6896, %v7184
    %v7186 = vpop.f32.mrb[0].mxu0
    %7187 = vmatprep.mubr.bf16.mxu0 0
    %7188 = vmatmul.mubr.bf16.gmra.mrb[0].mxu0 %v6746
    %v7189 = vpop.f32.mrb[0].mxu0
    %v7190 = vadd.f32 %v6901, %v7189
    %v7191 = vpop.f32.mrb[0].mxu0
    %v7192 = vpop.f32.mrb[0].mxu0
    %v7193 = vadd.f32 %v6904, %v7192
    %v7194 = vpop.f32.mrb[0].mxu0
    %7195 = vmatprep.mubr.bf16.mxu0 0
    %7196 = vmatmul.mubr.bf16.gmra.mrb[0].mxu0 %v6749
    %v7197 = vpop.f32.mrb[0].mxu0
    %v7198 = vadd.f32 %v6909, %v7197
    %v7199 = vpop.f32.mrb[0].mxu0
    %v7200 = vpop.f32.mrb[0].mxu0
    %v7201 = vadd.f32 %v6912, %v7200
    %v7202 = vpop.f32.mrb[0].mxu0
    %7203 = vmatprep.mubr.bf16.mxu0 0
    %7204 = vmatmul.mubr.bf16.gmra.mrb[0].mxu0 %v6752
    %v7205 = vpop.f32.mrb[0].mxu0
    %v7206 = vadd.f32 %v6917, %v7205
    %v7207 = vpop.f32.mrb[0].mxu0
    %v7208 = vpop.f32.mrb[0].mxu0
    %v7209 = vadd.f32 %v6920, %v7208
    %v7210 = vpop.f32.mrb[0].mxu0
    %7211 = vmatprep.mubr.bf16.mxu0 0
    %7212 = vmatmul.mubr.bf16.gmra.mrb[0].mxu0 %v6755
    %v7213 = vpop.f32.mrb[0].mxu0
    %v7214 = vadd.f32 %v6925, %v7213
    %v7215 = vpop.f32.mrb[0].mxu0
    %v7216 = vpop.f32.mrb[0].mxu0
    %v7217 = vadd.f32 %v6928, %v7216
    %v7218 = vpop.f32.mrb[0].mxu0
    %7219 = vmatprep.mubr.bf16.mxu0 0
    %7220 = vmatmul.mubr.bf16.gmra.mrb[0].mxu0 %v6758
    %v7221 = vpop.f32.mrb[0].mxu0
    %v7222 = vadd.f32 %v6933, %v7221
    %v7223 = vpop.f32.mrb[0].mxu0
    %v7224 = vpop.f32.mrb[0].mxu0
    %v7225 = vadd.f32 %v6936, %v7224
    %v7226 = vpop.f32.mrb[0].mxu0
    %7227 = vmatprep.mubr.bf16.mxu0 0
    %7228 = vmatmul.mubr.bf16.gmra.mrb[0].mxu0 %v6761
    %v7229 = vpop.f32.mrb[0].mxu0
    %v7230 = vadd.f32 %v6941, %v7229
    %v7231 = vpop.f32.mrb[0].mxu0
    %v7232 = vpop.f32.mrb[0].mxu0
    %v7233 = vadd.f32 %v6944, %v7232
    %v7234 = vpop.f32.mrb[0].mxu0
    %7235 = vmatprep.mubr.bf16.mxu0 0
    %7236 = vmatmul.mubr.bf16.gmra.mrb[0].mxu0 %v6764
    %v7237 = vpop.f32.mrb[0].mxu0
    %v7238 = vadd.f32 %v6949, %v7237
    %v7239 = vpop.f32.mrb[0].mxu0
    %v7240 = vpop.f32.mrb[0].mxu0
    %v7241 = vadd.f32 %v6952, %v7240
    %v7242 = vpop.f32.mrb[0].mxu0
    %7243 = vmatprep.mubr.bf16.mxu0 0
    %7244 = vmatmul.mubr.bf16.gmra.mrb[0].mxu0 %v6767
    %v7245 = vpop.f32.mrb[0].mxu0
    %v7246 = vadd.f32 %v6957, %v7245
    %v7247 = vpop.f32.mrb[0].mxu0
    %v7248 = vpop.f32.mrb[0].mxu0
    %v7249 = vadd.f32 %v6960, %v7248
    %v7250 = vpop.f32.mrb[0].mxu0
    %7251 = vmatprep.mubr.bf16.mxu0 0
    %7252 = vmatmul.mubr.bf16.gmra.mrb[0].mxu0 %v6770
    %v7253 = vpop.f32.mrb[0].mxu0
    %v7254 = vadd.f32 %v6965, %v7253
    %v7255 = vpop.f32.mrb[0].mxu0
    %v7256 = vpop.f32.mrb[0].mxu0
    %v7257 = vadd.f32 %v6968, %v7256
    %v7258 = vpop.f32.mrb[0].mxu0
    %7259 = vmatprep.mubr.bf16.mxu0 0
    %7260 = vmatmul.mubr.bf16.gmra.mrb[0].mxu0 %v6773
    %v7261 = vpop.f32.mrb[0].mxu0
    %v7262 = vadd.f32 %v6973, %v7261
    %v7263 = vpop.f32.mrb[0].mxu0
    %v7264 = vpop.f32.mrb[0].mxu0
    %v7265 = vadd.f32 %v6976, %v7264
    %v7266 = vpop.f32.mrb[0].mxu0
    %7267 = vmatprep.mubr.bf16.mxu0 0
    %7268 = vmatmul.mubr.bf16.gmra.mrb[0].mxu0 %v6776
    %v7269 = vpop.f32.mrb[0].mxu0
    %v7270 = vadd.f32 %v6981, %v7269
    %v7271 = vpop.f32.mrb[0].mxu0
    %v7272 = vpop.f32.mrb[0].mxu0
    %v7273 = vadd.f32 %v6984, %v7272
    %v7274 = vpop.f32.mrb[0].mxu0
    %7275 = vmatprep.mubr.bf16.mxu0 0
    %7276 = vmatmul.mubr.bf16.gmra.mrb[0].mxu0 %v6779
    %v7277 = vpop.f32.mrb[0].mxu0
    %v7278 = vadd.f32 %v6989, %v7277
    %v7279 = vpop.f32.mrb[0].mxu0
    %v7280 = vpop.f32.mrb[0].mxu0
    %v7281 = vadd.f32 %v6992, %v7280
    %v7282 = vpop.f32.mrb[0].mxu0
    %7283 = vmatprep.mubr.bf16.mxu0 0
    %7284 = vmatmul.mubr.bf16.gmra.mrb[0].mxu0 %v6782
    %v7285 = vpop.f32.mrb[0].mxu0
    %v7286 = vadd.f32 %v6997, %v7285
    %v7287 = vpop.f32.mrb[0].mxu0
    %v7288 = vpop.f32.mrb[0].mxu0
    %v7289 = vadd.f32 %v7000, %v7288
    %v7290 = vpop.f32.mrb[0].mxu0
    %7291 = vmatprep.mubr.bf16.mxu0 0
    %7292 = vmatmul.mubr.bf16.gmra.mrb[0].mxu0 %v6785
    %v7293 = vpop.f32.mrb[0].mxu0
    %v7294 = vadd.f32 %v7005, %v7293
    %v7295 = vpop.f32.mrb[0].mxu0
    %v7296 = vpop.f32.mrb[0].mxu0
    %v7297 = vadd.f32 %v7008, %v7296
    %v7298 = vpop.f32.mrb[0].mxu0
    %7299 = vmatprep.mubr.bf16.mxu0 0
    %7300 = vmatmul.mubr.bf16.gmra.mrb[0].mxu0 %v6788
    %v7301 = vpop.f32.mrb[0].mxu0
    %v7302 = vadd.f32 %v7013, %v7301
    %v7303 = vpop.f32.mrb[0].mxu0
    %v7304 = vpop.f32.mrb[0].mxu0
    %v7305 = vadd.f32 %v7016, %v7304
    %v7306 = vpop.f32.mrb[0].mxu0
    %7307 = vmatprep.mubr.bf16.mxu0 0
    %7308 = vmatmul.mubr.bf16.gmra.mrb[0].mxu0 %v6791
    %v7309 = vpop.f32.mrb[0].mxu0
    %v7310 = vadd.f32 %v7021, %v7309
    %v7311 = vpop.f32.mrb[0].mxu0
    %v7312 = vpop.f32.mrb[0].mxu0
    %v7313 = vadd.f32 %v7024, %v7312
    %v7314 = vpop.f32.mrb[0].mxu0
    %7315 = vmatprep.mubr.bf16.mxu0 0
    %7316 = vmatmul.mubr.bf16.gmra.mrb[0].mxu0 %v6794
    %v7317 = vpop.f32.mrb[0].mxu0
    %v7318 = vadd.f32 %v7029, %v7317
    %v7319 = vpop.f32.mrb[0].mxu0
    %v7320 = vpop.f32.mrb[0].mxu0
    %v7321 = vadd.f32 %v7032, %v7320
    %v7322 = vpop.f32.mrb[0].mxu0
    %7323 = vmatprep.mubr.bf16.mxu0 0
    %7324 = vmatmul.mubr.bf16.gmra.mrb[0].mxu0 %v6797
    %v7325 = vpop.f32.mrb[0].mxu0
    %v7326 = vadd.f32 %v7037, %v7325
    %v7327 = vpop.f32.mrb[0].mxu0
    %v7328 = vpop.f32.mrb[0].mxu0
    %v7329 = vadd.f32 %v7040, %v7328
    %v7330 = vpop.f32.mrb[0].mxu0
    %7331 = vmatprep.mubr.bf16.mxu0 0
    %7332 = vmatmul.mubr.bf16.gmra.mrb[0].mxu0 %v6800
    %v7333 = vpop.f32.mrb[0].mxu0
    %v7334 = vadd.f32 %v7045, %v7333
    %v7335 = vpop.f32.mrb[0].mxu0
    %v7336 = vpop.f32.mrb[0].mxu0
    %v7337 = vadd.f32 %v7048, %v7336
    %v7338 = vpop.f32.mrb[0].mxu0
    %7339 = vmatprep.mubr.bf16.mxu0 0
    %7340 = vmatmul.mubr.bf16.gmra.mrb[0].mxu0 %v6803
    %v7341 = vpop.f32.mrb[0].mxu0
    %v7342 = vadd.f32 %v7053, %v7341
    %v7343 = vpop.f32.mrb[0].mxu0
    %v7344 = vpop.f32.mrb[0].mxu0
    %v7345 = vadd.f32 %v7056, %v7344
    %v7346 = vpop.f32.mrb[0].mxu0
    %7347 = vmatprep.mubr.bf16.mxu0 0
    %7348 = vmatmul.mubr.bf16.gmra.mrb[0].mxu0 %v6806
    %v7349 = vpop.f32.mrb[0].mxu0
    %v7350 = vadd.f32 %v7061, %v7349
    %v7351 = vpop.f32.mrb[0].mxu0
    %v7352 = vpop.f32.mrb[0].mxu0
    %v7353 = vadd.f32 %v7064, %v7352
    %v7354 = vpop.f32.mrb[0].mxu0
    %7355 = vmatprep.mubr.bf16.mxu0 0
    %7356 = vmatmul.mubr.bf16.gmra.mrb[0].mxu0 %v6809
    %v7357 = vpop.f32.mrb[0].mxu0
    %v7358 = vadd.f32 %v7069, %v7357
    %v7359 = vpop.f32.mrb[0].mxu0
    %v7360 = vpop.f32.mrb[0].mxu0
    %v7361 = vadd.f32 %v7072, %v7360
    %v7362 = vpop.f32.mrb[0].mxu0
    %7363 = vmatprep.mubr.bf16.mxu0 0
    %7364 = vmatmul.mubr.bf16.gmra.mrb[0].mxu0 %v6812
    %v7365 = vpop.f32.mrb[0].mxu0
    %v7366 = vadd.f32 %v7077, %v7365
    %v7367 = vpop.f32.mrb[0].mxu0
    %v7368 = vpop.f32.mrb[0].mxu0
    %v7369 = vadd.f32 %v7080, %v7368
    %v7370 = vpop.f32.mrb[0].mxu0
    %7371 = vmatprep.mubr.bf16.mxu0 0
    %7372 = vmatmul.mubr.bf16.gmra.mrb[0].mxu0 %v6815
    %v7373 = vpop.f32.mrb[0].mxu0
    %v7374 = vadd.f32 %v7085, %v7373
    %v7375 = vpop.f32.mrb[0].mxu0
    %v7376 = vpop.f32.mrb[0].mxu0
    %v7377 = vadd.f32 %v7088, %v7376
    %v7378 = vpop.f32.mrb[0].mxu0
    %7379 = vmatprep.mubr.bf16.mxu0 0
    %7380 = vmatmul.mubr.bf16.gmra.mrb[0].mxu0 %v6818
    %v7381 = vpop.f32.mrb[0].mxu0
    %v7382 = vadd.f32 %v7093, %v7381
    %v7383 = vpop.f32.mrb[0].mxu0
    %v7384 = vpop.f32.mrb[0].mxu0
    %v7385 = vadd.f32 %v7096, %v7384
    %v7386 = vpop.f32.mrb[0].mxu0
    %7387 = vmatprep.mubr.bf16.mxu0 0
    %7388 = vmatmul.mubr.bf16.gmra.mrb[0].mxu0 %v6821
    %v7389 = vpop.f32.mrb[0].mxu0
    %v7390 = vadd.f32 %v7101, %v7389
    %v7391 = vpop.f32.mrb[0].mxu0
    %v7392 = vpop.f32.mrb[0].mxu0
    %v7393 = vadd.f32 %v7104, %v7392
    %v7394 = vpop.f32.mrb[0].mxu0
    %7395 = vmatprep.mubr.bf16.mxu0 0
    %7396 = vmatmul.mubr.bf16.gmra.mrb[0].mxu0 %v6824
    %v7397 = vpop.f32.mrb[0].mxu0
    %v7398 = vadd.f32 %v7109, %v7397
    %v7399 = vpop.f32.mrb[0].mxu0
    %v7400 = vpop.f32.mrb[0].mxu0
    %v7401 = vadd.f32 %v7112, %v7400
    %v7402 = vpop.f32.mrb[0].mxu0
    %7403 = vdwg.mxu0
    %v7404 = vsel %vm218, %v7150, 0.0
    %v7405 = vsel %vm218, %v7153, 0.0
    %v7406 = vadd.f32 %v7404, %v7405
    %v7407 = vsel %vm218, %v7158, 0.0
    %v7408 = vadd.f32 %v7406, %v7407
    %v7409 = vsel %vm218, %v7161, 0.0
    %v7410 = vadd.f32 %v7408, %v7409
    %v7411 = vsel %vm218, %v7166, 0.0
    %v7412 = vadd.f32 %v7410, %v7411
    %v7413 = vsel %vm218, %v7169, 0.0
    %v7414 = vadd.f32 %v7412, %v7413
    %v7415 = vsel %vm218, %v7174, 0.0
    %v7416 = vadd.f32 %v7414, %v7415
    %v7417 = vsel %vm218, %v7177, 0.0
    %v7418 = vadd.f32 %v7416, %v7417
    %v7419 = vsel %vm218, %v7182, 0.0
    %v7420 = vadd.f32 %v7418, %v7419
    %v7421 = vsel %vm218, %v7185, 0.0
    %v7422 = vadd.f32 %v7420, %v7421
    %v7423 = vsel %vm218, %v7190, 0.0
    %v7424 = vadd.f32 %v7422, %v7423
    %v7425 = vsel %vm218, %v7193, 0.0
    %v7426 = vadd.f32 %v7424, %v7425
    %v7427 = vsel %vm218, %v7198, 0.0
    %v7428 = vadd.f32 %v7426, %v7427
    %v7429 = vsel %vm218, %v7201, 0.0
    %v7430 = vadd.f32 %v7428, %v7429
    %v7431 = vsel %vm218, %v7206, 0.0
    %v7432 = vadd.f32 %v7430, %v7431
    %v7433 = vsel %vm218, %v7209, 0.0
    %v7434 = vadd.f32 %v7432, %v7433
    %v7435 = vsel %vm218, %v7214, 0.0
    %v7436 = vadd.f32 %v7434, %v7435
    %v7437 = vsel %vm218, %v7217, 0.0
    %v7438 = vadd.f32 %v7436, %v7437
    %v7439 = vsel %vm218, %v7222, 0.0
    %v7440 = vadd.f32 %v7438, %v7439
    %v7441 = vsel %vm218, %v7225, 0.0
    %v7442 = vadd.f32 %v7440, %v7441
    %v7443 = vsel %vm218, %v7230, 0.0
    %v7444 = vadd.f32 %v7442, %v7443
    %v7445 = vsel %vm218, %v7233, 0.0
    %v7446 = vadd.f32 %v7444, %v7445
    %v7447 = vsel %vm218, %v7238, 0.0
    %v7448 = vadd.f32 %v7446, %v7447
    %v7449 = vsel %vm218, %v7241, 0.0
    %v7450 = vadd.f32 %v7448, %v7449
    %v7451 = vsel %vm218, %v7246, 0.0
    %v7452 = vadd.f32 %v7450, %v7451
    %v7453 = vsel %vm218, %v7249, 0.0
    %v7454 = vadd.f32 %v7452, %v7453
    %v7455 = vsel %vm218, %v7254, 0.0
    %v7456 = vadd.f32 %v7454, %v7455
    %v7457 = vsel %vm218, %v7257, 0.0
    %v7458 = vadd.f32 %v7456, %v7457
    %v7459 = vsel %vm218, %v7262, 0.0
    %v7460 = vadd.f32 %v7458, %v7459
    %v7461 = vsel %vm218, %v7265, 0.0
    %v7462 = vadd.f32 %v7460, %v7461
    %v7463 = vsel %vm218, %v7270, 0.0
    %v7464 = vadd.f32 %v7462, %v7463
    %v7465 = vsel %vm218, %v7273, 0.0
    %v7466 = vadd.f32 %v7464, %v7465
    %v7467 = vsel %vm218, %v7278, 0.0
    %v7468 = vadd.f32 %v7466, %v7467
    %v7469 = vsel %vm218, %v7281, 0.0
    %v7470 = vadd.f32 %v7468, %v7469
    %v7471 = vsel %vm218, %v7286, 0.0
    %v7472 = vadd.f32 %v7470, %v7471
    %v7473 = vsel %vm218, %v7289, 0.0
    %v7474 = vadd.f32 %v7472, %v7473
    %v7475 = vsel %vm218, %v7294, 0.0
    %v7476 = vadd.f32 %v7474, %v7475
    %v7477 = vsel %vm218, %v7297, 0.0
    %v7478 = vadd.f32 %v7476, %v7477
    %v7479 = vsel %vm218, %v7302, 0.0
    %v7480 = vadd.f32 %v7478, %v7479
    %v7481 = vsel %vm218, %v7305, 0.0
    %v7482 = vadd.f32 %v7480, %v7481
    %v7483 = vsel %vm218, %v7310, 0.0
    %v7484 = vadd.f32 %v7482, %v7483
    %v7485 = vsel %vm218, %v7313, 0.0
    %v7486 = vadd.f32 %v7484, %v7485
    %v7487 = vsel %vm218, %v7318, 0.0
    %v7488 = vadd.f32 %v7486, %v7487
    %v7489 = vsel %vm218, %v7321, 0.0
    %v7490 = vadd.f32 %v7488, %v7489
    %v7491 = vsel %vm218, %v7326, 0.0
    %v7492 = vadd.f32 %v7490, %v7491
    %v7493 = vsel %vm218, %v7329, 0.0
    %v7494 = vadd.f32 %v7492, %v7493
    %v7495 = vsel %vm218, %v7334, 0.0
    %v7496 = vadd.f32 %v7494, %v7495
    %v7497 = vsel %vm218, %v7337, 0.0
    %v7498 = vadd.f32 %v7496, %v7497
    %v7499 = vsel %vm218, %v7342, 0.0
    %v7500 = vadd.f32 %v7498, %v7499
    %v7501 = vsel %vm218, %v7345, 0.0
    %v7502 = vadd.f32 %v7500, %v7501
    %v7503 = vsel %vm218, %v7350, 0.0
    %v7504 = vadd.f32 %v7502, %v7503
    %v7505 = vsel %vm218, %v7353, 0.0
    %v7506 = vadd.f32 %v7504, %v7505
    %v7507 = vsel %vm218, %v7358, 0.0
    %v7508 = vadd.f32 %v7506, %v7507
    %v7509 = vsel %vm218, %v7361, 0.0
    %v7510 = vadd.f32 %v7508, %v7509
    %v7511 = vsel %vm218, %v7366, 0.0
    %v7512 = vadd.f32 %v7510, %v7511
    %v7513 = vsel %vm218, %v7369, 0.0
    %v7514 = vadd.f32 %v7512, %v7513
    %v7515 = vsel %vm218, %v7374, 0.0
    %v7516 = vadd.f32 %v7514, %v7515
    %v7517 = vsel %vm218, %v7377, 0.0
    %v7518 = vadd.f32 %v7516, %v7517
    %v7519 = vsel %vm218, %v7382, 0.0
    %v7520 = vadd.f32 %v7518, %v7519
    %v7521 = vsel %vm218, %v7385, 0.0
    %v7522 = vadd.f32 %v7520, %v7521
    %v7523 = vsel %vm218, %v7390, 0.0
    %v7524 = vadd.f32 %v7522, %v7523
    %v7525 = vsel %vm218, %v7393, 0.0
    %v7526 = vadd.f32 %v7524, %v7525
    %v7527 = vsel %vm218, %v7398, 0.0
    %v7528 = vadd.f32 %v7526, %v7527
    %v7529 = vsel %vm218, %v7401, 0.0
    %v7530 = vadd.f32 %v7528, %v7529
    %v7531 = vrot.slane %v7530, 4
    %v7532 = vadd.f32 %v7530, %v7531
    %v7533 = vrot.slane %v7532, 2
    %v7534 = vadd.f32 %v7532, %v7533
    %v7535 = vrot.slane %v7534, 1
    %v7536 = vadd.f32 %v7534, %v7535
    %v7537 = vmul.f32 %v7536, %v3983
    %v7538 = vsub.f32 %v7150, %v7537
    %v7539 = vsub.f32 %v7153, %v7537
    %v7540 = vsub.f32 %v7158, %v7537
    %v7541 = vsub.f32 %v7161, %v7537
    %v7542 = vsub.f32 %v7166, %v7537
    %v7543 = vsub.f32 %v7169, %v7537
    %v7544 = vsub.f32 %v7174, %v7537
    %v7545 = vsub.f32 %v7177, %v7537
    %v7546 = vsub.f32 %v7182, %v7537
    %v7547 = vsub.f32 %v7185, %v7537
    %v7548 = vsub.f32 %v7190, %v7537
    %v7549 = vsub.f32 %v7193, %v7537
    %v7550 = vsub.f32 %v7198, %v7537
    %v7551 = vsub.f32 %v7201, %v7537
    %v7552 = vsub.f32 %v7206, %v7537
    %v7553 = vsub.f32 %v7209, %v7537
    %v7554 = vsub.f32 %v7214, %v7537
    %v7555 = vsub.f32 %v7217, %v7537
    %v7556 = vsub.f32 %v7222, %v7537
    %v7557 = vsub.f32 %v7225, %v7537
    %v7558 = vsub.f32 %v7230, %v7537
    %v7559 = vsub.f32 %v7233, %v7537
    %v7560 = vsub.f32 %v7238, %v7537
    %v7561 = vsub.f32 %v7241, %v7537
    %v7562 = vsub.f32 %v7246, %v7537
    %v7563 = vsub.f32 %v7249, %v7537
    %v7564 = vsub.f32 %v7254, %v7537
    %v7565 = vsub.f32 %v7257, %v7537
    %v7566 = vsub.f32 %v7262, %v7537
    %v7567 = vsub.f32 %v7265, %v7537
    %v7568 = vsub.f32 %v7270, %v7537
    %v7569 = vsub.f32 %v7273, %v7537
    %v7570 = vsub.f32 %v7278, %v7537
    %v7571 = vsub.f32 %v7281, %v7537
    %v7572 = vsub.f32 %v7286, %v7537
    %v7573 = vsub.f32 %v7289, %v7537
    %v7574 = vsub.f32 %v7294, %v7537
    %v7575 = vsub.f32 %v7297, %v7537
    %v7576 = vsub.f32 %v7302, %v7537
    %v7577 = vsub.f32 %v7305, %v7537
    %v7578 = vsub.f32 %v7310, %v7537
    %v7579 = vsub.f32 %v7313, %v7537
    %v7580 = vsub.f32 %v7318, %v7537
    %v7581 = vsub.f32 %v7321, %v7537
    %v7582 = vsub.f32 %v7326, %v7537
    %v7583 = vsub.f32 %v7329, %v7537
    %v7584 = vsub.f32 %v7334, %v7537
    %v7585 = vsub.f32 %v7337, %v7537
    %v7586 = vsub.f32 %v7342, %v7537
    %v7587 = vsub.f32 %v7345, %v7537
    %v7588 = vsub.f32 %v7350, %v7537
    %v7589 = vsub.f32 %v7353, %v7537
    %v7590 = vsub.f32 %v7358, %v7537
    %v7591 = vsub.f32 %v7361, %v7537
    %v7592 = vsub.f32 %v7366, %v7537
    %v7593 = vsub.f32 %v7369, %v7537
    %v7594 = vsub.f32 %v7374, %v7537
    %v7595 = vsub.f32 %v7377, %v7537
    %v7596 = vsub.f32 %v7382, %v7537
    %v7597 = vsub.f32 %v7385, %v7537
    %v7598 = vsub.f32 %v7390, %v7537
    %v7599 = vsub.f32 %v7393, %v7537
    %v7600 = vsub.f32 %v7398, %v7537
    %v7601 = vsub.f32 %v7401, %v7537
    %v7602 = vmul.f32 %v7538, %v7538
    %v7603 = vmul.f32 %v7539, %v7539
    %v7604 = vmul.f32 %v7540, %v7540
    %v7605 = vmul.f32 %v7541, %v7541
    %v7606 = vmul.f32 %v7542, %v7542
    %v7607 = vmul.f32 %v7543, %v7543
    %v7608 = vmul.f32 %v7544, %v7544
    %v7609 = vmul.f32 %v7545, %v7545
    %v7610 = vmul.f32 %v7546, %v7546
    %v7611 = vmul.f32 %v7547, %v7547
    %v7612 = vmul.f32 %v7548, %v7548
    %v7613 = vmul.f32 %v7549, %v7549
    %v7614 = vmul.f32 %v7550, %v7550
    %v7615 = vmul.f32 %v7551, %v7551
    %v7616 = vmul.f32 %v7552, %v7552
    %v7617 = vmul.f32 %v7553, %v7553
    %v7618 = vmul.f32 %v7554, %v7554
    %v7619 = vmul.f32 %v7555, %v7555
    %v7620 = vmul.f32 %v7556, %v7556
    %v7621 = vmul.f32 %v7557, %v7557
    %v7622 = vmul.f32 %v7558, %v7558
    %v7623 = vmul.f32 %v7559, %v7559
    %v7624 = vmul.f32 %v7560, %v7560
    %v7625 = vmul.f32 %v7561, %v7561
    %v7626 = vmul.f32 %v7562, %v7562
    %v7627 = vmul.f32 %v7563, %v7563
    %v7628 = vmul.f32 %v7564, %v7564
    %v7629 = vmul.f32 %v7565, %v7565
    %v7630 = vmul.f32 %v7566, %v7566
    %v7631 = vmul.f32 %v7567, %v7567
    %v7632 = vmul.f32 %v7568, %v7568
    %v7633 = vmul.f32 %v7569, %v7569
    %v7634 = vmul.f32 %v7570, %v7570
    %v7635 = vmul.f32 %v7571, %v7571
    %v7636 = vmul.f32 %v7572, %v7572
    %v7637 = vmul.f32 %v7573, %v7573
    %v7638 = vmul.f32 %v7574, %v7574
    %v7639 = vmul.f32 %v7575, %v7575
    %v7640 = vmul.f32 %v7576, %v7576
    %v7641 = vmul.f32 %v7577, %v7577
    %v7642 = vmul.f32 %v7578, %v7578
    %v7643 = vmul.f32 %v7579, %v7579
    %v7644 = vmul.f32 %v7580, %v7580
    %v7645 = vmul.f32 %v7581, %v7581
    %v7646 = vmul.f32 %v7582, %v7582
    %v7647 = vmul.f32 %v7583, %v7583
    %v7648 = vmul.f32 %v7584, %v7584
    %v7649 = vmul.f32 %v7585, %v7585
    %v7650 = vmul.f32 %v7586, %v7586
    %v7651 = vmul.f32 %v7587, %v7587
    %v7652 = vmul.f32 %v7588, %v7588
    %v7653 = vmul.f32 %v7589, %v7589
    %v7654 = vmul.f32 %v7590, %v7590
    %v7655 = vmul.f32 %v7591, %v7591
    %v7656 = vmul.f32 %v7592, %v7592
    %v7657 = vmul.f32 %v7593, %v7593
    %v7658 = vmul.f32 %v7594, %v7594
    %v7659 = vmul.f32 %v7595, %v7595
    %v7660 = vmul.f32 %v7596, %v7596
    %v7661 = vmul.f32 %v7597, %v7597
    %v7662 = vmul.f32 %v7598, %v7598
    %v7663 = vmul.f32 %v7599, %v7599
    %v7664 = vmul.f32 %v7600, %v7600
    %v7665 = vmul.f32 %v7601, %v7601
    %v7666 = vsel %vm218, %v7602, 0.0
    %v7667 = vsel %vm218, %v7603, 0.0
    %v7668 = vadd.f32 %v7666, %v7667
    %v7669 = vsel %vm218, %v7604, 0.0
    %v7670 = vadd.f32 %v7668, %v7669
    %v7671 = vsel %vm218, %v7605, 0.0
    %v7672 = vadd.f32 %v7670, %v7671
    %v7673 = vsel %vm218, %v7606, 0.0
    %v7674 = vadd.f32 %v7672, %v7673
    %v7675 = vsel %vm218, %v7607, 0.0
    %v7676 = vadd.f32 %v7674, %v7675
    %v7677 = vsel %vm218, %v7608, 0.0
    %v7678 = vadd.f32 %v7676, %v7677
    %v7679 = vsel %vm218, %v7609, 0.0
    %v7680 = vadd.f32 %v7678, %v7679
    %v7681 = vsel %vm218, %v7610, 0.0
    %v7682 = vadd.f32 %v7680, %v7681
    %v7683 = vsel %vm218, %v7611, 0.0
    %v7684 = vadd.f32 %v7682, %v7683
    %v7685 = vsel %vm218, %v7612, 0.0
    %v7686 = vadd.f32 %v7684, %v7685
    %v7687 = vsel %vm218, %v7613, 0.0
    %v7688 = vadd.f32 %v7686, %v7687
    %v7689 = vsel %vm218, %v7614, 0.0
    %v7690 = vadd.f32 %v7688, %v7689
    %v7691 = vsel %vm218, %v7615, 0.0
    %v7692 = vadd.f32 %v7690, %v7691
    %v7693 = vsel %vm218, %v7616, 0.0
    %v7694 = vadd.f32 %v7692, %v7693
    %v7695 = vsel %vm218, %v7617, 0.0
    %v7696 = vadd.f32 %v7694, %v7695
    %v7697 = vsel %vm218, %v7618, 0.0
    %v7698 = vadd.f32 %v7696, %v7697
    %v7699 = vsel %vm218, %v7619, 0.0
    %v7700 = vadd.f32 %v7698, %v7699
    %v7701 = vsel %vm218, %v7620, 0.0
    %v7702 = vadd.f32 %v7700, %v7701
    %v7703 = vsel %vm218, %v7621, 0.0
    %v7704 = vadd.f32 %v7702, %v7703
    %v7705 = vsel %vm218, %v7622, 0.0
    %v7706 = vadd.f32 %v7704, %v7705
    %v7707 = vsel %vm218, %v7623, 0.0
    %v7708 = vadd.f32 %v7706, %v7707
    %v7709 = vsel %vm218, %v7624, 0.0
    %v7710 = vadd.f32 %v7708, %v7709
    %v7711 = vsel %vm218, %v7625, 0.0
    %v7712 = vadd.f32 %v7710, %v7711
    %v7713 = vsel %vm218, %v7626, 0.0
    %v7714 = vadd.f32 %v7712, %v7713
    %v7715 = vsel %vm218, %v7627, 0.0
    %v7716 = vadd.f32 %v7714, %v7715
    %v7717 = vsel %vm218, %v7628, 0.0
    %v7718 = vadd.f32 %v7716, %v7717
    %v7719 = vsel %vm218, %v7629, 0.0
    %v7720 = vadd.f32 %v7718, %v7719
    %v7721 = vsel %vm218, %v7630, 0.0
    %v7722 = vadd.f32 %v7720, %v7721
    %v7723 = vsel %vm218, %v7631, 0.0
    %v7724 = vadd.f32 %v7722, %v7723
    %v7725 = vsel %vm218, %v7632, 0.0
    %v7726 = vadd.f32 %v7724, %v7725
    %v7727 = vsel %vm218, %v7633, 0.0
    %v7728 = vadd.f32 %v7726, %v7727
    %v7729 = vsel %vm218, %v7634, 0.0
    %v7730 = vadd.f32 %v7728, %v7729
    %v7731 = vsel %vm218, %v7635, 0.0
    %v7732 = vadd.f32 %v7730, %v7731
    %v7733 = vsel %vm218, %v7636, 0.0
    %v7734 = vadd.f32 %v7732, %v7733
    %v7735 = vsel %vm218, %v7637, 0.0
    %v7736 = vadd.f32 %v7734, %v7735
    %v7737 = vsel %vm218, %v7638, 0.0
    %v7738 = vadd.f32 %v7736, %v7737
    %v7739 = vsel %vm218, %v7639, 0.0
    %v7740 = vadd.f32 %v7738, %v7739
    %v7741 = vsel %vm218, %v7640, 0.0
    %v7742 = vadd.f32 %v7740, %v7741
    %v7743 = vsel %vm218, %v7641, 0.0
    %v7744 = vadd.f32 %v7742, %v7743
    %v7745 = vsel %vm218, %v7642, 0.0
    %v7746 = vadd.f32 %v7744, %v7745
    %v7747 = vsel %vm218, %v7643, 0.0
    %v7748 = vadd.f32 %v7746, %v7747
    %v7749 = vsel %vm218, %v7644, 0.0
    %v7750 = vadd.f32 %v7748, %v7749
    %v7751 = vsel %vm218, %v7645, 0.0
    %v7752 = vadd.f32 %v7750, %v7751
    %v7753 = vsel %vm218, %v7646, 0.0
    %v7754 = vadd.f32 %v7752, %v7753
    %v7755 = vsel %vm218, %v7647, 0.0
    %v7756 = vadd.f32 %v7754, %v7755
    %v7757 = vsel %vm218, %v7648, 0.0
    %v7758 = vadd.f32 %v7756, %v7757
    %v7759 = vsel %vm218, %v7649, 0.0
    %v7760 = vadd.f32 %v7758, %v7759
    %v7761 = vsel %vm218, %v7650, 0.0
    %v7762 = vadd.f32 %v7760, %v7761
    %v7763 = vsel %vm218, %v7651, 0.0
    %v7764 = vadd.f32 %v7762, %v7763
    %v7765 = vsel %vm218, %v7652, 0.0
    %v7766 = vadd.f32 %v7764, %v7765
    %v7767 = vsel %vm218, %v7653, 0.0
    %v7768 = vadd.f32 %v7766, %v7767
    %v7769 = vsel %vm218, %v7654, 0.0
    %v7770 = vadd.f32 %v7768, %v7769
    %v7771 = vsel %vm218, %v7655, 0.0
    %v7772 = vadd.f32 %v7770, %v7771
    %v7773 = vsel %vm218, %v7656, 0.0
    %v7774 = vadd.f32 %v7772, %v7773
    %v7775 = vsel %vm218, %v7657, 0.0
    %v7776 = vadd.f32 %v7774, %v7775
    %v7777 = vsel %vm218, %v7658, 0.0
    %v7778 = vadd.f32 %v7776, %v7777
    %v7779 = vsel %vm218, %v7659, 0.0
    %v7780 = vadd.f32 %v7778, %v7779
    %v7781 = vsel %vm218, %v7660, 0.0
    %v7782 = vadd.f32 %v7780, %v7781
    %v7783 = vsel %vm218, %v7661, 0.0
    %v7784 = vadd.f32 %v7782, %v7783
    %v7785 = vsel %vm218, %v7662, 0.0
    %v7786 = vadd.f32 %v7784, %v7785
    %v7787 = vsel %vm218, %v7663, 0.0
    %v7788 = vadd.f32 %v7786, %v7787
    %v7789 = vsel %vm218, %v7664, 0.0
    %v7790 = vadd.f32 %v7788, %v7789
    %v7791 = vsel %vm218, %v7665, 0.0
    %v7792 = vadd.f32 %v7790, %v7791
    %v7793 = vrot.slane %v7792, 4
    %v7794 = vadd.f32 %v7792, %v7793
    %v7795 = vrot.slane %v7794, 2
    %v7796 = vadd.f32 %v7794, %v7795
    %v7797 = vrot.slane %v7796, 1
    %v7798 = vadd.f32 %v7796, %v7797
    %v7799 = vmul.f32 %v7798, %v3983
    %v7800 = vld [vmem:[%s7] sm:$0x1]
    %v7801 = vadd.f32 %v7799, 1e-05
    %v7802 = vrsqrt.pop %v7801
    %v7803 = vmul.f32 %v7800, %v7802
    %v7804 = vld [vmem:[%s8] sm:$0x1]
    %v7805 = vmul.f32 %v7537, %v7803
    %v7806 = vsub.f32 %v7804, %v7805
    %v7808 = vlaneseq
    %v7809 = vshrl.u32 %v7808, 7
    %v7810 = vsub.s32 0, %v7809
    %v7811 = vrot.slane %v7803, %v7810
    %v7813 = vmul.f32 %v7150, %v7811
    %v7814 = vmul.f32 %v7153, %v7811
    %v7815 = vmul.f32 %v7158, %v7811
    %v7816 = vmul.f32 %v7161, %v7811
    %v7817 = vmul.f32 %v7166, %v7811
    %v7818 = vmul.f32 %v7169, %v7811
    %v7819 = vmul.f32 %v7174, %v7811
    %v7820 = vmul.f32 %v7177, %v7811
    %v7821 = vmul.f32 %v7182, %v7811
    %v7822 = vmul.f32 %v7185, %v7811
    %v7823 = vmul.f32 %v7190, %v7811
    %v7824 = vmul.f32 %v7193, %v7811
    %v7825 = vmul.f32 %v7198, %v7811
    %v7826 = vmul.f32 %v7201, %v7811
    %v7827 = vmul.f32 %v7206, %v7811
    %v7828 = vmul.f32 %v7209, %v7811
    %v7829 = vmul.f32 %v7214, %v7811
    %v7830 = vmul.f32 %v7217, %v7811
    %v7831 = vmul.f32 %v7222, %v7811
    %v7832 = vmul.f32 %v7225, %v7811
    %v7833 = vmul.f32 %v7230, %v7811
    %v7834 = vmul.f32 %v7233, %v7811
    %v7835 = vmul.f32 %v7238, %v7811
    %v7836 = vmul.f32 %v7241, %v7811
    %v7837 = vmul.f32 %v7246, %v7811
    %v7838 = vmul.f32 %v7249, %v7811
    %v7839 = vmul.f32 %v7254, %v7811
    %v7840 = vmul.f32 %v7257, %v7811
    %v7841 = vmul.f32 %v7262, %v7811
    %v7842 = vmul.f32 %v7265, %v7811
    %v7843 = vmul.f32 %v7270, %v7811
    %v7844 = vmul.f32 %v7273, %v7811
    %v7845 = vmul.f32 %v7278, %v7811
    %v7846 = vmul.f32 %v7281, %v7811
    %v7847 = vmul.f32 %v7286, %v7811
    %v7848 = vmul.f32 %v7289, %v7811
    %v7849 = vmul.f32 %v7294, %v7811
    %v7850 = vmul.f32 %v7297, %v7811
    %v7851 = vmul.f32 %v7302, %v7811
    %v7852 = vmul.f32 %v7305, %v7811
    %v7853 = vmul.f32 %v7310, %v7811
    %v7854 = vmul.f32 %v7313, %v7811
    %v7855 = vmul.f32 %v7318, %v7811
    %v7856 = vmul.f32 %v7321, %v7811
    %v7857 = vmul.f32 %v7326, %v7811
    %v7858 = vmul.f32 %v7329, %v7811
    %v7859 = vmul.f32 %v7334, %v7811
    %v7860 = vmul.f32 %v7337, %v7811
    %v7861 = vmul.f32 %v7342, %v7811
    %v7862 = vmul.f32 %v7345, %v7811
    %v7863 = vmul.f32 %v7350, %v7811
    %v7864 = vmul.f32 %v7353, %v7811
    %v7865 = vmul.f32 %v7358, %v7811
    %v7866 = vmul.f32 %v7361, %v7811
    %v7867 = vmul.f32 %v7366, %v7811
    %v7868 = vmul.f32 %v7369, %v7811
    %v7869 = vmul.f32 %v7374, %v7811
    %v7870 = vmul.f32 %v7377, %v7811
    %v7871 = vmul.f32 %v7382, %v7811
    %v7872 = vmul.f32 %v7385, %v7811
    %v7873 = vmul.f32 %v7390, %v7811
    %v7874 = vmul.f32 %v7393, %v7811
    %v7875 = vmul.f32 %v7398, %v7811
    %v7876 = vmul.f32 %v7401, %v7811
    %v7878 = vlaneseq
    %v7879 = vshrl.u32 %v7878, 7
    %v7880 = vsub.s32 0, %v7879
    %v7881 = vrot.slane %v7806, %v7880
    %v7883 = vadd.f32 %v7813, %v7881
    %v7884 = vadd.f32 %v7814, %v7881
    %v7885 = vadd.f32 %v7815, %v7881
    %v7886 = vadd.f32 %v7816, %v7881
    %v7887 = vadd.f32 %v7817, %v7881
    %v7888 = vadd.f32 %v7818, %v7881
    %v7889 = vadd.f32 %v7819, %v7881
    %v7890 = vadd.f32 %v7820, %v7881
    %v7891 = vadd.f32 %v7821, %v7881
    %v7892 = vadd.f32 %v7822, %v7881
    %v7893 = vadd.f32 %v7823, %v7881
    %v7894 = vadd.f32 %v7824, %v7881
    %v7895 = vadd.f32 %v7825, %v7881
    %v7896 = vadd.f32 %v7826, %v7881
    %v7897 = vadd.f32 %v7827, %v7881
    %v7898 = vadd.f32 %v7828, %v7881
    %v7899 = vadd.f32 %v7829, %v7881
    %v7900 = vadd.f32 %v7830, %v7881
    %v7901 = vadd.f32 %v7831, %v7881
    %v7902 = vadd.f32 %v7832, %v7881
    %v7903 = vadd.f32 %v7833, %v7881
    %v7904 = vadd.f32 %v7834, %v7881
    %v7905 = vadd.f32 %v7835, %v7881
    %v7906 = vadd.f32 %v7836, %v7881
    %v7907 = vadd.f32 %v7837, %v7881
    %v7908 = vadd.f32 %v7838, %v7881
    %v7909 = vadd.f32 %v7839, %v7881
    %v7910 = vadd.f32 %v7840, %v7881
    %v7911 = vadd.f32 %v7841, %v7881
    %v7912 = vadd.f32 %v7842, %v7881
    %v7913 = vadd.f32 %v7843, %v7881
    %v7914 = vadd.f32 %v7844, %v7881
    %v7915 = vadd.f32 %v7845, %v7881
    %v7916 = vadd.f32 %v7846, %v7881
    %v7917 = vadd.f32 %v7847, %v7881
    %v7918 = vadd.f32 %v7848, %v7881
    %v7919 = vadd.f32 %v7849, %v7881
    %v7920 = vadd.f32 %v7850, %v7881
    %v7921 = vadd.f32 %v7851, %v7881
    %v7922 = vadd.f32 %v7852, %v7881
    %v7923 = vadd.f32 %v7853, %v7881
    %v7924 = vadd.f32 %v7854, %v7881
    %v7925 = vadd.f32 %v7855, %v7881
    %v7926 = vadd.f32 %v7856, %v7881
    %v7927 = vadd.f32 %v7857, %v7881
    %v7928 = vadd.f32 %v7858, %v7881
    %v7929 = vadd.f32 %v7859, %v7881
    %v7930 = vadd.f32 %v7860, %v7881
    %v7931 = vadd.f32 %v7861, %v7881
    %v7932 = vadd.f32 %v7862, %v7881
    %v7933 = vadd.f32 %v7863, %v7881
    %v7934 = vadd.f32 %v7864, %v7881
    %v7935 = vadd.f32 %v7865, %v7881
    %v7936 = vadd.f32 %v7866, %v7881
    %v7937 = vadd.f32 %v7867, %v7881
    %v7938 = vadd.f32 %v7868, %v7881
    %v7939 = vadd.f32 %v7869, %v7881
    %v7940 = vadd.f32 %v7870, %v7881
    %v7941 = vadd.f32 %v7871, %v7881
    %v7942 = vadd.f32 %v7872, %v7881
    %v7943 = vadd.f32 %v7873, %v7881
    %v7944 = vadd.f32 %v7874, %v7881
    %v7945 = vadd.f32 %v7875, %v7881
    %v7946 = vadd.f32 %v7876, %v7881
    %v7947 = vmax.f32 %v7883, 0.0
    %v7948 = vmax.f32 %v7884, 0.0
    %v7949 = vmax.f32 %v7885, 0.0
    %v7950 = vmax.f32 %v7886, 0.0
    %v7951 = vmax.f32 %v7887, 0.0
    %v7952 = vmax.f32 %v7888, 0.0
    %v7953 = vmax.f32 %v7889, 0.0
    %v7954 = vmax.f32 %v7890, 0.0
    %v7955 = vmax.f32 %v7891, 0.0
    %v7956 = vmax.f32 %v7892, 0.0
    %v7957 = vmax.f32 %v7893, 0.0
    %v7958 = vmax.f32 %v7894, 0.0
    %v7959 = vmax.f32 %v7895, 0.0
    %v7960 = vmax.f32 %v7896, 0.0
    %v7961 = vmax.f32 %v7897, 0.0
    %v7962 = vmax.f32 %v7898, 0.0
    %v7963 = vmax.f32 %v7899, 0.0
    %v7964 = vmax.f32 %v7900, 0.0
    %v7965 = vmax.f32 %v7901, 0.0
    %v7966 = vmax.f32 %v7902, 0.0
    %v7967 = vmax.f32 %v7903, 0.0
    %v7968 = vmax.f32 %v7904, 0.0
    %v7969 = vmax.f32 %v7905, 0.0
    %v7970 = vmax.f32 %v7906, 0.0
    %v7971 = vmax.f32 %v7907, 0.0
    %v7972 = vmax.f32 %v7908, 0.0
    %v7973 = vmax.f32 %v7909, 0.0
    %v7974 = vmax.f32 %v7910, 0.0
    %v7975 = vmax.f32 %v7911, 0.0
    %v7976 = vmax.f32 %v7912, 0.0
    %v7977 = vmax.f32 %v7913, 0.0
    %v7978 = vmax.f32 %v7914, 0.0
    %v7979 = vmax.f32 %v7915, 0.0
    %v7980 = vmax.f32 %v7916, 0.0
    %v7981 = vmax.f32 %v7917, 0.0
    %v7982 = vmax.f32 %v7918, 0.0
    %v7983 = vmax.f32 %v7919, 0.0
    %v7984 = vmax.f32 %v7920, 0.0
    %v7985 = vmax.f32 %v7921, 0.0
    %v7986 = vmax.f32 %v7922, 0.0
    %v7987 = vmax.f32 %v7923, 0.0
    %v7988 = vmax.f32 %v7924, 0.0
    %v7989 = vmax.f32 %v7925, 0.0
    %v7990 = vmax.f32 %v7926, 0.0
    %v7991 = vmax.f32 %v7927, 0.0
    %v7992 = vmax.f32 %v7928, 0.0
    %v7993 = vmax.f32 %v7929, 0.0
    %v7994 = vmax.f32 %v7930, 0.0
    %v7995 = vmax.f32 %v7931, 0.0
    %v7996 = vmax.f32 %v7932, 0.0
    %v7997 = vmax.f32 %v7933, 0.0
    %v7998 = vmax.f32 %v7934, 0.0
    %v7999 = vmax.f32 %v7935, 0.0
    %v8000 = vmax.f32 %v7936, 0.0
    %v8001 = vmax.f32 %v7937, 0.0
    %v8002 = vmax.f32 %v7938, 0.0
    %v8003 = vmax.f32 %v7939, 0.0
    %v8004 = vmax.f32 %v7940, 0.0
    %v8005 = vmax.f32 %v7941, 0.0
    %v8006 = vmax.f32 %v7942, 0.0
    %v8007 = vmax.f32 %v7943, 0.0
    %v8008 = vmax.f32 %v7944, 0.0
    %v8009 = vmax.f32 %v7945, 0.0
    %v8010 = vmax.f32 %v7946, 0.0
    %v8011 = vsel %vm218, %v7947, 0.0
    %v8012 = vsel %vm218, %v7948, 0.0
    %v8013 = vadd.f32 %v8011, %v8012
    %v8014 = vsel %vm218, %v7949, 0.0
    %v8015 = vadd.f32 %v8013, %v8014
    %v8016 = vsel %vm218, %v7950, 0.0
    %v8017 = vadd.f32 %v8015, %v8016
    %v8018 = vsel %vm218, %v7951, 0.0
    %v8019 = vadd.f32 %v8017, %v8018
    %v8020 = vsel %vm218, %v7952, 0.0
    %v8021 = vadd.f32 %v8019, %v8020
    %v8022 = vsel %vm218, %v7953, 0.0
    %v8023 = vadd.f32 %v8021, %v8022
    %v8024 = vsel %vm218, %v7954, 0.0
    %v8025 = vadd.f32 %v8023, %v8024
    %v8026 = vsel %vm218, %v7955, 0.0
    %v8027 = vadd.f32 %v8025, %v8026
    %v8028 = vsel %vm218, %v7956, 0.0
    %v8029 = vadd.f32 %v8027, %v8028
    %v8030 = vsel %vm218, %v7957, 0.0
    %v8031 = vadd.f32 %v8029, %v8030
    %v8032 = vsel %vm218, %v7958, 0.0
    %v8033 = vadd.f32 %v8031, %v8032
    %v8034 = vsel %vm218, %v7959, 0.0
    %v8035 = vadd.f32 %v8033, %v8034
    %v8036 = vsel %vm218, %v7960, 0.0
    %v8037 = vadd.f32 %v8035, %v8036
    %v8038 = vsel %vm218, %v7961, 0.0
    %v8039 = vadd.f32 %v8037, %v8038
    %v8040 = vsel %vm218, %v7962, 0.0
    %v8041 = vadd.f32 %v8039, %v8040
    %v8042 = vsel %vm218, %v7963, 0.0
    %v8043 = vadd.f32 %v8041, %v8042
    %v8044 = vsel %vm218, %v7964, 0.0
    %v8045 = vadd.f32 %v8043, %v8044
    %v8046 = vsel %vm218, %v7965, 0.0
    %v8047 = vadd.f32 %v8045, %v8046
    %v8048 = vsel %vm218, %v7966, 0.0
    %v8049 = vadd.f32 %v8047, %v8048
    %v8050 = vsel %vm218, %v7967, 0.0
    %v8051 = vadd.f32 %v8049, %v8050
    %v8052 = vsel %vm218, %v7968, 0.0
    %v8053 = vadd.f32 %v8051, %v8052
    %v8054 = vsel %vm218, %v7969, 0.0
    %v8055 = vadd.f32 %v8053, %v8054
    %v8056 = vsel %vm218, %v7970, 0.0
    %v8057 = vadd.f32 %v8055, %v8056
    %v8058 = vsel %vm218, %v7971, 0.0
    %v8059 = vadd.f32 %v8057, %v8058
    %v8060 = vsel %vm218, %v7972, 0.0
    %v8061 = vadd.f32 %v8059, %v8060
    %v8062 = vsel %vm218, %v7973, 0.0
    %v8063 = vadd.f32 %v8061, %v8062
    %v8064 = vsel %vm218, %v7974, 0.0
    %v8065 = vadd.f32 %v8063, %v8064
    %v8066 = vsel %vm218, %v7975, 0.0
    %v8067 = vadd.f32 %v8065, %v8066
    %v8068 = vsel %vm218, %v7976, 0.0
    %v8069 = vadd.f32 %v8067, %v8068
    %v8070 = vsel %vm218, %v7977, 0.0
    %v8071 = vadd.f32 %v8069, %v8070
    %v8072 = vsel %vm218, %v7978, 0.0
    %v8073 = vadd.f32 %v8071, %v8072
    %v8074 = vrot.slane %v8073, 4
    %v8075 = vadd.f32 %v8073, %v8074
    %v8076 = vrot.slane %v8075, 2
    %v8077 = vadd.f32 %v8075, %v8076
    %v8078 = vrot.slane %v8077, 1
    %v8079 = vadd.f32 %v8077, %v8078
    %v8080 = vsel %vm218, %v7979, 0.0
    %v8081 = vsel %vm218, %v7980, 0.0
    %v8082 = vadd.f32 %v8080, %v8081
    %v8083 = vsel %vm218, %v7981, 0.0
    %v8084 = vadd.f32 %v8082, %v8083
    %v8085 = vsel %vm218, %v7982, 0.0
    %v8086 = vadd.f32 %v8084, %v8085
    %v8087 = vsel %vm218, %v7983, 0.0
    %v8088 = vadd.f32 %v8086, %v8087
    %v8089 = vsel %vm218, %v7984, 0.0
    %v8090 = vadd.f32 %v8088, %v8089
    %v8091 = vsel %vm218, %v7985, 0.0
    %v8092 = vadd.f32 %v8090, %v8091
    %v8093 = vsel %vm218, %v7986, 0.0
    %v8094 = vadd.f32 %v8092, %v8093
    %v8095 = vsel %vm218, %v7987, 0.0
    %v8096 = vadd.f32 %v8094, %v8095
    %v8097 = vsel %vm218, %v7988, 0.0
    %v8098 = vadd.f32 %v8096, %v8097
    %v8099 = vsel %vm218, %v7989, 0.0
    %v8100 = vadd.f32 %v8098, %v8099
    %v8101 = vsel %vm218, %v7990, 0.0
    %v8102 = vadd.f32 %v8100, %v8101
    %v8103 = vsel %vm218, %v7991, 0.0
    %v8104 = vadd.f32 %v8102, %v8103
    %v8105 = vsel %vm218, %v7992, 0.0
    %v8106 = vadd.f32 %v8104, %v8105
    %v8107 = vsel %vm218, %v7993, 0.0
    %v8108 = vadd.f32 %v8106, %v8107
    %v8109 = vsel %vm218, %v7994, 0.0
    %v8110 = vadd.f32 %v8108, %v8109
    %v8111 = vsel %vm218, %v7995, 0.0
    %v8112 = vadd.f32 %v8110, %v8111
    %v8113 = vsel %vm218, %v7996, 0.0
    %v8114 = vadd.f32 %v8112, %v8113
    %v8115 = vsel %vm218, %v7997, 0.0
    %v8116 = vadd.f32 %v8114, %v8115
    %v8117 = vsel %vm218, %v7998, 0.0
    %v8118 = vadd.f32 %v8116, %v8117
    %v8119 = vsel %vm218, %v7999, 0.0
    %v8120 = vadd.f32 %v8118, %v8119
    %v8121 = vsel %vm218, %v8000, 0.0
    %v8122 = vadd.f32 %v8120, %v8121
    %v8123 = vsel %vm218, %v8001, 0.0
    %v8124 = vadd.f32 %v8122, %v8123
    %v8125 = vsel %vm218, %v8002, 0.0
    %v8126 = vadd.f32 %v8124, %v8125
    %v8127 = vsel %vm218, %v8003, 0.0
    %v8128 = vadd.f32 %v8126, %v8127
    %v8129 = vsel %vm218, %v8004, 0.0
    %v8130 = vadd.f32 %v8128, %v8129
    %v8131 = vsel %vm218, %v8005, 0.0
    %v8132 = vadd.f32 %v8130, %v8131
    %v8133 = vsel %vm218, %v8006, 0.0
    %v8134 = vadd.f32 %v8132, %v8133
    %v8135 = vsel %vm218, %v8007, 0.0
    %v8136 = vadd.f32 %v8134, %v8135
    %v8137 = vsel %vm218, %v8008, 0.0
    %v8138 = vadd.f32 %v8136, %v8137
    %v8139 = vsel %vm218, %v8009, 0.0
    %v8140 = vadd.f32 %v8138, %v8139
    %v8141 = vsel %vm218, %v8010, 0.0
    %v8142 = vadd.f32 %v8140, %v8141
    %v8143 = vrot.slane %v8142, 4
    %v8144 = vadd.f32 %v8142, %v8143
    %v8145 = vrot.slane %v8144, 2
    %v8146 = vadd.f32 %v8144, %v8145
    %v8147 = vrot.slane %v8146, 1
    %v8148 = vadd.f32 %v8146, %v8147
    %v8149 = vrcp.pop 256.0
    %v8150 = vmul.f32 %v8079, %v8149
    %v8151 = vmul.f32 %v8148, %v8149
    %v8152 = vsel %vm218, %v7947, -inf
    %v8153 = vsel %vm218, %v7948, -inf
    %v8154 = vsel %vm218, %v7949, -inf
    %v8155 = vmax.f32 %v8152, %v8154
    %v8156 = vsel %vm218, %v7950, -inf
    %v8157 = vmax.f32 %v8153, %v8156
    %v8158 = vsel %vm218, %v7951, -inf
    %v8159 = vmax.f32 %v8155, %v8158
    %v8160 = vsel %vm218, %v7952, -inf
    %v8161 = vmax.f32 %v8157, %v8160
    %v8162 = vsel %vm218, %v7953, -inf
    %v8163 = vmax.f32 %v8159, %v8162
    %v8164 = vsel %vm218, %v7954, -inf
    %v8165 = vmax.f32 %v8161, %v8164
    %v8166 = vsel %vm218, %v7955, -inf
    %v8167 = vmax.f32 %v8163, %v8166
    %v8168 = vsel %vm218, %v7956, -inf
    %v8169 = vmax.f32 %v8165, %v8168
    %v8170 = vsel %vm218, %v7957, -inf
    %v8171 = vmax.f32 %v8167, %v8170
    %v8172 = vsel %vm218, %v7958, -inf
    %v8173 = vmax.f32 %v8169, %v8172
    %v8174 = vsel %vm218, %v7959, -inf
    %v8175 = vmax.f32 %v8171, %v8174
    %v8176 = vsel %vm218, %v7960, -inf
    %v8177 = vmax.f32 %v8173, %v8176
    %v8178 = vsel %vm218, %v7961, -inf
    %v8179 = vmax.f32 %v8175, %v8178
    %v8180 = vsel %vm218, %v7962, -inf
    %v8181 = vmax.f32 %v8177, %v8180
    %v8182 = vsel %vm218, %v7963, -inf
    %v8183 = vmax.f32 %v8179, %v8182
    %v8184 = vsel %vm218, %v7964, -inf
    %v8185 = vmax.f32 %v8181, %v8184
    %v8186 = vsel %vm218, %v7965, -inf
    %v8187 = vmax.f32 %v8183, %v8186
    %v8188 = vsel %vm218, %v7966, -inf
    %v8189 = vmax.f32 %v8185, %v8188
    %v8190 = vsel %vm218, %v7967, -inf
    %v8191 = vmax.f32 %v8187, %v8190
    %v8192 = vsel %vm218, %v7968, -inf
    %v8193 = vmax.f32 %v8189, %v8192
    %v8194 = vsel %vm218, %v7969, -inf
    %v8195 = vmax.f32 %v8191, %v8194
    %v8196 = vsel %vm218, %v7970, -inf
    %v8197 = vmax.f32 %v8193, %v8196
    %v8198 = vsel %vm218, %v7971, -inf
    %v8199 = vmax.f32 %v8195, %v8198
    %v8200 = vsel %vm218, %v7972, -inf
    %v8201 = vmax.f32 %v8197, %v8200
    %v8202 = vsel %vm218, %v7973, -inf
    %v8203 = vmax.f32 %v8199, %v8202
    %v8204 = vsel %vm218, %v7974, -inf
    %v8205 = vmax.f32 %v8201, %v8204
    %v8206 = vsel %vm218, %v7975, -inf
    %v8207 = vmax.f32 %v8203, %v8206
    %v8208 = vsel %vm218, %v7976, -inf
    %v8209 = vmax.f32 %v8205, %v8208
    %v8210 = vsel %vm218, %v7977, -inf
    %v8211 = vmax.f32 %v8207, %v8210
    %v8212 = vsel %vm218, %v7978, -inf
    %v8213 = vmax.f32 %v8209, %v8212
    %v8214 = vmax.f32 %v8211, %v8213
    %v8215 = vrot.slane %v8214, 4
    %v8216 = vmax.f32 %v8214, %v8215
    %v8217 = vrot.slane %v8216, 2
    %v8218 = vmax.f32 %v8216, %v8217
    %v8219 = vrot.slane %v8218, 1
    %v8220 = vmax.f32 %v8218, %v8219
    %v8221 = vsel %vm218, %v7979, -inf
    %v8222 = vsel %vm218, %v7980, -inf
    %v8223 = vsel %vm218, %v7981, -inf
    %v8224 = vmax.f32 %v8221, %v8223
    %v8225 = vsel %vm218, %v7982, -inf
    %v8226 = vmax.f32 %v8222, %v8225
    %v8227 = vsel %vm218, %v7983, -inf
    %v8228 = vmax.f32 %v8224, %v8227
    %v8229 = vsel %vm218, %v7984, -inf
    %v8230 = vmax.f32 %v8226, %v8229
    %v8231 = vsel %vm218, %v7985, -inf
    %v8232 = vmax.f32 %v8228, %v8231
    %v8233 = vsel %vm218, %v7986, -inf
    %v8234 = vmax.f32 %v8230, %v8233
    %v8235 = vsel %vm218, %v7987, -inf
    %v8236 = vmax.f32 %v8232, %v8235
    %v8237 = vsel %vm218, %v7988, -inf
    %v8238 = vmax.f32 %v8234, %v8237
    %v8239 = vsel %vm218, %v7989, -inf
    %v8240 = vmax.f32 %v8236, %v8239
    %v8241 = vsel %vm218, %v7990, -inf
    %v8242 = vmax.f32 %v8238, %v8241
    %v8243 = vsel %vm218, %v7991, -inf
    %v8244 = vmax.f32 %v8240, %v8243
    %v8245 = vsel %vm218, %v7992, -inf
    %v8246 = vmax.f32 %v8242, %v8245
    %v8247 = vsel %vm218, %v7993, -inf
    %v8248 = vmax.f32 %v8244, %v8247
    %v8249 = vsel %vm218, %v7994, -inf
    %v8250 = vmax.f32 %v8246, %v8249
    %v8251 = vsel %vm218, %v7995, -inf
    %v8252 = vmax.f32 %v8248, %v8251
    %v8253 = vsel %vm218, %v7996, -inf
    %v8254 = vmax.f32 %v8250, %v8253
    %v8255 = vsel %vm218, %v7997, -inf
    %v8256 = vmax.f32 %v8252, %v8255
    %v8257 = vsel %vm218, %v7998, -inf
    %v8258 = vmax.f32 %v8254, %v8257
    %v8259 = vsel %vm218, %v7999, -inf
    %v8260 = vmax.f32 %v8256, %v8259
    %v8261 = vsel %vm218, %v8000, -inf
    %v8262 = vmax.f32 %v8258, %v8261
    %v8263 = vsel %vm218, %v8001, -inf
    %v8264 = vmax.f32 %v8260, %v8263
    %v8265 = vsel %vm218, %v8002, -inf
    %v8266 = vmax.f32 %v8262, %v8265
    %v8267 = vsel %vm218, %v8003, -inf
    %v8268 = vmax.f32 %v8264, %v8267
    %v8269 = vsel %vm218, %v8004, -inf
    %v8270 = vmax.f32 %v8266, %v8269
    %v8271 = vsel %vm218, %v8005, -inf
    %v8272 = vmax.f32 %v8268, %v8271
    %v8273 = vsel %vm218, %v8006, -inf
    %v8274 = vmax.f32 %v8270, %v8273
    %v8275 = vsel %vm218, %v8007, -inf
    %v8276 = vmax.f32 %v8272, %v8275
    %v8277 = vsel %vm218, %v8008, -inf
    %v8278 = vmax.f32 %v8274, %v8277
    %v8279 = vsel %vm218, %v8009, -inf
    %v8280 = vmax.f32 %v8276, %v8279
    %v8281 = vsel %vm218, %v8010, -inf
    %v8282 = vmax.f32 %v8278, %v8281
    %v8283 = vmax.f32 %v8280, %v8282
    %v8284 = vrot.slane %v8283, 4
    %v8285 = vmax.f32 %v8283, %v8284
    %v8286 = vrot.slane %v8285, 2
    %v8287 = vmax.f32 %v8285, %v8286
    %v8288 = vrot.slane %v8287, 1
    %v8289 = vmax.f32 %v8287, %v8288
    %vm8292 = vcmask 1041409
    %v8293 = vsel %vm8292, %v8151, %v8150
    %vm8297 = vcmask 1043459
    %v8298 = vsel %vm8297, %v8289, %v8220
    %vm8300 = vcmask 1041408
    %v8301 = vsel %vm8300, %v8293, %v8298
    %v8302 = vld [vmem:[%s9] sm:$0xff]
    %v8303 = vld [vmem:[%s9 + $0x8] sm:$0xff]
    %v8304 = vld [vmem:[%s9 + $0x10] sm:$0xff]
    %v8305 = vld [vmem:[%s9 + $0x18] sm:$0xff]
    %v8307 = vsel %vm218, %v8301, 0
    %8309 = vmatprep.subr.mxu0 0.0
    %8310 = vmatpush1.msra.mxu0 %v8302
    %8311 = vmatprep.subr.mxu0 0.0
    %8312 = vmatpush1.msra.mxu0 %v8303
    %8313 = vmatprep.subr.mxu0 0.0
    %8314 = vmatpush1.msra.mxu0 %v8304
    %8315 = vmatprep.subr.mxu0 0.0
    %8316 = vmatpush1.msra.mxu0 %v8305
    %8317 = vmatprep.subr.mxu0 0.0
    %8318 = vmatpush1.msra.mxu0 0.0
    %8319 = vmatprep.subr.mxu0 0.0
    %8320 = vmatpush1.msra.mxu0 0.0
    %8321 = vmatprep.subr.mxu0 0.0
    %8322 = vmatpush1.msra.mxu0 0.0
    %8323 = vmatprep.subr.mxu0 0.0
    %8324 = vmatpush1.msra.mxu0 0.0
    %8325 = vmatprep.subr.mxu0 0.0
    %8326 = vmatpush1.msra.mxu0 0.0
    %8327 = vmatprep.subr.mxu0 0.0
    %8328 = vmatpush1.msra.mxu0 0.0
    %8329 = vmatprep.subr.mxu0 0.0
    %8330 = vmatpush1.msra.mxu0 0.0
    %8331 = vmatprep.subr.mxu0 0.0
    %8332 = vmatpush1.msra.mxu0 0.0
    %8333 = vmatprep.subr.mxu0 0.0
    %8334 = vmatpush1.msra.mxu0 0.0
    %8335 = vmatprep.subr.mxu0 0.0
    %8336 = vmatpush1.msra.mxu0 0.0
    %8337 = vmatprep.subr.mxu0 0.0
    %8338 = vmatpush1.msra.mxu0 0.0
    %8339 = vmatprep.subr.mxu0 0.0
    %8340 = vmatpush1.msra.mxu0 0.0
    %8341 = vmatprep.subr.mxu0 0.0
    %8342 = vmatpush1.msra.mxu0 0.0
    %8343 = vmatprep.subr.mxu0 0.0
    %8344 = vmatpush1.msra.mxu0 0.0
    %8345 = vmatprep.subr.mxu0 0.0
    %8346 = vmatpush1.msra.mxu0 0.0
    %8347 = vmatprep.subr.mxu0 0.0
    %8348 = vmatpush1.msra.mxu0 0.0
    %8349 = vmatprep.subr.mxu0 0.0
    %8350 = vmatpush1.msra.mxu0 0.0
    %8351 = vmatprep.subr.mxu0 0.0
    %8352 = vmatpush1.msra.mxu0 0.0
    %8353 = vmatprep.subr.mxu0 0.0
    %8354 = vmatpush1.msra.mxu0 0.0
    %8355 = vmatprep.subr.mxu0 0.0
    %8356 = vmatpush1.msra.mxu0 0.0
    %8357 = vmatprep.subr.mxu0 0.0
    %8358 = vmatpush1.msra.mxu0 0.0
    %8359 = vmatprep.subr.mxu0 0.0
    %8360 = vmatpush1.msra.mxu0 0.0
    %8361 = vmatprep.subr.mxu0 0.0
    %8362 = vmatpush1.msra.mxu0 0.0
    %8363 = vmatprep.subr.mxu0 0.0
    %8364 = vmatpush1.msra.mxu0 0.0
    %8365 = vmatprep.subr.mxu0 0.0
    %8366 = vmatpush1.msra.mxu0 0.0
    %8367 = vmatprep.subr.mxu0 0.0
    %8368 = vmatpush1.msra.mxu0 0.0
    %8369 = vmatprep.subr.mxu0 0.0
    %8370 = vmatpush1.msra.mxu0 0.0
    %8371 = vmatprep.subr.mxu0 0.0
    %8372 = vmatpush1.msra.mxu0 0.0
    %8373 = vmatprep.mubr.f32.mxu0 0.0
    %8374 = vmatmul.mubr.f32.gmra.mrb[0].mxu0 %v8307
    %v8375 = vpop.f32.mrb[0].mxu0
    %v8376 = vadd.f32 0.0, %v8375
    %v8377 = vpop.f32.mrb[0].mxu0
    %8378 = vdwg.mxu0
    %v8379 = vmax.f32 %v8376, 0.0
    %v8380 = vld [vmem:[%s10] sm:$0x3]
    %vm8381 = vcmask 15360
    %v8383 = vsel %vm8381, %v8379, 0
    %v8386 = vsel %vm8300, %v8380, 0
    %8388 = vmatprep.subr.mxu0 0.0
    %8389 = vmatpush1.msra.mxu0 %v8386
    %8390 = vmatprep.subr.mxu0 0.0
    %8391 = vmatpush1.msra.mxu0 0.0
    %8392 = vmatprep.subr.mxu0 0.0
    %8393 = vmatpush1.msra.mxu0 0.0
    %8394 = vmatprep.subr.mxu0 0.0
    %8395 = vmatpush1.msra.mxu0 0.0
    %8396 = vmatprep.subr.mxu0 0.0
    %8397 = vmatpush1.msra.mxu0 0.0
    %8398 = vmatprep.subr.mxu0 0.0
    %8399 = vmatpush1.msra.mxu0 0.0
    %8400 = vmatprep.subr.mxu0 0.0
    %8401 = vmatpush1.msra.mxu0 0.0
    %8402 = vmatprep.subr.mxu0 0.0
    %8403 = vmatpush1.msra.mxu0 0.0
    %8404 = vmatprep.subr.mxu0 0.0
    %8405 = vmatpush1.msra.mxu0 0.0
    %8406 = vmatprep.subr.mxu0 0.0
    %8407 = vmatpush1.msra.mxu0 0.0
    %8408 = vmatprep.subr.mxu0 0.0
    %8409 = vmatpush1.msra.mxu0 0.0
    %8410 = vmatprep.subr.mxu0 0.0
    %8411 = vmatpush1.msra.mxu0 0.0
    %8412 = vmatprep.subr.mxu0 0.0
    %8413 = vmatpush1.msra.mxu0 0.0
    %8414 = vmatprep.subr.mxu0 0.0
    %8415 = vmatpush1.msra.mxu0 0.0
    %8416 = vmatprep.subr.mxu0 0.0
    %8417 = vmatpush1.msra.mxu0 0.0
    %8418 = vmatprep.subr.mxu0 0.0
    %8419 = vmatpush1.msra.mxu0 0.0
    %8420 = vmatprep.subr.mxu0 0.0
    %8421 = vmatpush1.msra.mxu0 0.0
    %8422 = vmatprep.subr.mxu0 0.0
    %8423 = vmatpush1.msra.mxu0 0.0
    %8424 = vmatprep.subr.mxu0 0.0
    %8425 = vmatpush1.msra.mxu0 0.0
    %8426 = vmatprep.subr.mxu0 0.0
    %8427 = vmatpush1.msra.mxu0 0.0
    %8428 = vmatprep.subr.mxu0 0.0
    %8429 = vmatpush1.msra.mxu0 0.0
    %8430 = vmatprep.subr.mxu0 0.0
    %8431 = vmatpush1.msra.mxu0 0.0
    %8432 = vmatprep.subr.mxu0 0.0
    %8433 = vmatpush1.msra.mxu0 0.0
    %8434 = vmatprep.subr.mxu0 0.0
    %8435 = vmatpush1.msra.mxu0 0.0
    %8436 = vmatprep.subr.mxu0 0.0
    %8437 = vmatpush1.msra.mxu0 0.0
    %8438 = vmatprep.subr.mxu0 0.0
    %8439 = vmatpush1.msra.mxu0 0.0
    %8440 = vmatprep.subr.mxu0 0.0
    %8441 = vmatpush1.msra.mxu0 0.0
    %8442 = vmatprep.subr.mxu0 0.0
    %8443 = vmatpush1.msra.mxu0 0.0
    %8444 = vmatprep.subr.mxu0 0.0
    %8445 = vmatpush1.msra.mxu0 0.0
    %8446 = vmatprep.subr.mxu0 0.0
    %8447 = vmatpush1.msra.mxu0 0.0
    %8448 = vmatprep.subr.mxu0 0.0
    %8449 = vmatpush1.msra.mxu0 0.0
    %8450 = vmatprep.subr.mxu0 0.0
    %8451 = vmatpush1.msra.mxu0 0.0
    %8452 = vmatprep.mubr.f32.mxu0 0.0
    %8453 = vmatmul.mubr.f32.gmra.mrb[0].mxu0 %v8383
    %v8454 = vpop.f32.mrb[0].mxu0
    %v8455 = vadd.f32 0.0, %v8454
    %v8456 = vpop.f32.mrb[0].mxu0
    %8457 = vdwg.mxu0
    %v8459 = vrot.slane %v8455, 2
    %v8461 = vadd.f32 %v8455, %v8459
    %v8462 = vxor.u32 %v8461, 2147483648
    %v8463 = vmul.f32 %v8462, 1.442695
    %v8464 = vpow.pop %v8463
    %v8465 = vadd.f32 %v8464, 1.0
    %v8466 = vrcp.pop %v8465
    %v8467 = vmul.f32 1.0, %v8466
    %v8470 = vunpack.c.l.s4 1966171168
    %v8471 = vunpack.c.0.s8 %v8470
    %v8472 = vlaneseq
    %v8473 = vshrl.u32 %v8472, 7
    %v8474 = vsub.s32 %v8471, %v8473
    %v8475 = vrot.slane %v8467, %v8474
    %v8476 = vcombine.high %v8475, %v8475
    %v8478 = vunpack.c.l.s4 1966171168
    %v8479 = vunpack.c.0.s8 %v8478
    %v8480 = vlaneseq
    %v8481 = vshrl.u32 %v8480, 7
    %v8482 = vsub.s32 %v8479, %v8481
    %v8483 = vrot.slane %v8475, %v8482
    %v8485 = vunpack.c.l.s4 1966171168
    %v8486 = vunpack.c.0.s8 %v8485
    %v8487 = vlaneseq
    %v8488 = vshrl.u32 %v8487, 7
    %v8489 = vsub.s32 %v8486, %v8488
    %v8490 = vrot.slane %v8476, %v8489
    %v8491 = vlaneseq
    %v8492 = vshrl.u32 %v8491, 7
    %v8493 = vsub.s32 0, %v8492
    %v8494 = vrot.slane %v8483, %v8493
    %v8495 = vlaneseq
    %v8496 = vshrl.u32 %v8495, 7
    %v8497 = vsub.s32 0, %v8496
    %v8498 = vrot.slane %v8490, %v8497
    %v8501 = vmul.f32 %v7947, %v8494
    %v8502 = vmul.f32 %v7948, %v8494
    %v8503 = vmul.f32 %v7949, %v8494
    %v8504 = vmul.f32 %v7950, %v8494
    %v8505 = vmul.f32 %v7951, %v8494
    %v8506 = vmul.f32 %v7952, %v8494
    %v8507 = vmul.f32 %v7953, %v8494
    %v8508 = vmul.f32 %v7954, %v8494
    %v8509 = vmul.f32 %v7955, %v8494
    %v8510 = vmul.f32 %v7956, %v8494
    %v8511 = vmul.f32 %v7957, %v8494
    %v8512 = vmul.f32 %v7958, %v8494
    %v8513 = vmul.f32 %v7959, %v8494
    %v8514 = vmul.f32 %v7960, %v8494
    %v8515 = vmul.f32 %v7961, %v8494
    %v8516 = vmul.f32 %v7962, %v8494
    %v8517 = vmul.f32 %v7963, %v8494
    %v8518 = vmul.f32 %v7964, %v8494
    %v8519 = vmul.f32 %v7965, %v8494
    %v8520 = vmul.f32 %v7966, %v8494
    %v8521 = vmul.f32 %v7967, %v8494
    %v8522 = vmul.f32 %v7968, %v8494
    %v8523 = vmul.f32 %v7969, %v8494
    %v8524 = vmul.f32 %v7970, %v8494
    %v8525 = vmul.f32 %v7971, %v8494
    %v8526 = vmul.f32 %v7972, %v8494
    %v8527 = vmul.f32 %v7973, %v8494
    %v8528 = vmul.f32 %v7974, %v8494
    %v8529 = vmul.f32 %v7975, %v8494
    %v8530 = vmul.f32 %v7976, %v8494
    %v8531 = vmul.f32 %v7977, %v8494
    %v8532 = vmul.f32 %v7978, %v8494
    %v8533 = vmul.f32 %v7979, %v8498
    %v8534 = vmul.f32 %v7980, %v8498
    %v8535 = vmul.f32 %v7981, %v8498
    %v8536 = vmul.f32 %v7982, %v8498
    %v8537 = vmul.f32 %v7983, %v8498
    %v8538 = vmul.f32 %v7984, %v8498
    %v8539 = vmul.f32 %v7985, %v8498
    %v8540 = vmul.f32 %v7986, %v8498
    %v8541 = vmul.f32 %v7987, %v8498
    %v8542 = vmul.f32 %v7988, %v8498
    %v8543 = vmul.f32 %v7989, %v8498
    %v8544 = vmul.f32 %v7990, %v8498
    %v8545 = vmul.f32 %v7991, %v8498
    %v8546 = vmul.f32 %v7992, %v8498
    %v8547 = vmul.f32 %v7993, %v8498
    %v8548 = vmul.f32 %v7994, %v8498
    %v8549 = vmul.f32 %v7995, %v8498
    %v8550 = vmul.f32 %v7996, %v8498
    %v8551 = vmul.f32 %v7997, %v8498
    %v8552 = vmul.f32 %v7998, %v8498
    %v8553 = vmul.f32 %v7999, %v8498
    %v8554 = vmul.f32 %v8000, %v8498
    %v8555 = vmul.f32 %v8001, %v8498
    %v8556 = vmul.f32 %v8002, %v8498
    %v8557 = vmul.f32 %v8003, %v8498
    %v8558 = vmul.f32 %v8004, %v8498
    %v8559 = vmul.f32 %v8005, %v8498
    %v8560 = vmul.f32 %v8006, %v8498
    %v8561 = vmul.f32 %v8007, %v8498
    %v8562 = vmul.f32 %v8008, %v8498
    %v8563 = vmul.f32 %v8009, %v8498
    %v8564 = vmul.f32 %v8010, %v8498
    %vm8565 = vcmask 359424
    %8566 = vst.msk [vmem:[#allocation4] sm:$0xff] %vm8565, 0.0
    %8567 = vst.msk [vmem:[#allocation4 + $0x8] sm:$0xff] %vm8565, 0.0
    %vm8568 = vcmask 357376
    %8569 = vst.msk [vmem:[#allocation4 + $0x10] sm:$0x3f] %vm8568, 0.0
    %8570 = vst.msk [vmem:[#allocation4 + $0x18] sm:$0xff] %vm8565, 0.0
    %8571 = vst.msk [vmem:[#allocation4 + $0x20] sm:$0xff] %vm8565, 0.0
    %8572 = vst.msk [vmem:[#allocation4 + $0x28] sm:$0x3f] %vm8568, 0.0
    %v8573 = vsel %vm218, %v8501, 0.0
    %8574 = vadd.xlane.f32.xlu0 %v8573
    %v8575 = vpop.xlane.xlu0 %8574
    %v8576 = vsel %vm218, %v8502, 0.0
    %8577 = vadd.xlane.f32.xlu0 %v8576
    %v8578 = vpop.xlane.xlu0 %8577
    %v8579 = vsel %vm218, %v8503, 0.0
    %8580 = vadd.xlane.f32.xlu0 %v8579
    %v8581 = vpop.xlane.xlu0 %8580
    %v8582 = vsel %vm218, %v8504, 0.0
    %8583 = vadd.xlane.f32.xlu0 %v8582
    %v8584 = vpop.xlane.xlu0 %8583
    %v8585 = vsel %vm218, %v8505, 0.0
    %8586 = vadd.xlane.f32.xlu0 %v8585
    %v8587 = vpop.xlane.xlu0 %8586
    %v8588 = vsel %vm218, %v8506, 0.0
    %8589 = vadd.xlane.f32.xlu0 %v8588
    %v8590 = vpop.xlane.xlu0 %8589
    %v8591 = vsel %vm218, %v8507, 0.0
    %8592 = vadd.xlane.f32.xlu0 %v8591
    %v8593 = vpop.xlane.xlu0 %8592
    %v8594 = vsel %vm218, %v8508, 0.0
    %8595 = vadd.xlane.f32.xlu0 %v8594
    %v8596 = vpop.xlane.xlu0 %8595
    %v8597 = vsel %vm218, %v8509, 0.0
    %8598 = vadd.xlane.f32.xlu0 %v8597
    %v8599 = vpop.xlane.xlu0 %8598
    %v8600 = vsel %vm218, %v8510, 0.0
    %8601 = vadd.xlane.f32.xlu0 %v8600
    %v8602 = vpop.xlane.xlu0 %8601
    %v8603 = vsel %vm218, %v8511, 0.0
    %8604 = vadd.xlane.f32.xlu0 %v8603
    %v8605 = vpop.xlane.xlu0 %8604
    %v8606 = vsel %vm218, %v8512, 0.0
    %8607 = vadd.xlane.f32.xlu0 %v8606
    %v8608 = vpop.xlane.xlu0 %8607
    %v8609 = vsel %vm218, %v8513, 0.0
    %8610 = vadd.xlane.f32.xlu0 %v8609
    %v8611 = vpop.xlane.xlu0 %8610
    %v8612 = vsel %vm218, %v8514, 0.0
    %8613 = vadd.xlane.f32.xlu0 %v8612
    %v8614 = vpop.xlane.xlu0 %8613
    %v8615 = vsel %vm218, %v8515, 0.0
    %8616 = vadd.xlane.f32.xlu0 %v8615
    %v8617 = vpop.xlane.xlu0 %8616
    %v8618 = vsel %vm218, %v8516, 0.0
    %8619 = vadd.xlane.f32.xlu0 %v8618
    %v8620 = vpop.xlane.xlu0 %8619
    %v8621 = vsel %vm218, %v8517, 0.0
    %8622 = vadd.xlane.f32.xlu0 %v8621
    %v8623 = vpop.xlane.xlu0 %8622
    %v8624 = vsel %vm218, %v8518, 0.0
    %8625 = vadd.xlane.f32.xlu0 %v8624
    %v8626 = vpop.xlane.xlu0 %8625
    %v8627 = vsel %vm218, %v8519, 0.0
    %8628 = vadd.xlane.f32.xlu0 %v8627
    %v8629 = vpop.xlane.xlu0 %8628
    %v8630 = vsel %vm218, %v8520, 0.0
    %8631 = vadd.xlane.f32.xlu0 %v8630
    %v8632 = vpop.xlane.xlu0 %8631
    %v8633 = vsel %vm218, %v8521, 0.0
    %8634 = vadd.xlane.f32.xlu0 %v8633
    %v8635 = vpop.xlane.xlu0 %8634
    %v8636 = vsel %vm218, %v8522, 0.0
    %8637 = vadd.xlane.f32.xlu0 %v8636
    %v8638 = vpop.xlane.xlu0 %8637
    %v8639 = vsel %vm218, %v8523, 0.0
    %8640 = vadd.xlane.f32.xlu0 %v8639
    %v8641 = vpop.xlane.xlu0 %8640
    %v8642 = vsel %vm218, %v8524, 0.0
    %8643 = vadd.xlane.f32.xlu0 %v8642
    %v8644 = vpop.xlane.xlu0 %8643
    %v8645 = vsel %vm218, %v8525, 0.0
    %8646 = vadd.xlane.f32.xlu0 %v8645
    %v8647 = vpop.xlane.xlu0 %8646
    %v8648 = vsel %vm218, %v8526, 0.0
    %8649 = vadd.xlane.f32.xlu0 %v8648
    %v8650 = vpop.xlane.xlu0 %8649
    %v8651 = vsel %vm218, %v8527, 0.0
    %8652 = vadd.xlane.f32.xlu0 %v8651
    %v8653 = vpop.xlane.xlu0 %8652
    %v8654 = vsel %vm218, %v8528, 0.0
    %8655 = vadd.xlane.f32.xlu0 %v8654
    %v8656 = vpop.xlane.xlu0 %8655
    %v8657 = vsel %vm218, %v8529, 0.0
    %8658 = vadd.xlane.f32.xlu0 %v8657
    %v8659 = vpop.xlane.xlu0 %8658
    %v8660 = vsel %vm218, %v8530, 0.0
    %8661 = vadd.xlane.f32.xlu0 %v8660
    %v8662 = vpop.xlane.xlu0 %8661
    %v8663 = vsel %vm218, %v8531, 0.0
    %8664 = vadd.xlane.f32.xlu0 %v8663
    %v8665 = vpop.xlane.xlu0 %8664
    %v8666 = vsel %vm218, %v8532, 0.0
    %8667 = vadd.xlane.f32.xlu0 %v8666
    %v8668 = vpop.xlane.xlu0 %8667
    %v8669 = vsel %vm218, %v8533, 0.0
    %8670 = vadd.xlane.f32.xlu0 %v8669
    %v8671 = vpop.xlane.xlu0 %8670
    %v8672 = vsel %vm218, %v8534, 0.0
    %8673 = vadd.xlane.f32.xlu0 %v8672
    %v8674 = vpop.xlane.xlu0 %8673
    %v8675 = vsel %vm218, %v8535, 0.0
    %8676 = vadd.xlane.f32.xlu0 %v8675
    %v8677 = vpop.xlane.xlu0 %8676
    %v8678 = vsel %vm218, %v8536, 0.0
    %8679 = vadd.xlane.f32.xlu0 %v8678
    %v8680 = vpop.xlane.xlu0 %8679
    %v8681 = vsel %vm218, %v8537, 0.0
    %8682 = vadd.xlane.f32.xlu0 %v8681
    %v8683 = vpop.xlane.xlu0 %8682
    %v8684 = vsel %vm218, %v8538, 0.0
    %8685 = vadd.xlane.f32.xlu0 %v8684
    %v8686 = vpop.xlane.xlu0 %8685
    %v8687 = vsel %vm218, %v8539, 0.0
    %8688 = vadd.xlane.f32.xlu0 %v8687
    %v8689 = vpop.xlane.xlu0 %8688
    %v8690 = vsel %vm218, %v8540, 0.0
    %8691 = vadd.xlane.f32.xlu0 %v8690
    %v8692 = vpop.xlane.xlu0 %8691
    %v8693 = vsel %vm218, %v8541, 0.0
    %8694 = vadd.xlane.f32.xlu0 %v8693
    %v8695 = vpop.xlane.xlu0 %8694
    %v8696 = vsel %vm218, %v8542, 0.0
    %8697 = vadd.xlane.f32.xlu0 %v8696
    %v8698 = vpop.xlane.xlu0 %8697
    %v8699 = vsel %vm218, %v8543, 0.0
    %8700 = vadd.xlane.f32.xlu0 %v8699
    %v8701 = vpop.xlane.xlu0 %8700
    %v8702 = vsel %vm218, %v8544, 0.0
    %8703 = vadd.xlane.f32.xlu0 %v8702
    %v8704 = vpop.xlane.xlu0 %8703
    %v8705 = vsel %vm218, %v8545, 0.0
    %8706 = vadd.xlane.f32.xlu0 %v8705
    %v8707 = vpop.xlane.xlu0 %8706
    %v8708 = vsel %vm218, %v8546, 0.0
    %8709 = vadd.xlane.f32.xlu0 %v8708
    %v8710 = vpop.xlane.xlu0 %8709
    %v8711 = vsel %vm218, %v8547, 0.0
    %8712 = vadd.xlane.f32.xlu0 %v8711
    %v8713 = vpop.xlane.xlu0 %8712
    %v8714 = vsel %vm218, %v8548, 0.0
    %8715 = vadd.xlane.f32.xlu0 %v8714
    %v8716 = vpop.xlane.xlu0 %8715
    %v8717 = vsel %vm218, %v8549, 0.0
    %8718 = vadd.xlane.f32.xlu0 %v8717
    %v8719 = vpop.xlane.xlu0 %8718
    %v8720 = vsel %vm218, %v8550, 0.0
    %8721 = vadd.xlane.f32.xlu0 %v8720
    %v8722 = vpop.xlane.xlu0 %8721
    %v8723 = vsel %vm218, %v8551, 0.0
    %8724 = vadd.xlane.f32.xlu0 %v8723
    %v8725 = vpop.xlane.xlu0 %8724
    %v8726 = vsel %vm218, %v8552, 0.0
    %8727 = vadd.xlane.f32.xlu0 %v8726
    %v8728 = vpop.xlane.xlu0 %8727
    %v8729 = vsel %vm218, %v8553, 0.0
    %8730 = vadd.xlane.f32.xlu0 %v8729
    %v8731 = vpop.xlane.xlu0 %8730
    %v8732 = vsel %vm218, %v8554, 0.0
    %8733 = vadd.xlane.f32.xlu0 %v8732
    %v8734 = vpop.xlane.xlu0 %8733
    %v8735 = vsel %vm218, %v8555, 0.0
    %8736 = vadd.xlane.f32.xlu0 %v8735
    %v8737 = vpop.xlane.xlu0 %8736
    %v8738 = vsel %vm218, %v8556, 0.0
    %8739 = vadd.xlane.f32.xlu0 %v8738
    %v8740 = vpop.xlane.xlu0 %8739
    %v8741 = vsel %vm218, %v8557, 0.0
    %8742 = vadd.xlane.f32.xlu0 %v8741
    %v8743 = vpop.xlane.xlu0 %8742
    %v8744 = vsel %vm218, %v8558, 0.0
    %8745 = vadd.xlane.f32.xlu0 %v8744
    %v8746 = vpop.xlane.xlu0 %8745
    %v8747 = vsel %vm218, %v8559, 0.0
    %8748 = vadd.xlane.f32.xlu0 %v8747
    %v8749 = vpop.xlane.xlu0 %8748
    %v8750 = vsel %vm218, %v8560, 0.0
    %8751 = vadd.xlane.f32.xlu0 %v8750
    %v8752 = vpop.xlane.xlu0 %8751
    %v8753 = vsel %vm218, %v8561, 0.0
    %8754 = vadd.xlane.f32.xlu0 %v8753
    %v8755 = vpop.xlane.xlu0 %8754
    %v8756 = vsel %vm218, %v8562, 0.0
    %8757 = vadd.xlane.f32.xlu0 %v8756
    %v8758 = vpop.xlane.xlu0 %8757
    %v8759 = vsel %vm218, %v8563, 0.0
    %8760 = vadd.xlane.f32.xlu0 %v8759
    %v8761 = vpop.xlane.xlu0 %8760
    %v8762 = vsel %vm218, %v8564, 0.0
    %8763 = vadd.xlane.f32.xlu0 %v8762
    %v8764 = vpop.xlane.xlu0 %8763
    %v8765 = vrcp.pop 32.0
    %v8766 = vmul.f32 %v8575, %v8765
    %v8767 = vmul.f32 %v8578, %v8765
    %v8768 = vmul.f32 %v8581, %v8765
    %v8769 = vmul.f32 %v8584, %v8765
    %v8770 = vmul.f32 %v8587, %v8765
    %v8771 = vmul.f32 %v8590, %v8765
    %v8772 = vmul.f32 %v8593, %v8765
    %v8773 = vmul.f32 %v8596, %v8765
    %v8774 = vmul.f32 %v8599, %v8765
    %v8775 = vmul.f32 %v8602, %v8765
    %v8776 = vmul.f32 %v8605, %v8765
    %v8777 = vmul.f32 %v8608, %v8765
    %v8778 = vmul.f32 %v8611, %v8765
    %v8779 = vmul.f32 %v8614, %v8765
    %v8780 = vmul.f32 %v8617, %v8765
    %v8781 = vmul.f32 %v8620, %v8765
    %v8782 = vmul.f32 %v8623, %v8765
    %v8783 = vmul.f32 %v8626, %v8765
    %v8784 = vmul.f32 %v8629, %v8765
    %v8785 = vmul.f32 %v8632, %v8765
    %v8786 = vmul.f32 %v8635, %v8765
    %v8787 = vmul.f32 %v8638, %v8765
    %v8788 = vmul.f32 %v8641, %v8765
    %v8789 = vmul.f32 %v8644, %v8765
    %v8790 = vmul.f32 %v8647, %v8765
    %v8791 = vmul.f32 %v8650, %v8765
    %v8792 = vmul.f32 %v8653, %v8765
    %v8793 = vmul.f32 %v8656, %v8765
    %v8794 = vmul.f32 %v8659, %v8765
    %v8795 = vmul.f32 %v8662, %v8765
    %v8796 = vmul.f32 %v8665, %v8765
    %v8797 = vmul.f32 %v8668, %v8765
    %v8798 = vmul.f32 %v8671, %v8765
    %v8799 = vmul.f32 %v8674, %v8765
    %v8800 = vmul.f32 %v8677, %v8765
    %v8801 = vmul.f32 %v8680, %v8765
    %v8802 = vmul.f32 %v8683, %v8765
    %v8803 = vmul.f32 %v8686, %v8765
    %v8804 = vmul.f32 %v8689, %v8765
    %v8805 = vmul.f32 %v8692, %v8765
    %v8806 = vmul.f32 %v8695, %v8765
    %v8807 = vmul.f32 %v8698, %v8765
    %v8808 = vmul.f32 %v8701, %v8765
    %v8809 = vmul.f32 %v8704, %v8765
    %v8810 = vmul.f32 %v8707, %v8765
    %v8811 = vmul.f32 %v8710, %v8765
    %v8812 = vmul.f32 %v8713, %v8765
    %v8813 = vmul.f32 %v8716, %v8765
    %v8814 = vmul.f32 %v8719, %v8765
    %v8815 = vmul.f32 %v8722, %v8765
    %v8816 = vmul.f32 %v8725, %v8765
    %v8817 = vmul.f32 %v8728, %v8765
    %v8818 = vmul.f32 %v8731, %v8765
    %v8819 = vmul.f32 %v8734, %v8765
    %v8820 = vmul.f32 %v8737, %v8765
    %v8821 = vmul.f32 %v8740, %v8765
    %v8822 = vmul.f32 %v8743, %v8765
    %v8823 = vmul.f32 %v8746, %v8765
    %v8824 = vmul.f32 %v8749, %v8765
    %v8825 = vmul.f32 %v8752, %v8765
    %v8826 = vmul.f32 %v8755, %v8765
    %v8827 = vmul.f32 %v8758, %v8765
    %v8828 = vmul.f32 %v8761, %v8765
    %v8829 = vmul.f32 %v8764, %v8765
    %v8894 = vlaneseq
    %v8895 = vand.u32 %v8894, 127
    %v8896 = vadd.s32 %v8895, 4294967293
    %v8897 = vlaneseq
    %v8898 = vshrl.u32 %v8897, 7
    %v8899 = vsub.s32 %v8896, %v8898
    %v8900 = vrot.slane %v8766, %v8899
    %v8901 = vadd.s32 %v8895, 4294967285
    %v8902 = vlaneseq
    %v8903 = vshrl.u32 %v8902, 7
    %v8904 = vsub.s32 %v8901, %v8903
    %v8905 = vrot.slane %v8767, %v8904
    %vm8906 = vcmask 154712
    %v8907 = vsel %vm8906, %v8905, %v8900
    %v8908 = vlaneseq
    %v8909 = vshrl.u32 %v8908, 7
    %v8910 = vsub.s32 %v8896, %v8909
    %v8911 = vrot.slane %v8768, %v8910
    %v8912 = vlaneseq
    %v8913 = vshrl.u32 %v8912, 7
    %v8914 = vsub.s32 %v8901, %v8913
    %v8915 = vrot.slane %v8769, %v8914
    %v8916 = vsel %vm8906, %v8915, %v8911
    %v8917 = vlaneseq
    %v8918 = vshrl.u32 %v8917, 7
    %v8919 = vsub.s32 %v8896, %v8918
    %v8920 = vrot.slane %v8770, %v8919
    %v8921 = vlaneseq
    %v8922 = vshrl.u32 %v8921, 7
    %v8923 = vsub.s32 %v8901, %v8922
    %v8924 = vrot.slane %v8771, %v8923
    %v8925 = vsel %vm8906, %v8924, %v8920
    %v8926 = vlaneseq
    %v8927 = vshrl.u32 %v8926, 7
    %v8928 = vsub.s32 %v8896, %v8927
    %v8929 = vrot.slane %v8772, %v8928
    %v8930 = vlaneseq
    %v8931 = vshrl.u32 %v8930, 7
    %v8932 = vsub.s32 %v8901, %v8931
    %v8933 = vrot.slane %v8773, %v8932
    %v8934 = vsel %vm8906, %v8933, %v8929
    %v8935 = vlaneseq
    %v8936 = vshrl.u32 %v8935, 7
    %v8937 = vsub.s32 %v8896, %v8936
    %v8938 = vrot.slane %v8774, %v8937
    %v8939 = vlaneseq
    %v8940 = vshrl.u32 %v8939, 7
    %v8941 = vsub.s32 %v8901, %v8940
    %v8942 = vrot.slane %v8775, %v8941
    %v8943 = vsel %vm8906, %v8942, %v8938
    %v8944 = vlaneseq
    %v8945 = vshrl.u32 %v8944, 7
    %v8946 = vsub.s32 %v8896, %v8945
    %v8947 = vrot.slane %v8776, %v8946
    %v8948 = vlaneseq
    %v8949 = vshrl.u32 %v8948, 7
    %v8950 = vsub.s32 %v8901, %v8949
    %v8951 = vrot.slane %v8777, %v8950
    %v8952 = vsel %vm8906, %v8951, %v8947
    %v8953 = vlaneseq
    %v8954 = vshrl.u32 %v8953, 7
    %v8955 = vsub.s32 %v8896, %v8954
    %v8956 = vrot.slane %v8778, %v8955
    %v8957 = vlaneseq
    %v8958 = vshrl.u32 %v8957, 7
    %v8959 = vsub.s32 %v8901, %v8958
    %v8960 = vrot.slane %v8779, %v8959
    %v8961 = vsel %vm8906, %v8960, %v8956
    %v8962 = vlaneseq
    %v8963 = vshrl.u32 %v8962, 7
    %v8964 = vsub.s32 %v8896, %v8963
    %v8965 = vrot.slane %v8780, %v8964
    %v8966 = vlaneseq
    %v8967 = vshrl.u32 %v8966, 7
    %v8968 = vsub.s32 %v8901, %v8967
    %v8969 = vrot.slane %v8781, %v8968
    %v8970 = vsel %vm8906, %v8969, %v8965
    %v8971 = vlaneseq
    %v8972 = vshrl.u32 %v8971, 7
    %v8973 = vsub.s32 %v8896, %v8972
    %v8974 = vrot.slane %v8782, %v8973
    %v8975 = vlaneseq
    %v8976 = vshrl.u32 %v8975, 7
    %v8977 = vsub.s32 %v8901, %v8976
    %v8978 = vrot.slane %v8783, %v8977
    %v8979 = vsel %vm8906, %v8978, %v8974
    %v8980 = vlaneseq
    %v8981 = vshrl.u32 %v8980, 7
    %v8982 = vsub.s32 %v8896, %v8981
    %v8983 = vrot.slane %v8784, %v8982
    %v8984 = vlaneseq
    %v8985 = vshrl.u32 %v8984, 7
    %v8986 = vsub.s32 %v8901, %v8985
    %v8987 = vrot.slane %v8785, %v8986
    %v8988 = vsel %vm8906, %v8987, %v8983
    %v8989 = vlaneseq
    %v8990 = vshrl.u32 %v8989, 7
    %v8991 = vsub.s32 %v8896, %v8990
    %v8992 = vrot.slane %v8786, %v8991
    %v8993 = vlaneseq
    %v8994 = vshrl.u32 %v8993, 7
    %v8995 = vsub.s32 %v8901, %v8994
    %v8996 = vrot.slane %v8787, %v8995
    %v8997 = vsel %vm8906, %v8996, %v8992
    %v8998 = vlaneseq
    %v8999 = vshrl.u32 %v8998, 7
    %v9000 = vsub.s32 %v8896, %v8999
    %v9001 = vrot.slane %v8788, %v9000
    %v9002 = vlaneseq
    %v9003 = vshrl.u32 %v9002, 7
    %v9004 = vsub.s32 %v8901, %v9003
    %v9005 = vrot.slane %v8789, %v9004
    %v9006 = vsel %vm8906, %v9005, %v9001
    %v9007 = vlaneseq
    %v9008 = vshrl.u32 %v9007, 7
    %v9009 = vsub.s32 %v8896, %v9008
    %v9010 = vrot.slane %v8790, %v9009
    %v9011 = vlaneseq
    %v9012 = vshrl.u32 %v9011, 7
    %v9013 = vsub.s32 %v8901, %v9012
    %v9014 = vrot.slane %v8791, %v9013
    %v9015 = vsel %vm8906, %v9014, %v9010
    %v9016 = vlaneseq
    %v9017 = vshrl.u32 %v9016, 7
    %v9018 = vsub.s32 %v8896, %v9017
    %v9019 = vrot.slane %v8792, %v9018
    %v9020 = vlaneseq
    %v9021 = vshrl.u32 %v9020, 7
    %v9022 = vsub.s32 %v8901, %v9021
    %v9023 = vrot.slane %v8793, %v9022
    %v9024 = vsel %vm8906, %v9023, %v9019
    %v9025 = vlaneseq
    %v9026 = vshrl.u32 %v9025, 7
    %v9027 = vsub.s32 %v8896, %v9026
    %v9028 = vrot.slane %v8794, %v9027
    %v9029 = vlaneseq
    %v9030 = vshrl.u32 %v9029, 7
    %v9031 = vsub.s32 %v8901, %v9030
    %v9032 = vrot.slane %v8795, %v9031
    %v9033 = vsel %vm8906, %v9032, %v9028
    %v9034 = vlaneseq
    %v9035 = vshrl.u32 %v9034, 7
    %v9036 = vsub.s32 %v8896, %v9035
    %v9037 = vrot.slane %v8796, %v9036
    %v9038 = vlaneseq
    %v9039 = vshrl.u32 %v9038, 7
    %v9040 = vsub.s32 %v8901, %v9039
    %v9041 = vrot.slane %v8797, %v9040
    %v9042 = vsel %vm8906, %v9041, %v9037
    %v9043 = vlaneseq
    %v9044 = vshrl.u32 %v9043, 7
    %v9045 = vsub.s32 %v8896, %v9044
    %v9046 = vrot.slane %v8798, %v9045
    %v9047 = vlaneseq
    %v9048 = vshrl.u32 %v9047, 7
    %v9049 = vsub.s32 %v8901, %v9048
    %v9050 = vrot.slane %v8799, %v9049
    %v9051 = vsel %vm8906, %v9050, %v9046
    %v9052 = vlaneseq
    %v9053 = vshrl.u32 %v9052, 7
    %v9054 = vsub.s32 %v8896, %v9053
    %v9055 = vrot.slane %v8800, %v9054
    %v9056 = vlaneseq
    %v9057 = vshrl.u32 %v9056, 7
    %v9058 = vsub.s32 %v8901, %v9057
    %v9059 = vrot.slane %v8801, %v9058
    %v9060 = vsel %vm8906, %v9059, %v9055
    %v9061 = vlaneseq
    %v9062 = vshrl.u32 %v9061, 7
    %v9063 = vsub.s32 %v8896, %v9062
    %v9064 = vrot.slane %v8802, %v9063
    %v9065 = vlaneseq
    %v9066 = vshrl.u32 %v9065, 7
    %v9067 = vsub.s32 %v8901, %v9066
    %v9068 = vrot.slane %v8803, %v9067
    %v9069 = vsel %vm8906, %v9068, %v9064
    %v9070 = vlaneseq
    %v9071 = vshrl.u32 %v9070, 7
    %v9072 = vsub.s32 %v8896, %v9071
    %v9073 = vrot.slane %v8804, %v9072
    %v9074 = vlaneseq
    %v9075 = vshrl.u32 %v9074, 7
    %v9076 = vsub.s32 %v8901, %v9075
    %v9077 = vrot.slane %v8805, %v9076
    %v9078 = vsel %vm8906, %v9077, %v9073
    %v9079 = vlaneseq
    %v9080 = vshrl.u32 %v9079, 7
    %v9081 = vsub.s32 %v8896, %v9080
    %v9082 = vrot.slane %v8806, %v9081
    %v9083 = vlaneseq
    %v9084 = vshrl.u32 %v9083, 7
    %v9085 = vsub.s32 %v8901, %v9084
    %v9086 = vrot.slane %v8807, %v9085
    %v9087 = vsel %vm8906, %v9086, %v9082
    %v9088 = vlaneseq
    %v9089 = vshrl.u32 %v9088, 7
    %v9090 = vsub.s32 %v8896, %v9089
    %v9091 = vrot.slane %v8808, %v9090
    %v9092 = vlaneseq
    %v9093 = vshrl.u32 %v9092, 7
    %v9094 = vsub.s32 %v8901, %v9093
    %v9095 = vrot.slane %v8809, %v9094
    %v9096 = vsel %vm8906, %v9095, %v9091
    %v9097 = vlaneseq
    %v9098 = vshrl.u32 %v9097, 7
    %v9099 = vsub.s32 %v8896, %v9098
    %v9100 = vrot.slane %v8810, %v9099
    %v9101 = vlaneseq
    %v9102 = vshrl.u32 %v9101, 7
    %v9103 = vsub.s32 %v8901, %v9102
    %v9104 = vrot.slane %v8811, %v9103
    %v9105 = vsel %vm8906, %v9104, %v9100
    %v9106 = vlaneseq
    %v9107 = vshrl.u32 %v9106, 7
    %v9108 = vsub.s32 %v8896, %v9107
    %v9109 = vrot.slane %v8812, %v9108
    %v9110 = vlaneseq
    %v9111 = vshrl.u32 %v9110, 7
    %v9112 = vsub.s32 %v8901, %v9111
    %v9113 = vrot.slane %v8813, %v9112
    %v9114 = vsel %vm8906, %v9113, %v9109
    %v9115 = vlaneseq
    %v9116 = vshrl.u32 %v9115, 7
    %v9117 = vsub.s32 %v8896, %v9116
    %v9118 = vrot.slane %v8814, %v9117
    %v9119 = vlaneseq
    %v9120 = vshrl.u32 %v9119, 7
    %v9121 = vsub.s32 %v8901, %v9120
    %v9122 = vrot.slane %v8815, %v9121
    %v9123 = vsel %vm8906, %v9122, %v9118
    %v9124 = vlaneseq
    %v9125 = vshrl.u32 %v9124, 7
    %v9126 = vsub.s32 %v8896, %v9125
    %v9127 = vrot.slane %v8816, %v9126
    %v9128 = vlaneseq
    %v9129 = vshrl.u32 %v9128, 7
    %v9130 = vsub.s32 %v8901, %v9129
    %v9131 = vrot.slane %v8817, %v9130
    %v9132 = vsel %vm8906, %v9131, %v9127
    %v9133 = vlaneseq
    %v9134 = vshrl.u32 %v9133, 7
    %v9135 = vsub.s32 %v8896, %v9134
    %v9136 = vrot.slane %v8818, %v9135
    %v9137 = vlaneseq
    %v9138 = vshrl.u32 %v9137, 7
    %v9139 = vsub.s32 %v8901, %v9138
    %v9140 = vrot.slane %v8819, %v9139
    %v9141 = vsel %vm8906, %v9140, %v9136
    %v9142 = vlaneseq
    %v9143 = vshrl.u32 %v9142, 7
    %v9144 = vsub.s32 %v8896, %v9143
    %v9145 = vrot.slane %v8820, %v9144
    %v9146 = vlaneseq
    %v9147 = vshrl.u32 %v9146, 7
    %v9148 = vsub.s32 %v8901, %v9147
    %v9149 = vrot.slane %v8821, %v9148
    %v9150 = vsel %vm8906, %v9149, %v9145
    %v9151 = vlaneseq
    %v9152 = vshrl.u32 %v9151, 7
    %v9153 = vsub.s32 %v8896, %v9152
    %v9154 = vrot.slane %v8822, %v9153
    %v9155 = vlaneseq
    %v9156 = vshrl.u32 %v9155, 7
    %v9157 = vsub.s32 %v8901, %v9156
    %v9158 = vrot.slane %v8823, %v9157
    %v9159 = vsel %vm8906, %v9158, %v9154
    %v9160 = vlaneseq
    %v9161 = vshrl.u32 %v9160, 7
    %v9162 = vsub.s32 %v8896, %v9161
    %v9163 = vrot.slane %v8824, %v9162
    %v9164 = vlaneseq
    %v9165 = vshrl.u32 %v9164, 7
    %v9166 = vsub.s32 %v8901, %v9165
    %v9167 = vrot.slane %v8825, %v9166
    %v9168 = vsel %vm8906, %v9167, %v9163
    %v9169 = vlaneseq
    %v9170 = vshrl.u32 %v9169, 7
    %v9171 = vsub.s32 %v8896, %v9170
    %v9172 = vrot.slane %v8826, %v9171
    %v9173 = vlaneseq
    %v9174 = vshrl.u32 %v9173, 7
    %v9175 = vsub.s32 %v8901, %v9174
    %v9176 = vrot.slane %v8827, %v9175
    %v9177 = vsel %vm8906, %v9176, %v9172
    %v9178 = vlaneseq
    %v9179 = vshrl.u32 %v9178, 7
    %v9180 = vsub.s32 %v8896, %v9179
    %v9181 = vrot.slane %v8828, %v9180
    %v9182 = vlaneseq
    %v9183 = vshrl.u32 %v9182, 7
    %v9184 = vsub.s32 %v8901, %v9183
    %v9185 = vrot.slane %v8829, %v9184
    %v9186 = vsel %vm8906, %v9185, %v9181
    %v9187 = vsel %vm8292, %v8916, %v8907
    %vm9188 = vcmask 1042434
    %v9189 = vsel %vm9188, %v8925, %v9187
    %v9190 = vsel %vm8297, %v8934, %v9189
    %vm9191 = vcmask 1044484
    %v9192 = vsel %vm9191, %v8943, %v9190
    %vm9193 = vcmask 1045509
    %v9194 = vsel %vm9193, %v8952, %v9192
    %vm9195 = vcmask 1046534
    %v9196 = vsel %vm9195, %v8961, %v9194
    %vm9197 = vcmask 1047559
    %v9198 = vsel %vm9197, %v8970, %v9196
    %v9199 = vsel %vm8292, %v8988, %v8979
    %v9200 = vsel %vm9188, %v8997, %v9199
    %v9201 = vsel %vm8297, %v9006, %v9200
    %v9202 = vsel %vm9191, %v9015, %v9201
    %v9203 = vsel %vm9193, %v9024, %v9202
    %v9204 = vsel %vm9195, %v9033, %v9203
    %v9205 = vsel %vm9197, %v9042, %v9204
    %v9206 = vsel %vm8292, %v9060, %v9051
    %v9207 = vsel %vm9188, %v9069, %v9206
    %v9208 = vsel %vm8297, %v9078, %v9207
    %v9209 = vsel %vm9191, %v9087, %v9208
    %v9210 = vsel %vm9193, %v9096, %v9209
    %v9211 = vsel %vm9195, %v9105, %v9210
    %v9212 = vsel %vm9197, %v9114, %v9211
    %v9213 = vsel %vm8292, %v9132, %v9123
    %v9214 = vsel %vm9188, %v9141, %v9213
    %v9215 = vsel %vm8297, %v9150, %v9214
    %v9216 = vsel %vm9191, %v9159, %v9215
    %v9217 = vsel %vm9193, %v9168, %v9216
    %v9218 = vsel %vm9195, %v9177, %v9217
    %v9219 = vsel %vm9197, %v9186, %v9218
    %vm9224 = vcmask 154648
    %9225 = vst.msk [vmem:[#allocation4 + $0x3] sm:$0xff] %vm9224, %v9198
    %9226 = vst.msk [vmem:[#allocation4 + $0xb] sm:$0xff] %vm9224, %v9205
    %9227 = vst.msk [vmem:[#allocation4 + $0x1b] sm:$0xff] %vm9224, %v9212
    %9228 = vst.msk [vmem:[#allocation4 + $0x23] sm:$0xff] %vm9224, %v9219
    %v9229 = vsel %vm218, %v8501, -inf
    %9230 = vmax.xlane.f32.xlu0 %v9229
    %v9231 = vpop.xlane.xlu0 %9230
    %v9232 = vsel %vm218, %v8502, -inf
    %9233 = vmax.xlane.f32.xlu0 %v9232
    %v9234 = vpop.xlane.xlu0 %9233
    %v9235 = vsel %vm218, %v8503, -inf
    %9236 = vmax.xlane.f32.xlu0 %v9235
    %v9237 = vpop.xlane.xlu0 %9236
    %v9238 = vsel %vm218, %v8504, -inf
    %9239 = vmax.xlane.f32.xlu0 %v9238
    %v9240 = vpop.xlane.xlu0 %9239
    %v9241 = vsel %vm218, %v8505, -inf
    %9242 = vmax.xlane.f32.xlu0 %v9241
    %v9243 = vpop.xlane.xlu0 %9242
    %v9244 = vsel %vm218, %v8506, -inf
    %9245 = vmax.xlane.f32.xlu0 %v9244
    %v9246 = vpop.xlane.xlu0 %9245
    %v9247 = vsel %vm218, %v8507, -inf
    %9248 = vmax.xlane.f32.xlu0 %v9247
    %v9249 = vpop.xlane.xlu0 %9248
    %v9250 = vsel %vm218, %v8508, -inf
    %9251 = vmax.xlane.f32.xlu0 %v9250
    %v9252 = vpop.xlane.xlu0 %9251
    %v9253 = vsel %vm218, %v8509, -inf
    %9254 = vmax.xlane.f32.xlu0 %v9253
    %v9255 = vpop.xlane.xlu0 %9254
    %v9256 = vsel %vm218, %v8510, -inf
    %9257 = vmax.xlane.f32.xlu0 %v9256
    %v9258 = vpop.xlane.xlu0 %9257
    %v9259 = vsel %vm218, %v8511, -inf
    %9260 = vmax.xlane.f32.xlu0 %v9259
    %v9261 = vpop.xlane.xlu0 %9260
    %v9262 = vsel %vm218, %v8512, -inf
    %9263 = vmax.xlane.f32.xlu0 %v9262
    %v9264 = vpop.xlane.xlu0 %9263
    %v9265 = vsel %vm218, %v8513, -inf
    %9266 = vmax.xlane.f32.xlu0 %v9265
    %v9267 = vpop.xlane.xlu0 %9266
    %v9268 = vsel %vm218, %v8514, -inf
    %9269 = vmax.xlane.f32.xlu0 %v9268
    %v9270 = vpop.xlane.xlu0 %9269
    %v9271 = vsel %vm218, %v8515, -inf
    %9272 = vmax.xlane.f32.xlu0 %v9271
    %v9273 = vpop.xlane.xlu0 %9272
    %v9274 = vsel %vm218, %v8516, -inf
    %9275 = vmax.xlane.f32.xlu0 %v9274
    %v9276 = vpop.xlane.xlu0 %9275
    %v9277 = vsel %vm218, %v8517, -inf
    %9278 = vmax.xlane.f32.xlu0 %v9277
    %v9279 = vpop.xlane.xlu0 %9278
    %v9280 = vsel %vm218, %v8518, -inf
    %9281 = vmax.xlane.f32.xlu0 %v9280
    %v9282 = vpop.xlane.xlu0 %9281
    %v9283 = vsel %vm218, %v8519, -inf
    %9284 = vmax.xlane.f32.xlu0 %v9283
    %v9285 = vpop.xlane.xlu0 %9284
    %v9286 = vsel %vm218, %v8520, -inf
    %9287 = vmax.xlane.f32.xlu0 %v9286
    %v9288 = vpop.xlane.xlu0 %9287
    %v9289 = vsel %vm218, %v8521, -inf
    %9290 = vmax.xlane.f32.xlu0 %v9289
    %v9291 = vpop.xlane.xlu0 %9290
    %v9292 = vsel %vm218, %v8522, -inf
    %9293 = vmax.xlane.f32.xlu0 %v9292
    %v9294 = vpop.xlane.xlu0 %9293
    %v9295 = vsel %vm218, %v8523, -inf
    %9296 = vmax.xlane.f32.xlu0 %v9295
    %v9297 = vpop.xlane.xlu0 %9296
    %v9298 = vsel %vm218, %v8524, -inf
    %9299 = vmax.xlane.f32.xlu0 %v9298
    %v9300 = vpop.xlane.xlu0 %9299
    %v9301 = vsel %vm218, %v8525, -inf
    %9302 = vmax.xlane.f32.xlu0 %v9301
    %v9303 = vpop.xlane.xlu0 %9302
    %v9304 = vsel %vm218, %v8526, -inf
    %9305 = vmax.xlane.f32.xlu0 %v9304
    %v9306 = vpop.xlane.xlu0 %9305
    %v9307 = vsel %vm218, %v8527, -inf
    %9308 = vmax.xlane.f32.xlu0 %v9307
    %v9309 = vpop.xlane.xlu0 %9308
    %v9310 = vsel %vm218, %v8528, -inf
    %9311 = vmax.xlane.f32.xlu0 %v9310
    %v9312 = vpop.xlane.xlu0 %9311
    %v9313 = vsel %vm218, %v8529, -inf
    %9314 = vmax.xlane.f32.xlu0 %v9313
    %v9315 = vpop.xlane.xlu0 %9314
    %v9316 = vsel %vm218, %v8530, -inf
    %9317 = vmax.xlane.f32.xlu0 %v9316
    %v9318 = vpop.xlane.xlu0 %9317
    %v9319 = vsel %vm218, %v8531, -inf
    %9320 = vmax.xlane.f32.xlu0 %v9319
    %v9321 = vpop.xlane.xlu0 %9320
    %v9322 = vsel %vm218, %v8532, -inf
    %9323 = vmax.xlane.f32.xlu0 %v9322
    %v9324 = vpop.xlane.xlu0 %9323
    %v9325 = vsel %vm218, %v8533, -inf
    %9326 = vmax.xlane.f32.xlu0 %v9325
    %v9327 = vpop.xlane.xlu0 %9326
    %v9328 = vsel %vm218, %v8534, -inf
    %9329 = vmax.xlane.f32.xlu0 %v9328
    %v9330 = vpop.xlane.xlu0 %9329
    %v9331 = vsel %vm218, %v8535, -inf
    %9332 = vmax.xlane.f32.xlu0 %v9331
    %v9333 = vpop.xlane.xlu0 %9332
    %v9334 = vsel %vm218, %v8536, -inf
    %9335 = vmax.xlane.f32.xlu0 %v9334
    %v9336 = vpop.xlane.xlu0 %9335
    %v9337 = vsel %vm218, %v8537, -inf
    %9338 = vmax.xlane.f32.xlu0 %v9337
    %v9339 = vpop.xlane.xlu0 %9338
    %v9340 = vsel %vm218, %v8538, -inf
    %9341 = vmax.xlane.f32.xlu0 %v9340
    %v9342 = vpop.xlane.xlu0 %9341
    %v9343 = vsel %vm218, %v8539, -inf
    %9344 = vmax.xlane.f32.xlu0 %v9343
    %v9345 = vpop.xlane.xlu0 %9344
    %v9346 = vsel %vm218, %v8540, -inf
    %9347 = vmax.xlane.f32.xlu0 %v9346
    %v9348 = vpop.xlane.xlu0 %9347
    %v9349 = vsel %vm218, %v8541, -inf
    %9350 = vmax.xlane.f32.xlu0 %v9349
    %v9351 = vpop.xlane.xlu0 %9350
    %v9352 = vsel %vm218, %v8542, -inf
    %9353 = vmax.xlane.f32.xlu0 %v9352
    %v9354 = vpop.xlane.xlu0 %9353
    %v9355 = vsel %vm218, %v8543, -inf
    %9356 = vmax.xlane.f32.xlu0 %v9355
    %v9357 = vpop.xlane.xlu0 %9356
    %v9358 = vsel %vm218, %v8544, -inf
    %9359 = vmax.xlane.f32.xlu0 %v9358
    %v9360 = vpop.xlane.xlu0 %9359
    %v9361 = vsel %vm218, %v8545, -inf
    %9362 = vmax.xlane.f32.xlu0 %v9361
    %v9363 = vpop.xlane.xlu0 %9362
    %v9364 = vsel %vm218, %v8546, -inf
    %9365 = vmax.xlane.f32.xlu0 %v9364
    %v9366 = vpop.xlane.xlu0 %9365
    %v9367 = vsel %vm218, %v8547, -inf
    %9368 = vmax.xlane.f32.xlu0 %v9367
    %v9369 = vpop.xlane.xlu0 %9368
    %v9370 = vsel %vm218, %v8548, -inf
    %9371 = vmax.xlane.f32.xlu0 %v9370
    %v9372 = vpop.xlane.xlu0 %9371
    %v9373 = vsel %vm218, %v8549, -inf
    %9374 = vmax.xlane.f32.xlu0 %v9373
    %v9375 = vpop.xlane.xlu0 %9374
    %v9376 = vsel %vm218, %v8550, -inf
    %9377 = vmax.xlane.f32.xlu0 %v9376
    %v9378 = vpop.xlane.xlu0 %9377
    %v9379 = vsel %vm218, %v8551, -inf
    %9380 = vmax.xlane.f32.xlu0 %v9379
    %v9381 = vpop.xlane.xlu0 %9380
    %v9382 = vsel %vm218, %v8552, -inf
    %9383 = vmax.xlane.f32.xlu0 %v9382
    %v9384 = vpop.xlane.xlu0 %9383
    %v9385 = vsel %vm218, %v8553, -inf
    %9386 = vmax.xlane.f32.xlu0 %v9385
    %v9387 = vpop.xlane.xlu0 %9386
    %v9388 = vsel %vm218, %v8554, -inf
    %9389 = vmax.xlane.f32.xlu0 %v9388
    %v9390 = vpop.xlane.xlu0 %9389
    %v9391 = vsel %vm218, %v8555, -inf
    %9392 = vmax.xlane.f32.xlu0 %v9391
    %v9393 = vpop.xlane.xlu0 %9392
    %v9394 = vsel %vm218, %v8556, -inf
    %9395 = vmax.xlane.f32.xlu0 %v9394
    %v9396 = vpop.xlane.xlu0 %9395
    %v9397 = vsel %vm218, %v8557, -inf
    %9398 = vmax.xlane.f32.xlu0 %v9397
    %v9399 = vpop.xlane.xlu0 %9398
    %v9400 = vsel %vm218, %v8558, -inf
    %9401 = vmax.xlane.f32.xlu0 %v9400
    %v9402 = vpop.xlane.xlu0 %9401
    %v9403 = vsel %vm218, %v8559, -inf
    %9404 = vmax.xlane.f32.xlu0 %v9403
    %v9405 = vpop.xlane.xlu0 %9404
    %v9406 = vsel %vm218, %v8560, -inf
    %9407 = vmax.xlane.f32.xlu0 %v9406
    %v9408 = vpop.xlane.xlu0 %9407
    %v9409 = vsel %vm218, %v8561, -inf
    %9410 = vmax.xlane.f32.xlu0 %v9409
    %v9411 = vpop.xlane.xlu0 %9410
    %v9412 = vsel %vm218, %v8562, -inf
    %9413 = vmax.xlane.f32.xlu0 %v9412
    %v9414 = vpop.xlane.xlu0 %9413
    %v9415 = vsel %vm218, %v8563, -inf
    %9416 = vmax.xlane.f32.xlu0 %v9415
    %v9417 = vpop.xlane.xlu0 %9416
    %v9418 = vsel %vm218, %v8564, -inf
    %9419 = vmax.xlane.f32.xlu0 %v9418
    %v9420 = vpop.xlane.xlu0 %9419
    %v9485 = vadd.s32 %v8895, 4294967271
    %v9486 = vlaneseq
    %v9487 = vshrl.u32 %v9486, 7
    %v9488 = vsub.s32 %v9485, %v9487
    %v9489 = vrot.slane %v9231, %v9488
    %v9490 = vadd.s32 %v8895, 4294967263
    %v9491 = vlaneseq
    %v9492 = vshrl.u32 %v9491, 7
    %v9493 = vsub.s32 %v9490, %v9492
    %v9494 = vrot.slane %v9234, %v9493
    %vm9495 = vcmask 335112
    %v9496 = vsel %vm9495, %v9494, %v9489
    %v9497 = vlaneseq
    %v9498 = vshrl.u32 %v9497, 7
    %v9499 = vsub.s32 %v9485, %v9498
    %v9500 = vrot.slane %v9237, %v9499
    %v9501 = vlaneseq
    %v9502 = vshrl.u32 %v9501, 7
    %v9503 = vsub.s32 %v9490, %v9502
    %v9504 = vrot.slane %v9240, %v9503
    %v9505 = vsel %vm9495, %v9504, %v9500
    %v9506 = vlaneseq
    %v9507 = vshrl.u32 %v9506, 7
    %v9508 = vsub.s32 %v9485, %v9507
    %v9509 = vrot.slane %v9243, %v9508
    %v9510 = vlaneseq
    %v9511 = vshrl.u32 %v9510, 7
    %v9512 = vsub.s32 %v9490, %v9511
    %v9513 = vrot.slane %v9246, %v9512
    %v9514 = vsel %vm9495, %v9513, %v9509
    %v9515 = vlaneseq
    %v9516 = vshrl.u32 %v9515, 7
    %v9517 = vsub.s32 %v9485, %v9516
    %v9518 = vrot.slane %v9249, %v9517
    %v9519 = vlaneseq
    %v9520 = vshrl.u32 %v9519, 7
    %v9521 = vsub.s32 %v9490, %v9520
    %v9522 = vrot.slane %v9252, %v9521
    %v9523 = vsel %vm9495, %v9522, %v9518
    %v9524 = vlaneseq
    %v9525 = vshrl.u32 %v9524, 7
    %v9526 = vsub.s32 %v9485, %v9525
    %v9527 = vrot.slane %v9255, %v9526
    %v9528 = vlaneseq
    %v9529 = vshrl.u32 %v9528, 7
    %v9530 = vsub.s32 %v9490, %v9529
    %v9531 = vrot.slane %v9258, %v9530
    %v9532 = vsel %vm9495, %v9531, %v9527
    %v9533 = vlaneseq
    %v9534 = vshrl.u32 %v9533, 7
    %v9535 = vsub.s32 %v9485, %v9534
    %v9536 = vrot.slane %v9261, %v9535
    %v9537 = vlaneseq
    %v9538 = vshrl.u32 %v9537, 7
    %v9539 = vsub.s32 %v9490, %v9538
    %v9540 = vrot.slane %v9264, %v9539
    %v9541 = vsel %vm9495, %v9540, %v9536
    %v9542 = vlaneseq
    %v9543 = vshrl.u32 %v9542, 7
    %v9544 = vsub.s32 %v9485, %v9543
    %v9545 = vrot.slane %v9267, %v9544
    %v9546 = vlaneseq
    %v9547 = vshrl.u32 %v9546, 7
    %v9548 = vsub.s32 %v9490, %v9547
    %v9549 = vrot.slane %v9270, %v9548
    %v9550 = vsel %vm9495, %v9549, %v9545
    %v9551 = vlaneseq
    %v9552 = vshrl.u32 %v9551, 7
    %v9553 = vsub.s32 %v9485, %v9552
    %v9554 = vrot.slane %v9273, %v9553
    %v9555 = vlaneseq
    %v9556 = vshrl.u32 %v9555, 7
    %v9557 = vsub.s32 %v9490, %v9556
    %v9558 = vrot.slane %v9276, %v9557
    %v9559 = vsel %vm9495, %v9558, %v9554
    %v9560 = vlaneseq
    %v9561 = vshrl.u32 %v9560, 7
    %v9562 = vsub.s32 %v9485, %v9561
    %v9563 = vrot.slane %v9279, %v9562
    %v9564 = vlaneseq
    %v9565 = vshrl.u32 %v9564, 7
    %v9566 = vsub.s32 %v9490, %v9565
    %v9567 = vrot.slane %v9282, %v9566
    %v9568 = vsel %vm9495, %v9567, %v9563
    %v9569 = vlaneseq
    %v9570 = vshrl.u32 %v9569, 7
    %v9571 = vsub.s32 %v9485, %v9570
    %v9572 = vrot.slane %v9285, %v9571
    %v9573 = vlaneseq
    %v9574 = vshrl.u32 %v9573, 7
    %v9575 = vsub.s32 %v9490, %v9574
    %v9576 = vrot.slane %v9288, %v9575
    %v9577 = vsel %vm9495, %v9576, %v9572
    %v9578 = vlaneseq
    %v9579 = vshrl.u32 %v9578, 7
    %v9580 = vsub.s32 %v9485, %v9579
    %v9581 = vrot.slane %v9291, %v9580
    %v9582 = vlaneseq
    %v9583 = vshrl.u32 %v9582, 7
    %v9584 = vsub.s32 %v9490, %v9583
    %v9585 = vrot.slane %v9294, %v9584
    %v9586 = vsel %vm9495, %v9585, %v9581
    %v9587 = vlaneseq
    %v9588 = vshrl.u32 %v9587, 7
    %v9589 = vsub.s32 %v9485, %v9588
    %v9590 = vrot.slane %v9297, %v9589
    %v9591 = vlaneseq
    %v9592 = vshrl.u32 %v9591, 7
    %v9593 = vsub.s32 %v9490, %v9592
    %v9594 = vrot.slane %v9300, %v9593
    %v9595 = vsel %vm9495, %v9594, %v9590
    %v9596 = vlaneseq
    %v9597 = vshrl.u32 %v9596, 7
    %v9598 = vsub.s32 %v9485, %v9597
    %v9599 = vrot.slane %v9303, %v9598
    %v9600 = vlaneseq
    %v9601 = vshrl.u32 %v9600, 7
    %v9602 = vsub.s32 %v9490, %v9601
    %v9603 = vrot.slane %v9306, %v9602
    %v9604 = vsel %vm9495, %v9603, %v9599
    %v9605 = vlaneseq
    %v9606 = vshrl.u32 %v9605, 7
    %v9607 = vsub.s32 %v9485, %v9606
    %v9608 = vrot.slane %v9309, %v9607
    %v9609 = vlaneseq
    %v9610 = vshrl.u32 %v9609, 7
    %v9611 = vsub.s32 %v9490, %v9610
    %v9612 = vrot.slane %v9312, %v9611
    %v9613 = vsel %vm9495, %v9612, %v9608
    %v9614 = vlaneseq
    %v9615 = vshrl.u32 %v9614, 7
    %v9616 = vsub.s32 %v9485, %v9615
    %v9617 = vrot.slane %v9315, %v9616
    %v9618 = vlaneseq
    %v9619 = vshrl.u32 %v9618, 7
    %v9620 = vsub.s32 %v9490, %v9619
    %v9621 = vrot.slane %v9318, %v9620
    %v9622 = vsel %vm9495, %v9621, %v9617
    %v9623 = vlaneseq
    %v9624 = vshrl.u32 %v9623, 7
    %v9625 = vsub.s32 %v9485, %v9624
    %v9626 = vrot.slane %v9321, %v9625
    %v9627 = vlaneseq
    %v9628 = vshrl.u32 %v9627, 7
    %v9629 = vsub.s32 %v9490, %v9628
    %v9630 = vrot.slane %v9324, %v9629
    %v9631 = vsel %vm9495, %v9630, %v9626
    %v9632 = vlaneseq
    %v9633 = vshrl.u32 %v9632, 7
    %v9634 = vsub.s32 %v9485, %v9633
    %v9635 = vrot.slane %v9327, %v9634
    %v9636 = vlaneseq
    %v9637 = vshrl.u32 %v9636, 7
    %v9638 = vsub.s32 %v9490, %v9637
    %v9639 = vrot.slane %v9330, %v9638
    %v9640 = vsel %vm9495, %v9639, %v9635
    %v9641 = vlaneseq
    %v9642 = vshrl.u32 %v9641, 7
    %v9643 = vsub.s32 %v9485, %v9642
    %v9644 = vrot.slane %v9333, %v9643
    %v9645 = vlaneseq
    %v9646 = vshrl.u32 %v9645, 7
    %v9647 = vsub.s32 %v9490, %v9646
    %v9648 = vrot.slane %v9336, %v9647
    %v9649 = vsel %vm9495, %v9648, %v9644
    %v9650 = vlaneseq
    %v9651 = vshrl.u32 %v9650, 7
    %v9652 = vsub.s32 %v9485, %v9651
    %v9653 = vrot.slane %v9339, %v9652
    %v9654 = vlaneseq
    %v9655 = vshrl.u32 %v9654, 7
    %v9656 = vsub.s32 %v9490, %v9655
    %v9657 = vrot.slane %v9342, %v9656
    %v9658 = vsel %vm9495, %v9657, %v9653
    %v9659 = vlaneseq
    %v9660 = vshrl.u32 %v9659, 7
    %v9661 = vsub.s32 %v9485, %v9660
    %v9662 = vrot.slane %v9345, %v9661
    %v9663 = vlaneseq
    %v9664 = vshrl.u32 %v9663, 7
    %v9665 = vsub.s32 %v9490, %v9664
    %v9666 = vrot.slane %v9348, %v9665
    %v9667 = vsel %vm9495, %v9666, %v9662
    %v9668 = vlaneseq
    %v9669 = vshrl.u32 %v9668, 7
    %v9670 = vsub.s32 %v9485, %v9669
    %v9671 = vrot.slane %v9351, %v9670
    %v9672 = vlaneseq
    %v9673 = vshrl.u32 %v9672, 7
    %v9674 = vsub.s32 %v9490, %v9673
    %v9675 = vrot.slane %v9354, %v9674
    %v9676 = vsel %vm9495, %v9675, %v9671
    %v9677 = vlaneseq
    %v9678 = vshrl.u32 %v9677, 7
    %v9679 = vsub.s32 %v9485, %v9678
    %v9680 = vrot.slane %v9357, %v9679
    %v9681 = vlaneseq
    %v9682 = vshrl.u32 %v9681, 7
    %v9683 = vsub.s32 %v9490, %v9682
    %v9684 = vrot.slane %v9360, %v9683
    %v9685 = vsel %vm9495, %v9684, %v9680
    %v9686 = vlaneseq
    %v9687 = vshrl.u32 %v9686, 7
    %v9688 = vsub.s32 %v9485, %v9687
    %v9689 = vrot.slane %v9363, %v9688
    %v9690 = vlaneseq
    %v9691 = vshrl.u32 %v9690, 7
    %v9692 = vsub.s32 %v9490, %v9691
    %v9693 = vrot.slane %v9366, %v9692
    %v9694 = vsel %vm9495, %v9693, %v9689
    %v9695 = vlaneseq
    %v9696 = vshrl.u32 %v9695, 7
    %v9697 = vsub.s32 %v9485, %v9696
    %v9698 = vrot.slane %v9369, %v9697
    %v9699 = vlaneseq
    %v9700 = vshrl.u32 %v9699, 7
    %v9701 = vsub.s32 %v9490, %v9700
    %v9702 = vrot.slane %v9372, %v9701
    %v9703 = vsel %vm9495, %v9702, %v9698
    %v9704 = vlaneseq
    %v9705 = vshrl.u32 %v9704, 7
    %v9706 = vsub.s32 %v9485, %v9705
    %v9707 = vrot.slane %v9375, %v9706
    %v9708 = vlaneseq
    %v9709 = vshrl.u32 %v9708, 7
    %v9710 = vsub.s32 %v9490, %v9709
    %v9711 = vrot.slane %v9378, %v9710
    %v9712 = vsel %vm9495, %v9711, %v9707
    %v9713 = vlaneseq
    %v9714 = vshrl.u32 %v9713, 7
    %v9715 = vsub.s32 %v9485, %v9714
    %v9716 = vrot.slane %v9381, %v9715
    %v9717 = vlaneseq
    %v9718 = vshrl.u32 %v9717, 7
    %v9719 = vsub.s32 %v9490, %v9718
    %v9720 = vrot.slane %v9384, %v9719
    %v9721 = vsel %vm9495, %v9720, %v9716
    %v9722 = vlaneseq
    %v9723 = vshrl.u32 %v9722, 7
    %v9724 = vsub.s32 %v9485, %v9723
    %v9725 = vrot.slane %v9387, %v9724
    %v9726 = vlaneseq
    %v9727 = vshrl.u32 %v9726, 7
    %v9728 = vsub.s32 %v9490, %v9727
    %v9729 = vrot.slane %v9390, %v9728
    %v9730 = vsel %vm9495, %v9729, %v9725
    %v9731 = vlaneseq
    %v9732 = vshrl.u32 %v9731, 7
    %v9733 = vsub.s32 %v9485, %v9732
    %v9734 = vrot.slane %v9393, %v9733
    %v9735 = vlaneseq
    %v9736 = vshrl.u32 %v9735, 7
    %v9737 = vsub.s32 %v9490, %v9736
    %v9738 = vrot.slane %v9396, %v9737
    %v9739 = vsel %vm9495, %v9738, %v9734
    %v9740 = vlaneseq
    %v9741 = vshrl.u32 %v9740, 7
    %v9742 = vsub.s32 %v9485, %v9741
    %v9743 = vrot.slane %v9399, %v9742
    %v9744 = vlaneseq
    %v9745 = vshrl.u32 %v9744, 7
    %v9746 = vsub.s32 %v9490, %v9745
    %v9747 = vrot.slane %v9402, %v9746
    %v9748 = vsel %vm9495, %v9747, %v9743
    %v9749 = vlaneseq
    %v9750 = vshrl.u32 %v9749, 7
    %v9751 = vsub.s32 %v9485, %v9750
    %v9752 = vrot.slane %v9405, %v9751
    %v9753 = vlaneseq
    %v9754 = vshrl.u32 %v9753, 7
    %v9755 = vsub.s32 %v9490, %v9754
    %v9756 = vrot.slane %v9408, %v9755
    %v9757 = vsel %vm9495, %v9756, %v9752
    %v9758 = vlaneseq
    %v9759 = vshrl.u32 %v9758, 7
    %v9760 = vsub.s32 %v9485, %v9759
    %v9761 = vrot.slane %v9411, %v9760
    %v9762 = vlaneseq
    %v9763 = vshrl.u32 %v9762, 7
    %v9764 = vsub.s32 %v9490, %v9763
    %v9765 = vrot.slane %v9414, %v9764
    %v9766 = vsel %vm9495, %v9765, %v9761
    %v9767 = vlaneseq
    %v9768 = vshrl.u32 %v9767, 7
    %v9769 = vsub.s32 %v9485, %v9768
    %v9770 = vrot.slane %v9417, %v9769
    %v9771 = vlaneseq
    %v9772 = vshrl.u32 %v9771, 7
    %v9773 = vsub.s32 %v9490, %v9772
    %v9774 = vrot.slane %v9420, %v9773
    %v9775 = vsel %vm9495, %v9774, %v9770
    %v9776 = vsel %vm8292, %v9505, %v9496
    %v9777 = vsel %vm9188, %v9514, %v9776
    %v9778 = vsel %vm8297, %v9523, %v9777
    %v9779 = vsel %vm9191, %v9532, %v9778
    %v9780 = vsel %vm9193, %v9541, %v9779
    %v9781 = vsel %vm9195, %v9550, %v9780
    %v9782 = vsel %vm9197, %v9559, %v9781
    %v9783 = vsel %vm8292, %v9577, %v9568
    %v9784 = vsel %vm9188, %v9586, %v9783
    %v9785 = vsel %vm8297, %v9595, %v9784
    %v9786 = vsel %vm9191, %v9604, %v9785
    %v9787 = vsel %vm9193, %v9613, %v9786
    %v9788 = vsel %vm9195, %v9622, %v9787
    %v9789 = vsel %vm9197, %v9631, %v9788
    %v9790 = vsel %vm8292, %v9649, %v9640
    %v9791 = vsel %vm9188, %v9658, %v9790
    %v9792 = vsel %vm8297, %v9667, %v9791
    %v9793 = vsel %vm9191, %v9676, %v9792
    %v9794 = vsel %vm9193, %v9685, %v9793
    %v9795 = vsel %vm9195, %v9694, %v9794
    %v9796 = vsel %vm9197, %v9703, %v9795
    %v9797 = vsel %vm8292, %v9721, %v9712
    %v9798 = vsel %vm9188, %v9730, %v9797
    %v9799 = vsel %vm8297, %v9739, %v9798
    %v9800 = vsel %vm9191, %v9748, %v9799
    %v9801 = vsel %vm9193, %v9757, %v9800
    %v9802 = vsel %vm9195, %v9766, %v9801
    %v9803 = vsel %vm9197, %v9775, %v9802
    %vm9808 = vcmask 335048
    %9809 = vst.msk [vmem:[#allocation4 + $0x3] sm:$0xff] %vm9808, %v9782
    %9810 = vst.msk [vmem:[#allocation4 + $0xb] sm:$0xff] %vm9808, %v9789
    %9811 = vst.msk [vmem:[#allocation4 + $0x1b] sm:$0xff] %vm9808, %v9796
    %9812 = vst.msk [vmem:[#allocation4 + $0x23] sm:$0xff] %vm9808, %v9803
    %v9813 = vld [vmem:[#allocation4] sm:$0xff]
    %v9814 = vld [vmem:[#allocation4 + $0x8] sm:$0xff]
    %v9815 = vld [vmem:[#allocation4 + $0x18] sm:$0xff]
    %v9816 = vld [vmem:[#allocation4 + $0x20] sm:$0xff]
    %v9817 = vld [vmem:[%s11] sm:$0xff]
    %v9818 = vld [vmem:[%s11 + $0x8] sm:$0xff]
    %v9819 = vld [vmem:[%s11 + $0x10] sm:$0xff]
    %v9820 = vld [vmem:[%s11 + $0x18] sm:$0xff]
    %v9821 = vld [vmem:[%s11 + $0x20] sm:$0xff]
    %v9822 = vld [vmem:[%s11 + $0x28] sm:$0xf]
    %v9823 = vld [vmem:[#allocation4 + $0x1] sm:$0xff]
    %v9824 = vld [vmem:[#allocation4 + $0x9] sm:$0xff]
    %v9825 = vld [vmem:[#allocation4 + $0x19] sm:$0xff]
    %v9826 = vld [vmem:[#allocation4 + $0x21] sm:$0xff]
    %s9827 = scalar_lea.vmem %s11, 48
    %v9828 = vld [vmem:[%s9827] sm:$0xff]
    %v9829 = vld [vmem:[%s9827 + $0x8] sm:$0xff]
    %v9830 = vld [vmem:[%s9827 + $0x10] sm:$0xff]
    %v9831 = vld [vmem:[%s9827 + $0x18] sm:$0xff]
    %v9832 = vld [vmem:[%s9827 + $0x20] sm:$0xff]
    %v9833 = vld [vmem:[%s9827 + $0x28] sm:$0xf]
    %v9835 = vsel %vm8565, %v9823, 0
    %v9838 = vsel %vm8565, %v9824, 0
    %v9841 = vsel %vm8565, %v9825, 0
    %v9844 = vsel %vm8565, %v9826, 0
    %vm9846 = vcmask 1043456
    %v9848 = vsel %vm9846, %v9833, 0
    %9850 = vmatprep.subr.mxu0 0.0
    %9851 = vmatpush1.msra.mxu0 %v9828
    %9852 = vmatprep.subr.mxu0 0.0
    %9853 = vmatpush1.msra.mxu0 %v9829
    %9854 = vmatprep.subr.mxu0 0.0
    %9855 = vmatpush1.msra.mxu0 %v9830
    %9856 = vmatprep.subr.mxu0 0.0
    %9857 = vmatpush1.msra.mxu0 %v9831
    %9858 = vmatprep.subr.mxu0 0.0
    %9859 = vmatpush1.msra.mxu0 %v9832
    %9860 = vmatprep.subr.mxu0 0.0
    %9861 = vmatpush1.msra.mxu0 %v9848
    %9862 = vmatprep.subr.mxu0 0.0
    %9863 = vmatpush1.msra.mxu0 0.0
    %9864 = vmatprep.subr.mxu0 0.0
    %9865 = vmatpush1.msra.mxu0 0.0
    %9866 = vmatprep.subr.mxu0 0.0
    %9867 = vmatpush1.msra.mxu0 0.0
    %9868 = vmatprep.subr.mxu0 0.0
    %9869 = vmatpush1.msra.mxu0 0.0
    %9870 = vmatprep.subr.mxu0 0.0
    %9871 = vmatpush1.msra.mxu0 0.0
    %9872 = vmatprep.subr.mxu0 0.0
    %9873 = vmatpush1.msra.mxu0 0.0
    %9874 = vmatprep.subr.mxu0 0.0
    %9875 = vmatpush1.msra.mxu0 0.0
    %9876 = vmatprep.subr.mxu0 0.0
    %9877 = vmatpush1.msra.mxu0 0.0
    %9878 = vmatprep.subr.mxu0 0.0
    %9879 = vmatpush1.msra.mxu0 0.0
    %9880 = vmatprep.subr.mxu0 0.0
    %9881 = vmatpush1.msra.mxu0 0.0
    %9882 = vmatprep.subr.mxu0 0.0
    %9883 = vmatpush1.msra.mxu0 0.0
    %9884 = vmatprep.subr.mxu0 0.0
    %9885 = vmatpush1.msra.mxu0 0.0
    %9886 = vmatprep.subr.mxu0 0.0
    %9887 = vmatpush1.msra.mxu0 0.0
    %9888 = vmatprep.subr.mxu0 0.0
    %9889 = vmatpush1.msra.mxu0 0.0
    %9890 = vmatprep.subr.mxu0 0.0
    %9891 = vmatpush1.msra.mxu0 0.0
    %9892 = vmatprep.subr.mxu0 0.0
    %9893 = vmatpush1.msra.mxu0 0.0
    %9894 = vmatprep.subr.mxu0 0.0
    %9895 = vmatpush1.msra.mxu0 0.0
    %9896 = vmatprep.subr.mxu0 0.0
    %9897 = vmatpush1.msra.mxu0 0.0
    %9898 = vmatprep.subr.mxu0 0.0
    %9899 = vmatpush1.msra.mxu0 0.0
    %9900 = vmatprep.subr.mxu0 0.0
    %9901 = vmatpush1.msra.mxu0 0.0
    %9902 = vmatprep.subr.mxu0 0.0
    %9903 = vmatpush1.msra.mxu0 0.0
    %9904 = vmatprep.subr.mxu0 0.0
    %9905 = vmatpush1.msra.mxu0 0.0
    %9906 = vmatprep.subr.mxu0 0.0
    %9907 = vmatpush1.msra.mxu0 0.0
    %9908 = vmatprep.subr.mxu0 0.0
    %9909 = vmatpush1.msra.mxu0 0.0
    %9910 = vmatprep.subr.mxu0 0.0
    %9911 = vmatpush1.msra.mxu0 0.0
    %9912 = vmatprep.subr.mxu0 0.0
    %9913 = vmatpush1.msra.mxu0 0.0
    %9914 = vmatprep.mubr.f32.mxu0 0.0
    %9915 = vmatmul.mubr.f32.gmra.mrb[0].mxu0 %v9835
    %v9916 = vpop.f32.mrb[0].mxu0
    %v9917 = vadd.f32 0.0, %v9916
    %v9918 = vpop.f32.mrb[0].mxu0
    %9919 = vmatprep.mubr.f32.mxu0 0.0
    %9920 = vmatmul.mubr.f32.gmra.mrb[0].mxu0 %v9838
    %v9921 = vpop.f32.mrb[0].mxu0
    %v9922 = vadd.f32 0.0, %v9921
    %v9923 = vpop.f32.mrb[0].mxu0
    %9924 = vmatprep.mubr.f32.mxu0 0.0
    %9925 = vmatmul.mubr.f32.gmra.mrb[0].mxu0 %v9841
    %v9926 = vpop.f32.mrb[0].mxu0
    %v9927 = vadd.f32 0.0, %v9926
    %v9928 = vpop.f32.mrb[0].mxu0
    %9929 = vmatprep.mubr.f32.mxu0 0.0
    %9930 = vmatmul.mubr.f32.gmra.mrb[0].mxu0 %v9844
    %v9931 = vpop.f32.mrb[0].mxu0
    %v9932 = vadd.f32 0.0, %v9931
    %v9933 = vpop.f32.mrb[0].mxu0
    %9934 = vdwg.mxu0
    %v9936 = vsel %vm8565, %v9813, 0
    %v9939 = vsel %vm8565, %v9814, 0
    %v9942 = vsel %vm8565, %v9815, 0
    %v9945 = vsel %vm8565, %v9816, 0
    %v9948 = vsel %vm9846, %v9822, 0
    %9950 = vmatprep.subr.mxu0 0.0
    %9951 = vmatpush1.msra.mxu0 %v9817
    %9952 = vmatprep.subr.mxu0 0.0
    %9953 = vmatpush1.msra.mxu0 %v9818
    %9954 = vmatprep.subr.mxu0 0.0
    %9955 = vmatpush1.msra.mxu0 %v9819
    %9956 = vmatprep.subr.mxu0 0.0
    %9957 = vmatpush1.msra.mxu0 %v9820
    %9958 = vmatprep.subr.mxu0 0.0
    %9959 = vmatpush1.msra.mxu0 %v9821
    %9960 = vmatprep.subr.mxu0 0.0
    %9961 = vmatpush1.msra.mxu0 %v9948
    %9962 = vmatprep.subr.mxu0 0.0
    %9963 = vmatpush1.msra.mxu0 0.0
    %9964 = vmatprep.subr.mxu0 0.0
    %9965 = vmatpush1.msra.mxu0 0.0
    %9966 = vmatprep.subr.mxu0 0.0
    %9967 = vmatpush1.msra.mxu0 0.0
    %9968 = vmatprep.subr.mxu0 0.0
    %9969 = vmatpush1.msra.mxu0 0.0
    %9970 = vmatprep.subr.mxu0 0.0
    %9971 = vmatpush1.msra.mxu0 0.0
    %9972 = vmatprep.subr.mxu0 0.0
    %9973 = vmatpush1.msra.mxu0 0.0
    %9974 = vmatprep.subr.mxu0 0.0
    %9975 = vmatpush1.msra.mxu0 0.0
    %9976 = vmatprep.subr.mxu0 0.0
    %9977 = vmatpush1.msra.mxu0 0.0
    %9978 = vmatprep.subr.mxu0 0.0
    %9979 = vmatpush1.msra.mxu0 0.0
    %9980 = vmatprep.subr.mxu0 0.0
    %9981 = vmatpush1.msra.mxu0 0.0
    %9982 = vmatprep.subr.mxu0 0.0
    %9983 = vmatpush1.msra.mxu0 0.0
    %9984 = vmatprep.subr.mxu0 0.0
    %9985 = vmatpush1.msra.mxu0 0.0
    %9986 = vmatprep.subr.mxu0 0.0
    %9987 = vmatpush1.msra.mxu0 0.0
    %9988 = vmatprep.subr.mxu0 0.0
    %9989 = vmatpush1.msra.mxu0 0.0
    %9990 = vmatprep.subr.mxu0 0.0
    %9991 = vmatpush1.msra.mxu0 0.0
    %9992 = vmatprep.subr.mxu0 0.0
    %9993 = vmatpush1.msra.mxu0 0.0
    %9994 = vmatprep.subr.mxu0 0.0
    %9995 = vmatpush1.msra.mxu0 0.0
    %9996 = vmatprep.subr.mxu0 0.0
    %9997 = vmatpush1.msra.mxu0 0.0
    %9998 = vmatprep.subr.mxu0 0.0
    %9999 = vmatpush1.msra.mxu0 0.0
    %10000 = vmatprep.subr.mxu0 0.0
    %10001 = vmatpush1.msra.mxu0 0.0
    %10002 = vmatprep.subr.mxu0 0.0
    %10003 = vmatpush1.msra.mxu0 0.0
    %10004 = vmatprep.subr.mxu0 0.0
    %10005 = vmatpush1.msra.mxu0 0.0
    %10006 = vmatprep.subr.mxu0 0.0
    %10007 = vmatpush1.msra.mxu0 0.0
    %10008 = vmatprep.subr.mxu0 0.0
    %10009 = vmatpush1.msra.mxu0 0.0
    %10010 = vmatprep.subr.mxu0 0.0
    %10011 = vmatpush1.msra.mxu0 0.0
    %10012 = vmatprep.subr.mxu0 0.0
    %10013 = vmatpush1.msra.mxu0 0.0
    %10014 = vmatprep.mubr.f32.mxu0 0.0
    %10015 = vmatmul.mubr.f32.gmra.mrb[0].mxu0 %v9936
    %v10016 = vpop.f32.mrb[0].mxu0
    %v10017 = vadd.f32 %v9917, %v10016
    %v10018 = vpop.f32.mrb[0].mxu0
    %10019 = vmatprep.mubr.f32.mxu0 0.0
    %10020 = vmatmul.mubr.f32.gmra.mrb[0].mxu0 %v9939
    %v10021 = vpop.f32.mrb[0].mxu0
    %v10022 = vadd.f32 %v9922, %v10021
    %v10023 = vpop.f32.mrb[0].mxu0
    %10024 = vmatprep.mubr.f32.mxu0 0.0
    %10025 = vmatmul.mubr.f32.gmra.mrb[0].mxu0 %v9942
    %v10026 = vpop.f32.mrb[0].mxu0
    %v10027 = vadd.f32 %v9927, %v10026
    %v10028 = vpop.f32.mrb[0].mxu0
    %10029 = vmatprep.mubr.f32.mxu0 0.0
    %10030 = vmatmul.mubr.f32.gmra.mrb[0].mxu0 %v9945
    %v10031 = vpop.f32.mrb[0].mxu0
    %v10032 = vadd.f32 %v9932, %v10031
    %v10033 = vpop.f32.mrb[0].mxu0
    %10034 = vdwg.mxu0
    %v10035 = vld [vmem:[#allocation4 + $0x2] sm:$0xff]
    %v10036 = vld [vmem:[#allocation4 + $0xa] sm:$0xff]
    %v10037 = vld [vmem:[#allocation4 + $0x1a] sm:$0xff]
    %v10038 = vld [vmem:[#allocation4 + $0x22] sm:$0xff]
    %s10039 = scalar_lea.vmem %s11, 96
    %v10040 = vld [vmem:[%s10039] sm:$0xff]
    %v10041 = vld [vmem:[%s10039 + $0x8] sm:$0xff]
    %v10042 = vld [vmem:[%s10039 + $0x10] sm:$0xff]
    %v10043 = vld [vmem:[%s10039 + $0x18] sm:$0xff]
    %v10044 = vld [vmem:[%s10039 + $0x20] sm:$0xff]
    %v10045 = vld [vmem:[%s10039 + $0x28] sm:$0xf]
    %v10047 = vsel %vm8565, %v10035, 0
    %v10050 = vsel %vm8565, %v10036, 0
    %v10053 = vsel %vm8565, %v10037, 0
    %v10056 = vsel %vm8565, %v10038, 0
    %v10059 = vsel %vm9846, %v10045, 0
    %10061 = vmatprep.subr.mxu0 0.0
    %10062 = vmatpush1.msra.mxu0 %v10040
    %10063 = vmatprep.subr.mxu0 0.0
    %10064 = vmatpush1.msra.mxu0 %v10041
    %10065 = vmatprep.subr.mxu0 0.0
    %10066 = vmatpush1.msra.mxu0 %v10042
    %10067 = vmatprep.subr.mxu0 0.0
    %10068 = vmatpush1.msra.mxu0 %v10043
    %10069 = vmatprep.subr.mxu0 0.0
    %10070 = vmatpush1.msra.mxu0 %v10044
    %10071 = vmatprep.subr.mxu0 0.0
    %10072 = vmatpush1.msra.mxu0 %v10059
    %10073 = vmatprep.subr.mxu0 0.0
    %10074 = vmatpush1.msra.mxu0 0.0
    %10075 = vmatprep.subr.mxu0 0.0
    %10076 = vmatpush1.msra.mxu0 0.0
    %10077 = vmatprep.subr.mxu0 0.0
    %10078 = vmatpush1.msra.mxu0 0.0
    %10079 = vmatprep.subr.mxu0 0.0
    %10080 = vmatpush1.msra.mxu0 0.0
    %10081 = vmatprep.subr.mxu0 0.0
    %10082 = vmatpush1.msra.mxu0 0.0
    %10083 = vmatprep.subr.mxu0 0.0
    %10084 = vmatpush1.msra.mxu0 0.0
    %10085 = vmatprep.subr.mxu0 0.0
    %10086 = vmatpush1.msra.mxu0 0.0
    %10087 = vmatprep.subr.mxu0 0.0
    %10088 = vmatpush1.msra.mxu0 0.0
    %10089 = vmatprep.subr.mxu0 0.0
    %10090 = vmatpush1.msra.mxu0 0.0
    %10091 = vmatprep.subr.mxu0 0.0
    %10092 = vmatpush1.msra.mxu0 0.0
    %10093 = vmatprep.subr.mxu0 0.0
    %10094 = vmatpush1.msra.mxu0 0.0
    %10095 = vmatprep.subr.mxu0 0.0
    %10096 = vmatpush1.msra.mxu0 0.0
    %10097 = vmatprep.subr.mxu0 0.0
    %10098 = vmatpush1.msra.mxu0 0.0
    %10099 = vmatprep.subr.mxu0 0.0
    %10100 = vmatpush1.msra.mxu0 0.0
    %10101 = vmatprep.subr.mxu0 0.0
    %10102 = vmatpush1.msra.mxu0 0.0
    %10103 = vmatprep.subr.mxu0 0.0
    %10104 = vmatpush1.msra.mxu0 0.0
    %10105 = vmatprep.subr.mxu0 0.0
    %10106 = vmatpush1.msra.mxu0 0.0
    %10107 = vmatprep.subr.mxu0 0.0
    %10108 = vmatpush1.msra.mxu0 0.0
    %10109 = vmatprep.subr.mxu0 0.0
    %10110 = vmatpush1.msra.mxu0 0.0
    %10111 = vmatprep.subr.mxu0 0.0
    %10112 = vmatpush1.msra.mxu0 0.0
    %10113 = vmatprep.subr.mxu0 0.0
    %10114 = vmatpush1.msra.mxu0 0.0
    %10115 = vmatprep.subr.mxu0 0.0
    %10116 = vmatpush1.msra.mxu0 0.0
    %10117 = vmatprep.subr.mxu0 0.0
    %10118 = vmatpush1.msra.mxu0 0.0
    %10119 = vmatprep.subr.mxu0 0.0
    %10120 = vmatpush1.msra.mxu0 0.0
    %10121 = vmatprep.subr.mxu0 0.0
    %10122 = vmatpush1.msra.mxu0 0.0
    %10123 = vmatprep.subr.mxu0 0.0
    %10124 = vmatpush1.msra.mxu0 0.0
    %10125 = vmatprep.mubr.f32.mxu0 0.0
    %10126 = vmatmul.mubr.f32.gmra.mrb[0].mxu0 %v10047
    %v10127 = vpop.f32.mrb[0].mxu0
    %v10128 = vadd.f32 0.0, %v10127
    %v10129 = vpop.f32.mrb[0].mxu0
    %10130 = vmatprep.mubr.f32.mxu0 0.0
    %10131 = vmatmul.mubr.f32.gmra.mrb[0].mxu0 %v10050
    %v10132 = vpop.f32.mrb[0].mxu0
    %v10133 = vadd.f32 0.0, %v10132
    %v10134 = vpop.f32.mrb[0].mxu0
    %10135 = vmatprep.mubr.f32.mxu0 0.0
    %10136 = vmatmul.mubr.f32.gmra.mrb[0].mxu0 %v10053
    %v10137 = vpop.f32.mrb[0].mxu0
    %v10138 = vadd.f32 0.0, %v10137
    %v10139 = vpop.f32.mrb[0].mxu0
    %10140 = vmatprep.mubr.f32.mxu0 0.0
    %10141 = vmatmul.mubr.f32.gmra.mrb[0].mxu0 %v10056
    %v10142 = vpop.f32.mrb[0].mxu0
    %v10143 = vadd.f32 0.0, %v10142
    %v10144 = vpop.f32.mrb[0].mxu0
    %10145 = vdwg.mxu0
    %v10146 = vadd.f32 %v10017, %v10128
    %v10147 = vadd.f32 %v10022, %v10133
    %v10148 = vadd.f32 %v10027, %v10138
    %v10149 = vadd.f32 %v10032, %v10143
    %v10150 = vld [vmem:[#allocation4 + $0x3] sm:$0xff]
    %v10151 = vld [vmem:[#allocation4 + $0xb] sm:$0xff]
    %v10152 = vld [vmem:[#allocation4 + $0x1b] sm:$0xff]
    %v10153 = vld [vmem:[#allocation4 + $0x23] sm:$0xff]
    %s10154 = scalar_lea.vmem %s11, 144
    %v10155 = vld [vmem:[%s10154] sm:$0xff]
    %v10156 = vld [vmem:[%s10154 + $0x8] sm:$0xff]
    %v10157 = vld [vmem:[%s10154 + $0x10] sm:$0xff]
    %v10158 = vld [vmem:[%s10154 + $0x18] sm:$0xff]
    %v10159 = vld [vmem:[%s10154 + $0x20] sm:$0xff]
    %v10160 = vld [vmem:[%s10154 + $0x28] sm:$0xf]
    %v10162 = vsel %vm8565, %v10150, 0
    %v10165 = vsel %vm8565, %v10151, 0
    %v10168 = vsel %vm8565, %v10152, 0
    %v10171 = vsel %vm8565, %v10153, 0
    %v10174 = vsel %vm9846, %v10160, 0
    %10176 = vmatprep.subr.mxu0 0.0
    %10177 = vmatpush1.msra.mxu0 %v10155
    %10178 = vmatprep.subr.mxu0 0.0
    %10179 = vmatpush1.msra.mxu0 %v10156
    %10180 = vmatprep.subr.mxu0 0.0
    %10181 = vmatpush1.msra.mxu0 %v10157
    %10182 = vmatprep.subr.mxu0 0.0
    %10183 = vmatpush1.msra.mxu0 %v10158
    %10184 = vmatprep.subr.mxu0 0.0
    %10185 = vmatpush1.msra.mxu0 %v10159
    %10186 = vmatprep.subr.mxu0 0.0
    %10187 = vmatpush1.msra.mxu0 %v10174
    %10188 = vmatprep.subr.mxu0 0.0
    %10189 = vmatpush1.msra.mxu0 0.0
    %10190 = vmatprep.subr.mxu0 0.0
    %10191 = vmatpush1.msra.mxu0 0.0
    %10192 = vmatprep.subr.mxu0 0.0
    %10193 = vmatpush1.msra.mxu0 0.0
    %10194 = vmatprep.subr.mxu0 0.0
    %10195 = vmatpush1.msra.mxu0 0.0
    %10196 = vmatprep.subr.mxu0 0.0
    %10197 = vmatpush1.msra.mxu0 0.0
    %10198 = vmatprep.subr.mxu0 0.0
    %10199 = vmatpush1.msra.mxu0 0.0
    %10200 = vmatprep.subr.mxu0 0.0
    %10201 = vmatpush1.msra.mxu0 0.0
    %10202 = vmatprep.subr.mxu0 0.0
    %10203 = vmatpush1.msra.mxu0 0.0
    %10204 = vmatprep.subr.mxu0 0.0
    %10205 = vmatpush1.msra.mxu0 0.0
    %10206 = vmatprep.subr.mxu0 0.0
    %10207 = vmatpush1.msra.mxu0 0.0
    %10208 = vmatprep.subr.mxu0 0.0
    %10209 = vmatpush1.msra.mxu0 0.0
    %10210 = vmatprep.subr.mxu0 0.0
    %10211 = vmatpush1.msra.mxu0 0.0
    %10212 = vmatprep.subr.mxu0 0.0
    %10213 = vmatpush1.msra.mxu0 0.0
    %10214 = vmatprep.subr.mxu0 0.0
    %10215 = vmatpush1.msra.mxu0 0.0
    %10216 = vmatprep.subr.mxu0 0.0
    %10217 = vmatpush1.msra.mxu0 0.0
    %10218 = vmatprep.subr.mxu0 0.0
    %10219 = vmatpush1.msra.mxu0 0.0
    %10220 = vmatprep.subr.mxu0 0.0
    %10221 = vmatpush1.msra.mxu0 0.0
    %10222 = vmatprep.subr.mxu0 0.0
    %10223 = vmatpush1.msra.mxu0 0.0
    %10224 = vmatprep.subr.mxu0 0.0
    %10225 = vmatpush1.msra.mxu0 0.0
    %10226 = vmatprep.subr.mxu0 0.0
    %10227 = vmatpush1.msra.mxu0 0.0
    %10228 = vmatprep.subr.mxu0 0.0
    %10229 = vmatpush1.msra.mxu0 0.0
    %10230 = vmatprep.subr.mxu0 0.0
    %10231 = vmatpush1.msra.mxu0 0.0
    %10232 = vmatprep.subr.mxu0 0.0
    %10233 = vmatpush1.msra.mxu0 0.0
    %10234 = vmatprep.subr.mxu0 0.0
    %10235 = vmatpush1.msra.mxu0 0.0
    %10236 = vmatprep.subr.mxu0 0.0
    %10237 = vmatpush1.msra.mxu0 0.0
    %10238 = vmatprep.subr.mxu0 0.0
    %10239 = vmatpush1.msra.mxu0 0.0
    %10240 = vmatprep.mubr.f32.mxu0 0.0
    %10241 = vmatmul.mubr.f32.gmra.mrb[0].mxu0 %v10162
    %v10242 = vpop.f32.mrb[0].mxu0
    %v10243 = vadd.f32 0.0, %v10242
    %v10244 = vpop.f32.mrb[0].mxu0
    %10245 = vmatprep.mubr.f32.mxu0 0.0
    %10246 = vmatmul.mubr.f32.gmra.mrb[0].mxu0 %v10165
    %v10247 = vpop.f32.mrb[0].mxu0
    %v10248 = vadd.f32 0.0, %v10247
    %v10249 = vpop.f32.mrb[0].mxu0
    %10250 = vmatprep.mubr.f32.mxu0 0.0
    %10251 = vmatmul.mubr.f32.gmra.mrb[0].mxu0 %v10168
    %v10252 = vpop.f32.mrb[0].mxu0
    %v10253 = vadd.f32 0.0, %v10252
    %v10254 = vpop.f32.mrb[0].mxu0
    %10255 = vmatprep.mubr.f32.mxu0 0.0
    %10256 = vmatmul.mubr.f32.gmra.mrb[0].mxu0 %v10171
    %v10257 = vpop.f32.mrb[0].mxu0
    %v10258 = vadd.f32 0.0, %v10257
    %v10259 = vpop.f32.mrb[0].mxu0
    %10260 = vdwg.mxu0
    %v10261 = vadd.f32 %v10146, %v10243
    %v10262 = vadd.f32 %v10147, %v10248
    %v10263 = vadd.f32 %v10148, %v10253
    %v10264 = vadd.f32 %v10149, %v10258
    %v10265 = vld [vmem:[#allocation4 + $0x4] sm:$0xff]
    %v10266 = vld [vmem:[#allocation4 + $0xc] sm:$0xff]
    %v10267 = vld [vmem:[#allocation4 + $0x1c] sm:$0xff]
    %v10268 = vld [vmem:[#allocation4 + $0x24] sm:$0xff]
    %s10269 = scalar_lea.vmem %s11, 192
    %v10270 = vld [vmem:[%s10269] sm:$0xff]
    %v10271 = vld [vmem:[%s10269 + $0x8] sm:$0xff]
    %v10272 = vld [vmem:[%s10269 + $0x10] sm:$0xff]
    %v10273 = vld [vmem:[%s10269 + $0x18] sm:$0xff]
    %v10274 = vld [vmem:[%s10269 + $0x20] sm:$0xff]
    %v10275 = vld [vmem:[%s10269 + $0x28] sm:$0xf]
    %v10277 = vsel %vm8565, %v10265, 0
    %v10280 = vsel %vm8565, %v10266, 0
    %v10283 = vsel %vm8565, %v10267, 0
    %v10286 = vsel %vm8565, %v10268, 0
    %v10289 = vsel %vm9846, %v10275, 0
    %10291 = vmatprep.subr.mxu0 0.0
    %10292 = vmatpush1.msra.mxu0 %v10270
    %10293 = vmatprep.subr.mxu0 0.0
    %10294 = vmatpush1.msra.mxu0 %v10271
    %10295 = vmatprep.subr.mxu0 0.0
    %10296 = vmatpush1.msra.mxu0 %v10272
    %10297 = vmatprep.subr.mxu0 0.0
    %10298 = vmatpush1.msra.mxu0 %v10273
    %10299 = vmatprep.subr.mxu0 0.0
    %10300 = vmatpush1.msra.mxu0 %v10274
    %10301 = vmatprep.subr.mxu0 0.0
    %10302 = vmatpush1.msra.mxu0 %v10289
    %10303 = vmatprep.subr.mxu0 0.0
    %10304 = vmatpush1.msra.mxu0 0.0
    %10305 = vmatprep.subr.mxu0 0.0
    %10306 = vmatpush1.msra.mxu0 0.0
    %10307 = vmatprep.subr.mxu0 0.0
    %10308 = vmatpush1.msra.mxu0 0.0
    %10309 = vmatprep.subr.mxu0 0.0
    %10310 = vmatpush1.msra.mxu0 0.0
    %10311 = vmatprep.subr.mxu0 0.0
    %10312 = vmatpush1.msra.mxu0 0.0
    %10313 = vmatprep.subr.mxu0 0.0
    %10314 = vmatpush1.msra.mxu0 0.0
    %10315 = vmatprep.subr.mxu0 0.0
    %10316 = vmatpush1.msra.mxu0 0.0
    %10317 = vmatprep.subr.mxu0 0.0
    %10318 = vmatpush1.msra.mxu0 0.0
    %10319 = vmatprep.subr.mxu0 0.0
    %10320 = vmatpush1.msra.mxu0 0.0
    %10321 = vmatprep.subr.mxu0 0.0
    %10322 = vmatpush1.msra.mxu0 0.0
    %10323 = vmatprep.subr.mxu0 0.0
    %10324 = vmatpush1.msra.mxu0 0.0
    %10325 = vmatprep.subr.mxu0 0.0
    %10326 = vmatpush1.msra.mxu0 0.0
    %10327 = vmatprep.subr.mxu0 0.0
    %10328 = vmatpush1.msra.mxu0 0.0
    %10329 = vmatprep.subr.mxu0 0.0
    %10330 = vmatpush1.msra.mxu0 0.0
    %10331 = vmatprep.subr.mxu0 0.0
    %10332 = vmatpush1.msra.mxu0 0.0
    %10333 = vmatprep.subr.mxu0 0.0
    %10334 = vmatpush1.msra.mxu0 0.0
    %10335 = vmatprep.subr.mxu0 0.0
    %10336 = vmatpush1.msra.mxu0 0.0
    %10337 = vmatprep.subr.mxu0 0.0
    %10338 = vmatpush1.msra.mxu0 0.0
    %10339 = vmatprep.subr.mxu0 0.0
    %10340 = vmatpush1.msra.mxu0 0.0
    %10341 = vmatprep.subr.mxu0 0.0
    %10342 = vmatpush1.msra.mxu0 0.0
    %10343 = vmatprep.subr.mxu0 0.0
    %10344 = vmatpush1.msra.mxu0 0.0
    %10345 = vmatprep.subr.mxu0 0.0
    %10346 = vmatpush1.msra.mxu0 0.0
    %10347 = vmatprep.subr.mxu0 0.0
    %10348 = vmatpush1.msra.mxu0 0.0
    %10349 = vmatprep.subr.mxu0 0.0
    %10350 = vmatpush1.msra.mxu0 0.0
    %10351 = vmatprep.subr.mxu0 0.0
    %10352 = vmatpush1.msra.mxu0 0.0
    %10353 = vmatprep.subr.mxu0 0.0
    %10354 = vmatpush1.msra.mxu0 0.0
    %10355 = vmatprep.mubr.f32.mxu0 0.0
    %10356 = vmatmul.mubr.f32.gmra.mrb[0].mxu0 %v10277
    %v10357 = vpop.f32.mrb[0].mxu0
    %v10358 = vadd.f32 0.0, %v10357
    %v10359 = vpop.f32.mrb[0].mxu0
    %10360 = vmatprep.mubr.f32.mxu0 0.0
    %10361 = vmatmul.mubr.f32.gmra.mrb[0].mxu0 %v10280
    %v10362 = vpop.f32.mrb[0].mxu0
    %v10363 = vadd.f32 0.0, %v10362
    %v10364 = vpop.f32.mrb[0].mxu0
    %10365 = vmatprep.mubr.f32.mxu0 0.0
    %10366 = vmatmul.mubr.f32.gmra.mrb[0].mxu0 %v10283
    %v10367 = vpop.f32.mrb[0].mxu0
    %v10368 = vadd.f32 0.0, %v10367
    %v10369 = vpop.f32.mrb[0].mxu0
    %10370 = vmatprep.mubr.f32.mxu0 0.0
    %10371 = vmatmul.mubr.f32.gmra.mrb[0].mxu0 %v10286
    %v10372 = vpop.f32.mrb[0].mxu0
    %v10373 = vadd.f32 0.0, %v10372
    %v10374 = vpop.f32.mrb[0].mxu0
    %10375 = vdwg.mxu0
    %v10376 = vadd.f32 %v10261, %v10358
    %v10377 = vadd.f32 %v10262, %v10363
    %v10378 = vadd.f32 %v10263, %v10368
    %v10379 = vadd.f32 %v10264, %v10373
    %v10380 = vld [vmem:[#allocation4 + $0x5] sm:$0xff]
    %v10381 = vld [vmem:[#allocation4 + $0xd] sm:$0xff]
    %v10382 = vld [vmem:[#allocation4 + $0x1d] sm:$0xff]
    %v10383 = vld [vmem:[#allocation4 + $0x25] sm:$0xff]
    %s10384 = scalar_lea.vmem %s11, 240
    %v10385 = vld [vmem:[%s10384] sm:$0xff]
    %v10386 = vld [vmem:[%s10384 + $0x8] sm:$0xff]
    %v10387 = vld [vmem:[%s10384 + $0x10] sm:$0xff]
    %v10388 = vld [vmem:[%s10384 + $0x18] sm:$0xff]
    %v10389 = vld [vmem:[%s10384 + $0x20] sm:$0xff]
    %v10390 = vld [vmem:[%s10384 + $0x28] sm:$0xf]
    %v10392 = vsel %vm8565, %v10380, 0
    %v10395 = vsel %vm8565, %v10381, 0
    %v10398 = vsel %vm8565, %v10382, 0
    %v10401 = vsel %vm8565, %v10383, 0
    %v10404 = vsel %vm9846, %v10390, 0
    %10406 = vmatprep.subr.mxu0 0.0
    %10407 = vmatpush1.msra.mxu0 %v10385
    %10408 = vmatprep.subr.mxu0 0.0
    %10409 = vmatpush1.msra.mxu0 %v10386
    %10410 = vmatprep.subr.mxu0 0.0
    %10411 = vmatpush1.msra.mxu0 %v10387
    %10412 = vmatprep.subr.mxu0 0.0
    %10413 = vmatpush1.msra.mxu0 %v10388
    %10414 = vmatprep.subr.mxu0 0.0
    %10415 = vmatpush1.msra.mxu0 %v10389
    %10416 = vmatprep.subr.mxu0 0.0
    %10417 = vmatpush1.msra.mxu0 %v10404
    %10418 = vmatprep.subr.mxu0 0.0
    %10419 = vmatpush1.msra.mxu0 0.0
    %10420 = vmatprep.subr.mxu0 0.0
    %10421 = vmatpush1.msra.mxu0 0.0
    %10422 = vmatprep.subr.mxu0 0.0
    %10423 = vmatpush1.msra.mxu0 0.0
    %10424 = vmatprep.subr.mxu0 0.0
    %10425 = vmatpush1.msra.mxu0 0.0
    %10426 = vmatprep.subr.mxu0 0.0
    %10427 = vmatpush1.msra.mxu0 0.0
    %10428 = vmatprep.subr.mxu0 0.0
    %10429 = vmatpush1.msra.mxu0 0.0
    %10430 = vmatprep.subr.mxu0 0.0
    %10431 = vmatpush1.msra.mxu0 0.0
    %10432 = vmatprep.subr.mxu0 0.0
    %10433 = vmatpush1.msra.mxu0 0.0
    %10434 = vmatprep.subr.mxu0 0.0
    %10435 = vmatpush1.msra.mxu0 0.0
    %10436 = vmatprep.subr.mxu0 0.0
    %10437 = vmatpush1.msra.mxu0 0.0
    %10438 = vmatprep.subr.mxu0 0.0
    %10439 = vmatpush1.msra.mxu0 0.0
    %10440 = vmatprep.subr.mxu0 0.0
    %10441 = vmatpush1.msra.mxu0 0.0
    %10442 = vmatprep.subr.mxu0 0.0
    %10443 = vmatpush1.msra.mxu0 0.0
    %10444 = vmatprep.subr.mxu0 0.0
    %10445 = vmatpush1.msra.mxu0 0.0
    %10446 = vmatprep.subr.mxu0 0.0
    %10447 = vmatpush1.msra.mxu0 0.0
    %10448 = vmatprep.subr.mxu0 0.0
    %10449 = vmatpush1.msra.mxu0 0.0
    %10450 = vmatprep.subr.mxu0 0.0
    %10451 = vmatpush1.msra.mxu0 0.0
    %10452 = vmatprep.subr.mxu0 0.0
    %10453 = vmatpush1.msra.mxu0 0.0
    %10454 = vmatprep.subr.mxu0 0.0
    %10455 = vmatpush1.msra.mxu0 0.0
    %10456 = vmatprep.subr.mxu0 0.0
    %10457 = vmatpush1.msra.mxu0 0.0
    %10458 = vmatprep.subr.mxu0 0.0
    %10459 = vmatpush1.msra.mxu0 0.0
    %10460 = vmatprep.subr.mxu0 0.0
    %10461 = vmatpush1.msra.mxu0 0.0
    %10462 = vmatprep.subr.mxu0 0.0
    %10463 = vmatpush1.msra.mxu0 0.0
    %10464 = vmatprep.subr.mxu0 0.0
    %10465 = vmatpush1.msra.mxu0 0.0
    %10466 = vmatprep.subr.mxu0 0.0
    %10467 = vmatpush1.msra.mxu0 0.0
    %10468 = vmatprep.subr.mxu0 0.0
    %10469 = vmatpush1.msra.mxu0 0.0
    %10470 = vmatprep.mubr.f32.mxu0 0.0
    %10471 = vmatmul.mubr.f32.gmra.mrb[0].mxu0 %v10392
    %v10472 = vpop.f32.mrb[0].mxu0
    %v10473 = vadd.f32 0.0, %v10472
    %v10474 = vpop.f32.mrb[0].mxu0
    %10475 = vmatprep.mubr.f32.mxu0 0.0
    %10476 = vmatmul.mubr.f32.gmra.mrb[0].mxu0 %v10395
    %v10477 = vpop.f32.mrb[0].mxu0
    %v10478 = vadd.f32 0.0, %v10477
    %v10479 = vpop.f32.mrb[0].mxu0
    %10480 = vmatprep.mubr.f32.mxu0 0.0
    %10481 = vmatmul.mubr.f32.gmra.mrb[0].mxu0 %v10398
    %v10482 = vpop.f32.mrb[0].mxu0
    %v10483 = vadd.f32 0.0, %v10482
    %v10484 = vpop.f32.mrb[0].mxu0
    %10485 = vmatprep.mubr.f32.mxu0 0.0
    %10486 = vmatmul.mubr.f32.gmra.mrb[0].mxu0 %v10401
    %v10487 = vpop.f32.mrb[0].mxu0
    %v10488 = vadd.f32 0.0, %v10487
    %v10489 = vpop.f32.mrb[0].mxu0
    %10490 = vdwg.mxu0
    %v10491 = vadd.f32 %v10376, %v10473
    %v10492 = vadd.f32 %v10377, %v10478
    %v10493 = vadd.f32 %v10378, %v10483
    %v10494 = vadd.f32 %v10379, %v10488
    %v10495 = vld [vmem:[#allocation4 + $0x6] sm:$0xff]
    %v10496 = vld [vmem:[#allocation4 + $0xe] sm:$0xff]
    %v10497 = vld [vmem:[#allocation4 + $0x1e] sm:$0xff]
    %v10498 = vld [vmem:[#allocation4 + $0x26] sm:$0xff]
    %s10499 = scalar_lea.vmem %s11, 288
    %v10500 = vld [vmem:[%s10499] sm:$0xff]
    %v10501 = vld [vmem:[%s10499 + $0x8] sm:$0xff]
    %v10502 = vld [vmem:[%s10499 + $0x10] sm:$0xff]
    %v10503 = vld [vmem:[%s10499 + $0x18] sm:$0xff]
    %v10504 = vld [vmem:[%s10499 + $0x20] sm:$0xff]
    %v10505 = vld [vmem:[%s10499 + $0x28] sm:$0xf]
    %v10507 = vsel %vm8565, %v10495, 0
    %v10510 = vsel %vm8565, %v10496, 0
    %v10513 = vsel %vm8565, %v10497, 0
    %v10516 = vsel %vm8565, %v10498, 0
    %v10519 = vsel %vm9846, %v10505, 0
    %10521 = vmatprep.subr.mxu0 0.0
    %10522 = vmatpush1.msra.mxu0 %v10500
    %10523 = vmatprep.subr.mxu0 0.0
    %10524 = vmatpush1.msra.mxu0 %v10501
    %10525 = vmatprep.subr.mxu0 0.0
    %10526 = vmatpush1.msra.mxu0 %v10502
    %10527 = vmatprep.subr.mxu0 0.0
    %10528 = vmatpush1.msra.mxu0 %v10503
    %10529 = vmatprep.subr.mxu0 0.0
    %10530 = vmatpush1.msra.mxu0 %v10504
    %10531 = vmatprep.subr.mxu0 0.0
    %10532 = vmatpush1.msra.mxu0 %v10519
    %10533 = vmatprep.subr.mxu0 0.0
    %10534 = vmatpush1.msra.mxu0 0.0
    %10535 = vmatprep.subr.mxu0 0.0
    %10536 = vmatpush1.msra.mxu0 0.0
    %10537 = vmatprep.subr.mxu0 0.0
    %10538 = vmatpush1.msra.mxu0 0.0
    %10539 = vmatprep.subr.mxu0 0.0
    %10540 = vmatpush1.msra.mxu0 0.0
    %10541 = vmatprep.subr.mxu0 0.0
    %10542 = vmatpush1.msra.mxu0 0.0
    %10543 = vmatprep.subr.mxu0 0.0
    %10544 = vmatpush1.msra.mxu0 0.0
    %10545 = vmatprep.subr.mxu0 0.0
    %10546 = vmatpush1.msra.mxu0 0.0
    %10547 = vmatprep.subr.mxu0 0.0
    %10548 = vmatpush1.msra.mxu0 0.0
    %10549 = vmatprep.subr.mxu0 0.0
    %10550 = vmatpush1.msra.mxu0 0.0
    %10551 = vmatprep.subr.mxu0 0.0
    %10552 = vmatpush1.msra.mxu0 0.0
    %10553 = vmatprep.subr.mxu0 0.0
    %10554 = vmatpush1.msra.mxu0 0.0
    %10555 = vmatprep.subr.mxu0 0.0
    %10556 = vmatpush1.msra.mxu0 0.0
    %10557 = vmatprep.subr.mxu0 0.0
    %10558 = vmatpush1.msra.mxu0 0.0
    %10559 = vmatprep.subr.mxu0 0.0
    %10560 = vmatpush1.msra.mxu0 0.0
    %10561 = vmatprep.subr.mxu0 0.0
    %10562 = vmatpush1.msra.mxu0 0.0
    %10563 = vmatprep.subr.mxu0 0.0
    %10564 = vmatpush1.msra.mxu0 0.0
    %10565 = vmatprep.subr.mxu0 0.0
    %10566 = vmatpush1.msra.mxu0 0.0
    %10567 = vmatprep.subr.mxu0 0.0
    %10568 = vmatpush1.msra.mxu0 0.0
    %10569 = vmatprep.subr.mxu0 0.0
    %10570 = vmatpush1.msra.mxu0 0.0
    %10571 = vmatprep.subr.mxu0 0.0
    %10572 = vmatpush1.msra.mxu0 0.0
    %10573 = vmatprep.subr.mxu0 0.0
    %10574 = vmatpush1.msra.mxu0 0.0
    %10575 = vmatprep.subr.mxu0 0.0
    %10576 = vmatpush1.msra.mxu0 0.0
    %10577 = vmatprep.subr.mxu0 0.0
    %10578 = vmatpush1.msra.mxu0 0.0
    %10579 = vmatprep.subr.mxu0 0.0
    %10580 = vmatpush1.msra.mxu0 0.0
    %10581 = vmatprep.subr.mxu0 0.0
    %10582 = vmatpush1.msra.mxu0 0.0
    %10583 = vmatprep.subr.mxu0 0.0
    %10584 = vmatpush1.msra.mxu0 0.0
    %10585 = vmatprep.mubr.f32.mxu0 0.0
    %10586 = vmatmul.mubr.f32.gmra.mrb[0].mxu0 %v10507
    %v10587 = vpop.f32.mrb[0].mxu0
    %v10588 = vadd.f32 0.0, %v10587
    %v10589 = vpop.f32.mrb[0].mxu0
    %10590 = vmatprep.mubr.f32.mxu0 0.0
    %10591 = vmatmul.mubr.f32.gmra.mrb[0].mxu0 %v10510
    %v10592 = vpop.f32.mrb[0].mxu0
    %v10593 = vadd.f32 0.0, %v10592
    %v10594 = vpop.f32.mrb[0].mxu0
    %10595 = vmatprep.mubr.f32.mxu0 0.0
    %10596 = vmatmul.mubr.f32.gmra.mrb[0].mxu0 %v10513
    %v10597 = vpop.f32.mrb[0].mxu0
    %v10598 = vadd.f32 0.0, %v10597
    %v10599 = vpop.f32.mrb[0].mxu0
    %10600 = vmatprep.mubr.f32.mxu0 0.0
    %10601 = vmatmul.mubr.f32.gmra.mrb[0].mxu0 %v10516
    %v10602 = vpop.f32.mrb[0].mxu0
    %v10603 = vadd.f32 0.0, %v10602
    %v10604 = vpop.f32.mrb[0].mxu0
    %10605 = vdwg.mxu0
    %v10606 = vadd.f32 %v10491, %v10588
    %v10607 = vadd.f32 %v10492, %v10593
    %v10608 = vadd.f32 %v10493, %v10598
    %v10609 = vadd.f32 %v10494, %v10603
    %v10610 = vxor.u32 %v10606, 2147483648
    %v10611 = vxor.u32 %v10607, 2147483648
    %v10612 = vxor.u32 %v10608, 2147483648
    %v10613 = vxor.u32 %v10609, 2147483648
    %v10614 = vmul.f32 %v10610, 1.442695
    %v10615 = vpow.pop %v10614
    %v10616 = vmul.f32 %v10611, 1.442695
    %v10617 = vpow.pop %v10616
    %v10618 = vmul.f32 %v10612, 1.442695
    %v10619 = vpow.pop %v10618
    %v10620 = vmul.f32 %v10613, 1.442695
    %v10621 = vpow.pop %v10620
    %v10622 = vadd.f32 %v10615, 1.0
    %v10623 = vadd.f32 %v10617, 1.0
    %v10624 = vadd.f32 %v10619, 1.0
    %v10625 = vadd.f32 %v10621, 1.0
    %v10626 = vrcp.pop %v10622
    %v10627 = vmul.f32 1.0, %v10626
    %v10628 = vrcp.pop %v10623
    %v10629 = vmul.f32 1.0, %v10628
    %v10630 = vrcp.pop %v10624
    %v10631 = vmul.f32 1.0, %v10630
    %v10632 = vrcp.pop %v10625
    %v10633 = vmul.f32 1.0, %v10632
    %v10634 = vlaneseq
    %v10635 = vshrl.u32 %v10634, 7
    %v10636 = vsub.s32 0, %v10635
    %v10637 = vrot.slane %v10627, %v10636
    %10639 = vbcast.lane.b32.xlu0 %v10637, 256
    %v10640 = vpop.permute.xlu0 %10639
    %s10642 = sor.u32 256, 8
    %10643 = vbcast.lane.b32.xlu0 %v10637, %s10642
    %v10644 = vpop.permute.xlu0 %10643
    %v10645 = vlaneseq
    %v10646 = vshrl.u32 %v10645, 7
    %v10647 = vsub.s32 1, %v10646
    %v10648 = vrot.slane %v10627, %v10647
    %10650 = vbcast.lane.b32.xlu0 %v10648, 256
    %v10651 = vpop.permute.xlu0 %10650
    %s10653 = sor.u32 256, 8
    %10654 = vbcast.lane.b32.xlu0 %v10648, %s10653
    %v10655 = vpop.permute.xlu0 %10654
    %v10656 = vlaneseq
    %v10657 = vshrl.u32 %v10656, 7
    %v10658 = vsub.s32 2, %v10657
    %v10659 = vrot.slane %v10627, %v10658
    %10661 = vbcast.lane.b32.xlu0 %v10659, 256
    %v10662 = vpop.permute.xlu0 %10661
    %s10664 = sor.u32 256, 8
    %10665 = vbcast.lane.b32.xlu0 %v10659, %s10664
    %v10666 = vpop.permute.xlu0 %10665
    %v10667 = vlaneseq
    %v10668 = vshrl.u32 %v10667, 7
    %v10669 = vsub.s32 3, %v10668
    %v10670 = vrot.slane %v10627, %v10669
    %10672 = vbcast.lane.b32.xlu0 %v10670, 256
    %v10673 = vpop.permute.xlu0 %10672
    %s10675 = sor.u32 256, 8
    %10676 = vbcast.lane.b32.xlu0 %v10670, %s10675
    %v10677 = vpop.permute.xlu0 %10676
    %v10678 = vlaneseq
    %v10679 = vshrl.u32 %v10678, 7
    %v10680 = vsub.s32 4, %v10679
    %v10681 = vrot.slane %v10627, %v10680
    %10683 = vbcast.lane.b32.xlu0 %v10681, 256
    %v10684 = vpop.permute.xlu0 %10683
    %s10686 = sor.u32 256, 8
    %10687 = vbcast.lane.b32.xlu0 %v10681, %s10686
    %v10688 = vpop.permute.xlu0 %10687
    %v10689 = vlaneseq
    %v10690 = vshrl.u32 %v10689, 7
    %v10691 = vsub.s32 5, %v10690
    %v10692 = vrot.slane %v10627, %v10691
    %10694 = vbcast.lane.b32.xlu0 %v10692, 256
    %v10695 = vpop.permute.xlu0 %10694
    %s10697 = sor.u32 256, 8
    %10698 = vbcast.lane.b32.xlu0 %v10692, %s10697
    %v10699 = vpop.permute.xlu0 %10698
    %v10700 = vlaneseq
    %v10701 = vshrl.u32 %v10700, 7
    %v10702 = vsub.s32 6, %v10701
    %v10703 = vrot.slane %v10627, %v10702
    %10705 = vbcast.lane.b32.xlu0 %v10703, 256
    %v10706 = vpop.permute.xlu0 %10705
    %s10708 = sor.u32 256, 8
    %10709 = vbcast.lane.b32.xlu0 %v10703, %s10708
    %v10710 = vpop.permute.xlu0 %10709
    %v10711 = vlaneseq
    %v10712 = vshrl.u32 %v10711, 7
    %v10713 = vsub.s32 7, %v10712
    %v10714 = vrot.slane %v10627, %v10713
    %10716 = vbcast.lane.b32.xlu0 %v10714, 256
    %v10717 = vpop.permute.xlu0 %10716
    %s10719 = sor.u32 256, 8
    %10720 = vbcast.lane.b32.xlu0 %v10714, %s10719
    %v10721 = vpop.permute.xlu0 %10720
    %v10722 = vlaneseq
    %v10723 = vshrl.u32 %v10722, 7
    %v10724 = vsub.s32 0, %v10723
    %v10725 = vrot.slane %v10629, %v10724
    %10727 = vbcast.lane.b32.xlu0 %v10725, 256
    %v10728 = vpop.permute.xlu0 %10727
    %s10730 = sor.u32 256, 8
    %10731 = vbcast.lane.b32.xlu0 %v10725, %s10730
    %v10732 = vpop.permute.xlu0 %10731
    %v10733 = vlaneseq
    %v10734 = vshrl.u32 %v10733, 7
    %v10735 = vsub.s32 1, %v10734
    %v10736 = vrot.slane %v10629, %v10735
    %10738 = vbcast.lane.b32.xlu0 %v10736, 256
    %v10739 = vpop.permute.xlu0 %10738
    %s10741 = sor.u32 256, 8
    %10742 = vbcast.lane.b32.xlu0 %v10736, %s10741
    %v10743 = vpop.permute.xlu0 %10742
    %v10744 = vlaneseq
    %v10745 = vshrl.u32 %v10744, 7
    %v10746 = vsub.s32 2, %v10745
    %v10747 = vrot.slane %v10629, %v10746
    %10749 = vbcast.lane.b32.xlu0 %v10747, 256
    %v10750 = vpop.permute.xlu0 %10749
    %s10752 = sor.u32 256, 8
    %10753 = vbcast.lane.b32.xlu0 %v10747, %s10752
    %v10754 = vpop.permute.xlu0 %10753
    %v10755 = vlaneseq
    %v10756 = vshrl.u32 %v10755, 7
    %v10757 = vsub.s32 3, %v10756
    %v10758 = vrot.slane %v10629, %v10757
    %10760 = vbcast.lane.b32.xlu0 %v10758, 256
    %v10761 = vpop.permute.xlu0 %10760
    %s10763 = sor.u32 256, 8
    %10764 = vbcast.lane.b32.xlu0 %v10758, %s10763
    %v10765 = vpop.permute.xlu0 %10764
    %v10766 = vlaneseq
    %v10767 = vshrl.u32 %v10766, 7
    %v10768 = vsub.s32 4, %v10767
    %v10769 = vrot.slane %v10629, %v10768
    %10771 = vbcast.lane.b32.xlu0 %v10769, 256
    %v10772 = vpop.permute.xlu0 %10771
    %s10774 = sor.u32 256, 8
    %10775 = vbcast.lane.b32.xlu0 %v10769, %s10774
    %v10776 = vpop.permute.xlu0 %10775
    %v10777 = vlaneseq
    %v10778 = vshrl.u32 %v10777, 7
    %v10779 = vsub.s32 5, %v10778
    %v10780 = vrot.slane %v10629, %v10779
    %10782 = vbcast.lane.b32.xlu0 %v10780, 256
    %v10783 = vpop.permute.xlu0 %10782
    %s10785 = sor.u32 256, 8
    %10786 = vbcast.lane.b32.xlu0 %v10780, %s10785
    %v10787 = vpop.permute.xlu0 %10786
    %v10788 = vlaneseq
    %v10789 = vshrl.u32 %v10788, 7
    %v10790 = vsub.s32 6, %v10789
    %v10791 = vrot.slane %v10629, %v10790
    %10793 = vbcast.lane.b32.xlu0 %v10791, 256
    %v10794 = vpop.permute.xlu0 %10793
    %s10796 = sor.u32 256, 8
    %10797 = vbcast.lane.b32.xlu0 %v10791, %s10796
    %v10798 = vpop.permute.xlu0 %10797
    %v10799 = vlaneseq
    %v10800 = vshrl.u32 %v10799, 7
    %v10801 = vsub.s32 7, %v10800
    %v10802 = vrot.slane %v10629, %v10801
    %10804 = vbcast.lane.b32.xlu0 %v10802, 256
    %v10805 = vpop.permute.xlu0 %10804
    %s10807 = sor.u32 256, 8
    %10808 = vbcast.lane.b32.xlu0 %v10802, %s10807
    %v10809 = vpop.permute.xlu0 %10808
    %v10810 = vlaneseq
    %v10811 = vshrl.u32 %v10810, 7
    %v10812 = vsub.s32 0, %v10811
    %v10813 = vrot.slane %v10631, %v10812
    %10815 = vbcast.lane.b32.xlu0 %v10813, 256
    %v10816 = vpop.permute.xlu0 %10815
    %s10818 = sor.u32 256, 8
    %10819 = vbcast.lane.b32.xlu0 %v10813, %s10818
    %v10820 = vpop.permute.xlu0 %10819
    %v10821 = vlaneseq
    %v10822 = vshrl.u32 %v10821, 7
    %v10823 = vsub.s32 1, %v10822
    %v10824 = vrot.slane %v10631, %v10823
    %10826 = vbcast.lane.b32.xlu0 %v10824, 256
    %v10827 = vpop.permute.xlu0 %10826
    %s10829 = sor.u32 256, 8
    %10830 = vbcast.lane.b32.xlu0 %v10824, %s10829
    %v10831 = vpop.permute.xlu0 %10830
    %v10832 = vlaneseq
    %v10833 = vshrl.u32 %v10832, 7
    %v10834 = vsub.s32 2, %v10833
    %v10835 = vrot.slane %v10631, %v10834
    %10837 = vbcast.lane.b32.xlu0 %v10835, 256
    %v10838 = vpop.permute.xlu0 %10837
    %s10840 = sor.u32 256, 8
    %10841 = vbcast.lane.b32.xlu0 %v10835, %s10840
    %v10842 = vpop.permute.xlu0 %10841
    %v10843 = vlaneseq
    %v10844 = vshrl.u32 %v10843, 7
    %v10845 = vsub.s32 3, %v10844
    %v10846 = vrot.slane %v10631, %v10845
    %10848 = vbcast.lane.b32.xlu0 %v10846, 256
    %v10849 = vpop.permute.xlu0 %10848
    %s10851 = sor.u32 256, 8
    %10852 = vbcast.lane.b32.xlu0 %v10846, %s10851
    %v10853 = vpop.permute.xlu0 %10852
    %v10854 = vlaneseq
    %v10855 = vshrl.u32 %v10854, 7
    %v10856 = vsub.s32 4, %v10855
    %v10857 = vrot.slane %v10631, %v10856
    %10859 = vbcast.lane.b32.xlu0 %v10857, 256
    %v10860 = vpop.permute.xlu0 %10859
    %s10862 = sor.u32 256, 8
    %10863 = vbcast.lane.b32.xlu0 %v10857, %s10862
    %v10864 = vpop.permute.xlu0 %10863
    %v10865 = vlaneseq
    %v10866 = vshrl.u32 %v10865, 7
    %v10867 = vsub.s32 5, %v10866
    %v10868 = vrot.slane %v10631, %v10867
    %10870 = vbcast.lane.b32.xlu0 %v10868, 256
    %v10871 = vpop.permute.xlu0 %10870
    %s10873 = sor.u32 256, 8
    %10874 = vbcast.lane.b32.xlu0 %v10868, %s10873
    %v10875 = vpop.permute.xlu0 %10874
    %v10876 = vlaneseq
    %v10877 = vshrl.u32 %v10876, 7
    %v10878 = vsub.s32 6, %v10877
    %v10879 = vrot.slane %v10631, %v10878
    %10881 = vbcast.lane.b32.xlu0 %v10879, 256
    %v10882 = vpop.permute.xlu0 %10881
    %s10884 = sor.u32 256, 8
    %10885 = vbcast.lane.b32.xlu0 %v10879, %s10884
    %v10886 = vpop.permute.xlu0 %10885
    %v10887 = vlaneseq
    %v10888 = vshrl.u32 %v10887, 7
    %v10889 = vsub.s32 7, %v10888
    %v10890 = vrot.slane %v10631, %v10889
    %10892 = vbcast.lane.b32.xlu0 %v10890, 256
    %v10893 = vpop.permute.xlu0 %10892
    %s10895 = sor.u32 256, 8
    %10896 = vbcast.lane.b32.xlu0 %v10890, %s10895
    %v10897 = vpop.permute.xlu0 %10896
    %v10898 = vlaneseq
    %v10899 = vshrl.u32 %v10898, 7
    %v10900 = vsub.s32 0, %v10899
    %v10901 = vrot.slane %v10633, %v10900
    %10903 = vbcast.lane.b32.xlu0 %v10901, 256
    %v10904 = vpop.permute.xlu0 %10903
    %s10906 = sor.u32 256, 8
    %10907 = vbcast.lane.b32.xlu0 %v10901, %s10906
    %v10908 = vpop.permute.xlu0 %10907
    %v10909 = vlaneseq
    %v10910 = vshrl.u32 %v10909, 7
    %v10911 = vsub.s32 1, %v10910
    %v10912 = vrot.slane %v10633, %v10911
    %10914 = vbcast.lane.b32.xlu0 %v10912, 256
    %v10915 = vpop.permute.xlu0 %10914
    %s10917 = sor.u32 256, 8
    %10918 = vbcast.lane.b32.xlu0 %v10912, %s10917
    %v10919 = vpop.permute.xlu0 %10918
    %v10920 = vlaneseq
    %v10921 = vshrl.u32 %v10920, 7
    %v10922 = vsub.s32 2, %v10921
    %v10923 = vrot.slane %v10633, %v10922
    %10925 = vbcast.lane.b32.xlu0 %v10923, 256
    %v10926 = vpop.permute.xlu0 %10925
    %s10928 = sor.u32 256, 8
    %10929 = vbcast.lane.b32.xlu0 %v10923, %s10928
    %v10930 = vpop.permute.xlu0 %10929
    %v10931 = vlaneseq
    %v10932 = vshrl.u32 %v10931, 7
    %v10933 = vsub.s32 3, %v10932
    %v10934 = vrot.slane %v10633, %v10933
    %10936 = vbcast.lane.b32.xlu0 %v10934, 256
    %v10937 = vpop.permute.xlu0 %10936
    %s10939 = sor.u32 256, 8
    %10940 = vbcast.lane.b32.xlu0 %v10934, %s10939
    %v10941 = vpop.permute.xlu0 %10940
    %v10942 = vlaneseq
    %v10943 = vshrl.u32 %v10942, 7
    %v10944 = vsub.s32 4, %v10943
    %v10945 = vrot.slane %v10633, %v10944
    %10947 = vbcast.lane.b32.xlu0 %v10945, 256
    %v10948 = vpop.permute.xlu0 %10947
    %s10950 = sor.u32 256, 8
    %10951 = vbcast.lane.b32.xlu0 %v10945, %s10950
    %v10952 = vpop.permute.xlu0 %10951
    %v10953 = vlaneseq
    %v10954 = vshrl.u32 %v10953, 7
    %v10955 = vsub.s32 5, %v10954
    %v10956 = vrot.slane %v10633, %v10955
    %10958 = vbcast.lane.b32.xlu0 %v10956, 256
    %v10959 = vpop.permute.xlu0 %10958
    %s10961 = sor.u32 256, 8
    %10962 = vbcast.lane.b32.xlu0 %v10956, %s10961
    %v10963 = vpop.permute.xlu0 %10962
    %v10964 = vlaneseq
    %v10965 = vshrl.u32 %v10964, 7
    %v10966 = vsub.s32 6, %v10965
    %v10967 = vrot.slane %v10633, %v10966
    %10969 = vbcast.lane.b32.xlu0 %v10967, 256
    %v10970 = vpop.permute.xlu0 %10969
    %s10972 = sor.u32 256, 8
    %10973 = vbcast.lane.b32.xlu0 %v10967, %s10972
    %v10974 = vpop.permute.xlu0 %10973
    %v10975 = vlaneseq
    %v10976 = vshrl.u32 %v10975, 7
    %v10977 = vsub.s32 7, %v10976
    %v10978 = vrot.slane %v10633, %v10977
    %10980 = vbcast.lane.b32.xlu0 %v10978, 256
    %v10981 = vpop.permute.xlu0 %10980
    %s10983 = sor.u32 256, 8
    %10984 = vbcast.lane.b32.xlu0 %v10978, %s10983
    %v10985 = vpop.permute.xlu0 %10984
    %v10986 = vmul.f32 %v8501, %v10640
    %v10987 = vmul.f32 %v8502, %v10644
    %v10988 = vmul.f32 %v8503, %v10651
    %v10989 = vmul.f32 %v8504, %v10655
    %v10990 = vmul.f32 %v8505, %v10662
    %v10991 = vmul.f32 %v8506, %v10666
    %v10992 = vmul.f32 %v8507, %v10673
    %v10993 = vmul.f32 %v8508, %v10677
    %v10994 = vmul.f32 %v8509, %v10684
    %v10995 = vmul.f32 %v8510, %v10688
    %v10996 = vmul.f32 %v8511, %v10695
    %v10997 = vmul.f32 %v8512, %v10699
    %v10998 = vmul.f32 %v8513, %v10706
    %v10999 = vmul.f32 %v8514, %v10710
    %v11000 = vmul.f32 %v8515, %v10717
    %v11001 = vmul.f32 %v8516, %v10721
    %v11002 = vmul.f32 %v8517, %v10728
    %v11003 = vmul.f32 %v8518, %v10732
    %v11004 = vmul.f32 %v8519, %v10739
    %v11005 = vmul.f32 %v8520, %v10743
    %v11006 = vmul.f32 %v8521, %v10750
    %v11007 = vmul.f32 %v8522, %v10754
    %v11008 = vmul.f32 %v8523, %v10761
    %v11009 = vmul.f32 %v8524, %v10765
    %v11010 = vmul.f32 %v8525, %v10772
    %v11011 = vmul.f32 %v8526, %v10776
    %v11012 = vmul.f32 %v8527, %v10783
    %v11013 = vmul.f32 %v8528, %v10787
    %v11014 = vmul.f32 %v8529, %v10794
    %v11015 = vmul.f32 %v8530, %v10798
    %v11016 = vmul.f32 %v8531, %v10805
    %v11017 = vmul.f32 %v8532, %v10809
    %v11018 = vmul.f32 %v8533, %v10816
    %v11019 = vmul.f32 %v8534, %v10820
    %v11020 = vmul.f32 %v8535, %v10827
    %v11021 = vmul.f32 %v8536, %v10831
    %v11022 = vmul.f32 %v8537, %v10838
    %v11023 = vmul.f32 %v8538, %v10842
    %v11024 = vmul.f32 %v8539, %v10849
    %v11025 = vmul.f32 %v8540, %v10853
    %v11026 = vmul.f32 %v8541, %v10860
    %v11027 = vmul.f32 %v8542, %v10864
    %v11028 = vmul.f32 %v8543, %v10871
    %v11029 = vmul.f32 %v8544, %v10875
    %v11030 = vmul.f32 %v8545, %v10882
    %v11031 = vmul.f32 %v8546, %v10886
    %v11032 = vmul.f32 %v8547, %v10893
    %v11033 = vmul.f32 %v8548, %v10897
    %v11034 = vmul.f32 %v8549, %v10904
    %v11035 = vmul.f32 %v8550, %v10908
    %v11036 = vmul.f32 %v8551, %v10915
    %v11037 = vmul.f32 %v8552, %v10919
    %v11038 = vmul.f32 %v8553, %v10926
    %v11039 = vmul.f32 %v8554, %v10930
    %v11040 = vmul.f32 %v8555, %v10937
    %v11041 = vmul.f32 %v8556, %v10941
    %v11042 = vmul.f32 %v8557, %v10948
    %v11043 = vmul.f32 %v8558, %v10952
    %v11044 = vmul.f32 %v8559, %v10959
    %v11045 = vmul.f32 %v8560, %v10963
    %v11046 = vmul.f32 %v8561, %v10970
    %v11047 = vmul.f32 %v8562, %v10974
    %v11048 = vmul.f32 %v8563, %v10981
    %v11049 = vmul.f32 %v8564, %v10985
    %11050 = vst.msk [vmem:[#allocation5] sm:$0xff] %vm218, %v10986
    %11051 = vst.msk [vmem:[#allocation5 + $0x8] sm:$0xff] %vm218, %v10987
    %11052 = vst.msk [vmem:[#allocation5 + $0x10] sm:$0xff] %vm218, %v10988
    %11053 = vst.msk [vmem:[#allocation5 + $0x18] sm:$0xff] %vm218, %v10989
    %11054 = vst.msk [vmem:[#allocation5 + $0x20] sm:$0xff] %vm218, %v10990
    %11055 = vst.msk [vmem:[#allocation5 + $0x28] sm:$0xff] %vm218, %v10991
    %11056 = vst.msk [vmem:[#allocation5 + $0x30] sm:$0xff] %vm218, %v10992
    %11057 = vst.msk [vmem:[#allocation5 + $0x38] sm:$0xff] %vm218, %v10993
    %11058 = vst.msk [vmem:[#allocation5 + $0x40] sm:$0xff] %vm218, %v10994
    %11059 = vst.msk [vmem:[#allocation5 + $0x48] sm:$0xff] %vm218, %v10995
    %11060 = vst.msk [vmem:[#allocation5 + $0x50] sm:$0xff] %vm218, %v10996
    %11061 = vst.msk [vmem:[#allocation5 + $0x58] sm:$0xff] %vm218, %v10997
    %11062 = vst.msk [vmem:[#allocation5 + $0x60] sm:$0xff] %vm218, %v10998
    %11063 = vst.msk [vmem:[#allocation5 + $0x68] sm:$0xff] %vm218, %v10999
    %11064 = vst.msk [vmem:[#allocation5 + $0x70] sm:$0xff] %vm218, %v11000
    %11065 = vst.msk [vmem:[#allocation5 + $0x78] sm:$0xff] %vm218, %v11001
    %11066 = vst.msk [vmem:[#allocation5 + $0x80] sm:$0xff] %vm218, %v11002
    %11067 = vst.msk [vmem:[#allocation5 + $0x88] sm:$0xff] %vm218, %v11003
    %11068 = vst.msk [vmem:[#allocation5 + $0x90] sm:$0xff] %vm218, %v11004
    %11069 = vst.msk [vmem:[#allocation5 + $0x98] sm:$0xff] %vm218, %v11005
    %11070 = vst.msk [vmem:[#allocation5 + $0xa0] sm:$0xff] %vm218, %v11006
    %11071 = vst.msk [vmem:[#allocation5 + $0xa8] sm:$0xff] %vm218, %v11007
    %11072 = vst.msk [vmem:[#allocation5 + $0xb0] sm:$0xff] %vm218, %v11008
    %11073 = vst.msk [vmem:[#allocation5 + $0xb8] sm:$0xff] %vm218, %v11009
    %11074 = vst.msk [vmem:[#allocation5 + $0xc0] sm:$0xff] %vm218, %v11010
    %11075 = vst.msk [vmem:[#allocation5 + $0xc8] sm:$0xff] %vm218, %v11011
    %11076 = vst.msk [vmem:[#allocation5 + $0xd0] sm:$0xff] %vm218, %v11012
    %11077 = vst.msk [vmem:[#allocation5 + $0xd8] sm:$0xff] %vm218, %v11013
    %11078 = vst.msk [vmem:[#allocation5 + $0xe0] sm:$0xff] %vm218, %v11014
    %11079 = vst.msk [vmem:[#allocation5 + $0xe8] sm:$0xff] %vm218, %v11015
    %11080 = vst.msk [vmem:[#allocation5 + $0xf0] sm:$0xff] %vm218, %v11016
    %11081 = vst.msk [vmem:[#allocation5 + $0xf8] sm:$0xff] %vm218, %v11017
    %11082 = vst.msk [vmem:[#allocation5 + $0x100] sm:$0xff] %vm218, %v11018
    %11083 = vst.msk [vmem:[#allocation5 + $0x108] sm:$0xff] %vm218, %v11019
    %11084 = vst.msk [vmem:[#allocation5 + $0x110] sm:$0xff] %vm218, %v11020
    %11085 = vst.msk [vmem:[#allocation5 + $0x118] sm:$0xff] %vm218, %v11021
    %11086 = vst.msk [vmem:[#allocation5 + $0x120] sm:$0xff] %vm218, %v11022
    %11087 = vst.msk [vmem:[#allocation5 + $0x128] sm:$0xff] %vm218, %v11023
    %11088 = vst.msk [vmem:[#allocation5 + $0x130] sm:$0xff] %vm218, %v11024
    %11089 = vst.msk [vmem:[#allocation5 + $0x138] sm:$0xff] %vm218, %v11025
    %11090 = vst.msk [vmem:[#allocation5 + $0x140] sm:$0xff] %vm218, %v11026
    %11091 = vst.msk [vmem:[#allocation5 + $0x148] sm:$0xff] %vm218, %v11027
    %11092 = vst.msk [vmem:[#allocation5 + $0x150] sm:$0xff] %vm218, %v11028
    %11093 = vst.msk [vmem:[#allocation5 + $0x158] sm:$0xff] %vm218, %v11029
    %11094 = vst.msk [vmem:[#allocation5 + $0x160] sm:$0xff] %vm218, %v11030
    %11095 = vst.msk [vmem:[#allocation5 + $0x168] sm:$0xff] %vm218, %v11031
    %11096 = vst.msk [vmem:[#allocation5 + $0x170] sm:$0xff] %vm218, %v11032
    %11097 = vst.msk [vmem:[#allocation5 + $0x178] sm:$0xff] %vm218, %v11033
    %11098 = vst.msk [vmem:[#allocation5 + $0x180] sm:$0xff] %vm218, %v11034
    %11099 = vst.msk [vmem:[#allocation5 + $0x188] sm:$0xff] %vm218, %v11035
    %11100 = vst.msk [vmem:[#allocation5 + $0x190] sm:$0xff] %vm218, %v11036
    %11101 = vst.msk [vmem:[#allocation5 + $0x198] sm:$0xff] %vm218, %v11037
    %11102 = vst.msk [vmem:[#allocation5 + $0x1a0] sm:$0xff] %vm218, %v11038
    %11103 = vst.msk [vmem:[#allocation5 + $0x1a8] sm:$0xff] %vm218, %v11039
    %11104 = vst.msk [vmem:[#allocation5 + $0x1b0] sm:$0xff] %vm218, %v11040
    %11105 = vst.msk [vmem:[#allocation5 + $0x1b8] sm:$0xff] %vm218, %v11041
    %11106 = vst.msk [vmem:[#allocation5 + $0x1c0] sm:$0xff] %vm218, %v11042
    %11107 = vst.msk [vmem:[#allocation5 + $0x1c8] sm:$0xff] %vm218, %v11043
    %11108 = vst.msk [vmem:[#allocation5 + $0x1d0] sm:$0xff] %vm218, %v11044
    %11109 = vst.msk [vmem:[#allocation5 + $0x1d8] sm:$0xff] %vm218, %v11045
    %11110 = vst.msk [vmem:[#allocation5 + $0x1e0] sm:$0xff] %vm218, %v11046
    %11111 = vst.msk [vmem:[#allocation5 + $0x1e8] sm:$0xff] %vm218, %v11047
    %11112 = vst.msk [vmem:[#allocation5 + $0x1f0] sm:$0xff] %vm218, %v11048
    %11113 = vst.msk [vmem:[#allocation5 + $0x1f8] sm:$0xff] %vm218, %v11049
    // Predicated region
    $region50: #{up_forward.1} parent=1 // pred_check
      _
    $region51: #{up_forward.1} parent=1 // pred_check_branch
      %11115 = sbr.rel (0) target = $region53
    $region52: #{up_forward.1} parent=1 // pred_region
      %s11117 = ssub.s32 8192, 8192
      %11118 = vsyncadd [#allocation6], %s11117
      %s11119 = sshll.u32 [#allocation5], 4
      %s11120 = int_to_ptr.vmem [resolvable:$true] %s11119
      %11125 = dma.vmem_to_hbm [thread:$0]  %s11120, 8192, %s12, [#allocation6], 128, 128, 8
    $region53: #{up_forward.1} parent=1 // pred_fallthru
      _
    // Predicated region
    $region54: #{up_forward.1} parent=1 // pred_check
      _
    $region55: #{up_forward.1} parent=1 // pred_check_branch
      %11127 = sbr.rel (0) target = $region57
    $region56: #{up_forward.1} parent=1 // pred_region
      %11128 = dma.done [#allocation6], 8192
    $region57: #{up_forward.1} parent=1 // pred_fallthru
      _
    %11129 = vsyncpa [#allocation6], 1

</llo_original>
